<compile_context>
chip_gen: v7x
topology: tpu7x:2x2x1
jax: 0.10.0
libtpu: 0.0.40
codegen_flags: <defaults>
</compile_context>

<pallas_src>
import jax
import jax.numpy as jnp
import numpy as np
from jax import lax
from jax.experimental import pallas as pl
from jax.experimental.pallas import tpu as pltpu


def fused_cnn_kernel(x_ref, w1v_ref, b1v_ref, w2v_ref, b2v_ref, wl3_ref, bl_ref,
                     o_ref, p1_scr, p2_scr, ps1, pt1, ps2, pt2, act_scr):
    # x_ref   : (Bt, 1, 32, 32)  input images
    # w1v_ref : (9, 128)   conv1 weights, lane-broadcast per tap  [co*32+l] = w1[co,0,di,dj]
    # b1v_ref : (1, 128)   conv1 bias, lane-broadcast             [co*32+l] = b1[co]
    # w2v_ref : (36, 128)  conv2 weights, lane-broadcast per tap  [co*16+l] = w2[co,ci,di,dj]
    # b2v_ref : (1, 128)   conv2 bias, lane-broadcast             [co*16+l] = b2[co]
    # wl3_ref : (8, 64, 29) linear weight permuted to (h, co*8+w, n)
    # bl_ref  : (1, 29)
    # o_ref   : (Bt, 29)
    f32 = jnp.float32
    bt = x_ref.shape[0]

    # Zero the padded-input scratches every grid step (borders must stay 0 for the
    # 3x3 halo; interiors are overwritten per image).  Unconditional so "parallel"
    # grid sharding across cores stays correct.
    p1_scr[...] = jnp.zeros(p1_scr.shape, f32)      # (34, 34)
    p2_scr[...] = jnp.zeros(p2_scr.shape, f32)      # (4, 18, 18)

    w1v = w1v_ref[...]                              # (9, 128)
    b1v = b1v_ref[...]                              # (1, 128)
    w2v = w2v_ref[...]                              # (36, 128)
    b2v = b2v_ref[...]                              # (1, 128)

    for b in range(bt):
        # ---- stage 1: conv1 (1->4, 3x3, pad 1) + ReLU, output channels on lanes ----
        p1_scr[1:33, 1:33] = x_ref[b, 0]                                  # in-kernel halo pad
        acc = jnp.zeros((32, 128), f32)
        for di in range(3):
            for dj in range(3):
                t = di * 3 + dj
                tap = p1_scr[di:di + 32, dj:dj + 32]                      # (32, 32)
                rep = jnp.concatenate([tap, tap, tap, tap], axis=1)       # (32, 128)
                acc = acc + rep * w1v[t:t + 1, :]
        acc = jnp.maximum(acc + b1v, 0.0)

        # ---- 2x2 maxpool: H via strided sublane pairs, W via transpose + strided ----
        ps1[...] = acc                                                    # (32, 128)
        hp = jnp.maximum(ps1[pl.ds(0, 16, stride=2), :],
                         ps1[pl.ds(1, 16, stride=2), :])                  # (16, 128)
        pt1[...] = hp.T                                                   # (128, 16)
        wp = jnp.maximum(pt1[pl.ds(0, 64, stride=2), :],
                         pt1[pl.ds(1, 64, stride=2), :])                  # (64, 16)
        pooled1 = wp.T                                                    # (16, 64) = (h, ci*16+w)

        # ---- stage 2 input: per-channel zero-padded 18x18 planes (VMEM scratch) ----
        for ci in range(4):
            p2_scr[ci, 1:17, 1:17] = pooled1[:, 16 * ci:16 * ci + 16]

        # ---- stage 2: conv2 (4->8, 3x3, pad 1) + ReLU, output channels on lanes ----
        acc2 = jnp.zeros((16, 128), f32)
        for ci in range(4):
            for di in range(3):
                for dj in range(3):
                    t = ci * 9 + di * 3 + dj
                    tap = p2_scr[ci, di:di + 16, dj:dj + 16]              # (16, 16)
                    rep = jnp.concatenate([tap] * 8, axis=1)              # (16, 128)
                    acc2 = acc2 + rep * w2v[t:t + 1, :]
        acc2 = jnp.maximum(acc2 + b2v, 0.0)

        ps2[...] = acc2                                                   # (16, 128)
        hp2 = jnp.maximum(ps2[pl.ds(0, 8, stride=2), :],
                          ps2[pl.ds(1, 8, stride=2), :])                  # (8, 128)
        pt2[...] = hp2.T                                                  # (128, 8)
        wp2 = jnp.maximum(pt2[pl.ds(0, 64, stride=2), :],
                          pt2[pl.ds(1, 64, stride=2), :])                 # (64, 8)
        act_scr[b] = wp2.T                                                # (8, 64) = (h, co*8+w)

    # ---- stage 3: linear 512 -> 29 on the MXU (weights pre-permuted to match) ----
    out = jnp.zeros((bt, 29), f32)
    for h in range(8):
        out = out + jnp.dot(act_scr[:, h, :], wl3_ref[h],
                            preferred_element_type=f32)
    o_ref[...] = out + bl_ref[...]


def prepare_params(w1, b1, w2, b2, wl, bl):
    """One-time (model-load) weight re-layout: keep all reshapes/transposes out of
    the jit'd forward pass."""
    f32 = jnp.float32
    # conv1: w1v[di*3+dj, co*32+l] = w1[co, 0, di, dj]
    w1v = jnp.repeat(w1.astype(f32).reshape(4, 9).T, 32, axis=1)          # (9, 128)
    b1v = jnp.repeat(b1.astype(f32), 32).reshape(1, 128)                  # (1, 128)
    # conv2: w2v[ci*9+di*3+dj, co*16+l] = w2[co, ci, di, dj]
    w2v = jnp.repeat(w2.astype(f32).transpose(1, 2, 3, 0).reshape(36, 8),
                     16, axis=1)                                          # (36, 128)
    b2v = jnp.repeat(b2.astype(f32), 16).reshape(1, 128)                  # (1, 128)
    # linear: wl3[h, co*8+w, n] = wl[n, co*64 + h*8 + w]  (matches torch .view order)
    wl3 = wl.astype(f32).reshape(29, 8, 8, 8).transpose(2, 1, 3, 0).reshape(8, 64, 29)
    bl2 = bl.astype(f32).reshape(1, 29)
    return (w1v, b1v, w2v, b2v, wl3, bl2)


@jax.jit
def cnn_forward(x, params):
    w1v, b1v, w2v, b2v, wl3, bl2 = params
    f32 = jnp.float32
    x = x.astype(f32)
    B = x.shape[0]
    # Batch tile: amortize per-grid-step overhead; pad batch if needed.
    Bt = 8 if B >= 8 else B
    Bp = ((B + Bt - 1) // Bt) * Bt
    if Bp != B:
        x = jnp.pad(x, ((0, Bp - B), (0, 0), (0, 0), (0, 0)))

    out = pl.pallas_call(
        fused_cnn_kernel,
        out_shape=jax.ShapeDtypeStruct((Bp, 29), f32),
        grid=(Bp // Bt,),
        in_specs=[
            pl.BlockSpec((Bt, 1, 32, 32), lambda i: (i, 0, 0, 0)),
            pl.BlockSpec((9, 128), lambda i: (0, 0)),
            pl.BlockSpec((1, 128), lambda i: (0, 0)),
            pl.BlockSpec((36, 128), lambda i: (0, 0)),
            pl.BlockSpec((1, 128), lambda i: (0, 0)),
            pl.BlockSpec((8, 64, 29), lambda i: (0, 0, 0)),
            pl.BlockSpec((1, 29), lambda i: (0, 0)),
        ],
        out_specs=pl.BlockSpec((Bt, 29), lambda i: (i, 0)),
        scratch_shapes=[
            pltpu.VMEM((34, 34), f32),        # padded conv1 input
            pltpu.VMEM((4, 18, 18), f32),     # padded conv2 input (per in-channel)
            pltpu.VMEM((32, 128), f32),       # conv1 accumulator (for strided pool)
            pltpu.VMEM((128, 16), f32),       # conv1 pool transpose buffer
            pltpu.VMEM((16, 128), f32),       # conv2 accumulator (for strided pool)
            pltpu.VMEM((128, 8), f32),        # conv2 pool transpose buffer
            pltpu.VMEM((Bt, 8, 64), f32),     # lane-packed activations for the linear
        ],
        compiler_params=pltpu.CompilerParams(dimension_semantics=("parallel",)),
    )(x, w1v, b1v, w2v, b2v, wl3, bl2)
    return out[:B]


def reference(x, w1, b1, w2, b2, wl, bl):
    """Pure-JAX reference mirroring the PyTorch forward pass."""
    dn = ("NCHW", "OIHW", "NCHW")
    hi = lax.Precision.HIGHEST
    y = lax.conv_general_dilated(x, w1, (1, 1), ((1, 1), (1, 1)),
                                 dimension_numbers=dn, precision=hi)
    y = jnp.maximum(y + b1[None, :, None, None], 0.0)
    y = lax.reduce_window(y, -jnp.inf, lax.max, (1, 1, 2, 2), (1, 1, 2, 2), "VALID")
    y = lax.conv_general_dilated(y, w2, (1, 1), ((1, 1), (1, 1)),
                                 dimension_numbers=dn, precision=hi)
    y = jnp.maximum(y + b2[None, :, None, None], 0.0)
    y = lax.reduce_window(y, -jnp.inf, lax.max, (1, 1, 2, 2), (1, 1, 2, 2), "VALID")
    y = y.reshape(y.shape[0], -1)
    return jnp.dot(y, wl.T, precision=hi) + bl


if __name__ == "__main__":
    key = jax.random.PRNGKey(0)
    ks = jax.random.split(key, 7)
    # the Linear(8*8*8, 29) layer implies a 1x32x32 input image
    x  = jax.random.normal(ks[0], (2, 1, 32, 32), jnp.float32)
    w1 = 0.30 * jax.random.normal(ks[1], (4, 1, 3, 3), jnp.float32)
    b1 = 0.10 * jax.random.normal(ks[2], (4,), jnp.float32)
    w2 = 0.20 * jax.random.normal(ks[3], (8, 4, 3, 3), jnp.float32)
    b2 = 0.10 * jax.random.normal(ks[4], (8,), jnp.float32)
    wl = 0.05 * jax.random.normal(ks[5], (29, 512), jnp.float32)
    bl = 0.05 * jax.random.normal(ks[6], (29,), jnp.float32)

    params = prepare_params(w1, b1, w2, b2, wl, bl)   # one-time weight re-layout
    out = cnn_forward(x, params)
    out = jax.block_until_ready(out)
    assert out.shape == (2, 29) and out.dtype == jnp.float32

    ref = reference(x, w1, b1, w2, b2, wl, bl)
    np.testing.assert_allclose(np.asarray(out), np.asarray(ref), rtol=1e-2, atol=1e-2)

    print("KERNEL_OK")
</pallas_src>

<mosaic_0001>
module attributes {stable_mosaic.version = 11 : i64} {
  func.func @fused_cnn_kernel(%arg0: i32, %arg1: memref<2x1x32x32xf32, #tpu.memory_space<vmem>>, %arg2: memref<9x128xf32, #tpu.memory_space<vmem>>, %arg3: memref<1x128xf32, #tpu.memory_space<vmem>>, %arg4: memref<36x128xf32, #tpu.memory_space<vmem>>, %arg5: memref<1x128xf32, #tpu.memory_space<vmem>>, %arg6: memref<8x64x29xf32, #tpu.memory_space<vmem>>, %arg7: memref<1x29xf32, #tpu.memory_space<vmem>>, %arg8: memref<2x29xf32, #tpu.memory_space<vmem>>, %arg9: memref<34x34xf32, #tpu.memory_space<vmem>>, %arg10: memref<4x18x18xf32, #tpu.memory_space<vmem>>, %arg11: memref<32x128xf32, #tpu.memory_space<vmem>>, %arg12: memref<128x16xf32, #tpu.memory_space<vmem>>, %arg13: memref<16x128xf32, #tpu.memory_space<vmem>>, %arg14: memref<128x8xf32, #tpu.memory_space<vmem>>, %arg15: memref<2x8x64xf32, #tpu.memory_space<vmem>>) attributes {dimension_semantics = [#tpu.dimension_semantics<parallel>], iteration_bounds = array<i64: 1>, scalar_prefetch = 0 : i64, scratch_operands = 7 : i64, tpu.core_type = #tpu.core_type<tc>, window_params = [{transform_indices = @transform_0, window_bounds = array<i64: 2, 1, 32, 32>}, {pipeline_mode = #tpu.pipeline_mode<synchronous>, transform_indices = @transform_1, window_bounds = array<i64: 9, 128>}, {pipeline_mode = #tpu.pipeline_mode<synchronous>, transform_indices = @transform_2, window_bounds = array<i64: 1, 128>}, {pipeline_mode = #tpu.pipeline_mode<synchronous>, transform_indices = @transform_3, window_bounds = array<i64: 36, 128>}, {pipeline_mode = #tpu.pipeline_mode<synchronous>, transform_indices = @transform_4, window_bounds = array<i64: 1, 128>}, {pipeline_mode = #tpu.pipeline_mode<synchronous>, transform_indices = @transform_5, window_bounds = array<i64: 8, 64, 29>}, {pipeline_mode = #tpu.pipeline_mode<synchronous>, transform_indices = @transform_6, window_bounds = array<i64: 1, 29>}, {transform_indices = @transform_7, window_bounds = array<i64: 2, 29>}]} {
    %cst = arith.constant 0.000000e+00 : f32
    %0 = vector.broadcast %cst : f32 to vector<34x34xf32>
    %c0 = arith.constant 0 : index
    %c0_0 = arith.constant 0 : index
    %1 = vector.load %arg9[%c0, %c0_0] : memref<34x34xf32, #tpu.memory_space<vmem>>, vector<34x34xf32>
    tpu.vector_store %arg9[%c0, %c0_0], %0 {strides = array<i32>} : memref<34x34xf32, #tpu.memory_space<vmem>>, vector<34x34xf32>,
    %cst_1 = arith.constant 0.000000e+00 : f32
    %2 = vector.broadcast %cst_1 : f32 to vector<4x18x18xf32>
    %c0_2 = arith.constant 0 : index
    %c0_3 = arith.constant 0 : index
    %c0_4 = arith.constant 0 : index
    %3 = vector.load %arg10[%c0_2, %c0_3, %c0_4] : memref<4x18x18xf32, #tpu.memory_space<vmem>>, vector<4x18x18xf32>
    tpu.vector_store %arg10[%c0_2, %c0_3, %c0_4], %2 {strides = array<i32>} : memref<4x18x18xf32, #tpu.memory_space<vmem>>, vector<4x18x18xf32>,
    %c0_5 = arith.constant 0 : index
    %c0_6 = arith.constant 0 : index
    %4 = vector.load %arg2[%c0_5, %c0_6] : memref<9x128xf32, #tpu.memory_space<vmem>>, vector<9x128xf32>
    %c0_7 = arith.constant 0 : index
    %c0_8 = arith.constant 0 : index
    %5 = vector.load %arg3[%c0_7, %c0_8] : memref<1x128xf32, #tpu.memory_space<vmem>>, vector<1x128xf32>
    %c0_9 = arith.constant 0 : index
    %c0_10 = arith.constant 0 : index
    %6 = vector.load %arg4[%c0_9, %c0_10] : memref<36x128xf32, #tpu.memory_space<vmem>>, vector<36x128xf32>
    %c0_11 = arith.constant 0 : index
    %c0_12 = arith.constant 0 : index
    %7 = vector.load %arg5[%c0_11, %c0_12] : memref<1x128xf32, #tpu.memory_space<vmem>>, vector<1x128xf32>
    %c0_13 = arith.constant 0 : index
    %c0_14 = arith.constant 0 : index
    %c0_15 = arith.constant 0 : index
    %c0_16 = arith.constant 0 : index
    %8 = vector.load %arg1[%c0_13, %c0_14, %c0_15, %c0_16] : memref<2x1x32x32xf32, #tpu.memory_space<vmem>>, vector<1x1x32x32xf32>
    %9 = vector.shape_cast %8 : vector<1x1x32x32xf32> to vector<32x32xf32>
    %c1 = arith.constant 1 : index
    %c1_17 = arith.constant 1 : index
    %10 = vector.load %arg9[%c1, %c1_17] : memref<34x34xf32, #tpu.memory_space<vmem>>, vector<32x32xf32>
    tpu.vector_store %arg9[%c1, %c1_17], %9 {strides = array<i32>} : memref<34x34xf32, #tpu.memory_space<vmem>>, vector<32x32xf32>,
    %cst_18 = arith.constant 0.000000e+00 : f32
    %11 = vector.broadcast %cst_18 : f32 to vector<32x128xf32>
    %c0_19 = arith.constant 0 : index
    %c0_20 = arith.constant 0 : index
    %12 = vector.load %arg9[%c0_19, %c0_20] : memref<34x34xf32, #tpu.memory_space<vmem>>, vector<32x32xf32>
    %13 = tpu.concatenate %12, %12, %12, %12 in 1 : vector<32x32xf32>, vector<32x32xf32>, vector<32x32xf32>, vector<32x32xf32> -> vector<32x128xf32>
    %14 = vector.extract_strided_slice %4 {offsets = [0, 0], sizes = [1, 128], strides = [1, 1]} : vector<9x128xf32> to vector<1x128xf32>
    %15 = vector.broadcast %14 : vector<1x128xf32> to vector<32x128xf32>
    %16 = arith.mulf %13, %15 : vector<32x128xf32>
    %17 = arith.addf %11, %16 : vector<32x128xf32>
    %c0_21 = arith.constant 0 : index
    %c1_22 = arith.constant 1 : index
    %18 = vector.load %arg9[%c0_21, %c1_22] : memref<34x34xf32, #tpu.memory_space<vmem>>, vector<32x32xf32>
    %19 = tpu.concatenate %18, %18, %18, %18 in 1 : vector<32x32xf32>, vector<32x32xf32>, vector<32x32xf32>, vector<32x32xf32> -> vector<32x128xf32>
    %20 = vector.extract_strided_slice %4 {offsets = [1, 0], sizes = [1, 128], strides = [1, 1]} : vector<9x128xf32> to vector<1x128xf32>
    %21 = vector.broadcast %20 : vector<1x128xf32> to vector<32x128xf32>
    %22 = arith.mulf %19, %21 : vector<32x128xf32>
    %23 = arith.addf %17, %22 : vector<32x128xf32>
    %c0_23 = arith.constant 0 : index
    %c2 = arith.constant 2 : index
    %24 = vector.load %arg9[%c0_23, %c2] : memref<34x34xf32, #tpu.memory_space<vmem>>, vector<32x32xf32>
    %25 = tpu.concatenate %24, %24, %24, %24 in 1 : vector<32x32xf32>, vector<32x32xf32>, vector<32x32xf32>, vector<32x32xf32> -> vector<32x128xf32>
    %26 = vector.extract_strided_slice %4 {offsets = [2, 0], sizes = [1, 128], strides = [1, 1]} : vector<9x128xf32> to vector<1x128xf32>
    %27 = vector.broadcast %26 : vector<1x128xf32> to vector<32x128xf32>
    %28 = arith.mulf %25, %27 : vector<32x128xf32>
    %29 = arith.addf %23, %28 : vector<32x128xf32>
    %c1_24 = arith.constant 1 : index
    %c0_25 = arith.constant 0 : index
    %30 = vector.load %arg9[%c1_24, %c0_25] : memref<34x34xf32, #tpu.memory_space<vmem>>, vector<32x32xf32>
    %31 = tpu.concatenate %30, %30, %30, %30 in 1 : vector<32x32xf32>, vector<32x32xf32>, vector<32x32xf32>, vector<32x32xf32> -> vector<32x128xf32>
    %32 = vector.extract_strided_slice %4 {offsets = [3, 0], sizes = [1, 128], strides = [1, 1]} : vector<9x128xf32> to vector<1x128xf32>
    %33 = vector.broadcast %32 : vector<1x128xf32> to vector<32x128xf32>
    %34 = arith.mulf %31, %33 : vector<32x128xf32>
    %35 = arith.addf %29, %34 : vector<32x128xf32>
    %c1_26 = arith.constant 1 : index
    %c1_27 = arith.constant 1 : index
    %36 = vector.load %arg9[%c1_26, %c1_27] : memref<34x34xf32, #tpu.memory_space<vmem>>, vector<32x32xf32>
    %37 = tpu.concatenate %36, %36, %36, %36 in 1 : vector<32x32xf32>, vector<32x32xf32>, vector<32x32xf32>, vector<32x32xf32> -> vector<32x128xf32>
    %38 = vector.extract_strided_slice %4 {offsets = [4, 0], sizes = [1, 128], strides = [1, 1]} : vector<9x128xf32> to vector<1x128xf32>
    %39 = vector.broadcast %38 : vector<1x128xf32> to vector<32x128xf32>
    %40 = arith.mulf %37, %39 : vector<32x128xf32>
    %41 = arith.addf %35, %40 : vector<32x128xf32>
    %c1_28 = arith.constant 1 : index
    %c2_29 = arith.constant 2 : index
    %42 = vector.load %arg9[%c1_28, %c2_29] : memref<34x34xf32, #tpu.memory_space<vmem>>, vector<32x32xf32>
    %43 = tpu.concatenate %42, %42, %42, %42 in 1 : vector<32x32xf32>, vector<32x32xf32>, vector<32x32xf32>, vector<32x32xf32> -> vector<32x128xf32>
    %44 = vector.extract_strided_slice %4 {offsets = [5, 0], sizes = [1, 128], strides = [1, 1]} : vector<9x128xf32> to vector<1x128xf32>
    %45 = vector.broadcast %44 : vector<1x128xf32> to vector<32x128xf32>
    %46 = arith.mulf %43, %45 : vector<32x128xf32>
    %47 = arith.addf %41, %46 : vector<32x128xf32>
    %c2_30 = arith.constant 2 : index
    %c0_31 = arith.constant 0 : index
    %48 = vector.load %arg9[%c2_30, %c0_31] : memref<34x34xf32, #tpu.memory_space<vmem>>, vector<32x32xf32>
    %49 = tpu.concatenate %48, %48, %48, %48 in 1 : vector<32x32xf32>, vector<32x32xf32>, vector<32x32xf32>, vector<32x32xf32> -> vector<32x128xf32>
    %50 = vector.extract_strided_slice %4 {offsets = [6, 0], sizes = [1, 128], strides = [1, 1]} : vector<9x128xf32> to vector<1x128xf32>
    %51 = vector.broadcast %50 : vector<1x128xf32> to vector<32x128xf32>
    %52 = arith.mulf %49, %51 : vector<32x128xf32>
    %53 = arith.addf %47, %52 : vector<32x128xf32>
    %c2_32 = arith.constant 2 : index
    %c1_33 = arith.constant 1 : index
    %54 = vector.load %arg9[%c2_32, %c1_33] : memref<34x34xf32, #tpu.memory_space<vmem>>, vector<32x32xf32>
    %55 = tpu.concatenate %54, %54, %54, %54 in 1 : vector<32x32xf32>, vector<32x32xf32>, vector<32x32xf32>, vector<32x32xf32> -> vector<32x128xf32>
    %56 = vector.extract_strided_slice %4 {offsets = [7, 0], sizes = [1, 128], strides = [1, 1]} : vector<9x128xf32> to vector<1x128xf32>
    %57 = vector.broadcast %56 : vector<1x128xf32> to vector<32x128xf32>
    %58 = arith.mulf %55, %57 : vector<32x128xf32>
    %59 = arith.addf %53, %58 : vector<32x128xf32>
    %c2_34 = arith.constant 2 : index
    %c2_35 = arith.constant 2 : index
    %60 = vector.load %arg9[%c2_34, %c2_35] : memref<34x34xf32, #tpu.memory_space<vmem>>, vector<32x32xf32>
    %61 = tpu.concatenate %60, %60, %60, %60 in 1 : vector<32x32xf32>, vector<32x32xf32>, vector<32x32xf32>, vector<32x32xf32> -> vector<32x128xf32>
    %62 = vector.extract_strided_slice %4 {offsets = [8, 0], sizes = [1, 128], strides = [1, 1]} : vector<9x128xf32> to vector<1x128xf32>
    %63 = vector.broadcast %62 : vector<1x128xf32> to vector<32x128xf32>
    %64 = arith.mulf %61, %63 : vector<32x128xf32>
    %65 = arith.addf %59, %64 : vector<32x128xf32>
    %66 = vector.broadcast %5 : vector<1x128xf32> to vector<32x128xf32>
    %67 = arith.addf %65, %66 : vector<32x128xf32>
    %cst_36 = arith.constant 0.000000e+00 : f32
    %68 = vector.broadcast %cst_36 : f32 to vector<32x128xf32>
    %69 = arith.maximumf %67, %68 : vector<32x128xf32>
    %c0_37 = arith.constant 0 : index
    %c0_38 = arith.constant 0 : index
    %70 = vector.load %arg11[%c0_37, %c0_38] : memref<32x128xf32, #tpu.memory_space<vmem>>, vector<32x128xf32>
    tpu.vector_store %arg11[%c0_37, %c0_38], %69 {strides = array<i32>} : memref<32x128xf32, #tpu.memory_space<vmem>>, vector<32x128xf32>,
    %c0_39 = arith.constant 0 : index
    %c0_40 = arith.constant 0 : index
    %71 = tpu.strided_load %arg11[%c0_39, %c0_40] {strides = array<i32: 2, 1>} : memref<32x128xf32, #tpu.memory_space<vmem>>, vector<16x128xf32>
    %c1_41 = arith.constant 1 : index
    %c0_42 = arith.constant 0 : index
    %72 = tpu.strided_load %arg11[%c1_41, %c0_42] {strides = array<i32: 2, 1>} : memref<32x128xf32, #tpu.memory_space<vmem>>, vector<16x128xf32>
    %73 = arith.maximumf %71, %72 : vector<16x128xf32>
    %74 = tpu.transpose %73, [1, 0] : vector<16x128xf32> -> vector<128x16xf32>
    %c0_43 = arith.constant 0 : index
    %c0_44 = arith.constant 0 : index
    %75 = vector.load %arg12[%c0_43, %c0_44] : memref<128x16xf32, #tpu.memory_space<vmem>>, vector<128x16xf32>
    tpu.vector_store %arg12[%c0_43, %c0_44], %74 {strides = array<i32>} : memref<128x16xf32, #tpu.memory_space<vmem>>, vector<128x16xf32>,
    %c0_45 = arith.constant 0 : index
    %c0_46 = arith.constant 0 : index
    %76 = tpu.strided_load %arg12[%c0_45, %c0_46] {strides = array<i32: 2, 1>} : memref<128x16xf32, #tpu.memory_space<vmem>>, vector<64x16xf32>
    %c1_47 = arith.constant 1 : index
    %c0_48 = arith.constant 0 : index
    %77 = tpu.strided_load %arg12[%c1_47, %c0_48] {strides = array<i32: 2, 1>} : memref<128x16xf32, #tpu.memory_space<vmem>>, vector<64x16xf32>
    %78 = arith.maximumf %76, %77 : vector<64x16xf32>
    %79 = tpu.transpose %78, [1, 0] : vector<64x16xf32> -> vector<16x64xf32>
    %80 = vector.extract_strided_slice %79 {offsets = [0, 0], sizes = [16, 16], strides = [1, 1]} : vector<16x64xf32> to vector<16x16xf32>
    %c0_49 = arith.constant 0 : index
    %c1_50 = arith.constant 1 : index
    %c1_51 = arith.constant 1 : index
    %81 = vector.load %arg10[%c0_49, %c1_50, %c1_51] : memref<4x18x18xf32, #tpu.memory_space<vmem>>, vector<1x16x16xf32>
    %82 = vector.shape_cast %81 : vector<1x16x16xf32> to vector<16x16xf32>
    %83 = vector.shape_cast %80 : vector<16x16xf32> to vector<1x16x16xf32>
    tpu.vector_store %arg10[%c0_49, %c1_50, %c1_51], %83 {strides = array<i32>} : memref<4x18x18xf32, #tpu.memory_space<vmem>>, vector<1x16x16xf32>,
    %84 = vector.extract_strided_slice %79 {offsets = [0, 16], sizes = [16, 16], strides = [1, 1]} : vector<16x64xf32> to vector<16x16xf32>
    %c1_52 = arith.constant 1 : index
    %c1_53 = arith.constant 1 : index
    %c1_54 = arith.constant 1 : index
    %85 = vector.load %arg10[%c1_52, %c1_53, %c1_54] : memref<4x18x18xf32, #tpu.memory_space<vmem>>, vector<1x16x16xf32>
    %86 = vector.shape_cast %85 : vector<1x16x16xf32> to vector<16x16xf32>
    %87 = vector.shape_cast %84 : vector<16x16xf32> to vector<1x16x16xf32>
    tpu.vector_store %arg10[%c1_52, %c1_53, %c1_54], %87 {strides = array<i32>} : memref<4x18x18xf32, #tpu.memory_space<vmem>>, vector<1x16x16xf32>,
    %88 = vector.extract_strided_slice %79 {offsets = [0, 32], sizes = [16, 16], strides = [1, 1]} : vector<16x64xf32> to vector<16x16xf32>
    %c2_55 = arith.constant 2 : index
    %c1_56 = arith.constant 1 : index
    %c1_57 = arith.constant 1 : index
    %89 = vector.load %arg10[%c2_55, %c1_56, %c1_57] : memref<4x18x18xf32, #tpu.memory_space<vmem>>, vector<1x16x16xf32>
    %90 = vector.shape_cast %89 : vector<1x16x16xf32> to vector<16x16xf32>
    %91 = vector.shape_cast %88 : vector<16x16xf32> to vector<1x16x16xf32>
    tpu.vector_store %arg10[%c2_55, %c1_56, %c1_57], %91 {strides = array<i32>} : memref<4x18x18xf32, #tpu.memory_space<vmem>>, vector<1x16x16xf32>,
    %92 = vector.extract_strided_slice %79 {offsets = [0, 48], sizes = [16, 16], strides = [1, 1]} : vector<16x64xf32> to vector<16x16xf32>
    %c3 = arith.constant 3 : index
    %c1_58 = arith.constant 1 : index
    %c1_59 = arith.constant 1 : index
    %93 = vector.load %arg10[%c3, %c1_58, %c1_59] : memref<4x18x18xf32, #tpu.memory_space<vmem>>, vector<1x16x16xf32>
    %94 = vector.shape_cast %93 : vector<1x16x16xf32> to vector<16x16xf32>
    %95 = vector.shape_cast %92 : vector<16x16xf32> to vector<1x16x16xf32>
    tpu.vector_store %arg10[%c3, %c1_58, %c1_59], %95 {strides = array<i32>} : memref<4x18x18xf32, #tpu.memory_space<vmem>>, vector<1x16x16xf32>,
    %cst_60 = arith.constant 0.000000e+00 : f32
    %96 = vector.broadcast %cst_60 : f32 to vector<16x128xf32>
    %c0_61 = arith.constant 0 : index
    %c0_62 = arith.constant 0 : index
    %c0_63 = arith.constant 0 : index
    %97 = vector.load %arg10[%c0_61, %c0_62, %c0_63] : memref<4x18x18xf32, #tpu.memory_space<vmem>>, vector<1x16x16xf32>
    %98 = vector.shape_cast %97 : vector<1x16x16xf32> to vector<16x16xf32>
    %99 = tpu.concatenate %98, %98, %98, %98, %98, %98, %98, %98 in 1 : vector<16x16xf32>, vector<16x16xf32>, vector<16x16xf32>, vector<16x16xf32>, vector<16x16xf32>, vector<16x16xf32>, vector<16x16xf32>, vector<16x16xf32> -> vector<16x128xf32>
    %100 = vector.extract_strided_slice %6 {offsets = [0, 0], sizes = [1, 128], strides = [1, 1]} : vector<36x128xf32> to vector<1x128xf32>
    %101 = vector.broadcast %100 : vector<1x128xf32> to vector<16x128xf32>
    %102 = arith.mulf %99, %101 : vector<16x128xf32>
    %103 = arith.addf %96, %102 : vector<16x128xf32>
    %c0_64 = arith.constant 0 : index
    %c0_65 = arith.constant 0 : index
    %c1_66 = arith.constant 1 : index
    %104 = vector.load %arg10[%c0_64, %c0_65, %c1_66] : memref<4x18x18xf32, #tpu.memory_space<vmem>>, vector<1x16x16xf32>
    %105 = vector.shape_cast %104 : vector<1x16x16xf32> to vector<16x16xf32>
    %106 = tpu.concatenate %105, %105, %105, %105, %105, %105, %105, %105 in 1 : vector<16x16xf32>, vector<16x16xf32>, vector<16x16xf32>, vector<16x16xf32>, vector<16x16xf32>, vector<16x16xf32>, vector<16x16xf32>, vector<16x16xf32> -> vector<16x128xf32>
    %107 = vector.extract_strided_slice %6 {offsets = [1, 0], sizes = [1, 128], strides = [1, 1]} : vector<36x128xf32> to vector<1x128xf32>
    %108 = vector.broadcast %107 : vector<1x128xf32> to vector<16x128xf32>
    %109 = arith.mulf %106, %108 : vector<16x128xf32>
    %110 = arith.addf %103, %109 : vector<16x128xf32>
    %c0_67 = arith.constant 0 : index
    %c0_68 = arith.constant 0 : index
    %c2_69 = arith.constant 2 : index
    %111 = vector.load %arg10[%c0_67, %c0_68, %c2_69] : memref<4x18x18xf32, #tpu.memory_space<vmem>>, vector<1x16x16xf32>
    %112 = vector.shape_cast %111 : vector<1x16x16xf32> to vector<16x16xf32>
    %113 = tpu.concatenate %112, %112, %112, %112, %112, %112, %112, %112 in 1 : vector<16x16xf32>, vector<16x16xf32>, vector<16x16xf32>, vector<16x16xf32>, vector<16x16xf32>, vector<16x16xf32>, vector<16x16xf32>, vector<16x16xf32> -> vector<16x128xf32>
    %114 = vector.extract_strided_slice %6 {offsets = [2, 0], sizes = [1, 128], strides = [1, 1]} : vector<36x128xf32> to vector<1x128xf32>
    %115 = vector.broadcast %114 : vector<1x128xf32> to vector<16x128xf32>
    %116 = arith.mulf %113, %115 : vector<16x128xf32>
    %117 = arith.addf %110, %116 : vector<16x128xf32>
    %c0_70 = arith.constant 0 : index
    %c1_71 = arith.constant 1 : index
    %c0_72 = arith.constant 0 : index
    %118 = vector.load %arg10[%c0_70, %c1_71, %c0_72] : memref<4x18x18xf32, #tpu.memory_space<vmem>>, vector<1x16x16xf32>
    %119 = vector.shape_cast %118 : vector<1x16x16xf32> to vector<16x16xf32>
    %120 = tpu.concatenate %119, %119, %119, %119, %119, %119, %119, %119 in 1 : vector<16x16xf32>, vector<16x16xf32>, vector<16x16xf32>, vector<16x16xf32>, vector<16x16xf32>, vector<16x16xf32>, vector<16x16xf32>, vector<16x16xf32> -> vector<16x128xf32>
    %121 = vector.extract_strided_slice %6 {offsets = [3, 0], sizes = [1, 128], strides = [1, 1]} : vector<36x128xf32> to vector<1x128xf32>
    %122 = vector.broadcast %121 : vector<1x128xf32> to vector<16x128xf32>
    %123 = arith.mulf %120, %122 : vector<16x128xf32>
    %124 = arith.addf %117, %123 : vector<16x128xf32>
    %c0_73 = arith.constant 0 : index
    %c1_74 = arith.constant 1 : index
    %c1_75 = arith.constant 1 : index
    %125 = vector.load %arg10[%c0_73, %c1_74, %c1_75] : memref<4x18x18xf32, #tpu.memory_space<vmem>>, vector<1x16x16xf32>
    %126 = vector.shape_cast %125 : vector<1x16x16xf32> to vector<16x16xf32>
    %127 = tpu.concatenate %126, %126, %126, %126, %126, %126, %126, %126 in 1 : vector<16x16xf32>, vector<16x16xf32>, vector<16x16xf32>, vector<16x16xf32>, vector<16x16xf32>, vector<16x16xf32>, vector<16x16xf32>, vector<16x16xf32> -> vector<16x128xf32>
    %128 = vector.extract_strided_slice %6 {offsets = [4, 0], sizes = [1, 128], strides = [1, 1]} : vector<36x128xf32> to vector<1x128xf32>
    %129 = vector.broadcast %128 : vector<1x128xf32> to vector<16x128xf32>
    %130 = arith.mulf %127, %129 : vector<16x128xf32>
    %131 = arith.addf %124, %130 : vector<16x128xf32>
    %c0_76 = arith.constant 0 : index
    %c1_77 = arith.constant 1 : index
    %c2_78 = arith.constant 2 : index
    %132 = vector.load %arg10[%c0_76, %c1_77, %c2_78] : memref<4x18x18xf32, #tpu.memory_space<vmem>>, vector<1x16x16xf32>
    %133 = vector.shape_cast %132 : vector<1x16x16xf32> to vector<16x16xf32>
    %134 = tpu.concatenate %133, %133, %133, %133, %133, %133, %133, %133 in 1 : vector<16x16xf32>, vector<16x16xf32>, vector<16x16xf32>, vector<16x16xf32>, vector<16x16xf32>, vector<16x16xf32>, vector<16x16xf32>, vector<16x16xf32> -> vector<16x128xf32>
    %135 = vector.extract_strided_slice %6 {offsets = [5, 0], sizes = [1, 128], strides = [1, 1]} : vector<36x128xf32> to vector<1x128xf32>
    %136 = vector.broadcast %135 : vector<1x128xf32> to vector<16x128xf32>
    %137 = arith.mulf %134, %136 : vector<16x128xf32>
    %138 = arith.addf %131, %137 : vector<16x128xf32>
    %c0_79 = arith.constant 0 : index
    %c2_80 = arith.constant 2 : index
    %c0_81 = arith.constant 0 : index
    %139 = vector.load %arg10[%c0_79, %c2_80, %c0_81] : memref<4x18x18xf32, #tpu.memory_space<vmem>>, vector<1x16x16xf32>
    %140 = vector.shape_cast %139 : vector<1x16x16xf32> to vector<16x16xf32>
    %141 = tpu.concatenate %140, %140, %140, %140, %140, %140, %140, %140 in 1 : vector<16x16xf32>, vector<16x16xf32>, vector<16x16xf32>, vector<16x16xf32>, vector<16x16xf32>, vector<16x16xf32>, vector<16x16xf32>, vector<16x16xf32> -> vector<16x128xf32>
    %142 = vector.extract_strided_slice %6 {offsets = [6, 0], sizes = [1, 128], strides = [1, 1]} : vector<36x128xf32> to vector<1x128xf32>
    %143 = vector.broadcast %142 : vector<1x128xf32> to vector<16x128xf32>
    %144 = arith.mulf %141, %143 : vector<16x128xf32>
    %145 = arith.addf %138, %144 : vector<16x128xf32>
    %c0_82 = arith.constant 0 : index
    %c2_83 = arith.constant 2 : index
    %c1_84 = arith.constant 1 : index
    %146 = vector.load %arg10[%c0_82, %c2_83, %c1_84] : memref<4x18x18xf32, #tpu.memory_space<vmem>>, vector<1x16x16xf32>
    %147 = vector.shape_cast %146 : vector<1x16x16xf32> to vector<16x16xf32>
    %148 = tpu.concatenate %147, %147, %147, %147, %147, %147, %147, %147 in 1 : vector<16x16xf32>, vector<16x16xf32>, vector<16x16xf32>, vector<16x16xf32>, vector<16x16xf32>, vector<16x16xf32>, vector<16x16xf32>, vector<16x16xf32> -> vector<16x128xf32>
    %149 = vector.extract_strided_slice %6 {offsets = [7, 0], sizes = [1, 128], strides = [1, 1]} : vector<36x128xf32> to vector<1x128xf32>
    %150 = vector.broadcast %149 : vector<1x128xf32> to vector<16x128xf32>
    %151 = arith.mulf %148, %150 : vector<16x128xf32>
    %152 = arith.addf %145, %151 : vector<16x128xf32>
    %c0_85 = arith.constant 0 : index
    %c2_86 = arith.constant 2 : index
    %c2_87 = arith.constant 2 : index
    %153 = vector.load %arg10[%c0_85, %c2_86, %c2_87] : memref<4x18x18xf32, #tpu.memory_space<vmem>>, vector<1x16x16xf32>
    %154 = vector.shape_cast %153 : vector<1x16x16xf32> to vector<16x16xf32>
    %155 = tpu.concatenate %154, %154, %154, %154, %154, %154, %154, %154 in 1 : vector<16x16xf32>, vector<16x16xf32>, vector<16x16xf32>, vector<16x16xf32>, vector<16x16xf32>, vector<16x16xf32>, vector<16x16xf32>, vector<16x16xf32> -> vector<16x128xf32>
    %156 = vector.extract_strided_slice %6 {offsets = [8, 0], sizes = [1, 128], strides = [1, 1]} : vector<36x128xf32> to vector<1x128xf32>
    %157 = vector.broadcast %156 : vector<1x128xf32> to vector<16x128xf32>
    %158 = arith.mulf %155, %157 : vector<16x128xf32>
    %159 = arith.addf %152, %158 : vector<16x128xf32>
    %c1_88 = arith.constant 1 : index
    %c0_89 = arith.constant 0 : index
    %c0_90 = arith.constant 0 : index
    %160 = vector.load %arg10[%c1_88, %c0_89, %c0_90] : memref<4x18x18xf32, #tpu.memory_space<vmem>>, vector<1x16x16xf32>
    %161 = vector.shape_cast %160 : vector<1x16x16xf32> to vector<16x16xf32>
    %162 = tpu.concatenate %161, %161, %161, %161, %161, %161, %161, %161 in 1 : vector<16x16xf32>, vector<16x16xf32>, vector<16x16xf32>, vector<16x16xf32>, vector<16x16xf32>, vector<16x16xf32>, vector<16x16xf32>, vector<16x16xf32> -> vector<16x128xf32>
    %163 = vector.extract_strided_slice %6 {offsets = [9, 0], sizes = [1, 128], strides = [1, 1]} : vector<36x128xf32> to vector<1x128xf32>
    %164 = vector.broadcast %163 : vector<1x128xf32> to vector<16x128xf32>
    %165 = arith.mulf %162, %164 : vector<16x128xf32>
    %166 = arith.addf %159, %165 : vector<16x128xf32>
    %c1_91 = arith.constant 1 : index
    %c0_92 = arith.constant 0 : index
    %c1_93 = arith.constant 1 : index
    %167 = vector.load %arg10[%c1_91, %c0_92, %c1_93] : memref<4x18x18xf32, #tpu.memory_space<vmem>>, vector<1x16x16xf32>
    %168 = vector.shape_cast %167 : vector<1x16x16xf32> to vector<16x16xf32>
    %169 = tpu.concatenate %168, %168, %168, %168, %168, %168, %168, %168 in 1 : vector<16x16xf32>, vector<16x16xf32>, vector<16x16xf32>, vector<16x16xf32>, vector<16x16xf32>, vector<16x16xf32>, vector<16x16xf32>, vector<16x16xf32> -> vector<16x128xf32>
    %170 = vector.extract_strided_slice %6 {offsets = [10, 0], sizes = [1, 128], strides = [1, 1]} : vector<36x128xf32> to vector<1x128xf32>
    %171 = vector.broadcast %170 : vector<1x128xf32> to vector<16x128xf32>
    %172 = arith.mulf %169, %171 : vector<16x128xf32>
    %173 = arith.addf %166, %172 : vector<16x128xf32>
    %c1_94 = arith.constant 1 : index
    %c0_95 = arith.constant 0 : index
    %c2_96 = arith.constant 2 : index
    %174 = vector.load %arg10[%c1_94, %c0_95, %c2_96] : memref<4x18x18xf32, #tpu.memory_space<vmem>>, vector<1x16x16xf32>
    %175 = vector.shape_cast %174 : vector<1x16x16xf32> to vector<16x16xf32>
    %176 = tpu.concatenate %175, %175, %175, %175, %175, %175, %175, %175 in 1 : vector<16x16xf32>, vector<16x16xf32>, vector<16x16xf32>, vector<16x16xf32>, vector<16x16xf32>, vector<16x16xf32>, vector<16x16xf32>, vector<16x16xf32> -> vector<16x128xf32>
    %177 = vector.extract_strided_slice %6 {offsets = [11, 0], sizes = [1, 128], strides = [1, 1]} : vector<36x128xf32> to vector<1x128xf32>
    %178 = vector.broadcast %177 : vector<1x128xf32> to vector<16x128xf32>
    %179 = arith.mulf %176, %178 : vector<16x128xf32>
    %180 = arith.addf %173, %179 : vector<16x128xf32>
    %c1_97 = arith.constant 1 : index
    %c1_98 = arith.constant 1 : index
    %c0_99 = arith.constant 0 : index
    %181 = vector.load %arg10[%c1_97, %c1_98, %c0_99] : memref<4x18x18xf32, #tpu.memory_space<vmem>>, vector<1x16x16xf32>
    %182 = vector.shape_cast %181 : vector<1x16x16xf32> to vector<16x16xf32>
    %183 = tpu.concatenate %182, %182, %182, %182, %182, %182, %182, %182 in 1 : vector<16x16xf32>, vector<16x16xf32>, vector<16x16xf32>, vector<16x16xf32>, vector<16x16xf32>, vector<16x16xf32>, vector<16x16xf32>, vector<16x16xf32> -> vector<16x128xf32>
    %184 = vector.extract_strided_slice %6 {offsets = [12, 0], sizes = [1, 128], strides = [1, 1]} : vector<36x128xf32> to vector<1x128xf32>
    %185 = vector.broadcast %184 : vector<1x128xf32> to vector<16x128xf32>
    %186 = arith.mulf %183, %185 : vector<16x128xf32>
    %187 = arith.addf %180, %186 : vector<16x128xf32>
    %c1_100 = arith.constant 1 : index
    %c1_101 = arith.constant 1 : index
    %c1_102 = arith.constant 1 : index
    %188 = vector.load %arg10[%c1_100, %c1_101, %c1_102] : memref<4x18x18xf32, #tpu.memory_space<vmem>>, vector<1x16x16xf32>
    %189 = vector.shape_cast %188 : vector<1x16x16xf32> to vector<16x16xf32>
    %190 = tpu.concatenate %189, %189, %189, %189, %189, %189, %189, %189 in 1 : vector<16x16xf32>, vector<16x16xf32>, vector<16x16xf32>, vector<16x16xf32>, vector<16x16xf32>, vector<16x16xf32>, vector<16x16xf32>, vector<16x16xf32> -> vector<16x128xf32>
    %191 = vector.extract_strided_slice %6 {offsets = [13, 0], sizes = [1, 128], strides = [1, 1]} : vector<36x128xf32> to vector<1x128xf32>
    %192 = vector.broadcast %191 : vector<1x128xf32> to vector<16x128xf32>
    %193 = arith.mulf %190, %192 : vector<16x128xf32>
    %194 = arith.addf %187, %193 : vector<16x128xf32>
    %c1_103 = arith.constant 1 : index
    %c1_104 = arith.constant 1 : index
    %c2_105 = arith.constant 2 : index
    %195 = vector.load %arg10[%c1_103, %c1_104, %c2_105] : memref<4x18x18xf32, #tpu.memory_space<vmem>>, vector<1x16x16xf32>
    %196 = vector.shape_cast %195 : vector<1x16x16xf32> to vector<16x16xf32>
    %197 = tpu.concatenate %196, %196, %196, %196, %196, %196, %196, %196 in 1 : vector<16x16xf32>, vector<16x16xf32>, vector<16x16xf32>, vector<16x16xf32>, vector<16x16xf32>, vector<16x16xf32>, vector<16x16xf32>, vector<16x16xf32> -> vector<16x128xf32>
    %198 = vector.extract_strided_slice %6 {offsets = [14, 0], sizes = [1, 128], strides = [1, 1]} : vector<36x128xf32> to vector<1x128xf32>
    %199 = vector.broadcast %198 : vector<1x128xf32> to vector<16x128xf32>
    %200 = arith.mulf %197, %199 : vector<16x128xf32>
    %201 = arith.addf %194, %200 : vector<16x128xf32>
    %c1_106 = arith.constant 1 : index
    %c2_107 = arith.constant 2 : index
    %c0_108 = arith.constant 0 : index
    %202 = vector.load %arg10[%c1_106, %c2_107, %c0_108] : memref<4x18x18xf32, #tpu.memory_space<vmem>>, vector<1x16x16xf32>
    %203 = vector.shape_cast %202 : vector<1x16x16xf32> to vector<16x16xf32>
    %204 = tpu.concatenate %203, %203, %203, %203, %203, %203, %203, %203 in 1 : vector<16x16xf32>, vector<16x16xf32>, vector<16x16xf32>, vector<16x16xf32>, vector<16x16xf32>, vector<16x16xf32>, vector<16x16xf32>, vector<16x16xf32> -> vector<16x128xf32>
    %205 = vector.extract_strided_slice %6 {offsets = [15, 0], sizes = [1, 128], strides = [1, 1]} : vector<36x128xf32> to vector<1x128xf32>
    %206 = vector.broadcast %205 : vector<1x128xf32> to vector<16x128xf32>
    %207 = arith.mulf %204, %206 : vector<16x128xf32>
    %208 = arith.addf %201, %207 : vector<16x128xf32>
    %c1_109 = arith.constant 1 : index
    %c2_110 = arith.constant 2 : index
    %c1_111 = arith.constant 1 : index
    %209 = vector.load %arg10[%c1_109, %c2_110, %c1_111] : memref<4x18x18xf32, #tpu.memory_space<vmem>>, vector<1x16x16xf32>
    %210 = vector.shape_cast %209 : vector<1x16x16xf32> to vector<16x16xf32>
    %211 = tpu.concatenate %210, %210, %210, %210, %210, %210, %210, %210 in 1 : vector<16x16xf32>, vector<16x16xf32>, vector<16x16xf32>, vector<16x16xf32>, vector<16x16xf32>, vector<16x16xf32>, vector<16x16xf32>, vector<16x16xf32> -> vector<16x128xf32>
    %212 = vector.extract_strided_slice %6 {offsets = [16, 0], sizes = [1, 128], strides = [1, 1]} : vector<36x128xf32> to vector<1x128xf32>
    %213 = vector.broadcast %212 : vector<1x128xf32> to vector<16x128xf32>
    %214 = arith.mulf %211, %213 : vector<16x128xf32>
    %215 = arith.addf %208, %214 : vector<16x128xf32>
    %c1_112 = arith.constant 1 : index
    %c2_113 = arith.constant 2 : index
    %c2_114 = arith.constant 2 : index
    %216 = vector.load %arg10[%c1_112, %c2_113, %c2_114] : memref<4x18x18xf32, #tpu.memory_space<vmem>>, vector<1x16x16xf32>
    %217 = vector.shape_cast %216 : vector<1x16x16xf32> to vector<16x16xf32>
    %218 = tpu.concatenate %217, %217, %217, %217, %217, %217, %217, %217 in 1 : vector<16x16xf32>, vector<16x16xf32>, vector<16x16xf32>, vector<16x16xf32>, vector<16x16xf32>, vector<16x16xf32>, vector<16x16xf32>, vector<16x16xf32> -> vector<16x128xf32>
    %219 = vector.extract_strided_slice %6 {offsets = [17, 0], sizes = [1, 128], strides = [1, 1]} : vector<36x128xf32> to vector<1x128xf32>
    %220 = vector.broadcast %219 : vector<1x128xf32> to vector<16x128xf32>
    %221 = arith.mulf %218, %220 : vector<16x128xf32>
    %222 = arith.addf %215, %221 : vector<16x128xf32>
    %c2_115 = arith.constant 2 : index
    %c0_116 = arith.constant 0 : index
    %c0_117 = arith.constant 0 : index
    %223 = vector.load %arg10[%c2_115, %c0_116, %c0_117] : memref<4x18x18xf32, #tpu.memory_space<vmem>>, vector<1x16x16xf32>
    %224 = vector.shape_cast %223 : vector<1x16x16xf32> to vector<16x16xf32>
    %225 = tpu.concatenate %224, %224, %224, %224, %224, %224, %224, %224 in 1 : vector<16x16xf32>, vector<16x16xf32>, vector<16x16xf32>, vector<16x16xf32>, vector<16x16xf32>, vector<16x16xf32>, vector<16x16xf32>, vector<16x16xf32> -> vector<16x128xf32>
    %226 = vector.extract_strided_slice %6 {offsets = [18, 0], sizes = [1, 128], strides = [1, 1]} : vector<36x128xf32> to vector<1x128xf32>
    %227 = vector.broadcast %226 : vector<1x128xf32> to vector<16x128xf32>
    %228 = arith.mulf %225, %227 : vector<16x128xf32>
    %229 = arith.addf %222, %228 : vector<16x128xf32>
    %c2_118 = arith.constant 2 : index
    %c0_119 = arith.constant 0 : index
    %c1_120 = arith.constant 1 : index
    %230 = vector.load %arg10[%c2_118, %c0_119, %c1_120] : memref<4x18x18xf32, #tpu.memory_space<vmem>>, vector<1x16x16xf32>
    %231 = vector.shape_cast %230 : vector<1x16x16xf32> to vector<16x16xf32>
    %232 = tpu.concatenate %231, %231, %231, %231, %231, %231, %231, %231 in 1 : vector<16x16xf32>, vector<16x16xf32>, vector<16x16xf32>, vector<16x16xf32>, vector<16x16xf32>, vector<16x16xf32>, vector<16x16xf32>, vector<16x16xf32> -> vector<16x128xf32>
    %233 = vector.extract_strided_slice %6 {offsets = [19, 0], sizes = [1, 128], strides = [1, 1]} : vector<36x128xf32> to vector<1x128xf32>
    %234 = vector.broadcast %233 : vector<1x128xf32> to vector<16x128xf32>
    %235 = arith.mulf %232, %234 : vector<16x128xf32>
    %236 = arith.addf %229, %235 : vector<16x128xf32>
    %c2_121 = arith.constant 2 : index
    %c0_122 = arith.constant 0 : index
    %c2_123 = arith.constant 2 : index
    %237 = vector.load %arg10[%c2_121, %c0_122, %c2_123] : memref<4x18x18xf32, #tpu.memory_space<vmem>>, vector<1x16x16xf32>
    %238 = vector.shape_cast %237 : vector<1x16x16xf32> to vector<16x16xf32>
    %239 = tpu.concatenate %238, %238, %238, %238, %238, %238, %238, %238 in 1 : vector<16x16xf32>, vector<16x16xf32>, vector<16x16xf32>, vector<16x16xf32>, vector<16x16xf32>, vector<16x16xf32>, vector<16x16xf32>, vector<16x16xf32> -> vector<16x128xf32>
    %240 = vector.extract_strided_slice %6 {offsets = [20, 0], sizes = [1, 128], strides = [1, 1]} : vector<36x128xf32> to vector<1x128xf32>
    %241 = vector.broadcast %240 : vector<1x128xf32> to vector<16x128xf32>
    %242 = arith.mulf %239, %241 : vector<16x128xf32>
    %243 = arith.addf %236, %242 : vector<16x128xf32>
    %c2_124 = arith.constant 2 : index
    %c1_125 = arith.constant 1 : index
    %c0_126 = arith.constant 0 : index
    %244 = vector.load %arg10[%c2_124, %c1_125, %c0_126] : memref<4x18x18xf32, #tpu.memory_space<vmem>>, vector<1x16x16xf32>
    %245 = vector.shape_cast %244 : vector<1x16x16xf32> to vector<16x16xf32>
    %246 = tpu.concatenate %245, %245, %245, %245, %245, %245, %245, %245 in 1 : vector<16x16xf32>, vector<16x16xf32>, vector<16x16xf32>, vector<16x16xf32>, vector<16x16xf32>, vector<16x16xf32>, vector<16x16xf32>, vector<16x16xf32> -> vector<16x128xf32>
    %247 = vector.extract_strided_slice %6 {offsets = [21, 0], sizes = [1, 128], strides = [1, 1]} : vector<36x128xf32> to vector<1x128xf32>
    %248 = vector.broadcast %247 : vector<1x128xf32> to vector<16x128xf32>
    %249 = arith.mulf %246, %248 : vector<16x128xf32>
    %250 = arith.addf %243, %249 : vector<16x128xf32>
    %c2_127 = arith.constant 2 : index
    %c1_128 = arith.constant 1 : index
    %c1_129 = arith.constant 1 : index
    %251 = vector.load %arg10[%c2_127, %c1_128, %c1_129] : memref<4x18x18xf32, #tpu.memory_space<vmem>>, vector<1x16x16xf32>
    %252 = vector.shape_cast %251 : vector<1x16x16xf32> to vector<16x16xf32>
    %253 = tpu.concatenate %252, %252, %252, %252, %252, %252, %252, %252 in 1 : vector<16x16xf32>, vector<16x16xf32>, vector<16x16xf32>, vector<16x16xf32>, vector<16x16xf32>, vector<16x16xf32>, vector<16x16xf32>, vector<16x16xf32> -> vector<16x128xf32>
    %254 = vector.extract_strided_slice %6 {offsets = [22, 0], sizes = [1, 128], strides = [1, 1]} : vector<36x128xf32> to vector<1x128xf32>
    %255 = vector.broadcast %254 : vector<1x128xf32> to vector<16x128xf32>
    %256 = arith.mulf %253, %255 : vector<16x128xf32>
    %257 = arith.addf %250, %256 : vector<16x128xf32>
    %c2_130 = arith.constant 2 : index
    %c1_131 = arith.constant 1 : index
    %c2_132 = arith.constant 2 : index
    %258 = vector.load %arg10[%c2_130, %c1_131, %c2_132] : memref<4x18x18xf32, #tpu.memory_space<vmem>>, vector<1x16x16xf32>
    %259 = vector.shape_cast %258 : vector<1x16x16xf32> to vector<16x16xf32>
    %260 = tpu.concatenate %259, %259, %259, %259, %259, %259, %259, %259 in 1 : vector<16x16xf32>, vector<16x16xf32>, vector<16x16xf32>, vector<16x16xf32>, vector<16x16xf32>, vector<16x16xf32>, vector<16x16xf32>, vector<16x16xf32> -> vector<16x128xf32>
    %261 = vector.extract_strided_slice %6 {offsets = [23, 0], sizes = [1, 128], strides = [1, 1]} : vector<36x128xf32> to vector<1x128xf32>
    %262 = vector.broadcast %261 : vector<1x128xf32> to vector<16x128xf32>
    %263 = arith.mulf %260, %262 : vector<16x128xf32>
    %264 = arith.addf %257, %263 : vector<16x128xf32>
    %c2_133 = arith.constant 2 : index
    %c2_134 = arith.constant 2 : index
    %c0_135 = arith.constant 0 : index
    %265 = vector.load %arg10[%c2_133, %c2_134, %c0_135] : memref<4x18x18xf32, #tpu.memory_space<vmem>>, vector<1x16x16xf32>
    %266 = vector.shape_cast %265 : vector<1x16x16xf32> to vector<16x16xf32>
    %267 = tpu.concatenate %266, %266, %266, %266, %266, %266, %266, %266 in 1 : vector<16x16xf32>, vector<16x16xf32>, vector<16x16xf32>, vector<16x16xf32>, vector<16x16xf32>, vector<16x16xf32>, vector<16x16xf32>, vector<16x16xf32> -> vector<16x128xf32>
    %268 = vector.extract_strided_slice %6 {offsets = [24, 0], sizes = [1, 128], strides = [1, 1]} : vector<36x128xf32> to vector<1x128xf32>
    %269 = vector.broadcast %268 : vector<1x128xf32> to vector<16x128xf32>
    %270 = arith.mulf %267, %269 : vector<16x128xf32>
    %271 = arith.addf %264, %270 : vector<16x128xf32>
    %c2_136 = arith.constant 2 : index
    %c2_137 = arith.constant 2 : index
    %c1_138 = arith.constant 1 : index
    %272 = vector.load %arg10[%c2_136, %c2_137, %c1_138] : memref<4x18x18xf32, #tpu.memory_space<vmem>>, vector<1x16x16xf32>
    %273 = vector.shape_cast %272 : vector<1x16x16xf32> to vector<16x16xf32>
    %274 = tpu.concatenate %273, %273, %273, %273, %273, %273, %273, %273 in 1 : vector<16x16xf32>, vector<16x16xf32>, vector<16x16xf32>, vector<16x16xf32>, vector<16x16xf32>, vector<16x16xf32>, vector<16x16xf32>, vector<16x16xf32> -> vector<16x128xf32>
    %275 = vector.extract_strided_slice %6 {offsets = [25, 0], sizes = [1, 128], strides = [1, 1]} : vector<36x128xf32> to vector<1x128xf32>
    %276 = vector.broadcast %275 : vector<1x128xf32> to vector<16x128xf32>
    %277 = arith.mulf %274, %276 : vector<16x128xf32>
    %278 = arith.addf %271, %277 : vector<16x128xf32>
    %c2_139 = arith.constant 2 : index
    %c2_140 = arith.constant 2 : index
    %c2_141 = arith.constant 2 : index
    %279 = vector.load %arg10[%c2_139, %c2_140, %c2_141] : memref<4x18x18xf32, #tpu.memory_space<vmem>>, vector<1x16x16xf32>
    %280 = vector.shape_cast %279 : vector<1x16x16xf32> to vector<16x16xf32>
    %281 = tpu.concatenate %280, %280, %280, %280, %280, %280, %280, %280 in 1 : vector<16x16xf32>, vector<16x16xf32>, vector<16x16xf32>, vector<16x16xf32>, vector<16x16xf32>, vector<16x16xf32>, vector<16x16xf32>, vector<16x16xf32> -> vector<16x128xf32>
    %282 = vector.extract_strided_slice %6 {offsets = [26, 0], sizes = [1, 128], strides = [1, 1]} : vector<36x128xf32> to vector<1x128xf32>
    %283 = vector.broadcast %282 : vector<1x128xf32> to vector<16x128xf32>
    %284 = arith.mulf %281, %283 : vector<16x128xf32>
    %285 = arith.addf %278, %284 : vector<16x128xf32>
    %c3_142 = arith.constant 3 : index
    %c0_143 = arith.constant 0 : index
    %c0_144 = arith.constant 0 : index
    %286 = vector.load %arg10[%c3_142, %c0_143, %c0_144] : memref<4x18x18xf32, #tpu.memory_space<vmem>>, vector<1x16x16xf32>
    %287 = vector.shape_cast %286 : vector<1x16x16xf32> to vector<16x16xf32>
    %288 = tpu.concatenate %287, %287, %287, %287, %287, %287, %287, %287 in 1 : vector<16x16xf32>, vector<16x16xf32>, vector<16x16xf32>, vector<16x16xf32>, vector<16x16xf32>, vector<16x16xf32>, vector<16x16xf32>, vector<16x16xf32> -> vector<16x128xf32>
    %289 = vector.extract_strided_slice %6 {offsets = [27, 0], sizes = [1, 128], strides = [1, 1]} : vector<36x128xf32> to vector<1x128xf32>
    %290 = vector.broadcast %289 : vector<1x128xf32> to vector<16x128xf32>
    %291 = arith.mulf %288, %290 : vector<16x128xf32>
    %292 = arith.addf %285, %291 : vector<16x128xf32>
    %c3_145 = arith.constant 3 : index
    %c0_146 = arith.constant 0 : index
    %c1_147 = arith.constant 1 : index
    %293 = vector.load %arg10[%c3_145, %c0_146, %c1_147] : memref<4x18x18xf32, #tpu.memory_space<vmem>>, vector<1x16x16xf32>
    %294 = vector.shape_cast %293 : vector<1x16x16xf32> to vector<16x16xf32>
    %295 = tpu.concatenate %294, %294, %294, %294, %294, %294, %294, %294 in 1 : vector<16x16xf32>, vector<16x16xf32>, vector<16x16xf32>, vector<16x16xf32>, vector<16x16xf32>, vector<16x16xf32>, vector<16x16xf32>, vector<16x16xf32> -> vector<16x128xf32>
    %296 = vector.extract_strided_slice %6 {offsets = [28, 0], sizes = [1, 128], strides = [1, 1]} : vector<36x128xf32> to vector<1x128xf32>
    %297 = vector.broadcast %296 : vector<1x128xf32> to vector<16x128xf32>
    %298 = arith.mulf %295, %297 : vector<16x128xf32>
    %299 = arith.addf %292, %298 : vector<16x128xf32>
    %c3_148 = arith.constant 3 : index
    %c0_149 = arith.constant 0 : index
    %c2_150 = arith.constant 2 : index
    %300 = vector.load %arg10[%c3_148, %c0_149, %c2_150] : memref<4x18x18xf32, #tpu.memory_space<vmem>>, vector<1x16x16xf32>
    %301 = vector.shape_cast %300 : vector<1x16x16xf32> to vector<16x16xf32>
    %302 = tpu.concatenate %301, %301, %301, %301, %301, %301, %301, %301 in 1 : vector<16x16xf32>, vector<16x16xf32>, vector<16x16xf32>, vector<16x16xf32>, vector<16x16xf32>, vector<16x16xf32>, vector<16x16xf32>, vector<16x16xf32> -> vector<16x128xf32>
    %303 = vector.extract_strided_slice %6 {offsets = [29, 0], sizes = [1, 128], strides = [1, 1]} : vector<36x128xf32> to vector<1x128xf32>
    %304 = vector.broadcast %303 : vector<1x128xf32> to vector<16x128xf32>
    %305 = arith.mulf %302, %304 : vector<16x128xf32>
    %306 = arith.addf %299, %305 : vector<16x128xf32>
    %c3_151 = arith.constant 3 : index
    %c1_152 = arith.constant 1 : index
    %c0_153 = arith.constant 0 : index
    %307 = vector.load %arg10[%c3_151, %c1_152, %c0_153] : memref<4x18x18xf32, #tpu.memory_space<vmem>>, vector<1x16x16xf32>
    %308 = vector.shape_cast %307 : vector<1x16x16xf32> to vector<16x16xf32>
    %309 = tpu.concatenate %308, %308, %308, %308, %308, %308, %308, %308 in 1 : vector<16x16xf32>, vector<16x16xf32>, vector<16x16xf32>, vector<16x16xf32>, vector<16x16xf32>, vector<16x16xf32>, vector<16x16xf32>, vector<16x16xf32> -> vector<16x128xf32>
    %310 = vector.extract_strided_slice %6 {offsets = [30, 0], sizes = [1, 128], strides = [1, 1]} : vector<36x128xf32> to vector<1x128xf32>
    %311 = vector.broadcast %310 : vector<1x128xf32> to vector<16x128xf32>
    %312 = arith.mulf %309, %311 : vector<16x128xf32>
    %313 = arith.addf %306, %312 : vector<16x128xf32>
    %c3_154 = arith.constant 3 : index
    %c1_155 = arith.constant 1 : index
    %c1_156 = arith.constant 1 : index
    %314 = vector.load %arg10[%c3_154, %c1_155, %c1_156] : memref<4x18x18xf32, #tpu.memory_space<vmem>>, vector<1x16x16xf32>
    %315 = vector.shape_cast %314 : vector<1x16x16xf32> to vector<16x16xf32>
    %316 = tpu.concatenate %315, %315, %315, %315, %315, %315, %315, %315 in 1 : vector<16x16xf32>, vector<16x16xf32>, vector<16x16xf32>, vector<16x16xf32>, vector<16x16xf32>, vector<16x16xf32>, vector<16x16xf32>, vector<16x16xf32> -> vector<16x128xf32>
    %317 = vector.extract_strided_slice %6 {offsets = [31, 0], sizes = [1, 128], strides = [1, 1]} : vector<36x128xf32> to vector<1x128xf32>
    %318 = vector.broadcast %317 : vector<1x128xf32> to vector<16x128xf32>
    %319 = arith.mulf %316, %318 : vector<16x128xf32>
    %320 = arith.addf %313, %319 : vector<16x128xf32>
    %c3_157 = arith.constant 3 : index
    %c1_158 = arith.constant 1 : index
    %c2_159 = arith.constant 2 : index
    %321 = vector.load %arg10[%c3_157, %c1_158, %c2_159] : memref<4x18x18xf32, #tpu.memory_space<vmem>>, vector<1x16x16xf32>
    %322 = vector.shape_cast %321 : vector<1x16x16xf32> to vector<16x16xf32>
    %323 = tpu.concatenate %322, %322, %322, %322, %322, %322, %322, %322 in 1 : vector<16x16xf32>, vector<16x16xf32>, vector<16x16xf32>, vector<16x16xf32>, vector<16x16xf32>, vector<16x16xf32>, vector<16x16xf32>, vector<16x16xf32> -> vector<16x128xf32>
    %324 = vector.extract_strided_slice %6 {offsets = [32, 0], sizes = [1, 128], strides = [1, 1]} : vector<36x128xf32> to vector<1x128xf32>
    %325 = vector.broadcast %324 : vector<1x128xf32> to vector<16x128xf32>
    %326 = arith.mulf %323, %325 : vector<16x128xf32>
    %327 = arith.addf %320, %326 : vector<16x128xf32>
    %c3_160 = arith.constant 3 : index
    %c2_161 = arith.constant 2 : index
    %c0_162 = arith.constant 0 : index
    %328 = vector.load %arg10[%c3_160, %c2_161, %c0_162] : memref<4x18x18xf32, #tpu.memory_space<vmem>>, vector<1x16x16xf32>
    %329 = vector.shape_cast %328 : vector<1x16x16xf32> to vector<16x16xf32>
    %330 = tpu.concatenate %329, %329, %329, %329, %329, %329, %329, %329 in 1 : vector<16x16xf32>, vector<16x16xf32>, vector<16x16xf32>, vector<16x16xf32>, vector<16x16xf32>, vector<16x16xf32>, vector<16x16xf32>, vector<16x16xf32> -> vector<16x128xf32>
    %331 = vector.extract_strided_slice %6 {offsets = [33, 0], sizes = [1, 128], strides = [1, 1]} : vector<36x128xf32> to vector<1x128xf32>
    %332 = vector.broadcast %331 : vector<1x128xf32> to vector<16x128xf32>
    %333 = arith.mulf %330, %332 : vector<16x128xf32>
    %334 = arith.addf %327, %333 : vector<16x128xf32>
    %c3_163 = arith.constant 3 : index
    %c2_164 = arith.constant 2 : index
    %c1_165 = arith.constant 1 : index
    %335 = vector.load %arg10[%c3_163, %c2_164, %c1_165] : memref<4x18x18xf32, #tpu.memory_space<vmem>>, vector<1x16x16xf32>
    %336 = vector.shape_cast %335 : vector<1x16x16xf32> to vector<16x16xf32>
    %337 = tpu.concatenate %336, %336, %336, %336, %336, %336, %336, %336 in 1 : vector<16x16xf32>, vector<16x16xf32>, vector<16x16xf32>, vector<16x16xf32>, vector<16x16xf32>, vector<16x16xf32>, vector<16x16xf32>, vector<16x16xf32> -> vector<16x128xf32>
    %338 = vector.extract_strided_slice %6 {offsets = [34, 0], sizes = [1, 128], strides = [1, 1]} : vector<36x128xf32> to vector<1x128xf32>
    %339 = vector.broadcast %338 : vector<1x128xf32> to vector<16x128xf32>
    %340 = arith.mulf %337, %339 : vector<16x128xf32>
    %341 = arith.addf %334, %340 : vector<16x128xf32>
    %c3_166 = arith.constant 3 : index
    %c2_167 = arith.constant 2 : index
    %c2_168 = arith.constant 2 : index
    %342 = vector.load %arg10[%c3_166, %c2_167, %c2_168] : memref<4x18x18xf32, #tpu.memory_space<vmem>>, vector<1x16x16xf32>
    %343 = vector.shape_cast %342 : vector<1x16x16xf32> to vector<16x16xf32>
    %344 = tpu.concatenate %343, %343, %343, %343, %343, %343, %343, %343 in 1 : vector<16x16xf32>, vector<16x16xf32>, vector<16x16xf32>, vector<16x16xf32>, vector<16x16xf32>, vector<16x16xf32>, vector<16x16xf32>, vector<16x16xf32> -> vector<16x128xf32>
    %345 = vector.extract_strided_slice %6 {offsets = [35, 0], sizes = [1, 128], strides = [1, 1]} : vector<36x128xf32> to vector<1x128xf32>
    %346 = vector.broadcast %345 : vector<1x128xf32> to vector<16x128xf32>
    %347 = arith.mulf %344, %346 : vector<16x128xf32>
    %348 = arith.addf %341, %347 : vector<16x128xf32>
    %349 = vector.broadcast %7 : vector<1x128xf32> to vector<16x128xf32>
    %350 = arith.addf %348, %349 : vector<16x128xf32>
    %cst_169 = arith.constant 0.000000e+00 : f32
    %351 = vector.broadcast %cst_169 : f32 to vector<16x128xf32>
    %352 = arith.maximumf %350, %351 : vector<16x128xf32>
    %c0_170 = arith.constant 0 : index
    %c0_171 = arith.constant 0 : index
    %353 = vector.load %arg13[%c0_170, %c0_171] : memref<16x128xf32, #tpu.memory_space<vmem>>, vector<16x128xf32>
    tpu.vector_store %arg13[%c0_170, %c0_171], %352 {strides = array<i32>} : memref<16x128xf32, #tpu.memory_space<vmem>>, vector<16x128xf32>,
    %c0_172 = arith.constant 0 : index
    %c0_173 = arith.constant 0 : index
    %354 = tpu.strided_load %arg13[%c0_172, %c0_173] {strides = array<i32: 2, 1>} : memref<16x128xf32, #tpu.memory_space<vmem>>, vector<8x128xf32>
    %c1_174 = arith.constant 1 : index
    %c0_175 = arith.constant 0 : index
    %355 = tpu.strided_load %arg13[%c1_174, %c0_175] {strides = array<i32: 2, 1>} : memref<16x128xf32, #tpu.memory_space<vmem>>, vector<8x128xf32>
    %356 = arith.maximumf %354, %355 : vector<8x128xf32>
    %357 = tpu.transpose %356, [1, 0] : vector<8x128xf32> -> vector<128x8xf32>
    %c0_176 = arith.constant 0 : index
    %c0_177 = arith.constant 0 : index
    %358 = vector.load %arg14[%c0_176, %c0_177] : memref<128x8xf32, #tpu.memory_space<vmem>>, vector<128x8xf32>
    tpu.vector_store %arg14[%c0_176, %c0_177], %357 {strides = array<i32>} : memref<128x8xf32, #tpu.memory_space<vmem>>, vector<128x8xf32>,
    %c0_178 = arith.constant 0 : index
    %c0_179 = arith.constant 0 : index
    %359 = tpu.strided_load %arg14[%c0_178, %c0_179] {strides = array<i32: 2, 1>} : memref<128x8xf32, #tpu.memory_space<vmem>>, vector<64x8xf32>
    %c1_180 = arith.constant 1 : index
    %c0_181 = arith.constant 0 : index
    %360 = tpu.strided_load %arg14[%c1_180, %c0_181] {strides = array<i32: 2, 1>} : memref<128x8xf32, #tpu.memory_space<vmem>>, vector<64x8xf32>
    %361 = arith.maximumf %359, %360 : vector<64x8xf32>
    %362 = tpu.transpose %361, [1, 0] : vector<64x8xf32> -> vector<8x64xf32>
    %c0_182 = arith.constant 0 : index
    %c0_183 = arith.constant 0 : index
    %c0_184 = arith.constant 0 : index
    %363 = vector.load %arg15[%c0_182, %c0_183, %c0_184] : memref<2x8x64xf32, #tpu.memory_space<vmem>>, vector<1x8x64xf32>
    %364 = vector.shape_cast %363 : vector<1x8x64xf32> to vector<8x64xf32>
    %365 = vector.shape_cast %362 : vector<8x64xf32> to vector<1x8x64xf32>
    tpu.vector_store %arg15[%c0_182, %c0_183, %c0_184], %365 {strides = array<i32>} : memref<2x8x64xf32, #tpu.memory_space<vmem>>, vector<1x8x64xf32>,
    %c1_185 = arith.constant 1 : index
    %c0_186 = arith.constant 0 : index
    %c0_187 = arith.constant 0 : index
    %c0_188 = arith.constant 0 : index
    %366 = vector.load %arg1[%c1_185, %c0_186, %c0_187, %c0_188] : memref<2x1x32x32xf32, #tpu.memory_space<vmem>>, vector<1x1x32x32xf32>
    %367 = vector.shape_cast %366 : vector<1x1x32x32xf32> to vector<32x32xf32>
    %c1_189 = arith.constant 1 : index
    %c1_190 = arith.constant 1 : index
    %368 = vector.load %arg9[%c1_189, %c1_190] : memref<34x34xf32, #tpu.memory_space<vmem>>, vector<32x32xf32>
    tpu.vector_store %arg9[%c1_189, %c1_190], %367 {strides = array<i32>} : memref<34x34xf32, #tpu.memory_space<vmem>>, vector<32x32xf32>,
    %cst_191 = arith.constant 0.000000e+00 : f32
    %369 = vector.broadcast %cst_191 : f32 to vector<32x128xf32>
    %c0_192 = arith.constant 0 : index
    %c0_193 = arith.constant 0 : index
    %370 = vector.load %arg9[%c0_192, %c0_193] : memref<34x34xf32, #tpu.memory_space<vmem>>, vector<32x32xf32>
    %371 = tpu.concatenate %370, %370, %370, %370 in 1 : vector<32x32xf32>, vector<32x32xf32>, vector<32x32xf32>, vector<32x32xf32> -> vector<32x128xf32>
    %372 = vector.extract_strided_slice %4 {offsets = [0, 0], sizes = [1, 128], strides = [1, 1]} : vector<9x128xf32> to vector<1x128xf32>
    %373 = vector.broadcast %372 : vector<1x128xf32> to vector<32x128xf32>
    %374 = arith.mulf %371, %373 : vector<32x128xf32>
    %375 = arith.addf %369, %374 : vector<32x128xf32>
    %c0_194 = arith.constant 0 : index
    %c1_195 = arith.constant 1 : index
    %376 = vector.load %arg9[%c0_194, %c1_195] : memref<34x34xf32, #tpu.memory_space<vmem>>, vector<32x32xf32>
    %377 = tpu.concatenate %376, %376, %376, %376 in 1 : vector<32x32xf32>, vector<32x32xf32>, vector<32x32xf32>, vector<32x32xf32> -> vector<32x128xf32>
    %378 = vector.extract_strided_slice %4 {offsets = [1, 0], sizes = [1, 128], strides = [1, 1]} : vector<9x128xf32> to vector<1x128xf32>
    %379 = vector.broadcast %378 : vector<1x128xf32> to vector<32x128xf32>
    %380 = arith.mulf %377, %379 : vector<32x128xf32>
    %381 = arith.addf %375, %380 : vector<32x128xf32>
    %c0_196 = arith.constant 0 : index
    %c2_197 = arith.constant 2 : index
    %382 = vector.load %arg9[%c0_196, %c2_197] : memref<34x34xf32, #tpu.memory_space<vmem>>, vector<32x32xf32>
    %383 = tpu.concatenate %382, %382, %382, %382 in 1 : vector<32x32xf32>, vector<32x32xf32>, vector<32x32xf32>, vector<32x32xf32> -> vector<32x128xf32>
    %384 = vector.extract_strided_slice %4 {offsets = [2, 0], sizes = [1, 128], strides = [1, 1]} : vector<9x128xf32> to vector<1x128xf32>
    %385 = vector.broadcast %384 : vector<1x128xf32> to vector<32x128xf32>
    %386 = arith.mulf %383, %385 : vector<32x128xf32>
    %387 = arith.addf %381, %386 : vector<32x128xf32>
    %c1_198 = arith.constant 1 : index
    %c0_199 = arith.constant 0 : index
    %388 = vector.load %arg9[%c1_198, %c0_199] : memref<34x34xf32, #tpu.memory_space<vmem>>, vector<32x32xf32>
    %389 = tpu.concatenate %388, %388, %388, %388 in 1 : vector<32x32xf32>, vector<32x32xf32>, vector<32x32xf32>, vector<32x32xf32> -> vector<32x128xf32>
    %390 = vector.extract_strided_slice %4 {offsets = [3, 0], sizes = [1, 128], strides = [1, 1]} : vector<9x128xf32> to vector<1x128xf32>
    %391 = vector.broadcast %390 : vector<1x128xf32> to vector<32x128xf32>
    %392 = arith.mulf %389, %391 : vector<32x128xf32>
    %393 = arith.addf %387, %392 : vector<32x128xf32>
    %c1_200 = arith.constant 1 : index
    %c1_201 = arith.constant 1 : index
    %394 = vector.load %arg9[%c1_200, %c1_201] : memref<34x34xf32, #tpu.memory_space<vmem>>, vector<32x32xf32>
    %395 = tpu.concatenate %394, %394, %394, %394 in 1 : vector<32x32xf32>, vector<32x32xf32>, vector<32x32xf32>, vector<32x32xf32> -> vector<32x128xf32>
    %396 = vector.extract_strided_slice %4 {offsets = [4, 0], sizes = [1, 128], strides = [1, 1]} : vector<9x128xf32> to vector<1x128xf32>
    %397 = vector.broadcast %396 : vector<1x128xf32> to vector<32x128xf32>
    %398 = arith.mulf %395, %397 : vector<32x128xf32>
    %399 = arith.addf %393, %398 : vector<32x128xf32>
    %c1_202 = arith.constant 1 : index
    %c2_203 = arith.constant 2 : index
    %400 = vector.load %arg9[%c1_202, %c2_203] : memref<34x34xf32, #tpu.memory_space<vmem>>, vector<32x32xf32>
    %401 = tpu.concatenate %400, %400, %400, %400 in 1 : vector<32x32xf32>, vector<32x32xf32>, vector<32x32xf32>, vector<32x32xf32> -> vector<32x128xf32>
    %402 = vector.extract_strided_slice %4 {offsets = [5, 0], sizes = [1, 128], strides = [1, 1]} : vector<9x128xf32> to vector<1x128xf32>
    %403 = vector.broadcast %402 : vector<1x128xf32> to vector<32x128xf32>
    %404 = arith.mulf %401, %403 : vector<32x128xf32>
    %405 = arith.addf %399, %404 : vector<32x128xf32>
    %c2_204 = arith.constant 2 : index
    %c0_205 = arith.constant 0 : index
    %406 = vector.load %arg9[%c2_204, %c0_205] : memref<34x34xf32, #tpu.memory_space<vmem>>, vector<32x32xf32>
    %407 = tpu.concatenate %406, %406, %406, %406 in 1 : vector<32x32xf32>, vector<32x32xf32>, vector<32x32xf32>, vector<32x32xf32> -> vector<32x128xf32>
    %408 = vector.extract_strided_slice %4 {offsets = [6, 0], sizes = [1, 128], strides = [1, 1]} : vector<9x128xf32> to vector<1x128xf32>
    %409 = vector.broadcast %408 : vector<1x128xf32> to vector<32x128xf32>
    %410 = arith.mulf %407, %409 : vector<32x128xf32>
    %411 = arith.addf %405, %410 : vector<32x128xf32>
    %c2_206 = arith.constant 2 : index
    %c1_207 = arith.constant 1 : index
    %412 = vector.load %arg9[%c2_206, %c1_207] : memref<34x34xf32, #tpu.memory_space<vmem>>, vector<32x32xf32>
    %413 = tpu.concatenate %412, %412, %412, %412 in 1 : vector<32x32xf32>, vector<32x32xf32>, vector<32x32xf32>, vector<32x32xf32> -> vector<32x128xf32>
    %414 = vector.extract_strided_slice %4 {offsets = [7, 0], sizes = [1, 128], strides = [1, 1]} : vector<9x128xf32> to vector<1x128xf32>
    %415 = vector.broadcast %414 : vector<1x128xf32> to vector<32x128xf32>
    %416 = arith.mulf %413, %415 : vector<32x128xf32>
    %417 = arith.addf %411, %416 : vector<32x128xf32>
    %c2_208 = arith.constant 2 : index
    %c2_209 = arith.constant 2 : index
    %418 = vector.load %arg9[%c2_208, %c2_209] : memref<34x34xf32, #tpu.memory_space<vmem>>, vector<32x32xf32>
    %419 = tpu.concatenate %418, %418, %418, %418 in 1 : vector<32x32xf32>, vector<32x32xf32>, vector<32x32xf32>, vector<32x32xf32> -> vector<32x128xf32>
    %420 = vector.extract_strided_slice %4 {offsets = [8, 0], sizes = [1, 128], strides = [1, 1]} : vector<9x128xf32> to vector<1x128xf32>
    %421 = vector.broadcast %420 : vector<1x128xf32> to vector<32x128xf32>
    %422 = arith.mulf %419, %421 : vector<32x128xf32>
    %423 = arith.addf %417, %422 : vector<32x128xf32>
    %424 = vector.broadcast %5 : vector<1x128xf32> to vector<32x128xf32>
    %425 = arith.addf %423, %424 : vector<32x128xf32>
    %cst_210 = arith.constant 0.000000e+00 : f32
    %426 = vector.broadcast %cst_210 : f32 to vector<32x128xf32>
    %427 = arith.maximumf %425, %426 : vector<32x128xf32>
    %c0_211 = arith.constant 0 : index
    %c0_212 = arith.constant 0 : index
    %428 = vector.load %arg11[%c0_211, %c0_212] : memref<32x128xf32, #tpu.memory_space<vmem>>, vector<32x128xf32>
    tpu.vector_store %arg11[%c0_211, %c0_212], %427 {strides = array<i32>} : memref<32x128xf32, #tpu.memory_space<vmem>>, vector<32x128xf32>,
    %c0_213 = arith.constant 0 : index
    %c0_214 = arith.constant 0 : index
    %429 = tpu.strided_load %arg11[%c0_213, %c0_214] {strides = array<i32: 2, 1>} : memref<32x128xf32, #tpu.memory_space<vmem>>, vector<16x128xf32>
    %c1_215 = arith.constant 1 : index
    %c0_216 = arith.constant 0 : index
    %430 = tpu.strided_load %arg11[%c1_215, %c0_216] {strides = array<i32: 2, 1>} : memref<32x128xf32, #tpu.memory_space<vmem>>, vector<16x128xf32>
    %431 = arith.maximumf %429, %430 : vector<16x128xf32>
    %432 = tpu.transpose %431, [1, 0] : vector<16x128xf32> -> vector<128x16xf32>
    %c0_217 = arith.constant 0 : index
    %c0_218 = arith.constant 0 : index
    %433 = vector.load %arg12[%c0_217, %c0_218] : memref<128x16xf32, #tpu.memory_space<vmem>>, vector<128x16xf32>
    tpu.vector_store %arg12[%c0_217, %c0_218], %432 {strides = array<i32>} : memref<128x16xf32, #tpu.memory_space<vmem>>, vector<128x16xf32>,
    %c0_219 = arith.constant 0 : index
    %c0_220 = arith.constant 0 : index
    %434 = tpu.strided_load %arg12[%c0_219, %c0_220] {strides = array<i32: 2, 1>} : memref<128x16xf32, #tpu.memory_space<vmem>>, vector<64x16xf32>
    %c1_221 = arith.constant 1 : index
    %c0_222 = arith.constant 0 : index
    %435 = tpu.strided_load %arg12[%c1_221, %c0_222] {strides = array<i32: 2, 1>} : memref<128x16xf32, #tpu.memory_space<vmem>>, vector<64x16xf32>
    %436 = arith.maximumf %434, %435 : vector<64x16xf32>
    %437 = tpu.transpose %436, [1, 0] : vector<64x16xf32> -> vector<16x64xf32>
    %438 = vector.extract_strided_slice %437 {offsets = [0, 0], sizes = [16, 16], strides = [1, 1]} : vector<16x64xf32> to vector<16x16xf32>
    %c0_223 = arith.constant 0 : index
    %c1_224 = arith.constant 1 : index
    %c1_225 = arith.constant 1 : index
    %439 = vector.load %arg10[%c0_223, %c1_224, %c1_225] : memref<4x18x18xf32, #tpu.memory_space<vmem>>, vector<1x16x16xf32>
    %440 = vector.shape_cast %439 : vector<1x16x16xf32> to vector<16x16xf32>
    %441 = vector.shape_cast %438 : vector<16x16xf32> to vector<1x16x16xf32>
    tpu.vector_store %arg10[%c0_223, %c1_224, %c1_225], %441 {strides = array<i32>} : memref<4x18x18xf32, #tpu.memory_space<vmem>>, vector<1x16x16xf32>,
    %442 = vector.extract_strided_slice %437 {offsets = [0, 16], sizes = [16, 16], strides = [1, 1]} : vector<16x64xf32> to vector<16x16xf32>
    %c1_226 = arith.constant 1 : index
    %c1_227 = arith.constant 1 : index
    %c1_228 = arith.constant 1 : index
    %443 = vector.load %arg10[%c1_226, %c1_227, %c1_228] : memref<4x18x18xf32, #tpu.memory_space<vmem>>, vector<1x16x16xf32>
    %444 = vector.shape_cast %443 : vector<1x16x16xf32> to vector<16x16xf32>
    %445 = vector.shape_cast %442 : vector<16x16xf32> to vector<1x16x16xf32>
    tpu.vector_store %arg10[%c1_226, %c1_227, %c1_228], %445 {strides = array<i32>} : memref<4x18x18xf32, #tpu.memory_space<vmem>>, vector<1x16x16xf32>,
    %446 = vector.extract_strided_slice %437 {offsets = [0, 32], sizes = [16, 16], strides = [1, 1]} : vector<16x64xf32> to vector<16x16xf32>
    %c2_229 = arith.constant 2 : index
    %c1_230 = arith.constant 1 : index
    %c1_231 = arith.constant 1 : index
    %447 = vector.load %arg10[%c2_229, %c1_230, %c1_231] : memref<4x18x18xf32, #tpu.memory_space<vmem>>, vector<1x16x16xf32>
    %448 = vector.shape_cast %447 : vector<1x16x16xf32> to vector<16x16xf32>
    %449 = vector.shape_cast %446 : vector<16x16xf32> to vector<1x16x16xf32>
    tpu.vector_store %arg10[%c2_229, %c1_230, %c1_231], %449 {strides = array<i32>} : memref<4x18x18xf32, #tpu.memory_space<vmem>>, vector<1x16x16xf32>,
    %450 = vector.extract_strided_slice %437 {offsets = [0, 48], sizes = [16, 16], strides = [1, 1]} : vector<16x64xf32> to vector<16x16xf32>
    %c3_232 = arith.constant 3 : index
    %c1_233 = arith.constant 1 : index
    %c1_234 = arith.constant 1 : index
    %451 = vector.load %arg10[%c3_232, %c1_233, %c1_234] : memref<4x18x18xf32, #tpu.memory_space<vmem>>, vector<1x16x16xf32>
    %452 = vector.shape_cast %451 : vector<1x16x16xf32> to vector<16x16xf32>
    %453 = vector.shape_cast %450 : vector<16x16xf32> to vector<1x16x16xf32>
    tpu.vector_store %arg10[%c3_232, %c1_233, %c1_234], %453 {strides = array<i32>} : memref<4x18x18xf32, #tpu.memory_space<vmem>>, vector<1x16x16xf32>,
    %cst_235 = arith.constant 0.000000e+00 : f32
    %454 = vector.broadcast %cst_235 : f32 to vector<16x128xf32>
    %c0_236 = arith.constant 0 : index
    %c0_237 = arith.constant 0 : index
    %c0_238 = arith.constant 0 : index
    %455 = vector.load %arg10[%c0_236, %c0_237, %c0_238] : memref<4x18x18xf32, #tpu.memory_space<vmem>>, vector<1x16x16xf32>
    %456 = vector.shape_cast %455 : vector<1x16x16xf32> to vector<16x16xf32>
    %457 = tpu.concatenate %456, %456, %456, %456, %456, %456, %456, %456 in 1 : vector<16x16xf32>, vector<16x16xf32>, vector<16x16xf32>, vector<16x16xf32>, vector<16x16xf32>, vector<16x16xf32>, vector<16x16xf32>, vector<16x16xf32> -> vector<16x128xf32>
    %458 = vector.extract_strided_slice %6 {offsets = [0, 0], sizes = [1, 128], strides = [1, 1]} : vector<36x128xf32> to vector<1x128xf32>
    %459 = vector.broadcast %458 : vector<1x128xf32> to vector<16x128xf32>
    %460 = arith.mulf %457, %459 : vector<16x128xf32>
    %461 = arith.addf %454, %460 : vector<16x128xf32>
    %c0_239 = arith.constant 0 : index
    %c0_240 = arith.constant 0 : index
    %c1_241 = arith.constant 1 : index
    %462 = vector.load %arg10[%c0_239, %c0_240, %c1_241] : memref<4x18x18xf32, #tpu.memory_space<vmem>>, vector<1x16x16xf32>
    %463 = vector.shape_cast %462 : vector<1x16x16xf32> to vector<16x16xf32>
    %464 = tpu.concatenate %463, %463, %463, %463, %463, %463, %463, %463 in 1 : vector<16x16xf32>, vector<16x16xf32>, vector<16x16xf32>, vector<16x16xf32>, vector<16x16xf32>, vector<16x16xf32>, vector<16x16xf32>, vector<16x16xf32> -> vector<16x128xf32>
    %465 = vector.extract_strided_slice %6 {offsets = [1, 0], sizes = [1, 128], strides = [1, 1]} : vector<36x128xf32> to vector<1x128xf32>
    %466 = vector.broadcast %465 : vector<1x128xf32> to vector<16x128xf32>
    %467 = arith.mulf %464, %466 : vector<16x128xf32>
    %468 = arith.addf %461, %467 : vector<16x128xf32>
    %c0_242 = arith.constant 0 : index
    %c0_243 = arith.constant 0 : index
    %c2_244 = arith.constant 2 : index
    %469 = vector.load %arg10[%c0_242, %c0_243, %c2_244] : memref<4x18x18xf32, #tpu.memory_space<vmem>>, vector<1x16x16xf32>
    %470 = vector.shape_cast %469 : vector<1x16x16xf32> to vector<16x16xf32>
    %471 = tpu.concatenate %470, %470, %470, %470, %470, %470, %470, %470 in 1 : vector<16x16xf32>, vector<16x16xf32>, vector<16x16xf32>, vector<16x16xf32>, vector<16x16xf32>, vector<16x16xf32>, vector<16x16xf32>, vector<16x16xf32> -> vector<16x128xf32>
    %472 = vector.extract_strided_slice %6 {offsets = [2, 0], sizes = [1, 128], strides = [1, 1]} : vector<36x128xf32> to vector<1x128xf32>
    %473 = vector.broadcast %472 : vector<1x128xf32> to vector<16x128xf32>
    %474 = arith.mulf %471, %473 : vector<16x128xf32>
    %475 = arith.addf %468, %474 : vector<16x128xf32>
    %c0_245 = arith.constant 0 : index
    %c1_246 = arith.constant 1 : index
    %c0_247 = arith.constant 0 : index
    %476 = vector.load %arg10[%c0_245, %c1_246, %c0_247] : memref<4x18x18xf32, #tpu.memory_space<vmem>>, vector<1x16x16xf32>
    %477 = vector.shape_cast %476 : vector<1x16x16xf32> to vector<16x16xf32>
    %478 = tpu.concatenate %477, %477, %477, %477, %477, %477, %477, %477 in 1 : vector<16x16xf32>, vector<16x16xf32>, vector<16x16xf32>, vector<16x16xf32>, vector<16x16xf32>, vector<16x16xf32>, vector<16x16xf32>, vector<16x16xf32> -> vector<16x128xf32>
    %479 = vector.extract_strided_slice %6 {offsets = [3, 0], sizes = [1, 128], strides = [1, 1]} : vector<36x128xf32> to vector<1x128xf32>
    %480 = vector.broadcast %479 : vector<1x128xf32> to vector<16x128xf32>
    %481 = arith.mulf %478, %480 : vector<16x128xf32>
    %482 = arith.addf %475, %481 : vector<16x128xf32>
    %c0_248 = arith.constant 0 : index
    %c1_249 = arith.constant 1 : index
    %c1_250 = arith.constant 1 : index
    %483 = vector.load %arg10[%c0_248, %c1_249, %c1_250] : memref<4x18x18xf32, #tpu.memory_space<vmem>>, vector<1x16x16xf32>
    %484 = vector.shape_cast %483 : vector<1x16x16xf32> to vector<16x16xf32>
    %485 = tpu.concatenate %484, %484, %484, %484, %484, %484, %484, %484 in 1 : vector<16x16xf32>, vector<16x16xf32>, vector<16x16xf32>, vector<16x16xf32>, vector<16x16xf32>, vector<16x16xf32>, vector<16x16xf32>, vector<16x16xf32> -> vector<16x128xf32>
    %486 = vector.extract_strided_slice %6 {offsets = [4, 0], sizes = [1, 128], strides = [1, 1]} : vector<36x128xf32> to vector<1x128xf32>
    %487 = vector.broadcast %486 : vector<1x128xf32> to vector<16x128xf32>
    %488 = arith.mulf %485, %487 : vector<16x128xf32>
    %489 = arith.addf %482, %488 : vector<16x128xf32>
    %c0_251 = arith.constant 0 : index
    %c1_252 = arith.constant 1 : index
    %c2_253 = arith.constant 2 : index
    %490 = vector.load %arg10[%c0_251, %c1_252, %c2_253] : memref<4x18x18xf32, #tpu.memory_space<vmem>>, vector<1x16x16xf32>
    %491 = vector.shape_cast %490 : vector<1x16x16xf32> to vector<16x16xf32>
    %492 = tpu.concatenate %491, %491, %491, %491, %491, %491, %491, %491 in 1 : vector<16x16xf32>, vector<16x16xf32>, vector<16x16xf32>, vector<16x16xf32>, vector<16x16xf32>, vector<16x16xf32>, vector<16x16xf32>, vector<16x16xf32> -> vector<16x128xf32>
    %493 = vector.extract_strided_slice %6 {offsets = [5, 0], sizes = [1, 128], strides = [1, 1]} : vector<36x128xf32> to vector<1x128xf32>
    %494 = vector.broadcast %493 : vector<1x128xf32> to vector<16x128xf32>
    %495 = arith.mulf %492, %494 : vector<16x128xf32>
    %496 = arith.addf %489, %495 : vector<16x128xf32>
    %c0_254 = arith.constant 0 : index
    %c2_255 = arith.constant 2 : index
    %c0_256 = arith.constant 0 : index
    %497 = vector.load %arg10[%c0_254, %c2_255, %c0_256] : memref<4x18x18xf32, #tpu.memory_space<vmem>>, vector<1x16x16xf32>
    %498 = vector.shape_cast %497 : vector<1x16x16xf32> to vector<16x16xf32>
    %499 = tpu.concatenate %498, %498, %498, %498, %498, %498, %498, %498 in 1 : vector<16x16xf32>, vector<16x16xf32>, vector<16x16xf32>, vector<16x16xf32>, vector<16x16xf32>, vector<16x16xf32>, vector<16x16xf32>, vector<16x16xf32> -> vector<16x128xf32>
    %500 = vector.extract_strided_slice %6 {offsets = [6, 0], sizes = [1, 128], strides = [1, 1]} : vector<36x128xf32> to vector<1x128xf32>
    %501 = vector.broadcast %500 : vector<1x128xf32> to vector<16x128xf32>
    %502 = arith.mulf %499, %501 : vector<16x128xf32>
    %503 = arith.addf %496, %502 : vector<16x128xf32>
    %c0_257 = arith.constant 0 : index
    %c2_258 = arith.constant 2 : index
    %c1_259 = arith.constant 1 : index
    %504 = vector.load %arg10[%c0_257, %c2_258, %c1_259] : memref<4x18x18xf32, #tpu.memory_space<vmem>>, vector<1x16x16xf32>
    %505 = vector.shape_cast %504 : vector<1x16x16xf32> to vector<16x16xf32>
    %506 = tpu.concatenate %505, %505, %505, %505, %505, %505, %505, %505 in 1 : vector<16x16xf32>, vector<16x16xf32>, vector<16x16xf32>, vector<16x16xf32>, vector<16x16xf32>, vector<16x16xf32>, vector<16x16xf32>, vector<16x16xf32> -> vector<16x128xf32>
    %507 = vector.extract_strided_slice %6 {offsets = [7, 0], sizes = [1, 128], strides = [1, 1]} : vector<36x128xf32> to vector<1x128xf32>
    %508 = vector.broadcast %507 : vector<1x128xf32> to vector<16x128xf32>
    %509 = arith.mulf %506, %508 : vector<16x128xf32>
    %510 = arith.addf %503, %509 : vector<16x128xf32>
    %c0_260 = arith.constant 0 : index
    %c2_261 = arith.constant 2 : index
    %c2_262 = arith.constant 2 : index
    %511 = vector.load %arg10[%c0_260, %c2_261, %c2_262] : memref<4x18x18xf32, #tpu.memory_space<vmem>>, vector<1x16x16xf32>
    %512 = vector.shape_cast %511 : vector<1x16x16xf32> to vector<16x16xf32>
    %513 = tpu.concatenate %512, %512, %512, %512, %512, %512, %512, %512 in 1 : vector<16x16xf32>, vector<16x16xf32>, vector<16x16xf32>, vector<16x16xf32>, vector<16x16xf32>, vector<16x16xf32>, vector<16x16xf32>, vector<16x16xf32> -> vector<16x128xf32>
    %514 = vector.extract_strided_slice %6 {offsets = [8, 0], sizes = [1, 128], strides = [1, 1]} : vector<36x128xf32> to vector<1x128xf32>
    %515 = vector.broadcast %514 : vector<1x128xf32> to vector<16x128xf32>
    %516 = arith.mulf %513, %515 : vector<16x128xf32>
    %517 = arith.addf %510, %516 : vector<16x128xf32>
    %c1_263 = arith.constant 1 : index
    %c0_264 = arith.constant 0 : index
    %c0_265 = arith.constant 0 : index
    %518 = vector.load %arg10[%c1_263, %c0_264, %c0_265] : memref<4x18x18xf32, #tpu.memory_space<vmem>>, vector<1x16x16xf32>
    %519 = vector.shape_cast %518 : vector<1x16x16xf32> to vector<16x16xf32>
    %520 = tpu.concatenate %519, %519, %519, %519, %519, %519, %519, %519 in 1 : vector<16x16xf32>, vector<16x16xf32>, vector<16x16xf32>, vector<16x16xf32>, vector<16x16xf32>, vector<16x16xf32>, vector<16x16xf32>, vector<16x16xf32> -> vector<16x128xf32>
    %521 = vector.extract_strided_slice %6 {offsets = [9, 0], sizes = [1, 128], strides = [1, 1]} : vector<36x128xf32> to vector<1x128xf32>
    %522 = vector.broadcast %521 : vector<1x128xf32> to vector<16x128xf32>
    %523 = arith.mulf %520, %522 : vector<16x128xf32>
    %524 = arith.addf %517, %523 : vector<16x128xf32>
    %c1_266 = arith.constant 1 : index
    %c0_267 = arith.constant 0 : index
    %c1_268 = arith.constant 1 : index
    %525 = vector.load %arg10[%c1_266, %c0_267, %c1_268] : memref<4x18x18xf32, #tpu.memory_space<vmem>>, vector<1x16x16xf32>
    %526 = vector.shape_cast %525 : vector<1x16x16xf32> to vector<16x16xf32>
    %527 = tpu.concatenate %526, %526, %526, %526, %526, %526, %526, %526 in 1 : vector<16x16xf32>, vector<16x16xf32>, vector<16x16xf32>, vector<16x16xf32>, vector<16x16xf32>, vector<16x16xf32>, vector<16x16xf32>, vector<16x16xf32> -> vector<16x128xf32>
    %528 = vector.extract_strided_slice %6 {offsets = [10, 0], sizes = [1, 128], strides = [1, 1]} : vector<36x128xf32> to vector<1x128xf32>
    %529 = vector.broadcast %528 : vector<1x128xf32> to vector<16x128xf32>
    %530 = arith.mulf %527, %529 : vector<16x128xf32>
    %531 = arith.addf %524, %530 : vector<16x128xf32>
    %c1_269 = arith.constant 1 : index
    %c0_270 = arith.constant 0 : index
    %c2_271 = arith.constant 2 : index
    %532 = vector.load %arg10[%c1_269, %c0_270, %c2_271] : memref<4x18x18xf32, #tpu.memory_space<vmem>>, vector<1x16x16xf32>
    %533 = vector.shape_cast %532 : vector<1x16x16xf32> to vector<16x16xf32>
    %534 = tpu.concatenate %533, %533, %533, %533, %533, %533, %533, %533 in 1 : vector<16x16xf32>, vector<16x16xf32>, vector<16x16xf32>, vector<16x16xf32>, vector<16x16xf32>, vector<16x16xf32>, vector<16x16xf32>, vector<16x16xf32> -> vector<16x128xf32>
    %535 = vector.extract_strided_slice %6 {offsets = [11, 0], sizes = [1, 128], strides = [1, 1]} : vector<36x128xf32> to vector<1x128xf32>
    %536 = vector.broadcast %535 : vector<1x128xf32> to vector<16x128xf32>
    %537 = arith.mulf %534, %536 : vector<16x128xf32>
    %538 = arith.addf %531, %537 : vector<16x128xf32>
    %c1_272 = arith.constant 1 : index
    %c1_273 = arith.constant 1 : index
    %c0_274 = arith.constant 0 : index
    %539 = vector.load %arg10[%c1_272, %c1_273, %c0_274] : memref<4x18x18xf32, #tpu.memory_space<vmem>>, vector<1x16x16xf32>
    %540 = vector.shape_cast %539 : vector<1x16x16xf32> to vector<16x16xf32>
    %541 = tpu.concatenate %540, %540, %540, %540, %540, %540, %540, %540 in 1 : vector<16x16xf32>, vector<16x16xf32>, vector<16x16xf32>, vector<16x16xf32>, vector<16x16xf32>, vector<16x16xf32>, vector<16x16xf32>, vector<16x16xf32> -> vector<16x128xf32>
    %542 = vector.extract_strided_slice %6 {offsets = [12, 0], sizes = [1, 128], strides = [1, 1]} : vector<36x128xf32> to vector<1x128xf32>
    %543 = vector.broadcast %542 : vector<1x128xf32> to vector<16x128xf32>
    %544 = arith.mulf %541, %543 : vector<16x128xf32>
    %545 = arith.addf %538, %544 : vector<16x128xf32>
    %c1_275 = arith.constant 1 : index
    %c1_276 = arith.constant 1 : index
    %c1_277 = arith.constant 1 : index
    %546 = vector.load %arg10[%c1_275, %c1_276, %c1_277] : memref<4x18x18xf32, #tpu.memory_space<vmem>>, vector<1x16x16xf32>
    %547 = vector.shape_cast %546 : vector<1x16x16xf32> to vector<16x16xf32>
    %548 = tpu.concatenate %547, %547, %547, %547, %547, %547, %547, %547 in 1 : vector<16x16xf32>, vector<16x16xf32>, vector<16x16xf32>, vector<16x16xf32>, vector<16x16xf32>, vector<16x16xf32>, vector<16x16xf32>, vector<16x16xf32> -> vector<16x128xf32>
    %549 = vector.extract_strided_slice %6 {offsets = [13, 0], sizes = [1, 128], strides = [1, 1]} : vector<36x128xf32> to vector<1x128xf32>
    %550 = vector.broadcast %549 : vector<1x128xf32> to vector<16x128xf32>
    %551 = arith.mulf %548, %550 : vector<16x128xf32>
    %552 = arith.addf %545, %551 : vector<16x128xf32>
    %c1_278 = arith.constant 1 : index
    %c1_279 = arith.constant 1 : index
    %c2_280 = arith.constant 2 : index
    %553 = vector.load %arg10[%c1_278, %c1_279, %c2_280] : memref<4x18x18xf32, #tpu.memory_space<vmem>>, vector<1x16x16xf32>
    %554 = vector.shape_cast %553 : vector<1x16x16xf32> to vector<16x16xf32>
    %555 = tpu.concatenate %554, %554, %554, %554, %554, %554, %554, %554 in 1 : vector<16x16xf32>, vector<16x16xf32>, vector<16x16xf32>, vector<16x16xf32>, vector<16x16xf32>, vector<16x16xf32>, vector<16x16xf32>, vector<16x16xf32> -> vector<16x128xf32>
    %556 = vector.extract_strided_slice %6 {offsets = [14, 0], sizes = [1, 128], strides = [1, 1]} : vector<36x128xf32> to vector<1x128xf32>
    %557 = vector.broadcast %556 : vector<1x128xf32> to vector<16x128xf32>
    %558 = arith.mulf %555, %557 : vector<16x128xf32>
    %559 = arith.addf %552, %558 : vector<16x128xf32>
    %c1_281 = arith.constant 1 : index
    %c2_282 = arith.constant 2 : index
    %c0_283 = arith.constant 0 : index
    %560 = vector.load %arg10[%c1_281, %c2_282, %c0_283] : memref<4x18x18xf32, #tpu.memory_space<vmem>>, vector<1x16x16xf32>
    %561 = vector.shape_cast %560 : vector<1x16x16xf32> to vector<16x16xf32>
    %562 = tpu.concatenate %561, %561, %561, %561, %561, %561, %561, %561 in 1 : vector<16x16xf32>, vector<16x16xf32>, vector<16x16xf32>, vector<16x16xf32>, vector<16x16xf32>, vector<16x16xf32>, vector<16x16xf32>, vector<16x16xf32> -> vector<16x128xf32>
    %563 = vector.extract_strided_slice %6 {offsets = [15, 0], sizes = [1, 128], strides = [1, 1]} : vector<36x128xf32> to vector<1x128xf32>
    %564 = vector.broadcast %563 : vector<1x128xf32> to vector<16x128xf32>
    %565 = arith.mulf %562, %564 : vector<16x128xf32>
    %566 = arith.addf %559, %565 : vector<16x128xf32>
    %c1_284 = arith.constant 1 : index
    %c2_285 = arith.constant 2 : index
    %c1_286 = arith.constant 1 : index
    %567 = vector.load %arg10[%c1_284, %c2_285, %c1_286] : memref<4x18x18xf32, #tpu.memory_space<vmem>>, vector<1x16x16xf32>
    %568 = vector.shape_cast %567 : vector<1x16x16xf32> to vector<16x16xf32>
    %569 = tpu.concatenate %568, %568, %568, %568, %568, %568, %568, %568 in 1 : vector<16x16xf32>, vector<16x16xf32>, vector<16x16xf32>, vector<16x16xf32>, vector<16x16xf32>, vector<16x16xf32>, vector<16x16xf32>, vector<16x16xf32> -> vector<16x128xf32>
    %570 = vector.extract_strided_slice %6 {offsets = [16, 0], sizes = [1, 128], strides = [1, 1]} : vector<36x128xf32> to vector<1x128xf32>
    %571 = vector.broadcast %570 : vector<1x128xf32> to vector<16x128xf32>
    %572 = arith.mulf %569, %571 : vector<16x128xf32>
    %573 = arith.addf %566, %572 : vector<16x128xf32>
    %c1_287 = arith.constant 1 : index
    %c2_288 = arith.constant 2 : index
    %c2_289 = arith.constant 2 : index
    %574 = vector.load %arg10[%c1_287, %c2_288, %c2_289] : memref<4x18x18xf32, #tpu.memory_space<vmem>>, vector<1x16x16xf32>
    %575 = vector.shape_cast %574 : vector<1x16x16xf32> to vector<16x16xf32>
    %576 = tpu.concatenate %575, %575, %575, %575, %575, %575, %575, %575 in 1 : vector<16x16xf32>, vector<16x16xf32>, vector<16x16xf32>, vector<16x16xf32>, vector<16x16xf32>, vector<16x16xf32>, vector<16x16xf32>, vector<16x16xf32> -> vector<16x128xf32>
    %577 = vector.extract_strided_slice %6 {offsets = [17, 0], sizes = [1, 128], strides = [1, 1]} : vector<36x128xf32> to vector<1x128xf32>
    %578 = vector.broadcast %577 : vector<1x128xf32> to vector<16x128xf32>
    %579 = arith.mulf %576, %578 : vector<16x128xf32>
    %580 = arith.addf %573, %579 : vector<16x128xf32>
    %c2_290 = arith.constant 2 : index
    %c0_291 = arith.constant 0 : index
    %c0_292 = arith.constant 0 : index
    %581 = vector.load %arg10[%c2_290, %c0_291, %c0_292] : memref<4x18x18xf32, #tpu.memory_space<vmem>>, vector<1x16x16xf32>
    %582 = vector.shape_cast %581 : vector<1x16x16xf32> to vector<16x16xf32>
    %583 = tpu.concatenate %582, %582, %582, %582, %582, %582, %582, %582 in 1 : vector<16x16xf32>, vector<16x16xf32>, vector<16x16xf32>, vector<16x16xf32>, vector<16x16xf32>, vector<16x16xf32>, vector<16x16xf32>, vector<16x16xf32> -> vector<16x128xf32>
    %584 = vector.extract_strided_slice %6 {offsets = [18, 0], sizes = [1, 128], strides = [1, 1]} : vector<36x128xf32> to vector<1x128xf32>
    %585 = vector.broadcast %584 : vector<1x128xf32> to vector<16x128xf32>
    %586 = arith.mulf %583, %585 : vector<16x128xf32>
    %587 = arith.addf %580, %586 : vector<16x128xf32>
    %c2_293 = arith.constant 2 : index
    %c0_294 = arith.constant 0 : index
    %c1_295 = arith.constant 1 : index
    %588 = vector.load %arg10[%c2_293, %c0_294, %c1_295] : memref<4x18x18xf32, #tpu.memory_space<vmem>>, vector<1x16x16xf32>
    %589 = vector.shape_cast %588 : vector<1x16x16xf32> to vector<16x16xf32>
    %590 = tpu.concatenate %589, %589, %589, %589, %589, %589, %589, %589 in 1 : vector<16x16xf32>, vector<16x16xf32>, vector<16x16xf32>, vector<16x16xf32>, vector<16x16xf32>, vector<16x16xf32>, vector<16x16xf32>, vector<16x16xf32> -> vector<16x128xf32>
    %591 = vector.extract_strided_slice %6 {offsets = [19, 0], sizes = [1, 128], strides = [1, 1]} : vector<36x128xf32> to vector<1x128xf32>
    %592 = vector.broadcast %591 : vector<1x128xf32> to vector<16x128xf32>
    %593 = arith.mulf %590, %592 : vector<16x128xf32>
    %594 = arith.addf %587, %593 : vector<16x128xf32>
    %c2_296 = arith.constant 2 : index
    %c0_297 = arith.constant 0 : index
    %c2_298 = arith.constant 2 : index
    %595 = vector.load %arg10[%c2_296, %c0_297, %c2_298] : memref<4x18x18xf32, #tpu.memory_space<vmem>>, vector<1x16x16xf32>
    %596 = vector.shape_cast %595 : vector<1x16x16xf32> to vector<16x16xf32>
    %597 = tpu.concatenate %596, %596, %596, %596, %596, %596, %596, %596 in 1 : vector<16x16xf32>, vector<16x16xf32>, vector<16x16xf32>, vector<16x16xf32>, vector<16x16xf32>, vector<16x16xf32>, vector<16x16xf32>, vector<16x16xf32> -> vector<16x128xf32>
    %598 = vector.extract_strided_slice %6 {offsets = [20, 0], sizes = [1, 128], strides = [1, 1]} : vector<36x128xf32> to vector<1x128xf32>
    %599 = vector.broadcast %598 : vector<1x128xf32> to vector<16x128xf32>
    %600 = arith.mulf %597, %599 : vector<16x128xf32>
    %601 = arith.addf %594, %600 : vector<16x128xf32>
    %c2_299 = arith.constant 2 : index
    %c1_300 = arith.constant 1 : index
    %c0_301 = arith.constant 0 : index
    %602 = vector.load %arg10[%c2_299, %c1_300, %c0_301] : memref<4x18x18xf32, #tpu.memory_space<vmem>>, vector<1x16x16xf32>
    %603 = vector.shape_cast %602 : vector<1x16x16xf32> to vector<16x16xf32>
    %604 = tpu.concatenate %603, %603, %603, %603, %603, %603, %603, %603 in 1 : vector<16x16xf32>, vector<16x16xf32>, vector<16x16xf32>, vector<16x16xf32>, vector<16x16xf32>, vector<16x16xf32>, vector<16x16xf32>, vector<16x16xf32> -> vector<16x128xf32>
    %605 = vector.extract_strided_slice %6 {offsets = [21, 0], sizes = [1, 128], strides = [1, 1]} : vector<36x128xf32> to vector<1x128xf32>
    %606 = vector.broadcast %605 : vector<1x128xf32> to vector<16x128xf32>
    %607 = arith.mulf %604, %606 : vector<16x128xf32>
    %608 = arith.addf %601, %607 : vector<16x128xf32>
    %c2_302 = arith.constant 2 : index
    %c1_303 = arith.constant 1 : index
    %c1_304 = arith.constant 1 : index
    %609 = vector.load %arg10[%c2_302, %c1_303, %c1_304] : memref<4x18x18xf32, #tpu.memory_space<vmem>>, vector<1x16x16xf32>
    %610 = vector.shape_cast %609 : vector<1x16x16xf32> to vector<16x16xf32>
    %611 = tpu.concatenate %610, %610, %610, %610, %610, %610, %610, %610 in 1 : vector<16x16xf32>, vector<16x16xf32>, vector<16x16xf32>, vector<16x16xf32>, vector<16x16xf32>, vector<16x16xf32>, vector<16x16xf32>, vector<16x16xf32> -> vector<16x128xf32>
    %612 = vector.extract_strided_slice %6 {offsets = [22, 0], sizes = [1, 128], strides = [1, 1]} : vector<36x128xf32> to vector<1x128xf32>
    %613 = vector.broadcast %612 : vector<1x128xf32> to vector<16x128xf32>
    %614 = arith.mulf %611, %613 : vector<16x128xf32>
    %615 = arith.addf %608, %614 : vector<16x128xf32>
    %c2_305 = arith.constant 2 : index
    %c1_306 = arith.constant 1 : index
    %c2_307 = arith.constant 2 : index
    %616 = vector.load %arg10[%c2_305, %c1_306, %c2_307] : memref<4x18x18xf32, #tpu.memory_space<vmem>>, vector<1x16x16xf32>
    %617 = vector.shape_cast %616 : vector<1x16x16xf32> to vector<16x16xf32>
    %618 = tpu.concatenate %617, %617, %617, %617, %617, %617, %617, %617 in 1 : vector<16x16xf32>, vector<16x16xf32>, vector<16x16xf32>, vector<16x16xf32>, vector<16x16xf32>, vector<16x16xf32>, vector<16x16xf32>, vector<16x16xf32> -> vector<16x128xf32>
    %619 = vector.extract_strided_slice %6 {offsets = [23, 0], sizes = [1, 128], strides = [1, 1]} : vector<36x128xf32> to vector<1x128xf32>
    %620 = vector.broadcast %619 : vector<1x128xf32> to vector<16x128xf32>
    %621 = arith.mulf %618, %620 : vector<16x128xf32>
    %622 = arith.addf %615, %621 : vector<16x128xf32>
    %c2_308 = arith.constant 2 : index
    %c2_309 = arith.constant 2 : index
    %c0_310 = arith.constant 0 : index
    %623 = vector.load %arg10[%c2_308, %c2_309, %c0_310] : memref<4x18x18xf32, #tpu.memory_space<vmem>>, vector<1x16x16xf32>
    %624 = vector.shape_cast %623 : vector<1x16x16xf32> to vector<16x16xf32>
    %625 = tpu.concatenate %624, %624, %624, %624, %624, %624, %624, %624 in 1 : vector<16x16xf32>, vector<16x16xf32>, vector<16x16xf32>, vector<16x16xf32>, vector<16x16xf32>, vector<16x16xf32>, vector<16x16xf32>, vector<16x16xf32> -> vector<16x128xf32>
    %626 = vector.extract_strided_slice %6 {offsets = [24, 0], sizes = [1, 128], strides = [1, 1]} : vector<36x128xf32> to vector<1x128xf32>
    %627 = vector.broadcast %626 : vector<1x128xf32> to vector<16x128xf32>
    %628 = arith.mulf %625, %627 : vector<16x128xf32>
    %629 = arith.addf %622, %628 : vector<16x128xf32>
    %c2_311 = arith.constant 2 : index
    %c2_312 = arith.constant 2 : index
    %c1_313 = arith.constant 1 : index
    %630 = vector.load %arg10[%c2_311, %c2_312, %c1_313] : memref<4x18x18xf32, #tpu.memory_space<vmem>>, vector<1x16x16xf32>
    %631 = vector.shape_cast %630 : vector<1x16x16xf32> to vector<16x16xf32>
    %632 = tpu.concatenate %631, %631, %631, %631, %631, %631, %631, %631 in 1 : vector<16x16xf32>, vector<16x16xf32>, vector<16x16xf32>, vector<16x16xf32>, vector<16x16xf32>, vector<16x16xf32>, vector<16x16xf32>, vector<16x16xf32> -> vector<16x128xf32>
    %633 = vector.extract_strided_slice %6 {offsets = [25, 0], sizes = [1, 128], strides = [1, 1]} : vector<36x128xf32> to vector<1x128xf32>
    %634 = vector.broadcast %633 : vector<1x128xf32> to vector<16x128xf32>
    %635 = arith.mulf %632, %634 : vector<16x128xf32>
    %636 = arith.addf %629, %635 : vector<16x128xf32>
    %c2_314 = arith.constant 2 : index
    %c2_315 = arith.constant 2 : index
    %c2_316 = arith.constant 2 : index
    %637 = vector.load %arg10[%c2_314, %c2_315, %c2_316] : memref<4x18x18xf32, #tpu.memory_space<vmem>>, vector<1x16x16xf32>
    %638 = vector.shape_cast %637 : vector<1x16x16xf32> to vector<16x16xf32>
    %639 = tpu.concatenate %638, %638, %638, %638, %638, %638, %638, %638 in 1 : vector<16x16xf32>, vector<16x16xf32>, vector<16x16xf32>, vector<16x16xf32>, vector<16x16xf32>, vector<16x16xf32>, vector<16x16xf32>, vector<16x16xf32> -> vector<16x128xf32>
    %640 = vector.extract_strided_slice %6 {offsets = [26, 0], sizes = [1, 128], strides = [1, 1]} : vector<36x128xf32> to vector<1x128xf32>
    %641 = vector.broadcast %640 : vector<1x128xf32> to vector<16x128xf32>
    %642 = arith.mulf %639, %641 : vector<16x128xf32>
    %643 = arith.addf %636, %642 : vector<16x128xf32>
    %c3_317 = arith.constant 3 : index
    %c0_318 = arith.constant 0 : index
    %c0_319 = arith.constant 0 : index
    %644 = vector.load %arg10[%c3_317, %c0_318, %c0_319] : memref<4x18x18xf32, #tpu.memory_space<vmem>>, vector<1x16x16xf32>
    %645 = vector.shape_cast %644 : vector<1x16x16xf32> to vector<16x16xf32>
    %646 = tpu.concatenate %645, %645, %645, %645, %645, %645, %645, %645 in 1 : vector<16x16xf32>, vector<16x16xf32>, vector<16x16xf32>, vector<16x16xf32>, vector<16x16xf32>, vector<16x16xf32>, vector<16x16xf32>, vector<16x16xf32> -> vector<16x128xf32>
    %647 = vector.extract_strided_slice %6 {offsets = [27, 0], sizes = [1, 128], strides = [1, 1]} : vector<36x128xf32> to vector<1x128xf32>
    %648 = vector.broadcast %647 : vector<1x128xf32> to vector<16x128xf32>
    %649 = arith.mulf %646, %648 : vector<16x128xf32>
    %650 = arith.addf %643, %649 : vector<16x128xf32>
    %c3_320 = arith.constant 3 : index
    %c0_321 = arith.constant 0 : index
    %c1_322 = arith.constant 1 : index
    %651 = vector.load %arg10[%c3_320, %c0_321, %c1_322] : memref<4x18x18xf32, #tpu.memory_space<vmem>>, vector<1x16x16xf32>
    %652 = vector.shape_cast %651 : vector<1x16x16xf32> to vector<16x16xf32>
    %653 = tpu.concatenate %652, %652, %652, %652, %652, %652, %652, %652 in 1 : vector<16x16xf32>, vector<16x16xf32>, vector<16x16xf32>, vector<16x16xf32>, vector<16x16xf32>, vector<16x16xf32>, vector<16x16xf32>, vector<16x16xf32> -> vector<16x128xf32>
    %654 = vector.extract_strided_slice %6 {offsets = [28, 0], sizes = [1, 128], strides = [1, 1]} : vector<36x128xf32> to vector<1x128xf32>
    %655 = vector.broadcast %654 : vector<1x128xf32> to vector<16x128xf32>
    %656 = arith.mulf %653, %655 : vector<16x128xf32>
    %657 = arith.addf %650, %656 : vector<16x128xf32>
    %c3_323 = arith.constant 3 : index
    %c0_324 = arith.constant 0 : index
    %c2_325 = arith.constant 2 : index
    %658 = vector.load %arg10[%c3_323, %c0_324, %c2_325] : memref<4x18x18xf32, #tpu.memory_space<vmem>>, vector<1x16x16xf32>
    %659 = vector.shape_cast %658 : vector<1x16x16xf32> to vector<16x16xf32>
    %660 = tpu.concatenate %659, %659, %659, %659, %659, %659, %659, %659 in 1 : vector<16x16xf32>, vector<16x16xf32>, vector<16x16xf32>, vector<16x16xf32>, vector<16x16xf32>, vector<16x16xf32>, vector<16x16xf32>, vector<16x16xf32> -> vector<16x128xf32>
    %661 = vector.extract_strided_slice %6 {offsets = [29, 0], sizes = [1, 128], strides = [1, 1]} : vector<36x128xf32> to vector<1x128xf32>
    %662 = vector.broadcast %661 : vector<1x128xf32> to vector<16x128xf32>
    %663 = arith.mulf %660, %662 : vector<16x128xf32>
    %664 = arith.addf %657, %663 : vector<16x128xf32>
    %c3_326 = arith.constant 3 : index
    %c1_327 = arith.constant 1 : index
    %c0_328 = arith.constant 0 : index
    %665 = vector.load %arg10[%c3_326, %c1_327, %c0_328] : memref<4x18x18xf32, #tpu.memory_space<vmem>>, vector<1x16x16xf32>
    %666 = vector.shape_cast %665 : vector<1x16x16xf32> to vector<16x16xf32>
    %667 = tpu.concatenate %666, %666, %666, %666, %666, %666, %666, %666 in 1 : vector<16x16xf32>, vector<16x16xf32>, vector<16x16xf32>, vector<16x16xf32>, vector<16x16xf32>, vector<16x16xf32>, vector<16x16xf32>, vector<16x16xf32> -> vector<16x128xf32>
    %668 = vector.extract_strided_slice %6 {offsets = [30, 0], sizes = [1, 128], strides = [1, 1]} : vector<36x128xf32> to vector<1x128xf32>
    %669 = vector.broadcast %668 : vector<1x128xf32> to vector<16x128xf32>
    %670 = arith.mulf %667, %669 : vector<16x128xf32>
    %671 = arith.addf %664, %670 : vector<16x128xf32>
    %c3_329 = arith.constant 3 : index
    %c1_330 = arith.constant 1 : index
    %c1_331 = arith.constant 1 : index
    %672 = vector.load %arg10[%c3_329, %c1_330, %c1_331] : memref<4x18x18xf32, #tpu.memory_space<vmem>>, vector<1x16x16xf32>
    %673 = vector.shape_cast %672 : vector<1x16x16xf32> to vector<16x16xf32>
    %674 = tpu.concatenate %673, %673, %673, %673, %673, %673, %673, %673 in 1 : vector<16x16xf32>, vector<16x16xf32>, vector<16x16xf32>, vector<16x16xf32>, vector<16x16xf32>, vector<16x16xf32>, vector<16x16xf32>, vector<16x16xf32> -> vector<16x128xf32>
    %675 = vector.extract_strided_slice %6 {offsets = [31, 0], sizes = [1, 128], strides = [1, 1]} : vector<36x128xf32> to vector<1x128xf32>
    %676 = vector.broadcast %675 : vector<1x128xf32> to vector<16x128xf32>
    %677 = arith.mulf %674, %676 : vector<16x128xf32>
    %678 = arith.addf %671, %677 : vector<16x128xf32>
    %c3_332 = arith.constant 3 : index
    %c1_333 = arith.constant 1 : index
    %c2_334 = arith.constant 2 : index
    %679 = vector.load %arg10[%c3_332, %c1_333, %c2_334] : memref<4x18x18xf32, #tpu.memory_space<vmem>>, vector<1x16x16xf32>
    %680 = vector.shape_cast %679 : vector<1x16x16xf32> to vector<16x16xf32>
    %681 = tpu.concatenate %680, %680, %680, %680, %680, %680, %680, %680 in 1 : vector<16x16xf32>, vector<16x16xf32>, vector<16x16xf32>, vector<16x16xf32>, vector<16x16xf32>, vector<16x16xf32>, vector<16x16xf32>, vector<16x16xf32> -> vector<16x128xf32>
    %682 = vector.extract_strided_slice %6 {offsets = [32, 0], sizes = [1, 128], strides = [1, 1]} : vector<36x128xf32> to vector<1x128xf32>
    %683 = vector.broadcast %682 : vector<1x128xf32> to vector<16x128xf32>
    %684 = arith.mulf %681, %683 : vector<16x128xf32>
    %685 = arith.addf %678, %684 : vector<16x128xf32>
    %c3_335 = arith.constant 3 : index
    %c2_336 = arith.constant 2 : index
    %c0_337 = arith.constant 0 : index
    %686 = vector.load %arg10[%c3_335, %c2_336, %c0_337] : memref<4x18x18xf32, #tpu.memory_space<vmem>>, vector<1x16x16xf32>
    %687 = vector.shape_cast %686 : vector<1x16x16xf32> to vector<16x16xf32>
    %688 = tpu.concatenate %687, %687, %687, %687, %687, %687, %687, %687 in 1 : vector<16x16xf32>, vector<16x16xf32>, vector<16x16xf32>, vector<16x16xf32>, vector<16x16xf32>, vector<16x16xf32>, vector<16x16xf32>, vector<16x16xf32> -> vector<16x128xf32>
    %689 = vector.extract_strided_slice %6 {offsets = [33, 0], sizes = [1, 128], strides = [1, 1]} : vector<36x128xf32> to vector<1x128xf32>
    %690 = vector.broadcast %689 : vector<1x128xf32> to vector<16x128xf32>
    %691 = arith.mulf %688, %690 : vector<16x128xf32>
    %692 = arith.addf %685, %691 : vector<16x128xf32>
    %c3_338 = arith.constant 3 : index
    %c2_339 = arith.constant 2 : index
    %c1_340 = arith.constant 1 : index
    %693 = vector.load %arg10[%c3_338, %c2_339, %c1_340] : memref<4x18x18xf32, #tpu.memory_space<vmem>>, vector<1x16x16xf32>
    %694 = vector.shape_cast %693 : vector<1x16x16xf32> to vector<16x16xf32>
    %695 = tpu.concatenate %694, %694, %694, %694, %694, %694, %694, %694 in 1 : vector<16x16xf32>, vector<16x16xf32>, vector<16x16xf32>, vector<16x16xf32>, vector<16x16xf32>, vector<16x16xf32>, vector<16x16xf32>, vector<16x16xf32> -> vector<16x128xf32>
    %696 = vector.extract_strided_slice %6 {offsets = [34, 0], sizes = [1, 128], strides = [1, 1]} : vector<36x128xf32> to vector<1x128xf32>
    %697 = vector.broadcast %696 : vector<1x128xf32> to vector<16x128xf32>
    %698 = arith.mulf %695, %697 : vector<16x128xf32>
    %699 = arith.addf %692, %698 : vector<16x128xf32>
    %c3_341 = arith.constant 3 : index
    %c2_342 = arith.constant 2 : index
    %c2_343 = arith.constant 2 : index
    %700 = vector.load %arg10[%c3_341, %c2_342, %c2_343] : memref<4x18x18xf32, #tpu.memory_space<vmem>>, vector<1x16x16xf32>
    %701 = vector.shape_cast %700 : vector<1x16x16xf32> to vector<16x16xf32>
    %702 = tpu.concatenate %701, %701, %701, %701, %701, %701, %701, %701 in 1 : vector<16x16xf32>, vector<16x16xf32>, vector<16x16xf32>, vector<16x16xf32>, vector<16x16xf32>, vector<16x16xf32>, vector<16x16xf32>, vector<16x16xf32> -> vector<16x128xf32>
    %703 = vector.extract_strided_slice %6 {offsets = [35, 0], sizes = [1, 128], strides = [1, 1]} : vector<36x128xf32> to vector<1x128xf32>
    %704 = vector.broadcast %703 : vector<1x128xf32> to vector<16x128xf32>
    %705 = arith.mulf %702, %704 : vector<16x128xf32>
    %706 = arith.addf %699, %705 : vector<16x128xf32>
    %707 = vector.broadcast %7 : vector<1x128xf32> to vector<16x128xf32>
    %708 = arith.addf %706, %707 : vector<16x128xf32>
    %cst_344 = arith.constant 0.000000e+00 : f32
    %709 = vector.broadcast %cst_344 : f32 to vector<16x128xf32>
    %710 = arith.maximumf %708, %709 : vector<16x128xf32>
    %c0_345 = arith.constant 0 : index
    %c0_346 = arith.constant 0 : index
    %711 = vector.load %arg13[%c0_345, %c0_346] : memref<16x128xf32, #tpu.memory_space<vmem>>, vector<16x128xf32>
    tpu.vector_store %arg13[%c0_345, %c0_346], %710 {strides = array<i32>} : memref<16x128xf32, #tpu.memory_space<vmem>>, vector<16x128xf32>,
    %c0_347 = arith.constant 0 : index
    %c0_348 = arith.constant 0 : index
    %712 = tpu.strided_load %arg13[%c0_347, %c0_348] {strides = array<i32: 2, 1>} : memref<16x128xf32, #tpu.memory_space<vmem>>, vector<8x128xf32>
    %c1_349 = arith.constant 1 : index
    %c0_350 = arith.constant 0 : index
    %713 = tpu.strided_load %arg13[%c1_349, %c0_350] {strides = array<i32: 2, 1>} : memref<16x128xf32, #tpu.memory_space<vmem>>, vector<8x128xf32>
    %714 = arith.maximumf %712, %713 : vector<8x128xf32>
    %715 = tpu.transpose %714, [1, 0] : vector<8x128xf32> -> vector<128x8xf32>
    %c0_351 = arith.constant 0 : index
    %c0_352 = arith.constant 0 : index
    %716 = vector.load %arg14[%c0_351, %c0_352] : memref<128x8xf32, #tpu.memory_space<vmem>>, vector<128x8xf32>
    tpu.vector_store %arg14[%c0_351, %c0_352], %715 {strides = array<i32>} : memref<128x8xf32, #tpu.memory_space<vmem>>, vector<128x8xf32>,
    %c0_353 = arith.constant 0 : index
    %c0_354 = arith.constant 0 : index
    %717 = tpu.strided_load %arg14[%c0_353, %c0_354] {strides = array<i32: 2, 1>} : memref<128x8xf32, #tpu.memory_space<vmem>>, vector<64x8xf32>
    %c1_355 = arith.constant 1 : index
    %c0_356 = arith.constant 0 : index
    %718 = tpu.strided_load %arg14[%c1_355, %c0_356] {strides = array<i32: 2, 1>} : memref<128x8xf32, #tpu.memory_space<vmem>>, vector<64x8xf32>
    %719 = arith.maximumf %717, %718 : vector<64x8xf32>
    %720 = tpu.transpose %719, [1, 0] : vector<64x8xf32> -> vector<8x64xf32>
    %c1_357 = arith.constant 1 : index
    %c0_358 = arith.constant 0 : index
    %c0_359 = arith.constant 0 : index
    %721 = vector.load %arg15[%c1_357, %c0_358, %c0_359] : memref<2x8x64xf32, #tpu.memory_space<vmem>>, vector<1x8x64xf32>
    %722 = vector.shape_cast %721 : vector<1x8x64xf32> to vector<8x64xf32>
    %723 = vector.shape_cast %720 : vector<8x64xf32> to vector<1x8x64xf32>
    tpu.vector_store %arg15[%c1_357, %c0_358, %c0_359], %723 {strides = array<i32>} : memref<2x8x64xf32, #tpu.memory_space<vmem>>, vector<1x8x64xf32>,
    %cst_360 = arith.constant 0.000000e+00 : f32
    %724 = vector.broadcast %cst_360 : f32 to vector<2x29xf32>
    %c0_361 = arith.constant 0 : index
    %c0_362 = arith.constant 0 : index
    %c0_363 = arith.constant 0 : index
    %725 = vector.load %arg15[%c0_361, %c0_362, %c0_363] : memref<2x8x64xf32, #tpu.memory_space<vmem>>, vector<2x1x64xf32>
    %726 = vector.shape_cast %725 : vector<2x1x64xf32> to vector<2x64xf32>
    %c0_364 = arith.constant 0 : index
    %c0_365 = arith.constant 0 : index
    %c0_366 = arith.constant 0 : index
    %727 = vector.load %arg6[%c0_364, %c0_365, %c0_366] : memref<8x64x29xf32, #tpu.memory_space<vmem>>, vector<1x64x29xf32>
    %728 = vector.shape_cast %727 : vector<1x64x29xf32> to vector<64x29xf32>
    %cst_367 = arith.constant dense<0.000000e+00> : vector<2x29xf32>
    %729 = tpu.matmul %726, %728, %cst_367 {dimension_numbers = #tpu.dot_dimension_numbers<[1], [0], [0], [1], [0, 0, 1, 1], [], []>} : vector<2x64xf32>, vector<64x29xf32>, vector<2x29xf32> -> vector<2x29xf32>
    %730 = arith.addf %724, %729 : vector<2x29xf32>
    %c0_368 = arith.constant 0 : index
    %c1_369 = arith.constant 1 : index
    %c0_370 = arith.constant 0 : index
    %731 = vector.load %arg15[%c0_368, %c1_369, %c0_370] : memref<2x8x64xf32, #tpu.memory_space<vmem>>, vector<2x1x64xf32>
    %732 = vector.shape_cast %731 : vector<2x1x64xf32> to vector<2x64xf32>
    %c1_371 = arith.constant 1 : index
    %c0_372 = arith.constant 0 : index
    %c0_373 = arith.constant 0 : index
    %733 = vector.load %arg6[%c1_371, %c0_372, %c0_373] : memref<8x64x29xf32, #tpu.memory_space<vmem>>, vector<1x64x29xf32>
    %734 = vector.shape_cast %733 : vector<1x64x29xf32> to vector<64x29xf32>
    %cst_374 = arith.constant dense<0.000000e+00> : vector<2x29xf32>
    %735 = tpu.matmul %732, %734, %cst_374 {dimension_numbers = #tpu.dot_dimension_numbers<[1], [0], [0], [1], [0, 0, 1, 1], [], []>} : vector<2x64xf32>, vector<64x29xf32>, vector<2x29xf32> -> vector<2x29xf32>
    %736 = arith.addf %730, %735 : vector<2x29xf32>
    %c0_375 = arith.constant 0 : index
    %c2_376 = arith.constant 2 : index
    %c0_377 = arith.constant 0 : index
    %737 = vector.load %arg15[%c0_375, %c2_376, %c0_377] : memref<2x8x64xf32, #tpu.memory_space<vmem>>, vector<2x1x64xf32>
    %738 = vector.shape_cast %737 : vector<2x1x64xf32> to vector<2x64xf32>
    %c2_378 = arith.constant 2 : index
    %c0_379 = arith.constant 0 : index
    %c0_380 = arith.constant 0 : index
    %739 = vector.load %arg6[%c2_378, %c0_379, %c0_380] : memref<8x64x29xf32, #tpu.memory_space<vmem>>, vector<1x64x29xf32>
    %740 = vector.shape_cast %739 : vector<1x64x29xf32> to vector<64x29xf32>
    %cst_381 = arith.constant dense<0.000000e+00> : vector<2x29xf32>
    %741 = tpu.matmul %738, %740, %cst_381 {dimension_numbers = #tpu.dot_dimension_numbers<[1], [0], [0], [1], [0, 0, 1, 1], [], []>} : vector<2x64xf32>, vector<64x29xf32>, vector<2x29xf32> -> vector<2x29xf32>
    %742 = arith.addf %736, %741 : vector<2x29xf32>
    %c0_382 = arith.constant 0 : index
    %c3_383 = arith.constant 3 : index
    %c0_384 = arith.constant 0 : index
    %743 = vector.load %arg15[%c0_382, %c3_383, %c0_384] : memref<2x8x64xf32, #tpu.memory_space<vmem>>, vector<2x1x64xf32>
    %744 = vector.shape_cast %743 : vector<2x1x64xf32> to vector<2x64xf32>
    %c3_385 = arith.constant 3 : index
    %c0_386 = arith.constant 0 : index
    %c0_387 = arith.constant 0 : index
    %745 = vector.load %arg6[%c3_385, %c0_386, %c0_387] : memref<8x64x29xf32, #tpu.memory_space<vmem>>, vector<1x64x29xf32>
    %746 = vector.shape_cast %745 : vector<1x64x29xf32> to vector<64x29xf32>
    %cst_388 = arith.constant dense<0.000000e+00> : vector<2x29xf32>
    %747 = tpu.matmul %744, %746, %cst_388 {dimension_numbers = #tpu.dot_dimension_numbers<[1], [0], [0], [1], [0, 0, 1, 1], [], []>} : vector<2x64xf32>, vector<64x29xf32>, vector<2x29xf32> -> vector<2x29xf32>
    %748 = arith.addf %742, %747 : vector<2x29xf32>
    %c0_389 = arith.constant 0 : index
    %c4 = arith.constant 4 : index
    %c0_390 = arith.constant 0 : index
    %749 = vector.load %arg15[%c0_389, %c4, %c0_390] : memref<2x8x64xf32, #tpu.memory_space<vmem>>, vector<2x1x64xf32>
    %750 = vector.shape_cast %749 : vector<2x1x64xf32> to vector<2x64xf32>
    %c4_391 = arith.constant 4 : index
    %c0_392 = arith.constant 0 : index
    %c0_393 = arith.constant 0 : index
    %751 = vector.load %arg6[%c4_391, %c0_392, %c0_393] : memref<8x64x29xf32, #tpu.memory_space<vmem>>, vector<1x64x29xf32>
    %752 = vector.shape_cast %751 : vector<1x64x29xf32> to vector<64x29xf32>
    %cst_394 = arith.constant dense<0.000000e+00> : vector<2x29xf32>
    %753 = tpu.matmul %750, %752, %cst_394 {dimension_numbers = #tpu.dot_dimension_numbers<[1], [0], [0], [1], [0, 0, 1, 1], [], []>} : vector<2x64xf32>, vector<64x29xf32>, vector<2x29xf32> -> vector<2x29xf32>
    %754 = arith.addf %748, %753 : vector<2x29xf32>
    %c0_395 = arith.constant 0 : index
    %c5 = arith.constant 5 : index
    %c0_396 = arith.constant 0 : index
    %755 = vector.load %arg15[%c0_395, %c5, %c0_396] : memref<2x8x64xf32, #tpu.memory_space<vmem>>, vector<2x1x64xf32>
    %756 = vector.shape_cast %755 : vector<2x1x64xf32> to vector<2x64xf32>
    %c5_397 = arith.constant 5 : index
    %c0_398 = arith.constant 0 : index
    %c0_399 = arith.constant 0 : index
    %757 = vector.load %arg6[%c5_397, %c0_398, %c0_399] : memref<8x64x29xf32, #tpu.memory_space<vmem>>, vector<1x64x29xf32>
    %758 = vector.shape_cast %757 : vector<1x64x29xf32> to vector<64x29xf32>
    %cst_400 = arith.constant dense<0.000000e+00> : vector<2x29xf32>
    %759 = tpu.matmul %756, %758, %cst_400 {dimension_numbers = #tpu.dot_dimension_numbers<[1], [0], [0], [1], [0, 0, 1, 1], [], []>} : vector<2x64xf32>, vector<64x29xf32>, vector<2x29xf32> -> vector<2x29xf32>
    %760 = arith.addf %754, %759 : vector<2x29xf32>
    %c0_401 = arith.constant 0 : index
    %c6 = arith.constant 6 : index
    %c0_402 = arith.constant 0 : index
    %761 = vector.load %arg15[%c0_401, %c6, %c0_402] : memref<2x8x64xf32, #tpu.memory_space<vmem>>, vector<2x1x64xf32>
    %762 = vector.shape_cast %761 : vector<2x1x64xf32> to vector<2x64xf32>
    %c6_403 = arith.constant 6 : index
    %c0_404 = arith.constant 0 : index
    %c0_405 = arith.constant 0 : index
    %763 = vector.load %arg6[%c6_403, %c0_404, %c0_405] : memref<8x64x29xf32, #tpu.memory_space<vmem>>, vector<1x64x29xf32>
    %764 = vector.shape_cast %763 : vector<1x64x29xf32> to vector<64x29xf32>
    %cst_406 = arith.constant dense<0.000000e+00> : vector<2x29xf32>
    %765 = tpu.matmul %762, %764, %cst_406 {dimension_numbers = #tpu.dot_dimension_numbers<[1], [0], [0], [1], [0, 0, 1, 1], [], []>} : vector<2x64xf32>, vector<64x29xf32>, vector<2x29xf32> -> vector<2x29xf32>
    %766 = arith.addf %760, %765 : vector<2x29xf32>
    %c0_407 = arith.constant 0 : index
    %c7 = arith.constant 7 : index
    %c0_408 = arith.constant 0 : index
    %767 = vector.load %arg15[%c0_407, %c7, %c0_408] : memref<2x8x64xf32, #tpu.memory_space<vmem>>, vector<2x1x64xf32>
    %768 = vector.shape_cast %767 : vector<2x1x64xf32> to vector<2x64xf32>
    %c7_409 = arith.constant 7 : index
    %c0_410 = arith.constant 0 : index
    %c0_411 = arith.constant 0 : index
    %769 = vector.load %arg6[%c7_409, %c0_410, %c0_411] : memref<8x64x29xf32, #tpu.memory_space<vmem>>, vector<1x64x29xf32>
    %770 = vector.shape_cast %769 : vector<1x64x29xf32> to vector<64x29xf32>
    %cst_412 = arith.constant dense<0.000000e+00> : vector<2x29xf32>
    %771 = tpu.matmul %768, %770, %cst_412 {dimension_numbers = #tpu.dot_dimension_numbers<[1], [0], [0], [1], [0, 0, 1, 1], [], []>} : vector<2x64xf32>, vector<64x29xf32>, vector<2x29xf32> -> vector<2x29xf32>
    %772 = arith.addf %766, %771 : vector<2x29xf32>
    %c0_413 = arith.constant 0 : index
    %c0_414 = arith.constant 0 : index
    %773 = vector.load %arg7[%c0_413, %c0_414] : memref<1x29xf32, #tpu.memory_space<vmem>>, vector<1x29xf32>
    %774 = vector.broadcast %773 : vector<1x29xf32> to vector<2x29xf32>
    %775 = arith.addf %772, %774 : vector<2x29xf32>
    %c0_415 = arith.constant 0 : index
    %c0_416 = arith.constant 0 : index
    %776 = vector.load %arg8[%c0_415, %c0_416] : memref<2x29xf32, #tpu.memory_space<vmem>>, vector<2x29xf32>
    tpu.vector_store %arg8[%c0_415, %c0_416], %775 {strides = array<i32>} : memref<2x29xf32, #tpu.memory_space<vmem>>, vector<2x29xf32>,
    return
  }
  func.func @transform_0(%arg0: i32) -> (i32, i32, i32, i32) {
    %c0_i32 = arith.constant 0 : i32
    %c0_i32_0 = arith.constant 0 : i32
    %c0_i32_1 = arith.constant 0 : i32
    %c0_i32_2 = arith.constant 0 : i32
    return %arg0, %c0_i32, %c0_i32_0, %c0_i32_1 : i32, i32, i32, i32
  }
  func.func @transform_1(%arg0: i32) -> (i32, i32) {
    %c0_i32 = arith.constant 0 : i32
    %c0_i32_0 = arith.constant 0 : i32
    %c0_i32_1 = arith.constant 0 : i32
    return %c0_i32, %c0_i32_0 : i32, i32
  }
  func.func @transform_2(%arg0: i32) -> (i32, i32) {
    %c0_i32 = arith.constant 0 : i32
    %c0_i32_0 = arith.constant 0 : i32
    %c0_i32_1 = arith.constant 0 : i32
    return %c0_i32, %c0_i32_0 : i32, i32
  }
  func.func @transform_3(%arg0: i32) -> (i32, i32) {
    %c0_i32 = arith.constant 0 : i32
    %c0_i32_0 = arith.constant 0 : i32
    %c0_i32_1 = arith.constant 0 : i32
    return %c0_i32, %c0_i32_0 : i32, i32
  }
  func.func @transform_4(%arg0: i32) -> (i32, i32) {
    %c0_i32 = arith.constant 0 : i32
    %c0_i32_0 = arith.constant 0 : i32
    %c0_i32_1 = arith.constant 0 : i32
    return %c0_i32, %c0_i32_0 : i32, i32
  }
  func.func @transform_5(%arg0: i32) -> (i32, i32, i32) {
    %c0_i32 = arith.constant 0 : i32
    %c0_i32_0 = arith.constant 0 : i32
    %c0_i32_1 = arith.constant 0 : i32
    %c0_i32_2 = arith.constant 0 : i32
    return %c0_i32, %c0_i32_0, %c0_i32_1 : i32, i32, i32
  }
  func.func @transform_6(%arg0: i32) -> (i32, i32) {
    %c0_i32 = arith.constant 0 : i32
    %c0_i32_0 = arith.constant 0 : i32
    %c0_i32_1 = arith.constant 0 : i32
    return %c0_i32, %c0_i32_0 : i32, i32
  }
  func.func @transform_7(%arg0: i32) -> (i32, i32) {
    %c0_i32 = arith.constant 0 : i32
    %c0_i32_0 = arith.constant 0 : i32
    return %arg0, %c0_i32 : i32, i32
  }
}

</mosaic_0001>

<llo_original>
// kernel: cnn_forward.1
$region0: #{cnn_forward.1}
  #allocation0 [shape = 'u32[]', space=smem, size = 0x4, offset = 0x4, fixed_abs, tag = 'smem constant byte address 0x4 - core index']
  #allocation1 [shape = 'u32[144,128]{1,0:T(1,128)}', space=vmem, size = 0x12000, scoped, tag = 'internal scratch']
  #allocation2 [shape = 'f32[34,34]{1,0:T(8,128)}', space=vmem, size = 0x5000, scoped, tag = 'scratch operand']
  #allocation3 [shape = 'f32[4,18,18]{2,1,0:T(8,128)}', space=vmem, size = 0xc000, scoped, tag = 'scratch operand']
  #allocation4 [shape = 'f32[32,128]{1,0:T(8,128)}', space=vmem, size = 0x4000, scoped, tag = 'scratch operand']
  #allocation5 [shape = 'f32[128,16]{1,0:T(8,128)}', space=vmem, size = 0x10000, scoped, tag = 'scratch operand']
  #allocation6 [shape = 'f32[16,128]{1,0:T(8,128)}', space=vmem, size = 0x2000, scoped, tag = 'scratch operand']
  #allocation7 [shape = 'f32[128,8]{1,0:T(8,128)}', space=vmem, size = 0x10000, scoped, tag = 'scratch operand']
  #allocation8 [shape = 'f32[2,8,64]{2,1,0:T(8,128)}', space=vmem, size = 0x2000, scoped, tag = 'scratch operand']
  %s0 = inlined_call_operand.vmem [shape: f32[2,1,32,32], index: 0, kind: input, shape index: {}]
  %s1 = inlined_call_operand.vmem [shape: f32[9,128], index: 1, kind: input, shape index: {}]
  %s2 = inlined_call_operand.vmem [shape: f32[1,128], index: 2, kind: input, shape index: {}]
  %s3 = inlined_call_operand.vmem [shape: f32[36,128], index: 3, kind: input, shape index: {}]
  %s4 = inlined_call_operand.vmem [shape: f32[1,128], index: 4, kind: input, shape index: {}]
  %s5 = inlined_call_operand.vmem [shape: f32[8,64,29], index: 5, kind: input, shape index: {}]
  %s6 = inlined_call_operand.vmem [shape: f32[1,29], index: 6, kind: input, shape index: {}]
  %s7 = inlined_call_operand.hbm [shape: f32[2,29], index: 7, kind: output, shape index: {}]
  %s8 = sld [smem:[#allocation0]]
  $region38: #{cnn_forward.1} parent=0
    _
  %s10 = ssub.s32 1, %s8
  %s11 = scalar_select 0, %s10, %s8
  $region1: #{cnn_forward.1} parent=0
    #allocation9 [shape = 'u8[1024]{0}', space=vmem, size = 0x400, scoped, tag = 'output window, operand 0, single buffered']
    #allocation10 [shape = 's32[1]{0}', space=sflag, size = 0x4, scoped, tag = 'scoped memory for cnn_forward.1']
    %12 = vsyncpa [#allocation10], 0
    // Predicated region
    $region2: #{cnn_forward.1} parent=1 // pred_check
      _
    $region3: #{cnn_forward.1} parent=1 // pred_check_branch
      %14 = sbr.rel (0) target = $region5
    $region4: #{cnn_forward.1} parent=1 // pred_region
      _
    $region5: #{cnn_forward.1} parent=1 // pred_fallthru
      _
    // Predicated region
    $region6: #{cnn_forward.1} parent=1 // pred_check
      _
    $region7: #{cnn_forward.1} parent=1 // pred_check_branch
      %16 = sbr.rel (0) target = $region9
    $region8: #{cnn_forward.1} parent=1 // pred_region
      _
    $region9: #{cnn_forward.1} parent=1 // pred_fallthru
      _
    // Predicated region
    $region10: #{cnn_forward.1} parent=1 // pred_check
      _
    $region11: #{cnn_forward.1} parent=1 // pred_check_branch
      %18 = sbr.rel (0) target = $region13
    $region12: #{cnn_forward.1} parent=1 // pred_region
      _
    $region13: #{cnn_forward.1} parent=1 // pred_fallthru
      _
    // Predicated region
    $region14: #{cnn_forward.1} parent=1 // pred_check
      _
    $region15: #{cnn_forward.1} parent=1 // pred_check_branch
      %20 = sbr.rel (0) target = $region17
    $region16: #{cnn_forward.1} parent=1 // pred_region
      _
    $region17: #{cnn_forward.1} parent=1 // pred_fallthru
      _
    // Predicated region
    $region18: #{cnn_forward.1} parent=1 // pred_check
      _
    $region19: #{cnn_forward.1} parent=1 // pred_check_branch
      %22 = sbr.rel (0) target = $region21
    $region20: #{cnn_forward.1} parent=1 // pred_region
      _
    $region21: #{cnn_forward.1} parent=1 // pred_fallthru
      _
    // Predicated region
    $region22: #{cnn_forward.1} parent=1 // pred_check
      _
    $region23: #{cnn_forward.1} parent=1 // pred_check_branch
      %24 = sbr.rel (0) target = $region25
    $region24: #{cnn_forward.1} parent=1 // pred_region
      _
    $region25: #{cnn_forward.1} parent=1 // pred_fallthru
      _
    // Predicated region
    $region26: #{cnn_forward.1} parent=1 // pred_check
      _
    $region27: #{cnn_forward.1} parent=1 // pred_check_branch
      %26 = sbr.rel (0) target = $region29
    $region28: #{cnn_forward.1} parent=1 // pred_region
      _
    $region29: #{cnn_forward.1} parent=1 // pred_fallthru
      _
    %vm27 = vcmask 277504
    %28 = vst.msk [vmem:[#allocation2] sm:$0xff] %vm27, 0.0
    %29 = vst.msk [vmem:[#allocation2 + $0x8] sm:$0xff] %vm27, 0.0
    %30 = vst.msk [vmem:[#allocation2 + $0x10] sm:$0xff] %vm27, 0.0
    %31 = vst.msk [vmem:[#allocation2 + $0x18] sm:$0xff] %vm27, 0.0
    %vm32 = vcmask 271360
    %33 = vst.msk [vmem:[#allocation2 + $0x20] sm:$0x3] %vm32, 0.0
    %vm34 = vcmask 146432
    %35 = vst.msk [vmem:[#allocation3] sm:$0xff] %vm34, 0.0
    %36 = vst.msk [vmem:[#allocation3 + $0x8] sm:$0xff] %vm34, 0.0
    %vm37 = vcmask 140288
    %38 = vst.msk [vmem:[#allocation3 + $0x10] sm:$0x3] %vm37, 0.0
    %39 = vst.msk [vmem:[#allocation3 + $0x18] sm:$0xff] %vm34, 0.0
    %40 = vst.msk [vmem:[#allocation3 + $0x20] sm:$0xff] %vm34, 0.0
    %41 = vst.msk [vmem:[#allocation3 + $0x28] sm:$0x3] %vm37, 0.0
    %42 = vst.msk [vmem:[#allocation3 + $0x30] sm:$0xff] %vm34, 0.0
    %43 = vst.msk [vmem:[#allocation3 + $0x38] sm:$0xff] %vm34, 0.0
    %44 = vst.msk [vmem:[#allocation3 + $0x40] sm:$0x3] %vm37, 0.0
    %45 = vst.msk [vmem:[#allocation3 + $0x48] sm:$0xff] %vm34, 0.0
    %46 = vst.msk [vmem:[#allocation3 + $0x50] sm:$0xff] %vm34, 0.0
    %47 = vst.msk [vmem:[#allocation3 + $0x58] sm:$0x3] %vm37, 0.0
    %v48 = vld [vmem:[%s1] sm:$0xff]
    %v49 = vld [vmem:[%s1 + $0x8] sm:$0x1]
    %v50 = vld [vmem:[%s2] sm:$0x1]
    %v51 = vld [vmem:[%s3] sm:$0xff]
    %v52 = vld [vmem:[%s3 + $0x8] sm:$0xff]
    %v53 = vld [vmem:[%s3 + $0x10] sm:$0xff]
    %v54 = vld [vmem:[%s3 + $0x18] sm:$0xff]
    %v55 = vld [vmem:[%s3 + $0x20] sm:$0xf]
    %v56 = vld [vmem:[%s4] sm:$0x1]
    %v57 = vld [vmem:[%s0] sm:$0xff]
    %v58 = vld [vmem:[%s0 + $0x8] sm:$0xff]
    %v59 = vld [vmem:[%s0 + $0x10] sm:$0xff]
    %v60 = vld [vmem:[%s0 + $0x18] sm:$0xff]
    %65 = vrot.lane.b32.xlu0 %v57, 1
    %v66 = vpop.permute.xlu0 %65
    %67 = vrot.lane.b32.xlu0 %v58, 1
    %v68 = vpop.permute.xlu0 %67
    %69 = vrot.lane.b32.xlu0 %v59, 1
    %v70 = vpop.permute.xlu0 %69
    %71 = vrot.lane.b32.xlu0 %v60, 1
    %v72 = vpop.permute.xlu0 %71
    %vm77 = vcmask 269320
    %78 = vst.msk [vmem:[#allocation2 + $0x1] sm:$0xff] %vm77, %v66
    %79 = vst.msk [vmem:[#allocation2 + $0x9] sm:$0xff] %vm77, %v68
    %80 = vst.msk [vmem:[#allocation2 + $0x11] sm:$0xff] %vm77, %v70
    %81 = vst.msk [vmem:[#allocation2 + $0x19] sm:$0xff] %vm77, %v72
    %v82 = vld [vmem:[#allocation2] sm:$0xff]
    %v83 = vld [vmem:[#allocation2 + $0x8] sm:$0xff]
    %v84 = vld [vmem:[#allocation2 + $0x10] sm:$0xff]
    %v85 = vld [vmem:[#allocation2 + $0x18] sm:$0xff]
    %90 = vrot.lane.b32.xlu0 %v82, 32
    %v91 = vpop.permute.xlu0 %90
    %92 = vrot.lane.b32.xlu0 %v83, 32
    %v93 = vpop.permute.xlu0 %92
    %94 = vrot.lane.b32.xlu0 %v84, 32
    %v95 = vpop.permute.xlu0 %94
    %96 = vrot.lane.b32.xlu0 %v85, 32
    %v97 = vpop.permute.xlu0 %96
    %102 = vrot.lane.b32.xlu0 %v82, 64
    %v103 = vpop.permute.xlu0 %102
    %104 = vrot.lane.b32.xlu0 %v83, 64
    %v105 = vpop.permute.xlu0 %104
    %106 = vrot.lane.b32.xlu0 %v84, 64
    %v107 = vpop.permute.xlu0 %106
    %108 = vrot.lane.b32.xlu0 %v85, 64
    %v109 = vpop.permute.xlu0 %108
    %114 = vrot.lane.b32.xlu0 %v82, 96
    %v115 = vpop.permute.xlu0 %114
    %116 = vrot.lane.b32.xlu0 %v83, 96
    %v117 = vpop.permute.xlu0 %116
    %118 = vrot.lane.b32.xlu0 %v84, 96
    %v119 = vpop.permute.xlu0 %118
    %120 = vrot.lane.b32.xlu0 %v85, 96
    %v121 = vpop.permute.xlu0 %120
    %vm126 = vcmask 261120
    %v127 = vsel %vm126, %v82, %v91
    %v128 = vsel %vm126, %v83, %v93
    %v129 = vsel %vm126, %v84, %v95
    %v130 = vsel %vm126, %v85, %v97
    %vm131 = vcmask 523264
    %v132 = vsel %vm131, %v127, %v103
    %v133 = vsel %vm131, %v128, %v105
    %v134 = vsel %vm131, %v129, %v107
    %v135 = vsel %vm131, %v130, %v109
    %vm136 = vcmask 785408
    %v137 = vsel %vm136, %v132, %v115
    %v138 = vsel %vm136, %v133, %v117
    %v139 = vsel %vm136, %v134, %v119
    %v140 = vsel %vm136, %v135, %v121
    %v141 = vlaneseq
    %v142 = vshrl.u32 %v141, 7
    %v143 = vsub.s32 0, %v142
    %v144 = vrot.slane %v48, %v143
    %v145 = vmul.f32 %v137, %v144
    %v146 = vmul.f32 %v138, %v144
    %v147 = vmul.f32 %v139, %v144
    %v148 = vmul.f32 %v140, %v144
    %v149 = vadd.f32 %v145, 0.0
    %v150 = vadd.f32 %v146, 0.0
    %v151 = vadd.f32 %v147, 0.0
    %v152 = vadd.f32 %v148, 0.0
    %153 = vrot.lane.b32.xlu0 %v82, 127
    %v154 = vpop.permute.xlu0 %153
    %155 = vrot.lane.b32.xlu0 %v83, 127
    %v156 = vpop.permute.xlu0 %155
    %157 = vrot.lane.b32.xlu0 %v84, 127
    %v158 = vpop.permute.xlu0 %157
    %159 = vrot.lane.b32.xlu0 %v85, 127
    %v160 = vpop.permute.xlu0 %159
    %165 = vrot.lane.b32.xlu0 %v82, 31
    %v166 = vpop.permute.xlu0 %165
    %167 = vrot.lane.b32.xlu0 %v83, 31
    %v168 = vpop.permute.xlu0 %167
    %169 = vrot.lane.b32.xlu0 %v84, 31
    %v170 = vpop.permute.xlu0 %169
    %171 = vrot.lane.b32.xlu0 %v85, 31
    %v172 = vpop.permute.xlu0 %171
    %177 = vrot.lane.b32.xlu0 %v82, 63
    %v178 = vpop.permute.xlu0 %177
    %179 = vrot.lane.b32.xlu0 %v83, 63
    %v180 = vpop.permute.xlu0 %179
    %181 = vrot.lane.b32.xlu0 %v84, 63
    %v182 = vpop.permute.xlu0 %181
    %183 = vrot.lane.b32.xlu0 %v85, 63
    %v184 = vpop.permute.xlu0 %183
    %189 = vrot.lane.b32.xlu0 %v82, 95
    %v190 = vpop.permute.xlu0 %189
    %191 = vrot.lane.b32.xlu0 %v83, 95
    %v192 = vpop.permute.xlu0 %191
    %193 = vrot.lane.b32.xlu0 %v84, 95
    %v194 = vpop.permute.xlu0 %193
    %195 = vrot.lane.b32.xlu0 %v85, 95
    %v196 = vpop.permute.xlu0 %195
    %v201 = vsel %vm126, %v154, %v166
    %v202 = vsel %vm126, %v156, %v168
    %v203 = vsel %vm126, %v158, %v170
    %v204 = vsel %vm126, %v160, %v172
    %v205 = vsel %vm131, %v201, %v178
    %v206 = vsel %vm131, %v202, %v180
    %v207 = vsel %vm131, %v203, %v182
    %v208 = vsel %vm131, %v204, %v184
    %v209 = vsel %vm136, %v205, %v190
    %v210 = vsel %vm136, %v206, %v192
    %v211 = vsel %vm136, %v207, %v194
    %v212 = vsel %vm136, %v208, %v196
    %v213 = vlaneseq
    %v214 = vshrl.u32 %v213, 7
    %v215 = vsub.s32 1, %v214
    %v216 = vrot.slane %v48, %v215
    %v217 = vmul.f32 %v209, %v216
    %v218 = vmul.f32 %v210, %v216
    %v219 = vmul.f32 %v211, %v216
    %v220 = vmul.f32 %v212, %v216
    %v221 = vadd.f32 %v149, %v217
    %v222 = vadd.f32 %v150, %v218
    %v223 = vadd.f32 %v151, %v219
    %v224 = vadd.f32 %v152, %v220
    %225 = vrot.lane.b32.xlu0 %v82, 126
    %v226 = vpop.permute.xlu0 %225
    %227 = vrot.lane.b32.xlu0 %v83, 126
    %v228 = vpop.permute.xlu0 %227
    %229 = vrot.lane.b32.xlu0 %v84, 126
    %v230 = vpop.permute.xlu0 %229
    %231 = vrot.lane.b32.xlu0 %v85, 126
    %v232 = vpop.permute.xlu0 %231
    %237 = vrot.lane.b32.xlu0 %v82, 30
    %v238 = vpop.permute.xlu0 %237
    %239 = vrot.lane.b32.xlu0 %v83, 30
    %v240 = vpop.permute.xlu0 %239
    %241 = vrot.lane.b32.xlu0 %v84, 30
    %v242 = vpop.permute.xlu0 %241
    %243 = vrot.lane.b32.xlu0 %v85, 30
    %v244 = vpop.permute.xlu0 %243
    %249 = vrot.lane.b32.xlu0 %v82, 62
    %v250 = vpop.permute.xlu0 %249
    %251 = vrot.lane.b32.xlu0 %v83, 62
    %v252 = vpop.permute.xlu0 %251
    %253 = vrot.lane.b32.xlu0 %v84, 62
    %v254 = vpop.permute.xlu0 %253
    %255 = vrot.lane.b32.xlu0 %v85, 62
    %v256 = vpop.permute.xlu0 %255
    %261 = vrot.lane.b32.xlu0 %v82, 94
    %v262 = vpop.permute.xlu0 %261
    %263 = vrot.lane.b32.xlu0 %v83, 94
    %v264 = vpop.permute.xlu0 %263
    %265 = vrot.lane.b32.xlu0 %v84, 94
    %v266 = vpop.permute.xlu0 %265
    %267 = vrot.lane.b32.xlu0 %v85, 94
    %v268 = vpop.permute.xlu0 %267
    %v273 = vsel %vm126, %v226, %v238
    %v274 = vsel %vm126, %v228, %v240
    %v275 = vsel %vm126, %v230, %v242
    %v276 = vsel %vm126, %v232, %v244
    %v277 = vsel %vm131, %v273, %v250
    %v278 = vsel %vm131, %v274, %v252
    %v279 = vsel %vm131, %v275, %v254
    %v280 = vsel %vm131, %v276, %v256
    %v281 = vsel %vm136, %v277, %v262
    %v282 = vsel %vm136, %v278, %v264
    %v283 = vsel %vm136, %v279, %v266
    %v284 = vsel %vm136, %v280, %v268
    %v285 = vlaneseq
    %v286 = vshrl.u32 %v285, 7
    %v287 = vsub.s32 2, %v286
    %v288 = vrot.slane %v48, %v287
    %v289 = vmul.f32 %v281, %v288
    %v290 = vmul.f32 %v282, %v288
    %v291 = vmul.f32 %v283, %v288
    %v292 = vmul.f32 %v284, %v288
    %v293 = vadd.f32 %v221, %v289
    %v294 = vadd.f32 %v222, %v290
    %v295 = vadd.f32 %v223, %v291
    %v296 = vadd.f32 %v224, %v292
    %v297 = vld [vmem:[#allocation2 + $0x1] sm:$0xff]
    %v298 = vld [vmem:[#allocation2 + $0x9] sm:$0xff]
    %v299 = vld [vmem:[#allocation2 + $0x11] sm:$0xff]
    %v300 = vld [vmem:[#allocation2 + $0x19] sm:$0xff]
    %305 = vrot.lane.b32.xlu0 %v297, 32
    %v306 = vpop.permute.xlu0 %305
    %307 = vrot.lane.b32.xlu0 %v298, 32
    %v308 = vpop.permute.xlu0 %307
    %309 = vrot.lane.b32.xlu0 %v299, 32
    %v310 = vpop.permute.xlu0 %309
    %311 = vrot.lane.b32.xlu0 %v300, 32
    %v312 = vpop.permute.xlu0 %311
    %317 = vrot.lane.b32.xlu0 %v297, 64
    %v318 = vpop.permute.xlu0 %317
    %319 = vrot.lane.b32.xlu0 %v298, 64
    %v320 = vpop.permute.xlu0 %319
    %321 = vrot.lane.b32.xlu0 %v299, 64
    %v322 = vpop.permute.xlu0 %321
    %323 = vrot.lane.b32.xlu0 %v300, 64
    %v324 = vpop.permute.xlu0 %323
    %329 = vrot.lane.b32.xlu0 %v297, 96
    %v330 = vpop.permute.xlu0 %329
    %331 = vrot.lane.b32.xlu0 %v298, 96
    %v332 = vpop.permute.xlu0 %331
    %333 = vrot.lane.b32.xlu0 %v299, 96
    %v334 = vpop.permute.xlu0 %333
    %335 = vrot.lane.b32.xlu0 %v300, 96
    %v336 = vpop.permute.xlu0 %335
    %v341 = vsel %vm126, %v297, %v306
    %v342 = vsel %vm126, %v298, %v308
    %v343 = vsel %vm126, %v299, %v310
    %v344 = vsel %vm126, %v300, %v312
    %v345 = vsel %vm131, %v341, %v318
    %v346 = vsel %vm131, %v342, %v320
    %v347 = vsel %vm131, %v343, %v322
    %v348 = vsel %vm131, %v344, %v324
    %v349 = vsel %vm136, %v345, %v330
    %v350 = vsel %vm136, %v346, %v332
    %v351 = vsel %vm136, %v347, %v334
    %v352 = vsel %vm136, %v348, %v336
    %v353 = vlaneseq
    %v354 = vshrl.u32 %v353, 7
    %v355 = vsub.s32 3, %v354
    %v356 = vrot.slane %v48, %v355
    %v357 = vmul.f32 %v349, %v356
    %v358 = vmul.f32 %v350, %v356
    %v359 = vmul.f32 %v351, %v356
    %v360 = vmul.f32 %v352, %v356
    %v361 = vadd.f32 %v293, %v357
    %v362 = vadd.f32 %v294, %v358
    %v363 = vadd.f32 %v295, %v359
    %v364 = vadd.f32 %v296, %v360
    %365 = vrot.lane.b32.xlu0 %v297, 127
    %v366 = vpop.permute.xlu0 %365
    %367 = vrot.lane.b32.xlu0 %v298, 127
    %v368 = vpop.permute.xlu0 %367
    %369 = vrot.lane.b32.xlu0 %v299, 127
    %v370 = vpop.permute.xlu0 %369
    %371 = vrot.lane.b32.xlu0 %v300, 127
    %v372 = vpop.permute.xlu0 %371
    %377 = vrot.lane.b32.xlu0 %v297, 31
    %v378 = vpop.permute.xlu0 %377
    %379 = vrot.lane.b32.xlu0 %v298, 31
    %v380 = vpop.permute.xlu0 %379
    %381 = vrot.lane.b32.xlu0 %v299, 31
    %v382 = vpop.permute.xlu0 %381
    %383 = vrot.lane.b32.xlu0 %v300, 31
    %v384 = vpop.permute.xlu0 %383
    %389 = vrot.lane.b32.xlu0 %v297, 63
    %v390 = vpop.permute.xlu0 %389
    %391 = vrot.lane.b32.xlu0 %v298, 63
    %v392 = vpop.permute.xlu0 %391
    %393 = vrot.lane.b32.xlu0 %v299, 63
    %v394 = vpop.permute.xlu0 %393
    %395 = vrot.lane.b32.xlu0 %v300, 63
    %v396 = vpop.permute.xlu0 %395
    %401 = vrot.lane.b32.xlu0 %v297, 95
    %v402 = vpop.permute.xlu0 %401
    %403 = vrot.lane.b32.xlu0 %v298, 95
    %v404 = vpop.permute.xlu0 %403
    %405 = vrot.lane.b32.xlu0 %v299, 95
    %v406 = vpop.permute.xlu0 %405
    %407 = vrot.lane.b32.xlu0 %v300, 95
    %v408 = vpop.permute.xlu0 %407
    %v413 = vsel %vm126, %v366, %v378
    %v414 = vsel %vm126, %v368, %v380
    %v415 = vsel %vm126, %v370, %v382
    %v416 = vsel %vm126, %v372, %v384
    %v417 = vsel %vm131, %v413, %v390
    %v418 = vsel %vm131, %v414, %v392
    %v419 = vsel %vm131, %v415, %v394
    %v420 = vsel %vm131, %v416, %v396
    %v421 = vsel %vm136, %v417, %v402
    %v422 = vsel %vm136, %v418, %v404
    %v423 = vsel %vm136, %v419, %v406
    %v424 = vsel %vm136, %v420, %v408
    %v425 = vlaneseq
    %v426 = vshrl.u32 %v425, 7
    %v427 = vsub.s32 4, %v426
    %v428 = vrot.slane %v48, %v427
    %v429 = vmul.f32 %v421, %v428
    %v430 = vmul.f32 %v422, %v428
    %v431 = vmul.f32 %v423, %v428
    %v432 = vmul.f32 %v424, %v428
    %v433 = vadd.f32 %v361, %v429
    %v434 = vadd.f32 %v362, %v430
    %v435 = vadd.f32 %v363, %v431
    %v436 = vadd.f32 %v364, %v432
    %437 = vrot.lane.b32.xlu0 %v297, 126
    %v438 = vpop.permute.xlu0 %437
    %439 = vrot.lane.b32.xlu0 %v298, 126
    %v440 = vpop.permute.xlu0 %439
    %441 = vrot.lane.b32.xlu0 %v299, 126
    %v442 = vpop.permute.xlu0 %441
    %443 = vrot.lane.b32.xlu0 %v300, 126
    %v444 = vpop.permute.xlu0 %443
    %449 = vrot.lane.b32.xlu0 %v297, 30
    %v450 = vpop.permute.xlu0 %449
    %451 = vrot.lane.b32.xlu0 %v298, 30
    %v452 = vpop.permute.xlu0 %451
    %453 = vrot.lane.b32.xlu0 %v299, 30
    %v454 = vpop.permute.xlu0 %453
    %455 = vrot.lane.b32.xlu0 %v300, 30
    %v456 = vpop.permute.xlu0 %455
    %461 = vrot.lane.b32.xlu0 %v297, 62
    %v462 = vpop.permute.xlu0 %461
    %463 = vrot.lane.b32.xlu0 %v298, 62
    %v464 = vpop.permute.xlu0 %463
    %465 = vrot.lane.b32.xlu0 %v299, 62
    %v466 = vpop.permute.xlu0 %465
    %467 = vrot.lane.b32.xlu0 %v300, 62
    %v468 = vpop.permute.xlu0 %467
    %473 = vrot.lane.b32.xlu0 %v297, 94
    %v474 = vpop.permute.xlu0 %473
    %475 = vrot.lane.b32.xlu0 %v298, 94
    %v476 = vpop.permute.xlu0 %475
    %477 = vrot.lane.b32.xlu0 %v299, 94
    %v478 = vpop.permute.xlu0 %477
    %479 = vrot.lane.b32.xlu0 %v300, 94
    %v480 = vpop.permute.xlu0 %479
    %v485 = vsel %vm126, %v438, %v450
    %v486 = vsel %vm126, %v440, %v452
    %v487 = vsel %vm126, %v442, %v454
    %v488 = vsel %vm126, %v444, %v456
    %v489 = vsel %vm131, %v485, %v462
    %v490 = vsel %vm131, %v486, %v464
    %v491 = vsel %vm131, %v487, %v466
    %v492 = vsel %vm131, %v488, %v468
    %v493 = vsel %vm136, %v489, %v474
    %v494 = vsel %vm136, %v490, %v476
    %v495 = vsel %vm136, %v491, %v478
    %v496 = vsel %vm136, %v492, %v480
    %v497 = vlaneseq
    %v498 = vshrl.u32 %v497, 7
    %v499 = vsub.s32 5, %v498
    %v500 = vrot.slane %v48, %v499
    %v501 = vmul.f32 %v493, %v500
    %v502 = vmul.f32 %v494, %v500
    %v503 = vmul.f32 %v495, %v500
    %v504 = vmul.f32 %v496, %v500
    %v505 = vadd.f32 %v433, %v501
    %v506 = vadd.f32 %v434, %v502
    %v507 = vadd.f32 %v435, %v503
    %v508 = vadd.f32 %v436, %v504
    %v509 = vld [vmem:[#allocation2 + $0x2] sm:$0xff]
    %v510 = vld [vmem:[#allocation2 + $0xa] sm:$0xff]
    %v511 = vld [vmem:[#allocation2 + $0x12] sm:$0xff]
    %v512 = vld [vmem:[#allocation2 + $0x1a] sm:$0xff]
    %517 = vrot.lane.b32.xlu0 %v509, 32
    %v518 = vpop.permute.xlu0 %517
    %519 = vrot.lane.b32.xlu0 %v510, 32
    %v520 = vpop.permute.xlu0 %519
    %521 = vrot.lane.b32.xlu0 %v511, 32
    %v522 = vpop.permute.xlu0 %521
    %523 = vrot.lane.b32.xlu0 %v512, 32
    %v524 = vpop.permute.xlu0 %523
    %529 = vrot.lane.b32.xlu0 %v509, 64
    %v530 = vpop.permute.xlu0 %529
    %531 = vrot.lane.b32.xlu0 %v510, 64
    %v532 = vpop.permute.xlu0 %531
    %533 = vrot.lane.b32.xlu0 %v511, 64
    %v534 = vpop.permute.xlu0 %533
    %535 = vrot.lane.b32.xlu0 %v512, 64
    %v536 = vpop.permute.xlu0 %535
    %541 = vrot.lane.b32.xlu0 %v509, 96
    %v542 = vpop.permute.xlu0 %541
    %543 = vrot.lane.b32.xlu0 %v510, 96
    %v544 = vpop.permute.xlu0 %543
    %545 = vrot.lane.b32.xlu0 %v511, 96
    %v546 = vpop.permute.xlu0 %545
    %547 = vrot.lane.b32.xlu0 %v512, 96
    %v548 = vpop.permute.xlu0 %547
    %v553 = vsel %vm126, %v509, %v518
    %v554 = vsel %vm126, %v510, %v520
    %v555 = vsel %vm126, %v511, %v522
    %v556 = vsel %vm126, %v512, %v524
    %v557 = vsel %vm131, %v553, %v530
    %v558 = vsel %vm131, %v554, %v532
    %v559 = vsel %vm131, %v555, %v534
    %v560 = vsel %vm131, %v556, %v536
    %v561 = vsel %vm136, %v557, %v542
    %v562 = vsel %vm136, %v558, %v544
    %v563 = vsel %vm136, %v559, %v546
    %v564 = vsel %vm136, %v560, %v548
    %v565 = vlaneseq
    %v566 = vshrl.u32 %v565, 7
    %v567 = vsub.s32 6, %v566
    %v568 = vrot.slane %v48, %v567
    %v569 = vmul.f32 %v561, %v568
    %v570 = vmul.f32 %v562, %v568
    %v571 = vmul.f32 %v563, %v568
    %v572 = vmul.f32 %v564, %v568
    %v573 = vadd.f32 %v505, %v569
    %v574 = vadd.f32 %v506, %v570
    %v575 = vadd.f32 %v507, %v571
    %v576 = vadd.f32 %v508, %v572
    %577 = vrot.lane.b32.xlu0 %v509, 127
    %v578 = vpop.permute.xlu0 %577
    %579 = vrot.lane.b32.xlu0 %v510, 127
    %v580 = vpop.permute.xlu0 %579
    %581 = vrot.lane.b32.xlu0 %v511, 127
    %v582 = vpop.permute.xlu0 %581
    %583 = vrot.lane.b32.xlu0 %v512, 127
    %v584 = vpop.permute.xlu0 %583
    %589 = vrot.lane.b32.xlu0 %v509, 31
    %v590 = vpop.permute.xlu0 %589
    %591 = vrot.lane.b32.xlu0 %v510, 31
    %v592 = vpop.permute.xlu0 %591
    %593 = vrot.lane.b32.xlu0 %v511, 31
    %v594 = vpop.permute.xlu0 %593
    %595 = vrot.lane.b32.xlu0 %v512, 31
    %v596 = vpop.permute.xlu0 %595
    %601 = vrot.lane.b32.xlu0 %v509, 63
    %v602 = vpop.permute.xlu0 %601
    %603 = vrot.lane.b32.xlu0 %v510, 63
    %v604 = vpop.permute.xlu0 %603
    %605 = vrot.lane.b32.xlu0 %v511, 63
    %v606 = vpop.permute.xlu0 %605
    %607 = vrot.lane.b32.xlu0 %v512, 63
    %v608 = vpop.permute.xlu0 %607
    %613 = vrot.lane.b32.xlu0 %v509, 95
    %v614 = vpop.permute.xlu0 %613
    %615 = vrot.lane.b32.xlu0 %v510, 95
    %v616 = vpop.permute.xlu0 %615
    %617 = vrot.lane.b32.xlu0 %v511, 95
    %v618 = vpop.permute.xlu0 %617
    %619 = vrot.lane.b32.xlu0 %v512, 95
    %v620 = vpop.permute.xlu0 %619
    %v625 = vsel %vm126, %v578, %v590
    %v626 = vsel %vm126, %v580, %v592
    %v627 = vsel %vm126, %v582, %v594
    %v628 = vsel %vm126, %v584, %v596
    %v629 = vsel %vm131, %v625, %v602
    %v630 = vsel %vm131, %v626, %v604
    %v631 = vsel %vm131, %v627, %v606
    %v632 = vsel %vm131, %v628, %v608
    %v633 = vsel %vm136, %v629, %v614
    %v634 = vsel %vm136, %v630, %v616
    %v635 = vsel %vm136, %v631, %v618
    %v636 = vsel %vm136, %v632, %v620
    %v637 = vlaneseq
    %v638 = vshrl.u32 %v637, 7
    %v639 = vsub.s32 7, %v638
    %v640 = vrot.slane %v48, %v639
    %v641 = vmul.f32 %v633, %v640
    %v642 = vmul.f32 %v634, %v640
    %v643 = vmul.f32 %v635, %v640
    %v644 = vmul.f32 %v636, %v640
    %v645 = vadd.f32 %v573, %v641
    %v646 = vadd.f32 %v574, %v642
    %v647 = vadd.f32 %v575, %v643
    %v648 = vadd.f32 %v576, %v644
    %649 = vrot.lane.b32.xlu0 %v509, 126
    %v650 = vpop.permute.xlu0 %649
    %651 = vrot.lane.b32.xlu0 %v510, 126
    %v652 = vpop.permute.xlu0 %651
    %653 = vrot.lane.b32.xlu0 %v511, 126
    %v654 = vpop.permute.xlu0 %653
    %655 = vrot.lane.b32.xlu0 %v512, 126
    %v656 = vpop.permute.xlu0 %655
    %661 = vrot.lane.b32.xlu0 %v509, 30
    %v662 = vpop.permute.xlu0 %661
    %663 = vrot.lane.b32.xlu0 %v510, 30
    %v664 = vpop.permute.xlu0 %663
    %665 = vrot.lane.b32.xlu0 %v511, 30
    %v666 = vpop.permute.xlu0 %665
    %667 = vrot.lane.b32.xlu0 %v512, 30
    %v668 = vpop.permute.xlu0 %667
    %673 = vrot.lane.b32.xlu0 %v509, 62
    %v674 = vpop.permute.xlu0 %673
    %675 = vrot.lane.b32.xlu0 %v510, 62
    %v676 = vpop.permute.xlu0 %675
    %677 = vrot.lane.b32.xlu0 %v511, 62
    %v678 = vpop.permute.xlu0 %677
    %679 = vrot.lane.b32.xlu0 %v512, 62
    %v680 = vpop.permute.xlu0 %679
    %685 = vrot.lane.b32.xlu0 %v509, 94
    %v686 = vpop.permute.xlu0 %685
    %687 = vrot.lane.b32.xlu0 %v510, 94
    %v688 = vpop.permute.xlu0 %687
    %689 = vrot.lane.b32.xlu0 %v511, 94
    %v690 = vpop.permute.xlu0 %689
    %691 = vrot.lane.b32.xlu0 %v512, 94
    %v692 = vpop.permute.xlu0 %691
    %v697 = vsel %vm126, %v650, %v662
    %v698 = vsel %vm126, %v652, %v664
    %v699 = vsel %vm126, %v654, %v666
    %v700 = vsel %vm126, %v656, %v668
    %v701 = vsel %vm131, %v697, %v674
    %v702 = vsel %vm131, %v698, %v676
    %v703 = vsel %vm131, %v699, %v678
    %v704 = vsel %vm131, %v700, %v680
    %v705 = vsel %vm136, %v701, %v686
    %v706 = vsel %vm136, %v702, %v688
    %v707 = vsel %vm136, %v703, %v690
    %v708 = vsel %vm136, %v704, %v692
    %v709 = vlaneseq
    %v710 = vshrl.u32 %v709, 7
    %v711 = vsub.s32 0, %v710
    %v712 = vrot.slane %v49, %v711
    %v713 = vmul.f32 %v705, %v712
    %v714 = vmul.f32 %v706, %v712
    %v715 = vmul.f32 %v707, %v712
    %v716 = vmul.f32 %v708, %v712
    %v717 = vadd.f32 %v645, %v713
    %v718 = vadd.f32 %v646, %v714
    %v719 = vadd.f32 %v647, %v715
    %v720 = vadd.f32 %v648, %v716
    %v722 = vlaneseq
    %v723 = vshrl.u32 %v722, 7
    %v724 = vsub.s32 0, %v723
    %v725 = vrot.slane %v50, %v724
    %v727 = vadd.f32 %v717, %v725
    %v728 = vadd.f32 %v718, %v725
    %v729 = vadd.f32 %v719, %v725
    %v730 = vadd.f32 %v720, %v725
    %v731 = vmax.f32 %v727, 0.0
    %v732 = vmax.f32 %v728, 0.0
    %v733 = vmax.f32 %v729, 0.0
    %v734 = vmax.f32 %v730, 0.0
    %735 = vst [vmem:[#allocation4] sm:$0xff] %v731
    %736 = vst [vmem:[#allocation4 + $0x8] sm:$0xff] %v732
    %737 = vst [vmem:[#allocation4 + $0x10] sm:$0xff] %v733
    %738 = vst [vmem:[#allocation4 + $0x18] sm:$0xff] %v734
    %v739 = vld [vmem:[#allocation4] ss:$2 sm:$0xff]
    %s740 = scalar_lea.vmem [#allocation4], 16
    %v741 = vld [vmem:[%s740] ss:$2 sm:$0xff]
    %s742 = scalar_lea.vmem [#allocation4], 1
    %v743 = vld [vmem:[%s742] ss:$2 sm:$0xff]
    %s744 = scalar_lea.vmem [#allocation4], 17
    %v745 = vld [vmem:[%s744] ss:$2 sm:$0xff]
    %v746 = vmax.f32 %v739, %v743
    %v747 = vmax.f32 %v741, %v745
    %748 = vxpose.xlu0.b32.start [1/16] %v746, 128
    %749 = vxpose.xlu0.b32.cont [2/16] %v747, 128
    %750 = vxpose.xlu0.b32.cont [3/16] 0.0, 128
    %751 = vxpose.xlu0.b32.cont [4/16] 0.0, 128
    %752 = vxpose.xlu0.b32.cont [5/16] 0.0, 128
    %753 = vxpose.xlu0.b32.cont [6/16] 0.0, 128
    %754 = vxpose.xlu0.b32.cont [7/16] 0.0, 128
    %755 = vxpose.xlu0.b32.cont [8/16] 0.0, 128
    %756 = vxpose.xlu0.b32.cont [9/16] 0.0, 128
    %757 = vxpose.xlu0.b32.cont [10/16] 0.0, 128
    %758 = vxpose.xlu0.b32.cont [11/16] 0.0, 128
    %759 = vxpose.xlu0.b32.cont [12/16] 0.0, 128
    %760 = vxpose.xlu0.b32.cont [13/16] 0.0, 128
    %761 = vxpose.xlu0.b32.cont [14/16] 0.0, 128
    %762 = vxpose.xlu0.b32.cont [15/16] 0.0, 128
    %763 = vxpose.xlu0.b32.end [16/16] 0.0, 128
    %v764 = vpop.trf.xlu0
    %v765 = vpop.trf.xlu0
    %v766 = vpop.trf.xlu0
    %v767 = vpop.trf.xlu0
    %v768 = vpop.trf.xlu0
    %v769 = vpop.trf.xlu0
    %v770 = vpop.trf.xlu0
    %v771 = vpop.trf.xlu0
    %v772 = vpop.trf.xlu0
    %v773 = vpop.trf.xlu0
    %v774 = vpop.trf.xlu0
    %v775 = vpop.trf.xlu0
    %v776 = vpop.trf.xlu0
    %v777 = vpop.trf.xlu0
    %v778 = vpop.trf.xlu0
    %v779 = vpop.trf.xlu0
    %vm780 = vcmask 130048
    %781 = vst.msk [vmem:[#allocation5] sm:$0xff] %vm780, %v764
    %782 = vst.msk [vmem:[#allocation5 + $0x8] sm:$0xff] %vm780, %v765
    %783 = vst.msk [vmem:[#allocation5 + $0x10] sm:$0xff] %vm780, %v766
    %784 = vst.msk [vmem:[#allocation5 + $0x18] sm:$0xff] %vm780, %v767
    %785 = vst.msk [vmem:[#allocation5 + $0x20] sm:$0xff] %vm780, %v768
    %786 = vst.msk [vmem:[#allocation5 + $0x28] sm:$0xff] %vm780, %v769
    %787 = vst.msk [vmem:[#allocation5 + $0x30] sm:$0xff] %vm780, %v770
    %788 = vst.msk [vmem:[#allocation5 + $0x38] sm:$0xff] %vm780, %v771
    %789 = vst.msk [vmem:[#allocation5 + $0x40] sm:$0xff] %vm780, %v772
    %790 = vst.msk [vmem:[#allocation5 + $0x48] sm:$0xff] %vm780, %v773
    %791 = vst.msk [vmem:[#allocation5 + $0x50] sm:$0xff] %vm780, %v774
    %792 = vst.msk [vmem:[#allocation5 + $0x58] sm:$0xff] %vm780, %v775
    %793 = vst.msk [vmem:[#allocation5 + $0x60] sm:$0xff] %vm780, %v776
    %794 = vst.msk [vmem:[#allocation5 + $0x68] sm:$0xff] %vm780, %v777
    %795 = vst.msk [vmem:[#allocation5 + $0x70] sm:$0xff] %vm780, %v778
    %796 = vst.msk [vmem:[#allocation5 + $0x78] sm:$0xff] %vm780, %v779
    %v797 = vld [vmem:[#allocation5] ss:$2 sm:$0xff]
    %s798 = scalar_lea.vmem [#allocation5], 16
    %v799 = vld [vmem:[%s798] ss:$2 sm:$0xff]
    %s800 = scalar_lea.vmem [#allocation5], 32
    %v801 = vld [vmem:[%s800] ss:$2 sm:$0xff]
    %s802 = scalar_lea.vmem [#allocation5], 48
    %v803 = vld [vmem:[%s802] ss:$2 sm:$0xff]
    %s804 = scalar_lea.vmem [#allocation5], 64
    %v805 = vld [vmem:[%s804] ss:$2 sm:$0xff]
    %s806 = scalar_lea.vmem [#allocation5], 80
    %v807 = vld [vmem:[%s806] ss:$2 sm:$0xff]
    %s808 = scalar_lea.vmem [#allocation5], 96
    %v809 = vld [vmem:[%s808] ss:$2 sm:$0xff]
    %s810 = scalar_lea.vmem [#allocation5], 112
    %v811 = vld [vmem:[%s810] ss:$2 sm:$0xff]
    %s812 = scalar_lea.vmem [#allocation5], 1
    %v813 = vld [vmem:[%s812] ss:$2 sm:$0xff]
    %s814 = scalar_lea.vmem [#allocation5], 17
    %v815 = vld [vmem:[%s814] ss:$2 sm:$0xff]
    %s816 = scalar_lea.vmem [#allocation5], 33
    %v817 = vld [vmem:[%s816] ss:$2 sm:$0xff]
    %s818 = scalar_lea.vmem [#allocation5], 49
    %v819 = vld [vmem:[%s818] ss:$2 sm:$0xff]
    %s820 = scalar_lea.vmem [#allocation5], 65
    %v821 = vld [vmem:[%s820] ss:$2 sm:$0xff]
    %s822 = scalar_lea.vmem [#allocation5], 81
    %v823 = vld [vmem:[%s822] ss:$2 sm:$0xff]
    %s824 = scalar_lea.vmem [#allocation5], 97
    %v825 = vld [vmem:[%s824] ss:$2 sm:$0xff]
    %s826 = scalar_lea.vmem [#allocation5], 113
    %v827 = vld [vmem:[%s826] ss:$2 sm:$0xff]
    %v828 = vmax.f32 %v797, %v813
    %v829 = vmax.f32 %v799, %v815
    %v830 = vmax.f32 %v801, %v817
    %v831 = vmax.f32 %v803, %v819
    %v832 = vmax.f32 %v805, %v821
    %v833 = vmax.f32 %v807, %v823
    %v834 = vmax.f32 %v809, %v825
    %v835 = vmax.f32 %v811, %v827
    %836 = vxpose.xlu0.b32.start [1/16] %v828, 128
    %837 = vxpose.xlu0.b32.cont [2/16] %v829, 128
    %838 = vxpose.xlu0.b32.cont [3/16] %v830, 128
    %839 = vxpose.xlu0.b32.cont [4/16] %v831, 128
    %840 = vxpose.xlu0.b32.cont [5/16] %v832, 128
    %841 = vxpose.xlu0.b32.cont [6/16] %v833, 128
    %842 = vxpose.xlu0.b32.cont [7/16] %v834, 128
    %843 = vxpose.xlu0.b32.cont [8/16] %v835, 128
    %844 = vxpose.xlu0.b32.cont [9/16] 0.0, 128
    %845 = vxpose.xlu0.b32.cont [10/16] 0.0, 128
    %846 = vxpose.xlu0.b32.cont [11/16] 0.0, 128
    %847 = vxpose.xlu0.b32.cont [12/16] 0.0, 128
    %848 = vxpose.xlu0.b32.cont [13/16] 0.0, 128
    %849 = vxpose.xlu0.b32.cont [14/16] 0.0, 128
    %850 = vxpose.xlu0.b32.cont [15/16] 0.0, 128
    %851 = vxpose.xlu0.b32.end [16/16] 0.0, 128
    %v852 = vpop.trf.xlu0
    %v853 = vpop.trf.xlu0
    %v854 = vpop.trf.xlu0
    %v855 = vpop.trf.xlu0
    %v856 = vpop.trf.xlu0
    %v857 = vpop.trf.xlu0
    %v858 = vpop.trf.xlu0
    %v859 = vpop.trf.xlu0
    %v860 = vpop.trf.xlu0
    %v861 = vpop.trf.xlu0
    %v862 = vpop.trf.xlu0
    %v863 = vpop.trf.xlu0
    %v864 = vpop.trf.xlu0
    %v865 = vpop.trf.xlu0
    %v866 = vpop.trf.xlu0
    %v867 = vpop.trf.xlu0
    %870 = vrot.lane.b32.xlu0 %v852, 1
    %v871 = vpop.permute.xlu0 %870
    %872 = vrot.lane.b32.xlu0 %v853, 1
    %v873 = vpop.permute.xlu0 %872
    %vm876 = vcmask 138248
    %877 = vst.msk [vmem:[#allocation3 + $0x1] sm:$0xff] %vm876, %v871
    %878 = vst.msk [vmem:[#allocation3 + $0x9] sm:$0xff] %vm876, %v873
    %879 = vrot.lane.b32.xlu0 %v852, 113
    %v880 = vpop.permute.xlu0 %879
    %881 = vrot.lane.b32.xlu0 %v853, 113
    %v882 = vpop.permute.xlu0 %881
    %s885 = scalar_lea.vmem [#allocation3], 24
    %886 = vst.msk [vmem:[%s885 + $0x1] sm:$0xff] %vm876, %v880
    %887 = vst.msk [vmem:[%s885 + $0x9] sm:$0xff] %vm876, %v882
    %888 = vrot.lane.b32.xlu0 %v852, 97
    %v889 = vpop.permute.xlu0 %888
    %890 = vrot.lane.b32.xlu0 %v853, 97
    %v891 = vpop.permute.xlu0 %890
    %s894 = scalar_lea.vmem [#allocation3], 48
    %895 = vst.msk [vmem:[%s894 + $0x1] sm:$0xff] %vm876, %v889
    %896 = vst.msk [vmem:[%s894 + $0x9] sm:$0xff] %vm876, %v891
    %897 = vrot.lane.b32.xlu0 %v852, 81
    %v898 = vpop.permute.xlu0 %897
    %899 = vrot.lane.b32.xlu0 %v853, 81
    %v900 = vpop.permute.xlu0 %899
    %s903 = scalar_lea.vmem [#allocation3], 72
    %904 = vst.msk [vmem:[%s903 + $0x1] sm:$0xff] %vm876, %v898
    %905 = vst.msk [vmem:[%s903 + $0x9] sm:$0xff] %vm876, %v900
    %v906 = vld [vmem:[#allocation3] sm:$0xff]
    %v907 = vld [vmem:[#allocation3 + $0x8] sm:$0xff]
    %910 = vrot.lane.b32.xlu0 %v906, 16
    %v911 = vpop.permute.xlu0 %910
    %912 = vrot.lane.b32.xlu0 %v907, 16
    %v913 = vpop.permute.xlu0 %912
    %916 = vrot.lane.b32.xlu0 %v906, 32
    %v917 = vpop.permute.xlu0 %916
    %918 = vrot.lane.b32.xlu0 %v907, 32
    %v919 = vpop.permute.xlu0 %918
    %922 = vrot.lane.b32.xlu0 %v906, 48
    %v923 = vpop.permute.xlu0 %922
    %924 = vrot.lane.b32.xlu0 %v907, 48
    %v925 = vpop.permute.xlu0 %924
    %928 = vrot.lane.b32.xlu0 %v906, 64
    %v929 = vpop.permute.xlu0 %928
    %930 = vrot.lane.b32.xlu0 %v907, 64
    %v931 = vpop.permute.xlu0 %930
    %934 = vrot.lane.b32.xlu0 %v906, 80
    %v935 = vpop.permute.xlu0 %934
    %936 = vrot.lane.b32.xlu0 %v907, 80
    %v937 = vpop.permute.xlu0 %936
    %940 = vrot.lane.b32.xlu0 %v906, 96
    %v941 = vpop.permute.xlu0 %940
    %942 = vrot.lane.b32.xlu0 %v907, 96
    %v943 = vpop.permute.xlu0 %942
    %946 = vrot.lane.b32.xlu0 %v906, 112
    %v947 = vpop.permute.xlu0 %946
    %948 = vrot.lane.b32.xlu0 %v907, 112
    %v949 = vpop.permute.xlu0 %948
    %v952 = vsel %vm780, %v906, %v911
    %v953 = vsel %vm780, %v907, %v913
    %v954 = vsel %vm126, %v952, %v917
    %v955 = vsel %vm126, %v953, %v919
    %vm956 = vcmask 392192
    %v957 = vsel %vm956, %v954, %v923
    %v958 = vsel %vm956, %v955, %v925
    %v959 = vsel %vm131, %v957, %v929
    %v960 = vsel %vm131, %v958, %v931
    %vm961 = vcmask 654336
    %v962 = vsel %vm961, %v959, %v935
    %v963 = vsel %vm961, %v960, %v937
    %v964 = vsel %vm136, %v962, %v941
    %v965 = vsel %vm136, %v963, %v943
    %vm966 = vcmask 916480
    %v967 = vsel %vm966, %v964, %v947
    %v968 = vsel %vm966, %v965, %v949
    %v969 = vlaneseq
    %v970 = vshrl.u32 %v969, 7
    %v971 = vsub.s32 0, %v970
    %v972 = vrot.slane %v51, %v971
    %v973 = vmul.f32 %v967, %v972
    %v974 = vmul.f32 %v968, %v972
    %v975 = vadd.f32 %v973, 0.0
    %v976 = vadd.f32 %v974, 0.0
    %977 = vrot.lane.b32.xlu0 %v906, 127
    %v978 = vpop.permute.xlu0 %977
    %979 = vrot.lane.b32.xlu0 %v907, 127
    %v980 = vpop.permute.xlu0 %979
    %983 = vrot.lane.b32.xlu0 %v906, 15
    %v984 = vpop.permute.xlu0 %983
    %985 = vrot.lane.b32.xlu0 %v907, 15
    %v986 = vpop.permute.xlu0 %985
    %989 = vrot.lane.b32.xlu0 %v906, 31
    %v990 = vpop.permute.xlu0 %989
    %991 = vrot.lane.b32.xlu0 %v907, 31
    %v992 = vpop.permute.xlu0 %991
    %995 = vrot.lane.b32.xlu0 %v906, 47
    %v996 = vpop.permute.xlu0 %995
    %997 = vrot.lane.b32.xlu0 %v907, 47
    %v998 = vpop.permute.xlu0 %997
    %1001 = vrot.lane.b32.xlu0 %v906, 63
    %v1002 = vpop.permute.xlu0 %1001
    %1003 = vrot.lane.b32.xlu0 %v907, 63
    %v1004 = vpop.permute.xlu0 %1003
    %1007 = vrot.lane.b32.xlu0 %v906, 79
    %v1008 = vpop.permute.xlu0 %1007
    %1009 = vrot.lane.b32.xlu0 %v907, 79
    %v1010 = vpop.permute.xlu0 %1009
    %1013 = vrot.lane.b32.xlu0 %v906, 95
    %v1014 = vpop.permute.xlu0 %1013
    %1015 = vrot.lane.b32.xlu0 %v907, 95
    %v1016 = vpop.permute.xlu0 %1015
    %1019 = vrot.lane.b32.xlu0 %v906, 111
    %v1020 = vpop.permute.xlu0 %1019
    %1021 = vrot.lane.b32.xlu0 %v907, 111
    %v1022 = vpop.permute.xlu0 %1021
    %v1025 = vsel %vm780, %v978, %v984
    %v1026 = vsel %vm780, %v980, %v986
    %v1027 = vsel %vm126, %v1025, %v990
    %v1028 = vsel %vm126, %v1026, %v992
    %v1029 = vsel %vm956, %v1027, %v996
    %v1030 = vsel %vm956, %v1028, %v998
    %v1031 = vsel %vm131, %v1029, %v1002
    %v1032 = vsel %vm131, %v1030, %v1004
    %v1033 = vsel %vm961, %v1031, %v1008
    %v1034 = vsel %vm961, %v1032, %v1010
    %v1035 = vsel %vm136, %v1033, %v1014
    %v1036 = vsel %vm136, %v1034, %v1016
    %v1037 = vsel %vm966, %v1035, %v1020
    %v1038 = vsel %vm966, %v1036, %v1022
    %v1039 = vlaneseq
    %v1040 = vshrl.u32 %v1039, 7
    %v1041 = vsub.s32 1, %v1040
    %v1042 = vrot.slane %v51, %v1041
    %v1043 = vmul.f32 %v1037, %v1042
    %v1044 = vmul.f32 %v1038, %v1042
    %v1045 = vadd.f32 %v975, %v1043
    %v1046 = vadd.f32 %v976, %v1044
    %1047 = vrot.lane.b32.xlu0 %v906, 126
    %v1048 = vpop.permute.xlu0 %1047
    %1049 = vrot.lane.b32.xlu0 %v907, 126
    %v1050 = vpop.permute.xlu0 %1049
    %1053 = vrot.lane.b32.xlu0 %v906, 14
    %v1054 = vpop.permute.xlu0 %1053
    %1055 = vrot.lane.b32.xlu0 %v907, 14
    %v1056 = vpop.permute.xlu0 %1055
    %1059 = vrot.lane.b32.xlu0 %v906, 30
    %v1060 = vpop.permute.xlu0 %1059
    %1061 = vrot.lane.b32.xlu0 %v907, 30
    %v1062 = vpop.permute.xlu0 %1061
    %1065 = vrot.lane.b32.xlu0 %v906, 46
    %v1066 = vpop.permute.xlu0 %1065
    %1067 = vrot.lane.b32.xlu0 %v907, 46
    %v1068 = vpop.permute.xlu0 %1067
    %1071 = vrot.lane.b32.xlu0 %v906, 62
    %v1072 = vpop.permute.xlu0 %1071
    %1073 = vrot.lane.b32.xlu0 %v907, 62
    %v1074 = vpop.permute.xlu0 %1073
    %1077 = vrot.lane.b32.xlu0 %v906, 78
    %v1078 = vpop.permute.xlu0 %1077
    %1079 = vrot.lane.b32.xlu0 %v907, 78
    %v1080 = vpop.permute.xlu0 %1079
    %1083 = vrot.lane.b32.xlu0 %v906, 94
    %v1084 = vpop.permute.xlu0 %1083
    %1085 = vrot.lane.b32.xlu0 %v907, 94
    %v1086 = vpop.permute.xlu0 %1085
    %1089 = vrot.lane.b32.xlu0 %v906, 110
    %v1090 = vpop.permute.xlu0 %1089
    %1091 = vrot.lane.b32.xlu0 %v907, 110
    %v1092 = vpop.permute.xlu0 %1091
    %v1095 = vsel %vm780, %v1048, %v1054
    %v1096 = vsel %vm780, %v1050, %v1056
    %v1097 = vsel %vm126, %v1095, %v1060
    %v1098 = vsel %vm126, %v1096, %v1062
    %v1099 = vsel %vm956, %v1097, %v1066
    %v1100 = vsel %vm956, %v1098, %v1068
    %v1101 = vsel %vm131, %v1099, %v1072
    %v1102 = vsel %vm131, %v1100, %v1074
    %v1103 = vsel %vm961, %v1101, %v1078
    %v1104 = vsel %vm961, %v1102, %v1080
    %v1105 = vsel %vm136, %v1103, %v1084
    %v1106 = vsel %vm136, %v1104, %v1086
    %v1107 = vsel %vm966, %v1105, %v1090
    %v1108 = vsel %vm966, %v1106, %v1092
    %v1109 = vlaneseq
    %v1110 = vshrl.u32 %v1109, 7
    %v1111 = vsub.s32 2, %v1110
    %v1112 = vrot.slane %v51, %v1111
    %v1113 = vmul.f32 %v1107, %v1112
    %v1114 = vmul.f32 %v1108, %v1112
    %v1115 = vadd.f32 %v1045, %v1113
    %v1116 = vadd.f32 %v1046, %v1114
    %v1117 = vld [vmem:[#allocation3 + $0x1] sm:$0xff]
    %v1118 = vld [vmem:[#allocation3 + $0x9] sm:$0xff]
    %1121 = vrot.lane.b32.xlu0 %v1117, 16
    %v1122 = vpop.permute.xlu0 %1121
    %1123 = vrot.lane.b32.xlu0 %v1118, 16
    %v1124 = vpop.permute.xlu0 %1123
    %1127 = vrot.lane.b32.xlu0 %v1117, 32
    %v1128 = vpop.permute.xlu0 %1127
    %1129 = vrot.lane.b32.xlu0 %v1118, 32
    %v1130 = vpop.permute.xlu0 %1129
    %1133 = vrot.lane.b32.xlu0 %v1117, 48
    %v1134 = vpop.permute.xlu0 %1133
    %1135 = vrot.lane.b32.xlu0 %v1118, 48
    %v1136 = vpop.permute.xlu0 %1135
    %1139 = vrot.lane.b32.xlu0 %v1117, 64
    %v1140 = vpop.permute.xlu0 %1139
    %1141 = vrot.lane.b32.xlu0 %v1118, 64
    %v1142 = vpop.permute.xlu0 %1141
    %1145 = vrot.lane.b32.xlu0 %v1117, 80
    %v1146 = vpop.permute.xlu0 %1145
    %1147 = vrot.lane.b32.xlu0 %v1118, 80
    %v1148 = vpop.permute.xlu0 %1147
    %1151 = vrot.lane.b32.xlu0 %v1117, 96
    %v1152 = vpop.permute.xlu0 %1151
    %1153 = vrot.lane.b32.xlu0 %v1118, 96
    %v1154 = vpop.permute.xlu0 %1153
    %1157 = vrot.lane.b32.xlu0 %v1117, 112
    %v1158 = vpop.permute.xlu0 %1157
    %1159 = vrot.lane.b32.xlu0 %v1118, 112
    %v1160 = vpop.permute.xlu0 %1159
    %v1163 = vsel %vm780, %v1117, %v1122
    %v1164 = vsel %vm780, %v1118, %v1124
    %v1165 = vsel %vm126, %v1163, %v1128
    %v1166 = vsel %vm126, %v1164, %v1130
    %v1167 = vsel %vm956, %v1165, %v1134
    %v1168 = vsel %vm956, %v1166, %v1136
    %v1169 = vsel %vm131, %v1167, %v1140
    %v1170 = vsel %vm131, %v1168, %v1142
    %v1171 = vsel %vm961, %v1169, %v1146
    %v1172 = vsel %vm961, %v1170, %v1148
    %v1173 = vsel %vm136, %v1171, %v1152
    %v1174 = vsel %vm136, %v1172, %v1154
    %v1175 = vsel %vm966, %v1173, %v1158
    %v1176 = vsel %vm966, %v1174, %v1160
    %v1177 = vlaneseq
    %v1178 = vshrl.u32 %v1177, 7
    %v1179 = vsub.s32 3, %v1178
    %v1180 = vrot.slane %v51, %v1179
    %v1181 = vmul.f32 %v1175, %v1180
    %v1182 = vmul.f32 %v1176, %v1180
    %v1183 = vadd.f32 %v1115, %v1181
    %v1184 = vadd.f32 %v1116, %v1182
    %1185 = vrot.lane.b32.xlu0 %v1117, 127
    %v1186 = vpop.permute.xlu0 %1185
    %1187 = vrot.lane.b32.xlu0 %v1118, 127
    %v1188 = vpop.permute.xlu0 %1187
    %1191 = vrot.lane.b32.xlu0 %v1117, 15
    %v1192 = vpop.permute.xlu0 %1191
    %1193 = vrot.lane.b32.xlu0 %v1118, 15
    %v1194 = vpop.permute.xlu0 %1193
    %1197 = vrot.lane.b32.xlu0 %v1117, 31
    %v1198 = vpop.permute.xlu0 %1197
    %1199 = vrot.lane.b32.xlu0 %v1118, 31
    %v1200 = vpop.permute.xlu0 %1199
    %1203 = vrot.lane.b32.xlu0 %v1117, 47
    %v1204 = vpop.permute.xlu0 %1203
    %1205 = vrot.lane.b32.xlu0 %v1118, 47
    %v1206 = vpop.permute.xlu0 %1205
    %1209 = vrot.lane.b32.xlu0 %v1117, 63
    %v1210 = vpop.permute.xlu0 %1209
    %1211 = vrot.lane.b32.xlu0 %v1118, 63
    %v1212 = vpop.permute.xlu0 %1211
    %1215 = vrot.lane.b32.xlu0 %v1117, 79
    %v1216 = vpop.permute.xlu0 %1215
    %1217 = vrot.lane.b32.xlu0 %v1118, 79
    %v1218 = vpop.permute.xlu0 %1217
    %1221 = vrot.lane.b32.xlu0 %v1117, 95
    %v1222 = vpop.permute.xlu0 %1221
    %1223 = vrot.lane.b32.xlu0 %v1118, 95
    %v1224 = vpop.permute.xlu0 %1223
    %1227 = vrot.lane.b32.xlu0 %v1117, 111
    %v1228 = vpop.permute.xlu0 %1227
    %1229 = vrot.lane.b32.xlu0 %v1118, 111
    %v1230 = vpop.permute.xlu0 %1229
    %v1233 = vsel %vm780, %v1186, %v1192
    %v1234 = vsel %vm780, %v1188, %v1194
    %v1235 = vsel %vm126, %v1233, %v1198
    %v1236 = vsel %vm126, %v1234, %v1200
    %v1237 = vsel %vm956, %v1235, %v1204
    %v1238 = vsel %vm956, %v1236, %v1206
    %v1239 = vsel %vm131, %v1237, %v1210
    %v1240 = vsel %vm131, %v1238, %v1212
    %v1241 = vsel %vm961, %v1239, %v1216
    %v1242 = vsel %vm961, %v1240, %v1218
    %v1243 = vsel %vm136, %v1241, %v1222
    %v1244 = vsel %vm136, %v1242, %v1224
    %v1245 = vsel %vm966, %v1243, %v1228
    %v1246 = vsel %vm966, %v1244, %v1230
    %v1247 = vlaneseq
    %v1248 = vshrl.u32 %v1247, 7
    %v1249 = vsub.s32 4, %v1248
    %v1250 = vrot.slane %v51, %v1249
    %v1251 = vmul.f32 %v1245, %v1250
    %v1252 = vmul.f32 %v1246, %v1250
    %v1253 = vadd.f32 %v1183, %v1251
    %v1254 = vadd.f32 %v1184, %v1252
    %1255 = vrot.lane.b32.xlu0 %v1117, 126
    %v1256 = vpop.permute.xlu0 %1255
    %1257 = vrot.lane.b32.xlu0 %v1118, 126
    %v1258 = vpop.permute.xlu0 %1257
    %1261 = vrot.lane.b32.xlu0 %v1117, 14
    %v1262 = vpop.permute.xlu0 %1261
    %1263 = vrot.lane.b32.xlu0 %v1118, 14
    %v1264 = vpop.permute.xlu0 %1263
    %1267 = vrot.lane.b32.xlu0 %v1117, 30
    %v1268 = vpop.permute.xlu0 %1267
    %1269 = vrot.lane.b32.xlu0 %v1118, 30
    %v1270 = vpop.permute.xlu0 %1269
    %1273 = vrot.lane.b32.xlu0 %v1117, 46
    %v1274 = vpop.permute.xlu0 %1273
    %1275 = vrot.lane.b32.xlu0 %v1118, 46
    %v1276 = vpop.permute.xlu0 %1275
    %1279 = vrot.lane.b32.xlu0 %v1117, 62
    %v1280 = vpop.permute.xlu0 %1279
    %1281 = vrot.lane.b32.xlu0 %v1118, 62
    %v1282 = vpop.permute.xlu0 %1281
    %1285 = vrot.lane.b32.xlu0 %v1117, 78
    %v1286 = vpop.permute.xlu0 %1285
    %1287 = vrot.lane.b32.xlu0 %v1118, 78
    %v1288 = vpop.permute.xlu0 %1287
    %1291 = vrot.lane.b32.xlu0 %v1117, 94
    %v1292 = vpop.permute.xlu0 %1291
    %1293 = vrot.lane.b32.xlu0 %v1118, 94
    %v1294 = vpop.permute.xlu0 %1293
    %1297 = vrot.lane.b32.xlu0 %v1117, 110
    %v1298 = vpop.permute.xlu0 %1297
    %1299 = vrot.lane.b32.xlu0 %v1118, 110
    %v1300 = vpop.permute.xlu0 %1299
    %v1303 = vsel %vm780, %v1256, %v1262
    %v1304 = vsel %vm780, %v1258, %v1264
    %v1305 = vsel %vm126, %v1303, %v1268
    %v1306 = vsel %vm126, %v1304, %v1270
    %v1307 = vsel %vm956, %v1305, %v1274
    %v1308 = vsel %vm956, %v1306, %v1276
    %v1309 = vsel %vm131, %v1307, %v1280
    %v1310 = vsel %vm131, %v1308, %v1282
    %v1311 = vsel %vm961, %v1309, %v1286
    %v1312 = vsel %vm961, %v1310, %v1288
    %v1313 = vsel %vm136, %v1311, %v1292
    %v1314 = vsel %vm136, %v1312, %v1294
    %v1315 = vsel %vm966, %v1313, %v1298
    %v1316 = vsel %vm966, %v1314, %v1300
    %v1317 = vlaneseq
    %v1318 = vshrl.u32 %v1317, 7
    %v1319 = vsub.s32 5, %v1318
    %v1320 = vrot.slane %v51, %v1319
    %v1321 = vmul.f32 %v1315, %v1320
    %v1322 = vmul.f32 %v1316, %v1320
    %v1323 = vadd.f32 %v1253, %v1321
    %v1324 = vadd.f32 %v1254, %v1322
    %v1325 = vld [vmem:[#allocation3 + $0x2] sm:$0xff]
    %v1326 = vld [vmem:[#allocation3 + $0xa] sm:$0xff]
    %1329 = vrot.lane.b32.xlu0 %v1325, 16
    %v1330 = vpop.permute.xlu0 %1329
    %1331 = vrot.lane.b32.xlu0 %v1326, 16
    %v1332 = vpop.permute.xlu0 %1331
    %1335 = vrot.lane.b32.xlu0 %v1325, 32
    %v1336 = vpop.permute.xlu0 %1335
    %1337 = vrot.lane.b32.xlu0 %v1326, 32
    %v1338 = vpop.permute.xlu0 %1337
    %1341 = vrot.lane.b32.xlu0 %v1325, 48
    %v1342 = vpop.permute.xlu0 %1341
    %1343 = vrot.lane.b32.xlu0 %v1326, 48
    %v1344 = vpop.permute.xlu0 %1343
    %1347 = vrot.lane.b32.xlu0 %v1325, 64
    %v1348 = vpop.permute.xlu0 %1347
    %1349 = vrot.lane.b32.xlu0 %v1326, 64
    %v1350 = vpop.permute.xlu0 %1349
    %1353 = vrot.lane.b32.xlu0 %v1325, 80
    %v1354 = vpop.permute.xlu0 %1353
    %1355 = vrot.lane.b32.xlu0 %v1326, 80
    %v1356 = vpop.permute.xlu0 %1355
    %1359 = vrot.lane.b32.xlu0 %v1325, 96
    %v1360 = vpop.permute.xlu0 %1359
    %1361 = vrot.lane.b32.xlu0 %v1326, 96
    %v1362 = vpop.permute.xlu0 %1361
    %1365 = vrot.lane.b32.xlu0 %v1325, 112
    %v1366 = vpop.permute.xlu0 %1365
    %1367 = vrot.lane.b32.xlu0 %v1326, 112
    %v1368 = vpop.permute.xlu0 %1367
    %v1371 = vsel %vm780, %v1325, %v1330
    %v1372 = vsel %vm780, %v1326, %v1332
    %v1373 = vsel %vm126, %v1371, %v1336
    %v1374 = vsel %vm126, %v1372, %v1338
    %v1375 = vsel %vm956, %v1373, %v1342
    %v1376 = vsel %vm956, %v1374, %v1344
    %v1377 = vsel %vm131, %v1375, %v1348
    %v1378 = vsel %vm131, %v1376, %v1350
    %v1379 = vsel %vm961, %v1377, %v1354
    %v1380 = vsel %vm961, %v1378, %v1356
    %v1381 = vsel %vm136, %v1379, %v1360
    %v1382 = vsel %vm136, %v1380, %v1362
    %v1383 = vsel %vm966, %v1381, %v1366
    %v1384 = vsel %vm966, %v1382, %v1368
    %v1385 = vlaneseq
    %v1386 = vshrl.u32 %v1385, 7
    %v1387 = vsub.s32 6, %v1386
    %v1388 = vrot.slane %v51, %v1387
    %v1389 = vmul.f32 %v1383, %v1388
    %v1390 = vmul.f32 %v1384, %v1388
    %v1391 = vadd.f32 %v1323, %v1389
    %v1392 = vadd.f32 %v1324, %v1390
    %1393 = vrot.lane.b32.xlu0 %v1325, 127
    %v1394 = vpop.permute.xlu0 %1393
    %1395 = vrot.lane.b32.xlu0 %v1326, 127
    %v1396 = vpop.permute.xlu0 %1395
    %1399 = vrot.lane.b32.xlu0 %v1325, 15
    %v1400 = vpop.permute.xlu0 %1399
    %1401 = vrot.lane.b32.xlu0 %v1326, 15
    %v1402 = vpop.permute.xlu0 %1401
    %1405 = vrot.lane.b32.xlu0 %v1325, 31
    %v1406 = vpop.permute.xlu0 %1405
    %1407 = vrot.lane.b32.xlu0 %v1326, 31
    %v1408 = vpop.permute.xlu0 %1407
    %1411 = vrot.lane.b32.xlu0 %v1325, 47
    %v1412 = vpop.permute.xlu0 %1411
    %1413 = vrot.lane.b32.xlu0 %v1326, 47
    %v1414 = vpop.permute.xlu0 %1413
    %1417 = vrot.lane.b32.xlu0 %v1325, 63
    %v1418 = vpop.permute.xlu0 %1417
    %1419 = vrot.lane.b32.xlu0 %v1326, 63
    %v1420 = vpop.permute.xlu0 %1419
    %1423 = vrot.lane.b32.xlu0 %v1325, 79
    %v1424 = vpop.permute.xlu0 %1423
    %1425 = vrot.lane.b32.xlu0 %v1326, 79
    %v1426 = vpop.permute.xlu0 %1425
    %1429 = vrot.lane.b32.xlu0 %v1325, 95
    %v1430 = vpop.permute.xlu0 %1429
    %1431 = vrot.lane.b32.xlu0 %v1326, 95
    %v1432 = vpop.permute.xlu0 %1431
    %1435 = vrot.lane.b32.xlu0 %v1325, 111
    %v1436 = vpop.permute.xlu0 %1435
    %1437 = vrot.lane.b32.xlu0 %v1326, 111
    %v1438 = vpop.permute.xlu0 %1437
    %v1441 = vsel %vm780, %v1394, %v1400
    %v1442 = vsel %vm780, %v1396, %v1402
    %v1443 = vsel %vm126, %v1441, %v1406
    %v1444 = vsel %vm126, %v1442, %v1408
    %v1445 = vsel %vm956, %v1443, %v1412
    %v1446 = vsel %vm956, %v1444, %v1414
    %v1447 = vsel %vm131, %v1445, %v1418
    %v1448 = vsel %vm131, %v1446, %v1420
    %v1449 = vsel %vm961, %v1447, %v1424
    %v1450 = vsel %vm961, %v1448, %v1426
    %v1451 = vsel %vm136, %v1449, %v1430
    %v1452 = vsel %vm136, %v1450, %v1432
    %v1453 = vsel %vm966, %v1451, %v1436
    %v1454 = vsel %vm966, %v1452, %v1438
    %v1455 = vlaneseq
    %v1456 = vshrl.u32 %v1455, 7
    %v1457 = vsub.s32 7, %v1456
    %v1458 = vrot.slane %v51, %v1457
    %v1459 = vmul.f32 %v1453, %v1458
    %v1460 = vmul.f32 %v1454, %v1458
    %v1461 = vadd.f32 %v1391, %v1459
    %v1462 = vadd.f32 %v1392, %v1460
    %1463 = vrot.lane.b32.xlu0 %v1325, 126
    %v1464 = vpop.permute.xlu0 %1463
    %1465 = vrot.lane.b32.xlu0 %v1326, 126
    %v1466 = vpop.permute.xlu0 %1465
    %1469 = vrot.lane.b32.xlu0 %v1325, 14
    %v1470 = vpop.permute.xlu0 %1469
    %1471 = vrot.lane.b32.xlu0 %v1326, 14
    %v1472 = vpop.permute.xlu0 %1471
    %1475 = vrot.lane.b32.xlu0 %v1325, 30
    %v1476 = vpop.permute.xlu0 %1475
    %1477 = vrot.lane.b32.xlu0 %v1326, 30
    %v1478 = vpop.permute.xlu0 %1477
    %1481 = vrot.lane.b32.xlu0 %v1325, 46
    %v1482 = vpop.permute.xlu0 %1481
    %1483 = vrot.lane.b32.xlu0 %v1326, 46
    %v1484 = vpop.permute.xlu0 %1483
    %1487 = vrot.lane.b32.xlu0 %v1325, 62
    %v1488 = vpop.permute.xlu0 %1487
    %1489 = vrot.lane.b32.xlu0 %v1326, 62
    %v1490 = vpop.permute.xlu0 %1489
    %1493 = vrot.lane.b32.xlu0 %v1325, 78
    %v1494 = vpop.permute.xlu0 %1493
    %1495 = vrot.lane.b32.xlu0 %v1326, 78
    %v1496 = vpop.permute.xlu0 %1495
    %1499 = vrot.lane.b32.xlu0 %v1325, 94
    %v1500 = vpop.permute.xlu0 %1499
    %1501 = vrot.lane.b32.xlu0 %v1326, 94
    %v1502 = vpop.permute.xlu0 %1501
    %1505 = vrot.lane.b32.xlu0 %v1325, 110
    %v1506 = vpop.permute.xlu0 %1505
    %1507 = vrot.lane.b32.xlu0 %v1326, 110
    %v1508 = vpop.permute.xlu0 %1507
    %v1511 = vsel %vm780, %v1464, %v1470
    %v1512 = vsel %vm780, %v1466, %v1472
    %v1513 = vsel %vm126, %v1511, %v1476
    %v1514 = vsel %vm126, %v1512, %v1478
    %v1515 = vsel %vm956, %v1513, %v1482
    %v1516 = vsel %vm956, %v1514, %v1484
    %v1517 = vsel %vm131, %v1515, %v1488
    %v1518 = vsel %vm131, %v1516, %v1490
    %v1519 = vsel %vm961, %v1517, %v1494
    %v1520 = vsel %vm961, %v1518, %v1496
    %v1521 = vsel %vm136, %v1519, %v1500
    %v1522 = vsel %vm136, %v1520, %v1502
    %v1523 = vsel %vm966, %v1521, %v1506
    %v1524 = vsel %vm966, %v1522, %v1508
    %v1525 = vlaneseq
    %v1526 = vshrl.u32 %v1525, 7
    %v1527 = vsub.s32 0, %v1526
    %v1528 = vrot.slane %v52, %v1527
    %v1529 = vmul.f32 %v1523, %v1528
    %v1530 = vmul.f32 %v1524, %v1528
    %v1531 = vadd.f32 %v1461, %v1529
    %v1532 = vadd.f32 %v1462, %v1530
    %v1533 = vld [vmem:[%s885] sm:$0xff]
    %v1534 = vld [vmem:[%s885 + $0x8] sm:$0xff]
    %1537 = vrot.lane.b32.xlu0 %v1533, 16
    %v1538 = vpop.permute.xlu0 %1537
    %1539 = vrot.lane.b32.xlu0 %v1534, 16
    %v1540 = vpop.permute.xlu0 %1539
    %1543 = vrot.lane.b32.xlu0 %v1533, 32
    %v1544 = vpop.permute.xlu0 %1543
    %1545 = vrot.lane.b32.xlu0 %v1534, 32
    %v1546 = vpop.permute.xlu0 %1545
    %1549 = vrot.lane.b32.xlu0 %v1533, 48
    %v1550 = vpop.permute.xlu0 %1549
    %1551 = vrot.lane.b32.xlu0 %v1534, 48
    %v1552 = vpop.permute.xlu0 %1551
    %1555 = vrot.lane.b32.xlu0 %v1533, 64
    %v1556 = vpop.permute.xlu0 %1555
    %1557 = vrot.lane.b32.xlu0 %v1534, 64
    %v1558 = vpop.permute.xlu0 %1557
    %1561 = vrot.lane.b32.xlu0 %v1533, 80
    %v1562 = vpop.permute.xlu0 %1561
    %1563 = vrot.lane.b32.xlu0 %v1534, 80
    %v1564 = vpop.permute.xlu0 %1563
    %1567 = vrot.lane.b32.xlu0 %v1533, 96
    %v1568 = vpop.permute.xlu0 %1567
    %1569 = vrot.lane.b32.xlu0 %v1534, 96
    %v1570 = vpop.permute.xlu0 %1569
    %1573 = vrot.lane.b32.xlu0 %v1533, 112
    %v1574 = vpop.permute.xlu0 %1573
    %1575 = vrot.lane.b32.xlu0 %v1534, 112
    %v1576 = vpop.permute.xlu0 %1575
    %v1579 = vsel %vm780, %v1533, %v1538
    %v1580 = vsel %vm780, %v1534, %v1540
    %v1581 = vsel %vm126, %v1579, %v1544
    %v1582 = vsel %vm126, %v1580, %v1546
    %v1583 = vsel %vm956, %v1581, %v1550
    %v1584 = vsel %vm956, %v1582, %v1552
    %v1585 = vsel %vm131, %v1583, %v1556
    %v1586 = vsel %vm131, %v1584, %v1558
    %v1587 = vsel %vm961, %v1585, %v1562
    %v1588 = vsel %vm961, %v1586, %v1564
    %v1589 = vsel %vm136, %v1587, %v1568
    %v1590 = vsel %vm136, %v1588, %v1570
    %v1591 = vsel %vm966, %v1589, %v1574
    %v1592 = vsel %vm966, %v1590, %v1576
    %v1593 = vlaneseq
    %v1594 = vshrl.u32 %v1593, 7
    %v1595 = vsub.s32 1, %v1594
    %v1596 = vrot.slane %v52, %v1595
    %v1597 = vmul.f32 %v1591, %v1596
    %v1598 = vmul.f32 %v1592, %v1596
    %v1599 = vadd.f32 %v1531, %v1597
    %v1600 = vadd.f32 %v1532, %v1598
    %1601 = vrot.lane.b32.xlu0 %v1533, 127
    %v1602 = vpop.permute.xlu0 %1601
    %1603 = vrot.lane.b32.xlu0 %v1534, 127
    %v1604 = vpop.permute.xlu0 %1603
    %1607 = vrot.lane.b32.xlu0 %v1533, 15
    %v1608 = vpop.permute.xlu0 %1607
    %1609 = vrot.lane.b32.xlu0 %v1534, 15
    %v1610 = vpop.permute.xlu0 %1609
    %1613 = vrot.lane.b32.xlu0 %v1533, 31
    %v1614 = vpop.permute.xlu0 %1613
    %1615 = vrot.lane.b32.xlu0 %v1534, 31
    %v1616 = vpop.permute.xlu0 %1615
    %1619 = vrot.lane.b32.xlu0 %v1533, 47
    %v1620 = vpop.permute.xlu0 %1619
    %1621 = vrot.lane.b32.xlu0 %v1534, 47
    %v1622 = vpop.permute.xlu0 %1621
    %1625 = vrot.lane.b32.xlu0 %v1533, 63
    %v1626 = vpop.permute.xlu0 %1625
    %1627 = vrot.lane.b32.xlu0 %v1534, 63
    %v1628 = vpop.permute.xlu0 %1627
    %1631 = vrot.lane.b32.xlu0 %v1533, 79
    %v1632 = vpop.permute.xlu0 %1631
    %1633 = vrot.lane.b32.xlu0 %v1534, 79
    %v1634 = vpop.permute.xlu0 %1633
    %1637 = vrot.lane.b32.xlu0 %v1533, 95
    %v1638 = vpop.permute.xlu0 %1637
    %1639 = vrot.lane.b32.xlu0 %v1534, 95
    %v1640 = vpop.permute.xlu0 %1639
    %1643 = vrot.lane.b32.xlu0 %v1533, 111
    %v1644 = vpop.permute.xlu0 %1643
    %1645 = vrot.lane.b32.xlu0 %v1534, 111
    %v1646 = vpop.permute.xlu0 %1645
    %v1649 = vsel %vm780, %v1602, %v1608
    %v1650 = vsel %vm780, %v1604, %v1610
    %v1651 = vsel %vm126, %v1649, %v1614
    %v1652 = vsel %vm126, %v1650, %v1616
    %v1653 = vsel %vm956, %v1651, %v1620
    %v1654 = vsel %vm956, %v1652, %v1622
    %v1655 = vsel %vm131, %v1653, %v1626
    %v1656 = vsel %vm131, %v1654, %v1628
    %v1657 = vsel %vm961, %v1655, %v1632
    %v1658 = vsel %vm961, %v1656, %v1634
    %v1659 = vsel %vm136, %v1657, %v1638
    %v1660 = vsel %vm136, %v1658, %v1640
    %v1661 = vsel %vm966, %v1659, %v1644
    %v1662 = vsel %vm966, %v1660, %v1646
    %v1663 = vlaneseq
    %v1664 = vshrl.u32 %v1663, 7
    %v1665 = vsub.s32 2, %v1664
    %v1666 = vrot.slane %v52, %v1665
    %v1667 = vmul.f32 %v1661, %v1666
    %v1668 = vmul.f32 %v1662, %v1666
    %v1669 = vadd.f32 %v1599, %v1667
    %v1670 = vadd.f32 %v1600, %v1668
    %1671 = vrot.lane.b32.xlu0 %v1533, 126
    %v1672 = vpop.permute.xlu0 %1671
    %1673 = vrot.lane.b32.xlu0 %v1534, 126
    %v1674 = vpop.permute.xlu0 %1673
    %1677 = vrot.lane.b32.xlu0 %v1533, 14
    %v1678 = vpop.permute.xlu0 %1677
    %1679 = vrot.lane.b32.xlu0 %v1534, 14
    %v1680 = vpop.permute.xlu0 %1679
    %1683 = vrot.lane.b32.xlu0 %v1533, 30
    %v1684 = vpop.permute.xlu0 %1683
    %1685 = vrot.lane.b32.xlu0 %v1534, 30
    %v1686 = vpop.permute.xlu0 %1685
    %1689 = vrot.lane.b32.xlu0 %v1533, 46
    %v1690 = vpop.permute.xlu0 %1689
    %1691 = vrot.lane.b32.xlu0 %v1534, 46
    %v1692 = vpop.permute.xlu0 %1691
    %1695 = vrot.lane.b32.xlu0 %v1533, 62
    %v1696 = vpop.permute.xlu0 %1695
    %1697 = vrot.lane.b32.xlu0 %v1534, 62
    %v1698 = vpop.permute.xlu0 %1697
    %1701 = vrot.lane.b32.xlu0 %v1533, 78
    %v1702 = vpop.permute.xlu0 %1701
    %1703 = vrot.lane.b32.xlu0 %v1534, 78
    %v1704 = vpop.permute.xlu0 %1703
    %1707 = vrot.lane.b32.xlu0 %v1533, 94
    %v1708 = vpop.permute.xlu0 %1707
    %1709 = vrot.lane.b32.xlu0 %v1534, 94
    %v1710 = vpop.permute.xlu0 %1709
    %1713 = vrot.lane.b32.xlu0 %v1533, 110
    %v1714 = vpop.permute.xlu0 %1713
    %1715 = vrot.lane.b32.xlu0 %v1534, 110
    %v1716 = vpop.permute.xlu0 %1715
    %v1719 = vsel %vm780, %v1672, %v1678
    %v1720 = vsel %vm780, %v1674, %v1680
    %v1721 = vsel %vm126, %v1719, %v1684
    %v1722 = vsel %vm126, %v1720, %v1686
    %v1723 = vsel %vm956, %v1721, %v1690
    %v1724 = vsel %vm956, %v1722, %v1692
    %v1725 = vsel %vm131, %v1723, %v1696
    %v1726 = vsel %vm131, %v1724, %v1698
    %v1727 = vsel %vm961, %v1725, %v1702
    %v1728 = vsel %vm961, %v1726, %v1704
    %v1729 = vsel %vm136, %v1727, %v1708
    %v1730 = vsel %vm136, %v1728, %v1710
    %v1731 = vsel %vm966, %v1729, %v1714
    %v1732 = vsel %vm966, %v1730, %v1716
    %v1733 = vlaneseq
    %v1734 = vshrl.u32 %v1733, 7
    %v1735 = vsub.s32 3, %v1734
    %v1736 = vrot.slane %v52, %v1735
    %v1737 = vmul.f32 %v1731, %v1736
    %v1738 = vmul.f32 %v1732, %v1736
    %v1739 = vadd.f32 %v1669, %v1737
    %v1740 = vadd.f32 %v1670, %v1738
    %v1741 = vld [vmem:[%s885 + $0x1] sm:$0xff]
    %v1742 = vld [vmem:[%s885 + $0x9] sm:$0xff]
    %1745 = vrot.lane.b32.xlu0 %v1741, 16
    %v1746 = vpop.permute.xlu0 %1745
    %1747 = vrot.lane.b32.xlu0 %v1742, 16
    %v1748 = vpop.permute.xlu0 %1747
    %1751 = vrot.lane.b32.xlu0 %v1741, 32
    %v1752 = vpop.permute.xlu0 %1751
    %1753 = vrot.lane.b32.xlu0 %v1742, 32
    %v1754 = vpop.permute.xlu0 %1753
    %1757 = vrot.lane.b32.xlu0 %v1741, 48
    %v1758 = vpop.permute.xlu0 %1757
    %1759 = vrot.lane.b32.xlu0 %v1742, 48
    %v1760 = vpop.permute.xlu0 %1759
    %1763 = vrot.lane.b32.xlu0 %v1741, 64
    %v1764 = vpop.permute.xlu0 %1763
    %1765 = vrot.lane.b32.xlu0 %v1742, 64
    %v1766 = vpop.permute.xlu0 %1765
    %1769 = vrot.lane.b32.xlu0 %v1741, 80
    %v1770 = vpop.permute.xlu0 %1769
    %1771 = vrot.lane.b32.xlu0 %v1742, 80
    %v1772 = vpop.permute.xlu0 %1771
    %1775 = vrot.lane.b32.xlu0 %v1741, 96
    %v1776 = vpop.permute.xlu0 %1775
    %1777 = vrot.lane.b32.xlu0 %v1742, 96
    %v1778 = vpop.permute.xlu0 %1777
    %1781 = vrot.lane.b32.xlu0 %v1741, 112
    %v1782 = vpop.permute.xlu0 %1781
    %1783 = vrot.lane.b32.xlu0 %v1742, 112
    %v1784 = vpop.permute.xlu0 %1783
    %v1787 = vsel %vm780, %v1741, %v1746
    %v1788 = vsel %vm780, %v1742, %v1748
    %v1789 = vsel %vm126, %v1787, %v1752
    %v1790 = vsel %vm126, %v1788, %v1754
    %v1791 = vsel %vm956, %v1789, %v1758
    %v1792 = vsel %vm956, %v1790, %v1760
    %v1793 = vsel %vm131, %v1791, %v1764
    %v1794 = vsel %vm131, %v1792, %v1766
    %v1795 = vsel %vm961, %v1793, %v1770
    %v1796 = vsel %vm961, %v1794, %v1772
    %v1797 = vsel %vm136, %v1795, %v1776
    %v1798 = vsel %vm136, %v1796, %v1778
    %v1799 = vsel %vm966, %v1797, %v1782
    %v1800 = vsel %vm966, %v1798, %v1784
    %v1801 = vlaneseq
    %v1802 = vshrl.u32 %v1801, 7
    %v1803 = vsub.s32 4, %v1802
    %v1804 = vrot.slane %v52, %v1803
    %v1805 = vmul.f32 %v1799, %v1804
    %v1806 = vmul.f32 %v1800, %v1804
    %v1807 = vadd.f32 %v1739, %v1805
    %v1808 = vadd.f32 %v1740, %v1806
    %1809 = vrot.lane.b32.xlu0 %v1741, 127
    %v1810 = vpop.permute.xlu0 %1809
    %1811 = vrot.lane.b32.xlu0 %v1742, 127
    %v1812 = vpop.permute.xlu0 %1811
    %1815 = vrot.lane.b32.xlu0 %v1741, 15
    %v1816 = vpop.permute.xlu0 %1815
    %1817 = vrot.lane.b32.xlu0 %v1742, 15
    %v1818 = vpop.permute.xlu0 %1817
    %1821 = vrot.lane.b32.xlu0 %v1741, 31
    %v1822 = vpop.permute.xlu0 %1821
    %1823 = vrot.lane.b32.xlu0 %v1742, 31
    %v1824 = vpop.permute.xlu0 %1823
    %1827 = vrot.lane.b32.xlu0 %v1741, 47
    %v1828 = vpop.permute.xlu0 %1827
    %1829 = vrot.lane.b32.xlu0 %v1742, 47
    %v1830 = vpop.permute.xlu0 %1829
    %1833 = vrot.lane.b32.xlu0 %v1741, 63
    %v1834 = vpop.permute.xlu0 %1833
    %1835 = vrot.lane.b32.xlu0 %v1742, 63
    %v1836 = vpop.permute.xlu0 %1835
    %1839 = vrot.lane.b32.xlu0 %v1741, 79
    %v1840 = vpop.permute.xlu0 %1839
    %1841 = vrot.lane.b32.xlu0 %v1742, 79
    %v1842 = vpop.permute.xlu0 %1841
    %1845 = vrot.lane.b32.xlu0 %v1741, 95
    %v1846 = vpop.permute.xlu0 %1845
    %1847 = vrot.lane.b32.xlu0 %v1742, 95
    %v1848 = vpop.permute.xlu0 %1847
    %1851 = vrot.lane.b32.xlu0 %v1741, 111
    %v1852 = vpop.permute.xlu0 %1851
    %1853 = vrot.lane.b32.xlu0 %v1742, 111
    %v1854 = vpop.permute.xlu0 %1853
    %v1857 = vsel %vm780, %v1810, %v1816
    %v1858 = vsel %vm780, %v1812, %v1818
    %v1859 = vsel %vm126, %v1857, %v1822
    %v1860 = vsel %vm126, %v1858, %v1824
    %v1861 = vsel %vm956, %v1859, %v1828
    %v1862 = vsel %vm956, %v1860, %v1830
    %v1863 = vsel %vm131, %v1861, %v1834
    %v1864 = vsel %vm131, %v1862, %v1836
    %v1865 = vsel %vm961, %v1863, %v1840
    %v1866 = vsel %vm961, %v1864, %v1842
    %v1867 = vsel %vm136, %v1865, %v1846
    %v1868 = vsel %vm136, %v1866, %v1848
    %v1869 = vsel %vm966, %v1867, %v1852
    %v1870 = vsel %vm966, %v1868, %v1854
    %v1871 = vlaneseq
    %v1872 = vshrl.u32 %v1871, 7
    %v1873 = vsub.s32 5, %v1872
    %v1874 = vrot.slane %v52, %v1873
    %v1875 = vmul.f32 %v1869, %v1874
    %v1876 = vmul.f32 %v1870, %v1874
    %v1877 = vadd.f32 %v1807, %v1875
    %v1878 = vadd.f32 %v1808, %v1876
    %1879 = vrot.lane.b32.xlu0 %v1741, 126
    %v1880 = vpop.permute.xlu0 %1879
    %1881 = vrot.lane.b32.xlu0 %v1742, 126
    %v1882 = vpop.permute.xlu0 %1881
    %1885 = vrot.lane.b32.xlu0 %v1741, 14
    %v1886 = vpop.permute.xlu0 %1885
    %1887 = vrot.lane.b32.xlu0 %v1742, 14
    %v1888 = vpop.permute.xlu0 %1887
    %1891 = vrot.lane.b32.xlu0 %v1741, 30
    %v1892 = vpop.permute.xlu0 %1891
    %1893 = vrot.lane.b32.xlu0 %v1742, 30
    %v1894 = vpop.permute.xlu0 %1893
    %1897 = vrot.lane.b32.xlu0 %v1741, 46
    %v1898 = vpop.permute.xlu0 %1897
    %1899 = vrot.lane.b32.xlu0 %v1742, 46
    %v1900 = vpop.permute.xlu0 %1899
    %1903 = vrot.lane.b32.xlu0 %v1741, 62
    %v1904 = vpop.permute.xlu0 %1903
    %1905 = vrot.lane.b32.xlu0 %v1742, 62
    %v1906 = vpop.permute.xlu0 %1905
    %1909 = vrot.lane.b32.xlu0 %v1741, 78
    %v1910 = vpop.permute.xlu0 %1909
    %1911 = vrot.lane.b32.xlu0 %v1742, 78
    %v1912 = vpop.permute.xlu0 %1911
    %1915 = vrot.lane.b32.xlu0 %v1741, 94
    %v1916 = vpop.permute.xlu0 %1915
    %1917 = vrot.lane.b32.xlu0 %v1742, 94
    %v1918 = vpop.permute.xlu0 %1917
    %1921 = vrot.lane.b32.xlu0 %v1741, 110
    %v1922 = vpop.permute.xlu0 %1921
    %1923 = vrot.lane.b32.xlu0 %v1742, 110
    %v1924 = vpop.permute.xlu0 %1923
    %v1927 = vsel %vm780, %v1880, %v1886
    %v1928 = vsel %vm780, %v1882, %v1888
    %v1929 = vsel %vm126, %v1927, %v1892
    %v1930 = vsel %vm126, %v1928, %v1894
    %v1931 = vsel %vm956, %v1929, %v1898
    %v1932 = vsel %vm956, %v1930, %v1900
    %v1933 = vsel %vm131, %v1931, %v1904
    %v1934 = vsel %vm131, %v1932, %v1906
    %v1935 = vsel %vm961, %v1933, %v1910
    %v1936 = vsel %vm961, %v1934, %v1912
    %v1937 = vsel %vm136, %v1935, %v1916
    %v1938 = vsel %vm136, %v1936, %v1918
    %v1939 = vsel %vm966, %v1937, %v1922
    %v1940 = vsel %vm966, %v1938, %v1924
    %v1941 = vlaneseq
    %v1942 = vshrl.u32 %v1941, 7
    %v1943 = vsub.s32 6, %v1942
    %v1944 = vrot.slane %v52, %v1943
    %v1945 = vmul.f32 %v1939, %v1944
    %v1946 = vmul.f32 %v1940, %v1944
    %v1947 = vadd.f32 %v1877, %v1945
    %v1948 = vadd.f32 %v1878, %v1946
    %v1949 = vld [vmem:[%s885 + $0x2] sm:$0xff]
    %v1950 = vld [vmem:[%s885 + $0xa] sm:$0xff]
    %1953 = vrot.lane.b32.xlu0 %v1949, 16
    %v1954 = vpop.permute.xlu0 %1953
    %1955 = vrot.lane.b32.xlu0 %v1950, 16
    %v1956 = vpop.permute.xlu0 %1955
    %1959 = vrot.lane.b32.xlu0 %v1949, 32
    %v1960 = vpop.permute.xlu0 %1959
    %1961 = vrot.lane.b32.xlu0 %v1950, 32
    %v1962 = vpop.permute.xlu0 %1961
    %1965 = vrot.lane.b32.xlu0 %v1949, 48
    %v1966 = vpop.permute.xlu0 %1965
    %1967 = vrot.lane.b32.xlu0 %v1950, 48
    %v1968 = vpop.permute.xlu0 %1967
    %1971 = vrot.lane.b32.xlu0 %v1949, 64
    %v1972 = vpop.permute.xlu0 %1971
    %1973 = vrot.lane.b32.xlu0 %v1950, 64
    %v1974 = vpop.permute.xlu0 %1973
    %1977 = vrot.lane.b32.xlu0 %v1949, 80
    %v1978 = vpop.permute.xlu0 %1977
    %1979 = vrot.lane.b32.xlu0 %v1950, 80
    %v1980 = vpop.permute.xlu0 %1979
    %1983 = vrot.lane.b32.xlu0 %v1949, 96
    %v1984 = vpop.permute.xlu0 %1983
    %1985 = vrot.lane.b32.xlu0 %v1950, 96
    %v1986 = vpop.permute.xlu0 %1985
    %1989 = vrot.lane.b32.xlu0 %v1949, 112
    %v1990 = vpop.permute.xlu0 %1989
    %1991 = vrot.lane.b32.xlu0 %v1950, 112
    %v1992 = vpop.permute.xlu0 %1991
    %v1995 = vsel %vm780, %v1949, %v1954
    %v1996 = vsel %vm780, %v1950, %v1956
    %v1997 = vsel %vm126, %v1995, %v1960
    %v1998 = vsel %vm126, %v1996, %v1962
    %v1999 = vsel %vm956, %v1997, %v1966
    %v2000 = vsel %vm956, %v1998, %v1968
    %v2001 = vsel %vm131, %v1999, %v1972
    %v2002 = vsel %vm131, %v2000, %v1974
    %v2003 = vsel %vm961, %v2001, %v1978
    %v2004 = vsel %vm961, %v2002, %v1980
    %v2005 = vsel %vm136, %v2003, %v1984
    %v2006 = vsel %vm136, %v2004, %v1986
    %v2007 = vsel %vm966, %v2005, %v1990
    %v2008 = vsel %vm966, %v2006, %v1992
    %v2009 = vlaneseq
    %v2010 = vshrl.u32 %v2009, 7
    %v2011 = vsub.s32 7, %v2010
    %v2012 = vrot.slane %v52, %v2011
    %v2013 = vmul.f32 %v2007, %v2012
    %v2014 = vmul.f32 %v2008, %v2012
    %v2015 = vadd.f32 %v1947, %v2013
    %v2016 = vadd.f32 %v1948, %v2014
    %2017 = vrot.lane.b32.xlu0 %v1949, 127
    %v2018 = vpop.permute.xlu0 %2017
    %2019 = vrot.lane.b32.xlu0 %v1950, 127
    %v2020 = vpop.permute.xlu0 %2019
    %2023 = vrot.lane.b32.xlu0 %v1949, 15
    %v2024 = vpop.permute.xlu0 %2023
    %2025 = vrot.lane.b32.xlu0 %v1950, 15
    %v2026 = vpop.permute.xlu0 %2025
    %2029 = vrot.lane.b32.xlu0 %v1949, 31
    %v2030 = vpop.permute.xlu0 %2029
    %2031 = vrot.lane.b32.xlu0 %v1950, 31
    %v2032 = vpop.permute.xlu0 %2031
    %2035 = vrot.lane.b32.xlu0 %v1949, 47
    %v2036 = vpop.permute.xlu0 %2035
    %2037 = vrot.lane.b32.xlu0 %v1950, 47
    %v2038 = vpop.permute.xlu0 %2037
    %2041 = vrot.lane.b32.xlu0 %v1949, 63
    %v2042 = vpop.permute.xlu0 %2041
    %2043 = vrot.lane.b32.xlu0 %v1950, 63
    %v2044 = vpop.permute.xlu0 %2043
    %2047 = vrot.lane.b32.xlu0 %v1949, 79
    %v2048 = vpop.permute.xlu0 %2047
    %2049 = vrot.lane.b32.xlu0 %v1950, 79
    %v2050 = vpop.permute.xlu0 %2049
    %2053 = vrot.lane.b32.xlu0 %v1949, 95
    %v2054 = vpop.permute.xlu0 %2053
    %2055 = vrot.lane.b32.xlu0 %v1950, 95
    %v2056 = vpop.permute.xlu0 %2055
    %2059 = vrot.lane.b32.xlu0 %v1949, 111
    %v2060 = vpop.permute.xlu0 %2059
    %2061 = vrot.lane.b32.xlu0 %v1950, 111
    %v2062 = vpop.permute.xlu0 %2061
    %v2065 = vsel %vm780, %v2018, %v2024
    %v2066 = vsel %vm780, %v2020, %v2026
    %v2067 = vsel %vm126, %v2065, %v2030
    %v2068 = vsel %vm126, %v2066, %v2032
    %v2069 = vsel %vm956, %v2067, %v2036
    %v2070 = vsel %vm956, %v2068, %v2038
    %v2071 = vsel %vm131, %v2069, %v2042
    %v2072 = vsel %vm131, %v2070, %v2044
    %v2073 = vsel %vm961, %v2071, %v2048
    %v2074 = vsel %vm961, %v2072, %v2050
    %v2075 = vsel %vm136, %v2073, %v2054
    %v2076 = vsel %vm136, %v2074, %v2056
    %v2077 = vsel %vm966, %v2075, %v2060
    %v2078 = vsel %vm966, %v2076, %v2062
    %v2079 = vlaneseq
    %v2080 = vshrl.u32 %v2079, 7
    %v2081 = vsub.s32 0, %v2080
    %v2082 = vrot.slane %v53, %v2081
    %v2083 = vmul.f32 %v2077, %v2082
    %v2084 = vmul.f32 %v2078, %v2082
    %v2085 = vadd.f32 %v2015, %v2083
    %v2086 = vadd.f32 %v2016, %v2084
    %2087 = vrot.lane.b32.xlu0 %v1949, 126
    %v2088 = vpop.permute.xlu0 %2087
    %2089 = vrot.lane.b32.xlu0 %v1950, 126
    %v2090 = vpop.permute.xlu0 %2089
    %2093 = vrot.lane.b32.xlu0 %v1949, 14
    %v2094 = vpop.permute.xlu0 %2093
    %2095 = vrot.lane.b32.xlu0 %v1950, 14
    %v2096 = vpop.permute.xlu0 %2095
    %2099 = vrot.lane.b32.xlu0 %v1949, 30
    %v2100 = vpop.permute.xlu0 %2099
    %2101 = vrot.lane.b32.xlu0 %v1950, 30
    %v2102 = vpop.permute.xlu0 %2101
    %2105 = vrot.lane.b32.xlu0 %v1949, 46
    %v2106 = vpop.permute.xlu0 %2105
    %2107 = vrot.lane.b32.xlu0 %v1950, 46
    %v2108 = vpop.permute.xlu0 %2107
    %2111 = vrot.lane.b32.xlu0 %v1949, 62
    %v2112 = vpop.permute.xlu0 %2111
    %2113 = vrot.lane.b32.xlu0 %v1950, 62
    %v2114 = vpop.permute.xlu0 %2113
    %2117 = vrot.lane.b32.xlu0 %v1949, 78
    %v2118 = vpop.permute.xlu0 %2117
    %2119 = vrot.lane.b32.xlu0 %v1950, 78
    %v2120 = vpop.permute.xlu0 %2119
    %2123 = vrot.lane.b32.xlu0 %v1949, 94
    %v2124 = vpop.permute.xlu0 %2123
    %2125 = vrot.lane.b32.xlu0 %v1950, 94
    %v2126 = vpop.permute.xlu0 %2125
    %2129 = vrot.lane.b32.xlu0 %v1949, 110
    %v2130 = vpop.permute.xlu0 %2129
    %2131 = vrot.lane.b32.xlu0 %v1950, 110
    %v2132 = vpop.permute.xlu0 %2131
    %v2135 = vsel %vm780, %v2088, %v2094
    %v2136 = vsel %vm780, %v2090, %v2096
    %v2137 = vsel %vm126, %v2135, %v2100
    %v2138 = vsel %vm126, %v2136, %v2102
    %v2139 = vsel %vm956, %v2137, %v2106
    %v2140 = vsel %vm956, %v2138, %v2108
    %v2141 = vsel %vm131, %v2139, %v2112
    %v2142 = vsel %vm131, %v2140, %v2114
    %v2143 = vsel %vm961, %v2141, %v2118
    %v2144 = vsel %vm961, %v2142, %v2120
    %v2145 = vsel %vm136, %v2143, %v2124
    %v2146 = vsel %vm136, %v2144, %v2126
    %v2147 = vsel %vm966, %v2145, %v2130
    %v2148 = vsel %vm966, %v2146, %v2132
    %v2149 = vlaneseq
    %v2150 = vshrl.u32 %v2149, 7
    %v2151 = vsub.s32 1, %v2150
    %v2152 = vrot.slane %v53, %v2151
    %v2153 = vmul.f32 %v2147, %v2152
    %v2154 = vmul.f32 %v2148, %v2152
    %v2155 = vadd.f32 %v2085, %v2153
    %v2156 = vadd.f32 %v2086, %v2154
    %v2157 = vld [vmem:[%s894] sm:$0xff]
    %v2158 = vld [vmem:[%s894 + $0x8] sm:$0xff]
    %2161 = vrot.lane.b32.xlu0 %v2157, 16
    %v2162 = vpop.permute.xlu0 %2161
    %2163 = vrot.lane.b32.xlu0 %v2158, 16
    %v2164 = vpop.permute.xlu0 %2163
    %2167 = vrot.lane.b32.xlu0 %v2157, 32
    %v2168 = vpop.permute.xlu0 %2167
    %2169 = vrot.lane.b32.xlu0 %v2158, 32
    %v2170 = vpop.permute.xlu0 %2169
    %2173 = vrot.lane.b32.xlu0 %v2157, 48
    %v2174 = vpop.permute.xlu0 %2173
    %2175 = vrot.lane.b32.xlu0 %v2158, 48
    %v2176 = vpop.permute.xlu0 %2175
    %2179 = vrot.lane.b32.xlu0 %v2157, 64
    %v2180 = vpop.permute.xlu0 %2179
    %2181 = vrot.lane.b32.xlu0 %v2158, 64
    %v2182 = vpop.permute.xlu0 %2181
    %2185 = vrot.lane.b32.xlu0 %v2157, 80
    %v2186 = vpop.permute.xlu0 %2185
    %2187 = vrot.lane.b32.xlu0 %v2158, 80
    %v2188 = vpop.permute.xlu0 %2187
    %2191 = vrot.lane.b32.xlu0 %v2157, 96
    %v2192 = vpop.permute.xlu0 %2191
    %2193 = vrot.lane.b32.xlu0 %v2158, 96
    %v2194 = vpop.permute.xlu0 %2193
    %2197 = vrot.lane.b32.xlu0 %v2157, 112
    %v2198 = vpop.permute.xlu0 %2197
    %2199 = vrot.lane.b32.xlu0 %v2158, 112
    %v2200 = vpop.permute.xlu0 %2199
    %v2203 = vsel %vm780, %v2157, %v2162
    %v2204 = vsel %vm780, %v2158, %v2164
    %v2205 = vsel %vm126, %v2203, %v2168
    %v2206 = vsel %vm126, %v2204, %v2170
    %v2207 = vsel %vm956, %v2205, %v2174
    %v2208 = vsel %vm956, %v2206, %v2176
    %v2209 = vsel %vm131, %v2207, %v2180
    %v2210 = vsel %vm131, %v2208, %v2182
    %v2211 = vsel %vm961, %v2209, %v2186
    %v2212 = vsel %vm961, %v2210, %v2188
    %v2213 = vsel %vm136, %v2211, %v2192
    %v2214 = vsel %vm136, %v2212, %v2194
    %v2215 = vsel %vm966, %v2213, %v2198
    %v2216 = vsel %vm966, %v2214, %v2200
    %v2217 = vlaneseq
    %v2218 = vshrl.u32 %v2217, 7
    %v2219 = vsub.s32 2, %v2218
    %v2220 = vrot.slane %v53, %v2219
    %v2221 = vmul.f32 %v2215, %v2220
    %v2222 = vmul.f32 %v2216, %v2220
    %v2223 = vadd.f32 %v2155, %v2221
    %v2224 = vadd.f32 %v2156, %v2222
    %2225 = vrot.lane.b32.xlu0 %v2157, 127
    %v2226 = vpop.permute.xlu0 %2225
    %2227 = vrot.lane.b32.xlu0 %v2158, 127
    %v2228 = vpop.permute.xlu0 %2227
    %2231 = vrot.lane.b32.xlu0 %v2157, 15
    %v2232 = vpop.permute.xlu0 %2231
    %2233 = vrot.lane.b32.xlu0 %v2158, 15
    %v2234 = vpop.permute.xlu0 %2233
    %2237 = vrot.lane.b32.xlu0 %v2157, 31
    %v2238 = vpop.permute.xlu0 %2237
    %2239 = vrot.lane.b32.xlu0 %v2158, 31
    %v2240 = vpop.permute.xlu0 %2239
    %2243 = vrot.lane.b32.xlu0 %v2157, 47
    %v2244 = vpop.permute.xlu0 %2243
    %2245 = vrot.lane.b32.xlu0 %v2158, 47
    %v2246 = vpop.permute.xlu0 %2245
    %2249 = vrot.lane.b32.xlu0 %v2157, 63
    %v2250 = vpop.permute.xlu0 %2249
    %2251 = vrot.lane.b32.xlu0 %v2158, 63
    %v2252 = vpop.permute.xlu0 %2251
    %2255 = vrot.lane.b32.xlu0 %v2157, 79
    %v2256 = vpop.permute.xlu0 %2255
    %2257 = vrot.lane.b32.xlu0 %v2158, 79
    %v2258 = vpop.permute.xlu0 %2257
    %2261 = vrot.lane.b32.xlu0 %v2157, 95
    %v2262 = vpop.permute.xlu0 %2261
    %2263 = vrot.lane.b32.xlu0 %v2158, 95
    %v2264 = vpop.permute.xlu0 %2263
    %2267 = vrot.lane.b32.xlu0 %v2157, 111
    %v2268 = vpop.permute.xlu0 %2267
    %2269 = vrot.lane.b32.xlu0 %v2158, 111
    %v2270 = vpop.permute.xlu0 %2269
    %v2273 = vsel %vm780, %v2226, %v2232
    %v2274 = vsel %vm780, %v2228, %v2234
    %v2275 = vsel %vm126, %v2273, %v2238
    %v2276 = vsel %vm126, %v2274, %v2240
    %v2277 = vsel %vm956, %v2275, %v2244
    %v2278 = vsel %vm956, %v2276, %v2246
    %v2279 = vsel %vm131, %v2277, %v2250
    %v2280 = vsel %vm131, %v2278, %v2252
    %v2281 = vsel %vm961, %v2279, %v2256
    %v2282 = vsel %vm961, %v2280, %v2258
    %v2283 = vsel %vm136, %v2281, %v2262
    %v2284 = vsel %vm136, %v2282, %v2264
    %v2285 = vsel %vm966, %v2283, %v2268
    %v2286 = vsel %vm966, %v2284, %v2270
    %v2287 = vlaneseq
    %v2288 = vshrl.u32 %v2287, 7
    %v2289 = vsub.s32 3, %v2288
    %v2290 = vrot.slane %v53, %v2289
    %v2291 = vmul.f32 %v2285, %v2290
    %v2292 = vmul.f32 %v2286, %v2290
    %v2293 = vadd.f32 %v2223, %v2291
    %v2294 = vadd.f32 %v2224, %v2292
    %2295 = vrot.lane.b32.xlu0 %v2157, 126
    %v2296 = vpop.permute.xlu0 %2295
    %2297 = vrot.lane.b32.xlu0 %v2158, 126
    %v2298 = vpop.permute.xlu0 %2297
    %2301 = vrot.lane.b32.xlu0 %v2157, 14
    %v2302 = vpop.permute.xlu0 %2301
    %2303 = vrot.lane.b32.xlu0 %v2158, 14
    %v2304 = vpop.permute.xlu0 %2303
    %2307 = vrot.lane.b32.xlu0 %v2157, 30
    %v2308 = vpop.permute.xlu0 %2307
    %2309 = vrot.lane.b32.xlu0 %v2158, 30
    %v2310 = vpop.permute.xlu0 %2309
    %2313 = vrot.lane.b32.xlu0 %v2157, 46
    %v2314 = vpop.permute.xlu0 %2313
    %2315 = vrot.lane.b32.xlu0 %v2158, 46
    %v2316 = vpop.permute.xlu0 %2315
    %2319 = vrot.lane.b32.xlu0 %v2157, 62
    %v2320 = vpop.permute.xlu0 %2319
    %2321 = vrot.lane.b32.xlu0 %v2158, 62
    %v2322 = vpop.permute.xlu0 %2321
    %2325 = vrot.lane.b32.xlu0 %v2157, 78
    %v2326 = vpop.permute.xlu0 %2325
    %2327 = vrot.lane.b32.xlu0 %v2158, 78
    %v2328 = vpop.permute.xlu0 %2327
    %2331 = vrot.lane.b32.xlu0 %v2157, 94
    %v2332 = vpop.permute.xlu0 %2331
    %2333 = vrot.lane.b32.xlu0 %v2158, 94
    %v2334 = vpop.permute.xlu0 %2333
    %2337 = vrot.lane.b32.xlu0 %v2157, 110
    %v2338 = vpop.permute.xlu0 %2337
    %2339 = vrot.lane.b32.xlu0 %v2158, 110
    %v2340 = vpop.permute.xlu0 %2339
    %v2343 = vsel %vm780, %v2296, %v2302
    %v2344 = vsel %vm780, %v2298, %v2304
    %v2345 = vsel %vm126, %v2343, %v2308
    %v2346 = vsel %vm126, %v2344, %v2310
    %v2347 = vsel %vm956, %v2345, %v2314
    %v2348 = vsel %vm956, %v2346, %v2316
    %v2349 = vsel %vm131, %v2347, %v2320
    %v2350 = vsel %vm131, %v2348, %v2322
    %v2351 = vsel %vm961, %v2349, %v2326
    %v2352 = vsel %vm961, %v2350, %v2328
    %v2353 = vsel %vm136, %v2351, %v2332
    %v2354 = vsel %vm136, %v2352, %v2334
    %v2355 = vsel %vm966, %v2353, %v2338
    %v2356 = vsel %vm966, %v2354, %v2340
    %v2357 = vlaneseq
    %v2358 = vshrl.u32 %v2357, 7
    %v2359 = vsub.s32 4, %v2358
    %v2360 = vrot.slane %v53, %v2359
    %v2361 = vmul.f32 %v2355, %v2360
    %v2362 = vmul.f32 %v2356, %v2360
    %v2363 = vadd.f32 %v2293, %v2361
    %v2364 = vadd.f32 %v2294, %v2362
    %v2365 = vld [vmem:[%s894 + $0x1] sm:$0xff]
    %v2366 = vld [vmem:[%s894 + $0x9] sm:$0xff]
    %2369 = vrot.lane.b32.xlu0 %v2365, 16
    %v2370 = vpop.permute.xlu0 %2369
    %2371 = vrot.lane.b32.xlu0 %v2366, 16
    %v2372 = vpop.permute.xlu0 %2371
    %2375 = vrot.lane.b32.xlu0 %v2365, 32
    %v2376 = vpop.permute.xlu0 %2375
    %2377 = vrot.lane.b32.xlu0 %v2366, 32
    %v2378 = vpop.permute.xlu0 %2377
    %2381 = vrot.lane.b32.xlu0 %v2365, 48
    %v2382 = vpop.permute.xlu0 %2381
    %2383 = vrot.lane.b32.xlu0 %v2366, 48
    %v2384 = vpop.permute.xlu0 %2383
    %2387 = vrot.lane.b32.xlu0 %v2365, 64
    %v2388 = vpop.permute.xlu0 %2387
    %2389 = vrot.lane.b32.xlu0 %v2366, 64
    %v2390 = vpop.permute.xlu0 %2389
    %2393 = vrot.lane.b32.xlu0 %v2365, 80
    %v2394 = vpop.permute.xlu0 %2393
    %2395 = vrot.lane.b32.xlu0 %v2366, 80
    %v2396 = vpop.permute.xlu0 %2395
    %2399 = vrot.lane.b32.xlu0 %v2365, 96
    %v2400 = vpop.permute.xlu0 %2399
    %2401 = vrot.lane.b32.xlu0 %v2366, 96
    %v2402 = vpop.permute.xlu0 %2401
    %2405 = vrot.lane.b32.xlu0 %v2365, 112
    %v2406 = vpop.permute.xlu0 %2405
    %2407 = vrot.lane.b32.xlu0 %v2366, 112
    %v2408 = vpop.permute.xlu0 %2407
    %v2411 = vsel %vm780, %v2365, %v2370
    %v2412 = vsel %vm780, %v2366, %v2372
    %v2413 = vsel %vm126, %v2411, %v2376
    %v2414 = vsel %vm126, %v2412, %v2378
    %v2415 = vsel %vm956, %v2413, %v2382
    %v2416 = vsel %vm956, %v2414, %v2384
    %v2417 = vsel %vm131, %v2415, %v2388
    %v2418 = vsel %vm131, %v2416, %v2390
    %v2419 = vsel %vm961, %v2417, %v2394
    %v2420 = vsel %vm961, %v2418, %v2396
    %v2421 = vsel %vm136, %v2419, %v2400
    %v2422 = vsel %vm136, %v2420, %v2402
    %v2423 = vsel %vm966, %v2421, %v2406
    %v2424 = vsel %vm966, %v2422, %v2408
    %v2425 = vlaneseq
    %v2426 = vshrl.u32 %v2425, 7
    %v2427 = vsub.s32 5, %v2426
    %v2428 = vrot.slane %v53, %v2427
    %v2429 = vmul.f32 %v2423, %v2428
    %v2430 = vmul.f32 %v2424, %v2428
    %v2431 = vadd.f32 %v2363, %v2429
    %v2432 = vadd.f32 %v2364, %v2430
    %2433 = vrot.lane.b32.xlu0 %v2365, 127
    %v2434 = vpop.permute.xlu0 %2433
    %2435 = vrot.lane.b32.xlu0 %v2366, 127
    %v2436 = vpop.permute.xlu0 %2435
    %2439 = vrot.lane.b32.xlu0 %v2365, 15
    %v2440 = vpop.permute.xlu0 %2439
    %2441 = vrot.lane.b32.xlu0 %v2366, 15
    %v2442 = vpop.permute.xlu0 %2441
    %2445 = vrot.lane.b32.xlu0 %v2365, 31
    %v2446 = vpop.permute.xlu0 %2445
    %2447 = vrot.lane.b32.xlu0 %v2366, 31
    %v2448 = vpop.permute.xlu0 %2447
    %2451 = vrot.lane.b32.xlu0 %v2365, 47
    %v2452 = vpop.permute.xlu0 %2451
    %2453 = vrot.lane.b32.xlu0 %v2366, 47
    %v2454 = vpop.permute.xlu0 %2453
    %2457 = vrot.lane.b32.xlu0 %v2365, 63
    %v2458 = vpop.permute.xlu0 %2457
    %2459 = vrot.lane.b32.xlu0 %v2366, 63
    %v2460 = vpop.permute.xlu0 %2459
    %2463 = vrot.lane.b32.xlu0 %v2365, 79
    %v2464 = vpop.permute.xlu0 %2463
    %2465 = vrot.lane.b32.xlu0 %v2366, 79
    %v2466 = vpop.permute.xlu0 %2465
    %2469 = vrot.lane.b32.xlu0 %v2365, 95
    %v2470 = vpop.permute.xlu0 %2469
    %2471 = vrot.lane.b32.xlu0 %v2366, 95
    %v2472 = vpop.permute.xlu0 %2471
    %2475 = vrot.lane.b32.xlu0 %v2365, 111
    %v2476 = vpop.permute.xlu0 %2475
    %2477 = vrot.lane.b32.xlu0 %v2366, 111
    %v2478 = vpop.permute.xlu0 %2477
    %v2481 = vsel %vm780, %v2434, %v2440
    %v2482 = vsel %vm780, %v2436, %v2442
    %v2483 = vsel %vm126, %v2481, %v2446
    %v2484 = vsel %vm126, %v2482, %v2448
    %v2485 = vsel %vm956, %v2483, %v2452
    %v2486 = vsel %vm956, %v2484, %v2454
    %v2487 = vsel %vm131, %v2485, %v2458
    %v2488 = vsel %vm131, %v2486, %v2460
    %v2489 = vsel %vm961, %v2487, %v2464
    %v2490 = vsel %vm961, %v2488, %v2466
    %v2491 = vsel %vm136, %v2489, %v2470
    %v2492 = vsel %vm136, %v2490, %v2472
    %v2493 = vsel %vm966, %v2491, %v2476
    %v2494 = vsel %vm966, %v2492, %v2478
    %v2495 = vlaneseq
    %v2496 = vshrl.u32 %v2495, 7
    %v2497 = vsub.s32 6, %v2496
    %v2498 = vrot.slane %v53, %v2497
    %v2499 = vmul.f32 %v2493, %v2498
    %v2500 = vmul.f32 %v2494, %v2498
    %v2501 = vadd.f32 %v2431, %v2499
    %v2502 = vadd.f32 %v2432, %v2500
    %2503 = vrot.lane.b32.xlu0 %v2365, 126
    %v2504 = vpop.permute.xlu0 %2503
    %2505 = vrot.lane.b32.xlu0 %v2366, 126
    %v2506 = vpop.permute.xlu0 %2505
    %2509 = vrot.lane.b32.xlu0 %v2365, 14
    %v2510 = vpop.permute.xlu0 %2509
    %2511 = vrot.lane.b32.xlu0 %v2366, 14
    %v2512 = vpop.permute.xlu0 %2511
    %2515 = vrot.lane.b32.xlu0 %v2365, 30
    %v2516 = vpop.permute.xlu0 %2515
    %2517 = vrot.lane.b32.xlu0 %v2366, 30
    %v2518 = vpop.permute.xlu0 %2517
    %2521 = vrot.lane.b32.xlu0 %v2365, 46
    %v2522 = vpop.permute.xlu0 %2521
    %2523 = vrot.lane.b32.xlu0 %v2366, 46
    %v2524 = vpop.permute.xlu0 %2523
    %2527 = vrot.lane.b32.xlu0 %v2365, 62
    %v2528 = vpop.permute.xlu0 %2527
    %2529 = vrot.lane.b32.xlu0 %v2366, 62
    %v2530 = vpop.permute.xlu0 %2529
    %2533 = vrot.lane.b32.xlu0 %v2365, 78
    %v2534 = vpop.permute.xlu0 %2533
    %2535 = vrot.lane.b32.xlu0 %v2366, 78
    %v2536 = vpop.permute.xlu0 %2535
    %2539 = vrot.lane.b32.xlu0 %v2365, 94
    %v2540 = vpop.permute.xlu0 %2539
    %2541 = vrot.lane.b32.xlu0 %v2366, 94
    %v2542 = vpop.permute.xlu0 %2541
    %2545 = vrot.lane.b32.xlu0 %v2365, 110
    %v2546 = vpop.permute.xlu0 %2545
    %2547 = vrot.lane.b32.xlu0 %v2366, 110
    %v2548 = vpop.permute.xlu0 %2547
    %v2551 = vsel %vm780, %v2504, %v2510
    %v2552 = vsel %vm780, %v2506, %v2512
    %v2553 = vsel %vm126, %v2551, %v2516
    %v2554 = vsel %vm126, %v2552, %v2518
    %v2555 = vsel %vm956, %v2553, %v2522
    %v2556 = vsel %vm956, %v2554, %v2524
    %v2557 = vsel %vm131, %v2555, %v2528
    %v2558 = vsel %vm131, %v2556, %v2530
    %v2559 = vsel %vm961, %v2557, %v2534
    %v2560 = vsel %vm961, %v2558, %v2536
    %v2561 = vsel %vm136, %v2559, %v2540
    %v2562 = vsel %vm136, %v2560, %v2542
    %v2563 = vsel %vm966, %v2561, %v2546
    %v2564 = vsel %vm966, %v2562, %v2548
    %v2565 = vlaneseq
    %v2566 = vshrl.u32 %v2565, 7
    %v2567 = vsub.s32 7, %v2566
    %v2568 = vrot.slane %v53, %v2567
    %v2569 = vmul.f32 %v2563, %v2568
    %v2570 = vmul.f32 %v2564, %v2568
    %v2571 = vadd.f32 %v2501, %v2569
    %v2572 = vadd.f32 %v2502, %v2570
    %v2573 = vld [vmem:[%s894 + $0x2] sm:$0xff]
    %v2574 = vld [vmem:[%s894 + $0xa] sm:$0xff]
    %2577 = vrot.lane.b32.xlu0 %v2573, 16
    %v2578 = vpop.permute.xlu0 %2577
    %2579 = vrot.lane.b32.xlu0 %v2574, 16
    %v2580 = vpop.permute.xlu0 %2579
    %2583 = vrot.lane.b32.xlu0 %v2573, 32
    %v2584 = vpop.permute.xlu0 %2583
    %2585 = vrot.lane.b32.xlu0 %v2574, 32
    %v2586 = vpop.permute.xlu0 %2585
    %2589 = vrot.lane.b32.xlu0 %v2573, 48
    %v2590 = vpop.permute.xlu0 %2589
    %2591 = vrot.lane.b32.xlu0 %v2574, 48
    %v2592 = vpop.permute.xlu0 %2591
    %2595 = vrot.lane.b32.xlu0 %v2573, 64
    %v2596 = vpop.permute.xlu0 %2595
    %2597 = vrot.lane.b32.xlu0 %v2574, 64
    %v2598 = vpop.permute.xlu0 %2597
    %2601 = vrot.lane.b32.xlu0 %v2573, 80
    %v2602 = vpop.permute.xlu0 %2601
    %2603 = vrot.lane.b32.xlu0 %v2574, 80
    %v2604 = vpop.permute.xlu0 %2603
    %2607 = vrot.lane.b32.xlu0 %v2573, 96
    %v2608 = vpop.permute.xlu0 %2607
    %2609 = vrot.lane.b32.xlu0 %v2574, 96
    %v2610 = vpop.permute.xlu0 %2609
    %2613 = vrot.lane.b32.xlu0 %v2573, 112
    %v2614 = vpop.permute.xlu0 %2613
    %2615 = vrot.lane.b32.xlu0 %v2574, 112
    %v2616 = vpop.permute.xlu0 %2615
    %v2619 = vsel %vm780, %v2573, %v2578
    %v2620 = vsel %vm780, %v2574, %v2580
    %v2621 = vsel %vm126, %v2619, %v2584
    %v2622 = vsel %vm126, %v2620, %v2586
    %v2623 = vsel %vm956, %v2621, %v2590
    %v2624 = vsel %vm956, %v2622, %v2592
    %v2625 = vsel %vm131, %v2623, %v2596
    %v2626 = vsel %vm131, %v2624, %v2598
    %v2627 = vsel %vm961, %v2625, %v2602
    %v2628 = vsel %vm961, %v2626, %v2604
    %v2629 = vsel %vm136, %v2627, %v2608
    %v2630 = vsel %vm136, %v2628, %v2610
    %v2631 = vsel %vm966, %v2629, %v2614
    %v2632 = vsel %vm966, %v2630, %v2616
    %v2633 = vlaneseq
    %v2634 = vshrl.u32 %v2633, 7
    %v2635 = vsub.s32 0, %v2634
    %v2636 = vrot.slane %v54, %v2635
    %v2637 = vmul.f32 %v2631, %v2636
    %v2638 = vmul.f32 %v2632, %v2636
    %v2639 = vadd.f32 %v2571, %v2637
    %v2640 = vadd.f32 %v2572, %v2638
    %2641 = vrot.lane.b32.xlu0 %v2573, 127
    %v2642 = vpop.permute.xlu0 %2641
    %2643 = vrot.lane.b32.xlu0 %v2574, 127
    %v2644 = vpop.permute.xlu0 %2643
    %2647 = vrot.lane.b32.xlu0 %v2573, 15
    %v2648 = vpop.permute.xlu0 %2647
    %2649 = vrot.lane.b32.xlu0 %v2574, 15
    %v2650 = vpop.permute.xlu0 %2649
    %2653 = vrot.lane.b32.xlu0 %v2573, 31
    %v2654 = vpop.permute.xlu0 %2653
    %2655 = vrot.lane.b32.xlu0 %v2574, 31
    %v2656 = vpop.permute.xlu0 %2655
    %2659 = vrot.lane.b32.xlu0 %v2573, 47
    %v2660 = vpop.permute.xlu0 %2659
    %2661 = vrot.lane.b32.xlu0 %v2574, 47
    %v2662 = vpop.permute.xlu0 %2661
    %2665 = vrot.lane.b32.xlu0 %v2573, 63
    %v2666 = vpop.permute.xlu0 %2665
    %2667 = vrot.lane.b32.xlu0 %v2574, 63
    %v2668 = vpop.permute.xlu0 %2667
    %2671 = vrot.lane.b32.xlu0 %v2573, 79
    %v2672 = vpop.permute.xlu0 %2671
    %2673 = vrot.lane.b32.xlu0 %v2574, 79
    %v2674 = vpop.permute.xlu0 %2673
    %2677 = vrot.lane.b32.xlu0 %v2573, 95
    %v2678 = vpop.permute.xlu0 %2677
    %2679 = vrot.lane.b32.xlu0 %v2574, 95
    %v2680 = vpop.permute.xlu0 %2679
    %2683 = vrot.lane.b32.xlu0 %v2573, 111
    %v2684 = vpop.permute.xlu0 %2683
    %2685 = vrot.lane.b32.xlu0 %v2574, 111
    %v2686 = vpop.permute.xlu0 %2685
    %v2689 = vsel %vm780, %v2642, %v2648
    %v2690 = vsel %vm780, %v2644, %v2650
    %v2691 = vsel %vm126, %v2689, %v2654
    %v2692 = vsel %vm126, %v2690, %v2656
    %v2693 = vsel %vm956, %v2691, %v2660
    %v2694 = vsel %vm956, %v2692, %v2662
    %v2695 = vsel %vm131, %v2693, %v2666
    %v2696 = vsel %vm131, %v2694, %v2668
    %v2697 = vsel %vm961, %v2695, %v2672
    %v2698 = vsel %vm961, %v2696, %v2674
    %v2699 = vsel %vm136, %v2697, %v2678
    %v2700 = vsel %vm136, %v2698, %v2680
    %v2701 = vsel %vm966, %v2699, %v2684
    %v2702 = vsel %vm966, %v2700, %v2686
    %v2703 = vlaneseq
    %v2704 = vshrl.u32 %v2703, 7
    %v2705 = vsub.s32 1, %v2704
    %v2706 = vrot.slane %v54, %v2705
    %v2707 = vmul.f32 %v2701, %v2706
    %v2708 = vmul.f32 %v2702, %v2706
    %v2709 = vadd.f32 %v2639, %v2707
    %v2710 = vadd.f32 %v2640, %v2708
    %2711 = vrot.lane.b32.xlu0 %v2573, 126
    %v2712 = vpop.permute.xlu0 %2711
    %2713 = vrot.lane.b32.xlu0 %v2574, 126
    %v2714 = vpop.permute.xlu0 %2713
    %2717 = vrot.lane.b32.xlu0 %v2573, 14
    %v2718 = vpop.permute.xlu0 %2717
    %2719 = vrot.lane.b32.xlu0 %v2574, 14
    %v2720 = vpop.permute.xlu0 %2719
    %2723 = vrot.lane.b32.xlu0 %v2573, 30
    %v2724 = vpop.permute.xlu0 %2723
    %2725 = vrot.lane.b32.xlu0 %v2574, 30
    %v2726 = vpop.permute.xlu0 %2725
    %2729 = vrot.lane.b32.xlu0 %v2573, 46
    %v2730 = vpop.permute.xlu0 %2729
    %2731 = vrot.lane.b32.xlu0 %v2574, 46
    %v2732 = vpop.permute.xlu0 %2731
    %2735 = vrot.lane.b32.xlu0 %v2573, 62
    %v2736 = vpop.permute.xlu0 %2735
    %2737 = vrot.lane.b32.xlu0 %v2574, 62
    %v2738 = vpop.permute.xlu0 %2737
    %2741 = vrot.lane.b32.xlu0 %v2573, 78
    %v2742 = vpop.permute.xlu0 %2741
    %2743 = vrot.lane.b32.xlu0 %v2574, 78
    %v2744 = vpop.permute.xlu0 %2743
    %2747 = vrot.lane.b32.xlu0 %v2573, 94
    %v2748 = vpop.permute.xlu0 %2747
    %2749 = vrot.lane.b32.xlu0 %v2574, 94
    %v2750 = vpop.permute.xlu0 %2749
    %2753 = vrot.lane.b32.xlu0 %v2573, 110
    %v2754 = vpop.permute.xlu0 %2753
    %2755 = vrot.lane.b32.xlu0 %v2574, 110
    %v2756 = vpop.permute.xlu0 %2755
    %v2759 = vsel %vm780, %v2712, %v2718
    %v2760 = vsel %vm780, %v2714, %v2720
    %v2761 = vsel %vm126, %v2759, %v2724
    %v2762 = vsel %vm126, %v2760, %v2726
    %v2763 = vsel %vm956, %v2761, %v2730
    %v2764 = vsel %vm956, %v2762, %v2732
    %v2765 = vsel %vm131, %v2763, %v2736
    %v2766 = vsel %vm131, %v2764, %v2738
    %v2767 = vsel %vm961, %v2765, %v2742
    %v2768 = vsel %vm961, %v2766, %v2744
    %v2769 = vsel %vm136, %v2767, %v2748
    %v2770 = vsel %vm136, %v2768, %v2750
    %v2771 = vsel %vm966, %v2769, %v2754
    %v2772 = vsel %vm966, %v2770, %v2756
    %v2773 = vlaneseq
    %v2774 = vshrl.u32 %v2773, 7
    %v2775 = vsub.s32 2, %v2774
    %v2776 = vrot.slane %v54, %v2775
    %v2777 = vmul.f32 %v2771, %v2776
    %v2778 = vmul.f32 %v2772, %v2776
    %v2779 = vadd.f32 %v2709, %v2777
    %v2780 = vadd.f32 %v2710, %v2778
    %v2781 = vld [vmem:[%s903] sm:$0xff]
    %v2782 = vld [vmem:[%s903 + $0x8] sm:$0xff]
    %2785 = vrot.lane.b32.xlu0 %v2781, 16
    %v2786 = vpop.permute.xlu0 %2785
    %2787 = vrot.lane.b32.xlu0 %v2782, 16
    %v2788 = vpop.permute.xlu0 %2787
    %2791 = vrot.lane.b32.xlu0 %v2781, 32
    %v2792 = vpop.permute.xlu0 %2791
    %2793 = vrot.lane.b32.xlu0 %v2782, 32
    %v2794 = vpop.permute.xlu0 %2793
    %2797 = vrot.lane.b32.xlu0 %v2781, 48
    %v2798 = vpop.permute.xlu0 %2797
    %2799 = vrot.lane.b32.xlu0 %v2782, 48
    %v2800 = vpop.permute.xlu0 %2799
    %2803 = vrot.lane.b32.xlu0 %v2781, 64
    %v2804 = vpop.permute.xlu0 %2803
    %2805 = vrot.lane.b32.xlu0 %v2782, 64
    %v2806 = vpop.permute.xlu0 %2805
    %2809 = vrot.lane.b32.xlu0 %v2781, 80
    %v2810 = vpop.permute.xlu0 %2809
    %2811 = vrot.lane.b32.xlu0 %v2782, 80
    %v2812 = vpop.permute.xlu0 %2811
    %2815 = vrot.lane.b32.xlu0 %v2781, 96
    %v2816 = vpop.permute.xlu0 %2815
    %2817 = vrot.lane.b32.xlu0 %v2782, 96
    %v2818 = vpop.permute.xlu0 %2817
    %2821 = vrot.lane.b32.xlu0 %v2781, 112
    %v2822 = vpop.permute.xlu0 %2821
    %2823 = vrot.lane.b32.xlu0 %v2782, 112
    %v2824 = vpop.permute.xlu0 %2823
    %v2827 = vsel %vm780, %v2781, %v2786
    %v2828 = vsel %vm780, %v2782, %v2788
    %v2829 = vsel %vm126, %v2827, %v2792
    %v2830 = vsel %vm126, %v2828, %v2794
    %v2831 = vsel %vm956, %v2829, %v2798
    %v2832 = vsel %vm956, %v2830, %v2800
    %v2833 = vsel %vm131, %v2831, %v2804
    %v2834 = vsel %vm131, %v2832, %v2806
    %v2835 = vsel %vm961, %v2833, %v2810
    %v2836 = vsel %vm961, %v2834, %v2812
    %v2837 = vsel %vm136, %v2835, %v2816
    %v2838 = vsel %vm136, %v2836, %v2818
    %v2839 = vsel %vm966, %v2837, %v2822
    %v2840 = vsel %vm966, %v2838, %v2824
    %v2841 = vlaneseq
    %v2842 = vshrl.u32 %v2841, 7
    %v2843 = vsub.s32 3, %v2842
    %v2844 = vrot.slane %v54, %v2843
    %v2845 = vmul.f32 %v2839, %v2844
    %v2846 = vmul.f32 %v2840, %v2844
    %v2847 = vadd.f32 %v2779, %v2845
    %v2848 = vadd.f32 %v2780, %v2846
    %2849 = vrot.lane.b32.xlu0 %v2781, 127
    %v2850 = vpop.permute.xlu0 %2849
    %2851 = vrot.lane.b32.xlu0 %v2782, 127
    %v2852 = vpop.permute.xlu0 %2851
    %2855 = vrot.lane.b32.xlu0 %v2781, 15
    %v2856 = vpop.permute.xlu0 %2855
    %2857 = vrot.lane.b32.xlu0 %v2782, 15
    %v2858 = vpop.permute.xlu0 %2857
    %2861 = vrot.lane.b32.xlu0 %v2781, 31
    %v2862 = vpop.permute.xlu0 %2861
    %2863 = vrot.lane.b32.xlu0 %v2782, 31
    %v2864 = vpop.permute.xlu0 %2863
    %2867 = vrot.lane.b32.xlu0 %v2781, 47
    %v2868 = vpop.permute.xlu0 %2867
    %2869 = vrot.lane.b32.xlu0 %v2782, 47
    %v2870 = vpop.permute.xlu0 %2869
    %2873 = vrot.lane.b32.xlu0 %v2781, 63
    %v2874 = vpop.permute.xlu0 %2873
    %2875 = vrot.lane.b32.xlu0 %v2782, 63
    %v2876 = vpop.permute.xlu0 %2875
    %2879 = vrot.lane.b32.xlu0 %v2781, 79
    %v2880 = vpop.permute.xlu0 %2879
    %2881 = vrot.lane.b32.xlu0 %v2782, 79
    %v2882 = vpop.permute.xlu0 %2881
    %2885 = vrot.lane.b32.xlu0 %v2781, 95
    %v2886 = vpop.permute.xlu0 %2885
    %2887 = vrot.lane.b32.xlu0 %v2782, 95
    %v2888 = vpop.permute.xlu0 %2887
    %2891 = vrot.lane.b32.xlu0 %v2781, 111
    %v2892 = vpop.permute.xlu0 %2891
    %2893 = vrot.lane.b32.xlu0 %v2782, 111
    %v2894 = vpop.permute.xlu0 %2893
    %v2897 = vsel %vm780, %v2850, %v2856
    %v2898 = vsel %vm780, %v2852, %v2858
    %v2899 = vsel %vm126, %v2897, %v2862
    %v2900 = vsel %vm126, %v2898, %v2864
    %v2901 = vsel %vm956, %v2899, %v2868
    %v2902 = vsel %vm956, %v2900, %v2870
    %v2903 = vsel %vm131, %v2901, %v2874
    %v2904 = vsel %vm131, %v2902, %v2876
    %v2905 = vsel %vm961, %v2903, %v2880
    %v2906 = vsel %vm961, %v2904, %v2882
    %v2907 = vsel %vm136, %v2905, %v2886
    %v2908 = vsel %vm136, %v2906, %v2888
    %v2909 = vsel %vm966, %v2907, %v2892
    %v2910 = vsel %vm966, %v2908, %v2894
    %v2911 = vlaneseq
    %v2912 = vshrl.u32 %v2911, 7
    %v2913 = vsub.s32 4, %v2912
    %v2914 = vrot.slane %v54, %v2913
    %v2915 = vmul.f32 %v2909, %v2914
    %v2916 = vmul.f32 %v2910, %v2914
    %v2917 = vadd.f32 %v2847, %v2915
    %v2918 = vadd.f32 %v2848, %v2916
    %2919 = vrot.lane.b32.xlu0 %v2781, 126
    %v2920 = vpop.permute.xlu0 %2919
    %2921 = vrot.lane.b32.xlu0 %v2782, 126
    %v2922 = vpop.permute.xlu0 %2921
    %2925 = vrot.lane.b32.xlu0 %v2781, 14
    %v2926 = vpop.permute.xlu0 %2925
    %2927 = vrot.lane.b32.xlu0 %v2782, 14
    %v2928 = vpop.permute.xlu0 %2927
    %2931 = vrot.lane.b32.xlu0 %v2781, 30
    %v2932 = vpop.permute.xlu0 %2931
    %2933 = vrot.lane.b32.xlu0 %v2782, 30
    %v2934 = vpop.permute.xlu0 %2933
    %2937 = vrot.lane.b32.xlu0 %v2781, 46
    %v2938 = vpop.permute.xlu0 %2937
    %2939 = vrot.lane.b32.xlu0 %v2782, 46
    %v2940 = vpop.permute.xlu0 %2939
    %2943 = vrot.lane.b32.xlu0 %v2781, 62
    %v2944 = vpop.permute.xlu0 %2943
    %2945 = vrot.lane.b32.xlu0 %v2782, 62
    %v2946 = vpop.permute.xlu0 %2945
    %2949 = vrot.lane.b32.xlu0 %v2781, 78
    %v2950 = vpop.permute.xlu0 %2949
    %2951 = vrot.lane.b32.xlu0 %v2782, 78
    %v2952 = vpop.permute.xlu0 %2951
    %2955 = vrot.lane.b32.xlu0 %v2781, 94
    %v2956 = vpop.permute.xlu0 %2955
    %2957 = vrot.lane.b32.xlu0 %v2782, 94
    %v2958 = vpop.permute.xlu0 %2957
    %2961 = vrot.lane.b32.xlu0 %v2781, 110
    %v2962 = vpop.permute.xlu0 %2961
    %2963 = vrot.lane.b32.xlu0 %v2782, 110
    %v2964 = vpop.permute.xlu0 %2963
    %v2967 = vsel %vm780, %v2920, %v2926
    %v2968 = vsel %vm780, %v2922, %v2928
    %v2969 = vsel %vm126, %v2967, %v2932
    %v2970 = vsel %vm126, %v2968, %v2934
    %v2971 = vsel %vm956, %v2969, %v2938
    %v2972 = vsel %vm956, %v2970, %v2940
    %v2973 = vsel %vm131, %v2971, %v2944
    %v2974 = vsel %vm131, %v2972, %v2946
    %v2975 = vsel %vm961, %v2973, %v2950
    %v2976 = vsel %vm961, %v2974, %v2952
    %v2977 = vsel %vm136, %v2975, %v2956
    %v2978 = vsel %vm136, %v2976, %v2958
    %v2979 = vsel %vm966, %v2977, %v2962
    %v2980 = vsel %vm966, %v2978, %v2964
    %v2981 = vlaneseq
    %v2982 = vshrl.u32 %v2981, 7
    %v2983 = vsub.s32 5, %v2982
    %v2984 = vrot.slane %v54, %v2983
    %v2985 = vmul.f32 %v2979, %v2984
    %v2986 = vmul.f32 %v2980, %v2984
    %v2987 = vadd.f32 %v2917, %v2985
    %v2988 = vadd.f32 %v2918, %v2986
    %v2989 = vld [vmem:[%s903 + $0x1] sm:$0xff]
    %v2990 = vld [vmem:[%s903 + $0x9] sm:$0xff]
    %2993 = vrot.lane.b32.xlu0 %v2989, 16
    %v2994 = vpop.permute.xlu0 %2993
    %2995 = vrot.lane.b32.xlu0 %v2990, 16
    %v2996 = vpop.permute.xlu0 %2995
    %2999 = vrot.lane.b32.xlu0 %v2989, 32
    %v3000 = vpop.permute.xlu0 %2999
    %3001 = vrot.lane.b32.xlu0 %v2990, 32
    %v3002 = vpop.permute.xlu0 %3001
    %3005 = vrot.lane.b32.xlu0 %v2989, 48
    %v3006 = vpop.permute.xlu0 %3005
    %3007 = vrot.lane.b32.xlu0 %v2990, 48
    %v3008 = vpop.permute.xlu0 %3007
    %3011 = vrot.lane.b32.xlu0 %v2989, 64
    %v3012 = vpop.permute.xlu0 %3011
    %3013 = vrot.lane.b32.xlu0 %v2990, 64
    %v3014 = vpop.permute.xlu0 %3013
    %3017 = vrot.lane.b32.xlu0 %v2989, 80
    %v3018 = vpop.permute.xlu0 %3017
    %3019 = vrot.lane.b32.xlu0 %v2990, 80
    %v3020 = vpop.permute.xlu0 %3019
    %3023 = vrot.lane.b32.xlu0 %v2989, 96
    %v3024 = vpop.permute.xlu0 %3023
    %3025 = vrot.lane.b32.xlu0 %v2990, 96
    %v3026 = vpop.permute.xlu0 %3025
    %3029 = vrot.lane.b32.xlu0 %v2989, 112
    %v3030 = vpop.permute.xlu0 %3029
    %3031 = vrot.lane.b32.xlu0 %v2990, 112
    %v3032 = vpop.permute.xlu0 %3031
    %v3035 = vsel %vm780, %v2989, %v2994
    %v3036 = vsel %vm780, %v2990, %v2996
    %v3037 = vsel %vm126, %v3035, %v3000
    %v3038 = vsel %vm126, %v3036, %v3002
    %v3039 = vsel %vm956, %v3037, %v3006
    %v3040 = vsel %vm956, %v3038, %v3008
    %v3041 = vsel %vm131, %v3039, %v3012
    %v3042 = vsel %vm131, %v3040, %v3014
    %v3043 = vsel %vm961, %v3041, %v3018
    %v3044 = vsel %vm961, %v3042, %v3020
    %v3045 = vsel %vm136, %v3043, %v3024
    %v3046 = vsel %vm136, %v3044, %v3026
    %v3047 = vsel %vm966, %v3045, %v3030
    %v3048 = vsel %vm966, %v3046, %v3032
    %v3049 = vlaneseq
    %v3050 = vshrl.u32 %v3049, 7
    %v3051 = vsub.s32 6, %v3050
    %v3052 = vrot.slane %v54, %v3051
    %v3053 = vmul.f32 %v3047, %v3052
    %v3054 = vmul.f32 %v3048, %v3052
    %v3055 = vadd.f32 %v2987, %v3053
    %v3056 = vadd.f32 %v2988, %v3054
    %3057 = vrot.lane.b32.xlu0 %v2989, 127
    %v3058 = vpop.permute.xlu0 %3057
    %3059 = vrot.lane.b32.xlu0 %v2990, 127
    %v3060 = vpop.permute.xlu0 %3059
    %3063 = vrot.lane.b32.xlu0 %v2989, 15
    %v3064 = vpop.permute.xlu0 %3063
    %3065 = vrot.lane.b32.xlu0 %v2990, 15
    %v3066 = vpop.permute.xlu0 %3065
    %3069 = vrot.lane.b32.xlu0 %v2989, 31
    %v3070 = vpop.permute.xlu0 %3069
    %3071 = vrot.lane.b32.xlu0 %v2990, 31
    %v3072 = vpop.permute.xlu0 %3071
    %3075 = vrot.lane.b32.xlu0 %v2989, 47
    %v3076 = vpop.permute.xlu0 %3075
    %3077 = vrot.lane.b32.xlu0 %v2990, 47
    %v3078 = vpop.permute.xlu0 %3077
    %3081 = vrot.lane.b32.xlu0 %v2989, 63
    %v3082 = vpop.permute.xlu0 %3081
    %3083 = vrot.lane.b32.xlu0 %v2990, 63
    %v3084 = vpop.permute.xlu0 %3083
    %3087 = vrot.lane.b32.xlu0 %v2989, 79
    %v3088 = vpop.permute.xlu0 %3087
    %3089 = vrot.lane.b32.xlu0 %v2990, 79
    %v3090 = vpop.permute.xlu0 %3089
    %3093 = vrot.lane.b32.xlu0 %v2989, 95
    %v3094 = vpop.permute.xlu0 %3093
    %3095 = vrot.lane.b32.xlu0 %v2990, 95
    %v3096 = vpop.permute.xlu0 %3095
    %3099 = vrot.lane.b32.xlu0 %v2989, 111
    %v3100 = vpop.permute.xlu0 %3099
    %3101 = vrot.lane.b32.xlu0 %v2990, 111
    %v3102 = vpop.permute.xlu0 %3101
    %v3105 = vsel %vm780, %v3058, %v3064
    %v3106 = vsel %vm780, %v3060, %v3066
    %v3107 = vsel %vm126, %v3105, %v3070
    %v3108 = vsel %vm126, %v3106, %v3072
    %v3109 = vsel %vm956, %v3107, %v3076
    %v3110 = vsel %vm956, %v3108, %v3078
    %v3111 = vsel %vm131, %v3109, %v3082
    %v3112 = vsel %vm131, %v3110, %v3084
    %v3113 = vsel %vm961, %v3111, %v3088
    %v3114 = vsel %vm961, %v3112, %v3090
    %v3115 = vsel %vm136, %v3113, %v3094
    %v3116 = vsel %vm136, %v3114, %v3096
    %v3117 = vsel %vm966, %v3115, %v3100
    %v3118 = vsel %vm966, %v3116, %v3102
    %v3119 = vlaneseq
    %v3120 = vshrl.u32 %v3119, 7
    %v3121 = vsub.s32 7, %v3120
    %v3122 = vrot.slane %v54, %v3121
    %v3123 = vmul.f32 %v3117, %v3122
    %v3124 = vmul.f32 %v3118, %v3122
    %v3125 = vadd.f32 %v3055, %v3123
    %v3126 = vadd.f32 %v3056, %v3124
    %3127 = vrot.lane.b32.xlu0 %v2989, 126
    %v3128 = vpop.permute.xlu0 %3127
    %3129 = vrot.lane.b32.xlu0 %v2990, 126
    %v3130 = vpop.permute.xlu0 %3129
    %3133 = vrot.lane.b32.xlu0 %v2989, 14
    %v3134 = vpop.permute.xlu0 %3133
    %3135 = vrot.lane.b32.xlu0 %v2990, 14
    %v3136 = vpop.permute.xlu0 %3135
    %3139 = vrot.lane.b32.xlu0 %v2989, 30
    %v3140 = vpop.permute.xlu0 %3139
    %3141 = vrot.lane.b32.xlu0 %v2990, 30
    %v3142 = vpop.permute.xlu0 %3141
    %3145 = vrot.lane.b32.xlu0 %v2989, 46
    %v3146 = vpop.permute.xlu0 %3145
    %3147 = vrot.lane.b32.xlu0 %v2990, 46
    %v3148 = vpop.permute.xlu0 %3147
    %3151 = vrot.lane.b32.xlu0 %v2989, 62
    %v3152 = vpop.permute.xlu0 %3151
    %3153 = vrot.lane.b32.xlu0 %v2990, 62
    %v3154 = vpop.permute.xlu0 %3153
    %3157 = vrot.lane.b32.xlu0 %v2989, 78
    %v3158 = vpop.permute.xlu0 %3157
    %3159 = vrot.lane.b32.xlu0 %v2990, 78
    %v3160 = vpop.permute.xlu0 %3159
    %3163 = vrot.lane.b32.xlu0 %v2989, 94
    %v3164 = vpop.permute.xlu0 %3163
    %3165 = vrot.lane.b32.xlu0 %v2990, 94
    %v3166 = vpop.permute.xlu0 %3165
    %3169 = vrot.lane.b32.xlu0 %v2989, 110
    %v3170 = vpop.permute.xlu0 %3169
    %3171 = vrot.lane.b32.xlu0 %v2990, 110
    %v3172 = vpop.permute.xlu0 %3171
    %v3175 = vsel %vm780, %v3128, %v3134
    %v3176 = vsel %vm780, %v3130, %v3136
    %v3177 = vsel %vm126, %v3175, %v3140
    %v3178 = vsel %vm126, %v3176, %v3142
    %v3179 = vsel %vm956, %v3177, %v3146
    %v3180 = vsel %vm956, %v3178, %v3148
    %v3181 = vsel %vm131, %v3179, %v3152
    %v3182 = vsel %vm131, %v3180, %v3154
    %v3183 = vsel %vm961, %v3181, %v3158
    %v3184 = vsel %vm961, %v3182, %v3160
    %v3185 = vsel %vm136, %v3183, %v3164
    %v3186 = vsel %vm136, %v3184, %v3166
    %v3187 = vsel %vm966, %v3185, %v3170
    %v3188 = vsel %vm966, %v3186, %v3172
    %v3189 = vlaneseq
    %v3190 = vshrl.u32 %v3189, 7
    %v3191 = vsub.s32 0, %v3190
    %v3192 = vrot.slane %v55, %v3191
    %v3193 = vmul.f32 %v3187, %v3192
    %v3194 = vmul.f32 %v3188, %v3192
    %v3195 = vadd.f32 %v3125, %v3193
    %v3196 = vadd.f32 %v3126, %v3194
    %v3197 = vld [vmem:[%s903 + $0x2] sm:$0xff]
    %v3198 = vld [vmem:[%s903 + $0xa] sm:$0xff]
    %3201 = vrot.lane.b32.xlu0 %v3197, 16
    %v3202 = vpop.permute.xlu0 %3201
    %3203 = vrot.lane.b32.xlu0 %v3198, 16
    %v3204 = vpop.permute.xlu0 %3203
    %3207 = vrot.lane.b32.xlu0 %v3197, 32
    %v3208 = vpop.permute.xlu0 %3207
    %3209 = vrot.lane.b32.xlu0 %v3198, 32
    %v3210 = vpop.permute.xlu0 %3209
    %3213 = vrot.lane.b32.xlu0 %v3197, 48
    %v3214 = vpop.permute.xlu0 %3213
    %3215 = vrot.lane.b32.xlu0 %v3198, 48
    %v3216 = vpop.permute.xlu0 %3215
    %3219 = vrot.lane.b32.xlu0 %v3197, 64
    %v3220 = vpop.permute.xlu0 %3219
    %3221 = vrot.lane.b32.xlu0 %v3198, 64
    %v3222 = vpop.permute.xlu0 %3221
    %3225 = vrot.lane.b32.xlu0 %v3197, 80
    %v3226 = vpop.permute.xlu0 %3225
    %3227 = vrot.lane.b32.xlu0 %v3198, 80
    %v3228 = vpop.permute.xlu0 %3227
    %3231 = vrot.lane.b32.xlu0 %v3197, 96
    %v3232 = vpop.permute.xlu0 %3231
    %3233 = vrot.lane.b32.xlu0 %v3198, 96
    %v3234 = vpop.permute.xlu0 %3233
    %3237 = vrot.lane.b32.xlu0 %v3197, 112
    %v3238 = vpop.permute.xlu0 %3237
    %3239 = vrot.lane.b32.xlu0 %v3198, 112
    %v3240 = vpop.permute.xlu0 %3239
    %v3243 = vsel %vm780, %v3197, %v3202
    %v3244 = vsel %vm780, %v3198, %v3204
    %v3245 = vsel %vm126, %v3243, %v3208
    %v3246 = vsel %vm126, %v3244, %v3210
    %v3247 = vsel %vm956, %v3245, %v3214
    %v3248 = vsel %vm956, %v3246, %v3216
    %v3249 = vsel %vm131, %v3247, %v3220
    %v3250 = vsel %vm131, %v3248, %v3222
    %v3251 = vsel %vm961, %v3249, %v3226
    %v3252 = vsel %vm961, %v3250, %v3228
    %v3253 = vsel %vm136, %v3251, %v3232
    %v3254 = vsel %vm136, %v3252, %v3234
    %v3255 = vsel %vm966, %v3253, %v3238
    %v3256 = vsel %vm966, %v3254, %v3240
    %v3257 = vlaneseq
    %v3258 = vshrl.u32 %v3257, 7
    %v3259 = vsub.s32 1, %v3258
    %v3260 = vrot.slane %v55, %v3259
    %v3261 = vmul.f32 %v3255, %v3260
    %v3262 = vmul.f32 %v3256, %v3260
    %v3263 = vadd.f32 %v3195, %v3261
    %v3264 = vadd.f32 %v3196, %v3262
    %3265 = vrot.lane.b32.xlu0 %v3197, 127
    %v3266 = vpop.permute.xlu0 %3265
    %3267 = vrot.lane.b32.xlu0 %v3198, 127
    %v3268 = vpop.permute.xlu0 %3267
    %3271 = vrot.lane.b32.xlu0 %v3197, 15
    %v3272 = vpop.permute.xlu0 %3271
    %3273 = vrot.lane.b32.xlu0 %v3198, 15
    %v3274 = vpop.permute.xlu0 %3273
    %3277 = vrot.lane.b32.xlu0 %v3197, 31
    %v3278 = vpop.permute.xlu0 %3277
    %3279 = vrot.lane.b32.xlu0 %v3198, 31
    %v3280 = vpop.permute.xlu0 %3279
    %3283 = vrot.lane.b32.xlu0 %v3197, 47
    %v3284 = vpop.permute.xlu0 %3283
    %3285 = vrot.lane.b32.xlu0 %v3198, 47
    %v3286 = vpop.permute.xlu0 %3285
    %3289 = vrot.lane.b32.xlu0 %v3197, 63
    %v3290 = vpop.permute.xlu0 %3289
    %3291 = vrot.lane.b32.xlu0 %v3198, 63
    %v3292 = vpop.permute.xlu0 %3291
    %3295 = vrot.lane.b32.xlu0 %v3197, 79
    %v3296 = vpop.permute.xlu0 %3295
    %3297 = vrot.lane.b32.xlu0 %v3198, 79
    %v3298 = vpop.permute.xlu0 %3297
    %3301 = vrot.lane.b32.xlu0 %v3197, 95
    %v3302 = vpop.permute.xlu0 %3301
    %3303 = vrot.lane.b32.xlu0 %v3198, 95
    %v3304 = vpop.permute.xlu0 %3303
    %3307 = vrot.lane.b32.xlu0 %v3197, 111
    %v3308 = vpop.permute.xlu0 %3307
    %3309 = vrot.lane.b32.xlu0 %v3198, 111
    %v3310 = vpop.permute.xlu0 %3309
    %v3313 = vsel %vm780, %v3266, %v3272
    %v3314 = vsel %vm780, %v3268, %v3274
    %v3315 = vsel %vm126, %v3313, %v3278
    %v3316 = vsel %vm126, %v3314, %v3280
    %v3317 = vsel %vm956, %v3315, %v3284
    %v3318 = vsel %vm956, %v3316, %v3286
    %v3319 = vsel %vm131, %v3317, %v3290
    %v3320 = vsel %vm131, %v3318, %v3292
    %v3321 = vsel %vm961, %v3319, %v3296
    %v3322 = vsel %vm961, %v3320, %v3298
    %v3323 = vsel %vm136, %v3321, %v3302
    %v3324 = vsel %vm136, %v3322, %v3304
    %v3325 = vsel %vm966, %v3323, %v3308
    %v3326 = vsel %vm966, %v3324, %v3310
    %v3327 = vlaneseq
    %v3328 = vshrl.u32 %v3327, 7
    %v3329 = vsub.s32 2, %v3328
    %v3330 = vrot.slane %v55, %v3329
    %v3331 = vmul.f32 %v3325, %v3330
    %v3332 = vmul.f32 %v3326, %v3330
    %v3333 = vadd.f32 %v3263, %v3331
    %v3334 = vadd.f32 %v3264, %v3332
    %3335 = vrot.lane.b32.xlu0 %v3197, 126
    %v3336 = vpop.permute.xlu0 %3335
    %3337 = vrot.lane.b32.xlu0 %v3198, 126
    %v3338 = vpop.permute.xlu0 %3337
    %3341 = vrot.lane.b32.xlu0 %v3197, 14
    %v3342 = vpop.permute.xlu0 %3341
    %3343 = vrot.lane.b32.xlu0 %v3198, 14
    %v3344 = vpop.permute.xlu0 %3343
    %3347 = vrot.lane.b32.xlu0 %v3197, 30
    %v3348 = vpop.permute.xlu0 %3347
    %3349 = vrot.lane.b32.xlu0 %v3198, 30
    %v3350 = vpop.permute.xlu0 %3349
    %3353 = vrot.lane.b32.xlu0 %v3197, 46
    %v3354 = vpop.permute.xlu0 %3353
    %3355 = vrot.lane.b32.xlu0 %v3198, 46
    %v3356 = vpop.permute.xlu0 %3355
    %3359 = vrot.lane.b32.xlu0 %v3197, 62
    %v3360 = vpop.permute.xlu0 %3359
    %3361 = vrot.lane.b32.xlu0 %v3198, 62
    %v3362 = vpop.permute.xlu0 %3361
    %3365 = vrot.lane.b32.xlu0 %v3197, 78
    %v3366 = vpop.permute.xlu0 %3365
    %3367 = vrot.lane.b32.xlu0 %v3198, 78
    %v3368 = vpop.permute.xlu0 %3367
    %3371 = vrot.lane.b32.xlu0 %v3197, 94
    %v3372 = vpop.permute.xlu0 %3371
    %3373 = vrot.lane.b32.xlu0 %v3198, 94
    %v3374 = vpop.permute.xlu0 %3373
    %3377 = vrot.lane.b32.xlu0 %v3197, 110
    %v3378 = vpop.permute.xlu0 %3377
    %3379 = vrot.lane.b32.xlu0 %v3198, 110
    %v3380 = vpop.permute.xlu0 %3379
    %v3383 = vsel %vm780, %v3336, %v3342
    %v3384 = vsel %vm780, %v3338, %v3344
    %v3385 = vsel %vm126, %v3383, %v3348
    %v3386 = vsel %vm126, %v3384, %v3350
    %v3387 = vsel %vm956, %v3385, %v3354
    %v3388 = vsel %vm956, %v3386, %v3356
    %v3389 = vsel %vm131, %v3387, %v3360
    %v3390 = vsel %vm131, %v3388, %v3362
    %v3391 = vsel %vm961, %v3389, %v3366
    %v3392 = vsel %vm961, %v3390, %v3368
    %v3393 = vsel %vm136, %v3391, %v3372
    %v3394 = vsel %vm136, %v3392, %v3374
    %v3395 = vsel %vm966, %v3393, %v3378
    %v3396 = vsel %vm966, %v3394, %v3380
    %v3397 = vlaneseq
    %v3398 = vshrl.u32 %v3397, 7
    %v3399 = vsub.s32 3, %v3398
    %v3400 = vrot.slane %v55, %v3399
    %v3401 = vmul.f32 %v3395, %v3400
    %v3402 = vmul.f32 %v3396, %v3400
    %v3403 = vadd.f32 %v3333, %v3401
    %v3404 = vadd.f32 %v3334, %v3402
    %v3406 = vlaneseq
    %v3407 = vshrl.u32 %v3406, 7
    %v3408 = vsub.s32 0, %v3407
    %v3409 = vrot.slane %v56, %v3408
    %v3411 = vadd.f32 %v3403, %v3409
    %v3412 = vadd.f32 %v3404, %v3409
    %v3413 = vmax.f32 %v3411, 0.0
    %v3414 = vmax.f32 %v3412, 0.0
    %3415 = vst [vmem:[#allocation6] sm:$0xff] %v3413
    %3416 = vst [vmem:[#allocation6 + $0x8] sm:$0xff] %v3414
    %v3417 = vld [vmem:[#allocation6] ss:$2 sm:$0xff]
    %s3418 = scalar_lea.vmem [#allocation6], 1
    %v3419 = vld [vmem:[%s3418] ss:$2 sm:$0xff]
    %v3420 = vmax.f32 %v3417, %v3419
    %3421 = vxpose.xlu0.b32.start [1/16] %v3420, 128
    %3422 = vxpose.xlu0.b32.cont [2/16] 0.0, 128
    %3423 = vxpose.xlu0.b32.cont [3/16] 0.0, 128
    %3424 = vxpose.xlu0.b32.cont [4/16] 0.0, 128
    %3425 = vxpose.xlu0.b32.cont [5/16] 0.0, 128
    %3426 = vxpose.xlu0.b32.cont [6/16] 0.0, 128
    %3427 = vxpose.xlu0.b32.cont [7/16] 0.0, 128
    %3428 = vxpose.xlu0.b32.cont [8/16] 0.0, 128
    %3429 = vxpose.xlu0.b32.cont [9/16] 0.0, 128
    %3430 = vxpose.xlu0.b32.cont [10/16] 0.0, 128
    %3431 = vxpose.xlu0.b32.cont [11/16] 0.0, 128
    %3432 = vxpose.xlu0.b32.cont [12/16] 0.0, 128
    %3433 = vxpose.xlu0.b32.cont [13/16] 0.0, 128
    %3434 = vxpose.xlu0.b32.cont [14/16] 0.0, 128
    %3435 = vxpose.xlu0.b32.cont [15/16] 0.0, 128
    %3436 = vxpose.xlu0.b32.end [16/16] 0.0, 128
    %v3437 = vpop.trf.xlu0
    %v3438 = vpop.trf.xlu0
    %v3439 = vpop.trf.xlu0
    %v3440 = vpop.trf.xlu0
    %v3441 = vpop.trf.xlu0
    %v3442 = vpop.trf.xlu0
    %v3443 = vpop.trf.xlu0
    %v3444 = vpop.trf.xlu0
    %v3445 = vpop.trf.xlu0
    %v3446 = vpop.trf.xlu0
    %v3447 = vpop.trf.xlu0
    %v3448 = vpop.trf.xlu0
    %v3449 = vpop.trf.xlu0
    %v3450 = vpop.trf.xlu0
    %v3451 = vpop.trf.xlu0
    %v3452 = vpop.trf.xlu0
    %vm3453 = vcmask 64512
    %3454 = vst.msk [vmem:[#allocation7] sm:$0xff] %vm3453, %v3437
    %3455 = vst.msk [vmem:[#allocation7 + $0x8] sm:$0xff] %vm3453, %v3438
    %3456 = vst.msk [vmem:[#allocation7 + $0x10] sm:$0xff] %vm3453, %v3439
    %3457 = vst.msk [vmem:[#allocation7 + $0x18] sm:$0xff] %vm3453, %v3440
    %3458 = vst.msk [vmem:[#allocation7 + $0x20] sm:$0xff] %vm3453, %v3441
    %3459 = vst.msk [vmem:[#allocation7 + $0x28] sm:$0xff] %vm3453, %v3442
    %3460 = vst.msk [vmem:[#allocation7 + $0x30] sm:$0xff] %vm3453, %v3443
    %3461 = vst.msk [vmem:[#allocation7 + $0x38] sm:$0xff] %vm3453, %v3444
    %3462 = vst.msk [vmem:[#allocation7 + $0x40] sm:$0xff] %vm3453, %v3445
    %3463 = vst.msk [vmem:[#allocation7 + $0x48] sm:$0xff] %vm3453, %v3446
    %3464 = vst.msk [vmem:[#allocation7 + $0x50] sm:$0xff] %vm3453, %v3447
    %3465 = vst.msk [vmem:[#allocation7 + $0x58] sm:$0xff] %vm3453, %v3448
    %3466 = vst.msk [vmem:[#allocation7 + $0x60] sm:$0xff] %vm3453, %v3449
    %3467 = vst.msk [vmem:[#allocation7 + $0x68] sm:$0xff] %vm3453, %v3450
    %3468 = vst.msk [vmem:[#allocation7 + $0x70] sm:$0xff] %vm3453, %v3451
    %3469 = vst.msk [vmem:[#allocation7 + $0x78] sm:$0xff] %vm3453, %v3452
    %v3470 = vld [vmem:[#allocation7] ss:$2 sm:$0xff]
    %s3471 = scalar_lea.vmem [#allocation7], 16
    %v3472 = vld [vmem:[%s3471] ss:$2 sm:$0xff]
    %s3473 = scalar_lea.vmem [#allocation7], 32
    %v3474 = vld [vmem:[%s3473] ss:$2 sm:$0xff]
    %s3475 = scalar_lea.vmem [#allocation7], 48
    %v3476 = vld [vmem:[%s3475] ss:$2 sm:$0xff]
    %s3477 = scalar_lea.vmem [#allocation7], 64
    %v3478 = vld [vmem:[%s3477] ss:$2 sm:$0xff]
    %s3479 = scalar_lea.vmem [#allocation7], 80
    %v3480 = vld [vmem:[%s3479] ss:$2 sm:$0xff]
    %s3481 = scalar_lea.vmem [#allocation7], 96
    %v3482 = vld [vmem:[%s3481] ss:$2 sm:$0xff]
    %s3483 = scalar_lea.vmem [#allocation7], 112
    %v3484 = vld [vmem:[%s3483] ss:$2 sm:$0xff]
    %s3485 = scalar_lea.vmem [#allocation7], 1
    %v3486 = vld [vmem:[%s3485] ss:$2 sm:$0xff]
    %s3487 = scalar_lea.vmem [#allocation7], 17
    %v3488 = vld [vmem:[%s3487] ss:$2 sm:$0xff]
    %s3489 = scalar_lea.vmem [#allocation7], 33
    %v3490 = vld [vmem:[%s3489] ss:$2 sm:$0xff]
    %s3491 = scalar_lea.vmem [#allocation7], 49
    %v3492 = vld [vmem:[%s3491] ss:$2 sm:$0xff]
    %s3493 = scalar_lea.vmem [#allocation7], 65
    %v3494 = vld [vmem:[%s3493] ss:$2 sm:$0xff]
    %s3495 = scalar_lea.vmem [#allocation7], 81
    %v3496 = vld [vmem:[%s3495] ss:$2 sm:$0xff]
    %s3497 = scalar_lea.vmem [#allocation7], 97
    %v3498 = vld [vmem:[%s3497] ss:$2 sm:$0xff]
    %s3499 = scalar_lea.vmem [#allocation7], 113
    %v3500 = vld [vmem:[%s3499] ss:$2 sm:$0xff]
    %v3501 = vmax.f32 %v3470, %v3486
    %v3502 = vmax.f32 %v3472, %v3488
    %v3503 = vmax.f32 %v3474, %v3490
    %v3504 = vmax.f32 %v3476, %v3492
    %v3505 = vmax.f32 %v3478, %v3494
    %v3506 = vmax.f32 %v3480, %v3496
    %v3507 = vmax.f32 %v3482, %v3498
    %v3508 = vmax.f32 %v3484, %v3500
    %3509 = vxpose.xlu0.b32.start [1/16] %v3501, 128
    %3510 = vxpose.xlu0.b32.cont [2/16] %v3502, 128
    %3511 = vxpose.xlu0.b32.cont [3/16] %v3503, 128
    %3512 = vxpose.xlu0.b32.cont [4/16] %v3504, 128
    %3513 = vxpose.xlu0.b32.cont [5/16] %v3505, 128
    %3514 = vxpose.xlu0.b32.cont [6/16] %v3506, 128
    %3515 = vxpose.xlu0.b32.cont [7/16] %v3507, 128
    %3516 = vxpose.xlu0.b32.cont [8/16] %v3508, 128
    %3517 = vxpose.xlu0.b32.cont [9/16] 0.0, 128
    %3518 = vxpose.xlu0.b32.cont [10/16] 0.0, 128
    %3519 = vxpose.xlu0.b32.cont [11/16] 0.0, 128
    %3520 = vxpose.xlu0.b32.cont [12/16] 0.0, 128
    %3521 = vxpose.xlu0.b32.cont [13/16] 0.0, 128
    %3522 = vxpose.xlu0.b32.cont [14/16] 0.0, 128
    %3523 = vxpose.xlu0.b32.cont [15/16] 0.0, 128
    %3524 = vxpose.xlu0.b32.end [16/16] 0.0, 128
    %v3525 = vpop.trf.xlu0
    %v3526 = vpop.trf.xlu0
    %v3527 = vpop.trf.xlu0
    %v3528 = vpop.trf.xlu0
    %v3529 = vpop.trf.xlu0
    %v3530 = vpop.trf.xlu0
    %v3531 = vpop.trf.xlu0
    %v3532 = vpop.trf.xlu0
    %v3533 = vpop.trf.xlu0
    %v3534 = vpop.trf.xlu0
    %v3535 = vpop.trf.xlu0
    %v3536 = vpop.trf.xlu0
    %v3537 = vpop.trf.xlu0
    %v3538 = vpop.trf.xlu0
    %v3539 = vpop.trf.xlu0
    %v3540 = vpop.trf.xlu0
    %3541 = vst.msk [vmem:[#allocation8] sm:$0xff] %vm131, %v3525
    %s3542 = scalar_lea.vmem %s0, 32
    %v3543 = vld [vmem:[%s3542] sm:$0xff]
    %v3544 = vld [vmem:[%s3542 + $0x8] sm:$0xff]
    %v3545 = vld [vmem:[%s3542 + $0x10] sm:$0xff]
    %v3546 = vld [vmem:[%s3542 + $0x18] sm:$0xff]
    %3551 = vrot.lane.b32.xlu0 %v3543, 1
    %v3552 = vpop.permute.xlu0 %3551
    %3553 = vrot.lane.b32.xlu0 %v3544, 1
    %v3554 = vpop.permute.xlu0 %3553
    %3555 = vrot.lane.b32.xlu0 %v3545, 1
    %v3556 = vpop.permute.xlu0 %3555
    %3557 = vrot.lane.b32.xlu0 %v3546, 1
    %v3558 = vpop.permute.xlu0 %3557
    %3563 = vst.msk [vmem:[#allocation2 + $0x1] sm:$0xff] %vm77, %v3552
    %3564 = vst.msk [vmem:[#allocation2 + $0x9] sm:$0xff] %vm77, %v3554
    %3565 = vst.msk [vmem:[#allocation2 + $0x11] sm:$0xff] %vm77, %v3556
    %3566 = vst.msk [vmem:[#allocation2 + $0x19] sm:$0xff] %vm77, %v3558
    %v3567 = vld [vmem:[#allocation2] sm:$0xff]
    %v3568 = vld [vmem:[#allocation2 + $0x8] sm:$0xff]
    %v3569 = vld [vmem:[#allocation2 + $0x10] sm:$0xff]
    %v3570 = vld [vmem:[#allocation2 + $0x18] sm:$0xff]
    %3575 = vrot.lane.b32.xlu0 %v3567, 32
    %v3576 = vpop.permute.xlu0 %3575
    %3577 = vrot.lane.b32.xlu0 %v3568, 32
    %v3578 = vpop.permute.xlu0 %3577
    %3579 = vrot.lane.b32.xlu0 %v3569, 32
    %v3580 = vpop.permute.xlu0 %3579
    %3581 = vrot.lane.b32.xlu0 %v3570, 32
    %v3582 = vpop.permute.xlu0 %3581
    %3587 = vrot.lane.b32.xlu0 %v3567, 64
    %v3588 = vpop.permute.xlu0 %3587
    %3589 = vrot.lane.b32.xlu0 %v3568, 64
    %v3590 = vpop.permute.xlu0 %3589
    %3591 = vrot.lane.b32.xlu0 %v3569, 64
    %v3592 = vpop.permute.xlu0 %3591
    %3593 = vrot.lane.b32.xlu0 %v3570, 64
    %v3594 = vpop.permute.xlu0 %3593
    %3599 = vrot.lane.b32.xlu0 %v3567, 96
    %v3600 = vpop.permute.xlu0 %3599
    %3601 = vrot.lane.b32.xlu0 %v3568, 96
    %v3602 = vpop.permute.xlu0 %3601
    %3603 = vrot.lane.b32.xlu0 %v3569, 96
    %v3604 = vpop.permute.xlu0 %3603
    %3605 = vrot.lane.b32.xlu0 %v3570, 96
    %v3606 = vpop.permute.xlu0 %3605
    %v3611 = vsel %vm126, %v3567, %v3576
    %v3612 = vsel %vm126, %v3568, %v3578
    %v3613 = vsel %vm126, %v3569, %v3580
    %v3614 = vsel %vm126, %v3570, %v3582
    %v3615 = vsel %vm131, %v3611, %v3588
    %v3616 = vsel %vm131, %v3612, %v3590
    %v3617 = vsel %vm131, %v3613, %v3592
    %v3618 = vsel %vm131, %v3614, %v3594
    %v3619 = vsel %vm136, %v3615, %v3600
    %v3620 = vsel %vm136, %v3616, %v3602
    %v3621 = vsel %vm136, %v3617, %v3604
    %v3622 = vsel %vm136, %v3618, %v3606
    %v3623 = vmul.f32 %v3619, %v144
    %v3624 = vmul.f32 %v3620, %v144
    %v3625 = vmul.f32 %v3621, %v144
    %v3626 = vmul.f32 %v3622, %v144
    %v3627 = vadd.f32 %v3623, 0.0
    %v3628 = vadd.f32 %v3624, 0.0
    %v3629 = vadd.f32 %v3625, 0.0
    %v3630 = vadd.f32 %v3626, 0.0
    %3631 = vrot.lane.b32.xlu0 %v3567, 127
    %v3632 = vpop.permute.xlu0 %3631
    %3633 = vrot.lane.b32.xlu0 %v3568, 127
    %v3634 = vpop.permute.xlu0 %3633
    %3635 = vrot.lane.b32.xlu0 %v3569, 127
    %v3636 = vpop.permute.xlu0 %3635
    %3637 = vrot.lane.b32.xlu0 %v3570, 127
    %v3638 = vpop.permute.xlu0 %3637
    %3643 = vrot.lane.b32.xlu0 %v3567, 31
    %v3644 = vpop.permute.xlu0 %3643
    %3645 = vrot.lane.b32.xlu0 %v3568, 31
    %v3646 = vpop.permute.xlu0 %3645
    %3647 = vrot.lane.b32.xlu0 %v3569, 31
    %v3648 = vpop.permute.xlu0 %3647
    %3649 = vrot.lane.b32.xlu0 %v3570, 31
    %v3650 = vpop.permute.xlu0 %3649
    %3655 = vrot.lane.b32.xlu0 %v3567, 63
    %v3656 = vpop.permute.xlu0 %3655
    %3657 = vrot.lane.b32.xlu0 %v3568, 63
    %v3658 = vpop.permute.xlu0 %3657
    %3659 = vrot.lane.b32.xlu0 %v3569, 63
    %v3660 = vpop.permute.xlu0 %3659
    %3661 = vrot.lane.b32.xlu0 %v3570, 63
    %v3662 = vpop.permute.xlu0 %3661
    %3667 = vrot.lane.b32.xlu0 %v3567, 95
    %v3668 = vpop.permute.xlu0 %3667
    %3669 = vrot.lane.b32.xlu0 %v3568, 95
    %v3670 = vpop.permute.xlu0 %3669
    %3671 = vrot.lane.b32.xlu0 %v3569, 95
    %v3672 = vpop.permute.xlu0 %3671
    %3673 = vrot.lane.b32.xlu0 %v3570, 95
    %v3674 = vpop.permute.xlu0 %3673
    %v3679 = vsel %vm126, %v3632, %v3644
    %v3680 = vsel %vm126, %v3634, %v3646
    %v3681 = vsel %vm126, %v3636, %v3648
    %v3682 = vsel %vm126, %v3638, %v3650
    %v3683 = vsel %vm131, %v3679, %v3656
    %v3684 = vsel %vm131, %v3680, %v3658
    %v3685 = vsel %vm131, %v3681, %v3660
    %v3686 = vsel %vm131, %v3682, %v3662
    %v3687 = vsel %vm136, %v3683, %v3668
    %v3688 = vsel %vm136, %v3684, %v3670
    %v3689 = vsel %vm136, %v3685, %v3672
    %v3690 = vsel %vm136, %v3686, %v3674
    %v3691 = vmul.f32 %v3687, %v216
    %v3692 = vmul.f32 %v3688, %v216
    %v3693 = vmul.f32 %v3689, %v216
    %v3694 = vmul.f32 %v3690, %v216
    %v3695 = vadd.f32 %v3627, %v3691
    %v3696 = vadd.f32 %v3628, %v3692
    %v3697 = vadd.f32 %v3629, %v3693
    %v3698 = vadd.f32 %v3630, %v3694
    %3699 = vrot.lane.b32.xlu0 %v3567, 126
    %v3700 = vpop.permute.xlu0 %3699
    %3701 = vrot.lane.b32.xlu0 %v3568, 126
    %v3702 = vpop.permute.xlu0 %3701
    %3703 = vrot.lane.b32.xlu0 %v3569, 126
    %v3704 = vpop.permute.xlu0 %3703
    %3705 = vrot.lane.b32.xlu0 %v3570, 126
    %v3706 = vpop.permute.xlu0 %3705
    %3711 = vrot.lane.b32.xlu0 %v3567, 30
    %v3712 = vpop.permute.xlu0 %3711
    %3713 = vrot.lane.b32.xlu0 %v3568, 30
    %v3714 = vpop.permute.xlu0 %3713
    %3715 = vrot.lane.b32.xlu0 %v3569, 30
    %v3716 = vpop.permute.xlu0 %3715
    %3717 = vrot.lane.b32.xlu0 %v3570, 30
    %v3718 = vpop.permute.xlu0 %3717
    %3723 = vrot.lane.b32.xlu0 %v3567, 62
    %v3724 = vpop.permute.xlu0 %3723
    %3725 = vrot.lane.b32.xlu0 %v3568, 62
    %v3726 = vpop.permute.xlu0 %3725
    %3727 = vrot.lane.b32.xlu0 %v3569, 62
    %v3728 = vpop.permute.xlu0 %3727
    %3729 = vrot.lane.b32.xlu0 %v3570, 62
    %v3730 = vpop.permute.xlu0 %3729
    %3735 = vrot.lane.b32.xlu0 %v3567, 94
    %v3736 = vpop.permute.xlu0 %3735
    %3737 = vrot.lane.b32.xlu0 %v3568, 94
    %v3738 = vpop.permute.xlu0 %3737
    %3739 = vrot.lane.b32.xlu0 %v3569, 94
    %v3740 = vpop.permute.xlu0 %3739
    %3741 = vrot.lane.b32.xlu0 %v3570, 94
    %v3742 = vpop.permute.xlu0 %3741
    %v3747 = vsel %vm126, %v3700, %v3712
    %v3748 = vsel %vm126, %v3702, %v3714
    %v3749 = vsel %vm126, %v3704, %v3716
    %v3750 = vsel %vm126, %v3706, %v3718
    %v3751 = vsel %vm131, %v3747, %v3724
    %v3752 = vsel %vm131, %v3748, %v3726
    %v3753 = vsel %vm131, %v3749, %v3728
    %v3754 = vsel %vm131, %v3750, %v3730
    %v3755 = vsel %vm136, %v3751, %v3736
    %v3756 = vsel %vm136, %v3752, %v3738
    %v3757 = vsel %vm136, %v3753, %v3740
    %v3758 = vsel %vm136, %v3754, %v3742
    %v3759 = vmul.f32 %v3755, %v288
    %v3760 = vmul.f32 %v3756, %v288
    %v3761 = vmul.f32 %v3757, %v288
    %v3762 = vmul.f32 %v3758, %v288
    %v3763 = vadd.f32 %v3695, %v3759
    %v3764 = vadd.f32 %v3696, %v3760
    %v3765 = vadd.f32 %v3697, %v3761
    %v3766 = vadd.f32 %v3698, %v3762
    %v3767 = vld [vmem:[#allocation2 + $0x1] sm:$0xff]
    %v3768 = vld [vmem:[#allocation2 + $0x9] sm:$0xff]
    %v3769 = vld [vmem:[#allocation2 + $0x11] sm:$0xff]
    %v3770 = vld [vmem:[#allocation2 + $0x19] sm:$0xff]
    %3775 = vrot.lane.b32.xlu0 %v3767, 32
    %v3776 = vpop.permute.xlu0 %3775
    %3777 = vrot.lane.b32.xlu0 %v3768, 32
    %v3778 = vpop.permute.xlu0 %3777
    %3779 = vrot.lane.b32.xlu0 %v3769, 32
    %v3780 = vpop.permute.xlu0 %3779
    %3781 = vrot.lane.b32.xlu0 %v3770, 32
    %v3782 = vpop.permute.xlu0 %3781
    %3787 = vrot.lane.b32.xlu0 %v3767, 64
    %v3788 = vpop.permute.xlu0 %3787
    %3789 = vrot.lane.b32.xlu0 %v3768, 64
    %v3790 = vpop.permute.xlu0 %3789
    %3791 = vrot.lane.b32.xlu0 %v3769, 64
    %v3792 = vpop.permute.xlu0 %3791
    %3793 = vrot.lane.b32.xlu0 %v3770, 64
    %v3794 = vpop.permute.xlu0 %3793
    %3799 = vrot.lane.b32.xlu0 %v3767, 96
    %v3800 = vpop.permute.xlu0 %3799
    %3801 = vrot.lane.b32.xlu0 %v3768, 96
    %v3802 = vpop.permute.xlu0 %3801
    %3803 = vrot.lane.b32.xlu0 %v3769, 96
    %v3804 = vpop.permute.xlu0 %3803
    %3805 = vrot.lane.b32.xlu0 %v3770, 96
    %v3806 = vpop.permute.xlu0 %3805
    %v3811 = vsel %vm126, %v3767, %v3776
    %v3812 = vsel %vm126, %v3768, %v3778
    %v3813 = vsel %vm126, %v3769, %v3780
    %v3814 = vsel %vm126, %v3770, %v3782
    %v3815 = vsel %vm131, %v3811, %v3788
    %v3816 = vsel %vm131, %v3812, %v3790
    %v3817 = vsel %vm131, %v3813, %v3792
    %v3818 = vsel %vm131, %v3814, %v3794
    %v3819 = vsel %vm136, %v3815, %v3800
    %v3820 = vsel %vm136, %v3816, %v3802
    %v3821 = vsel %vm136, %v3817, %v3804
    %v3822 = vsel %vm136, %v3818, %v3806
    %v3823 = vmul.f32 %v3819, %v356
    %v3824 = vmul.f32 %v3820, %v356
    %v3825 = vmul.f32 %v3821, %v356
    %v3826 = vmul.f32 %v3822, %v356
    %v3827 = vadd.f32 %v3763, %v3823
    %v3828 = vadd.f32 %v3764, %v3824
    %v3829 = vadd.f32 %v3765, %v3825
    %v3830 = vadd.f32 %v3766, %v3826
    %3831 = vrot.lane.b32.xlu0 %v3767, 127
    %v3832 = vpop.permute.xlu0 %3831
    %3833 = vrot.lane.b32.xlu0 %v3768, 127
    %v3834 = vpop.permute.xlu0 %3833
    %3835 = vrot.lane.b32.xlu0 %v3769, 127
    %v3836 = vpop.permute.xlu0 %3835
    %3837 = vrot.lane.b32.xlu0 %v3770, 127
    %v3838 = vpop.permute.xlu0 %3837
    %3843 = vrot.lane.b32.xlu0 %v3767, 31
    %v3844 = vpop.permute.xlu0 %3843
    %3845 = vrot.lane.b32.xlu0 %v3768, 31
    %v3846 = vpop.permute.xlu0 %3845
    %3847 = vrot.lane.b32.xlu0 %v3769, 31
    %v3848 = vpop.permute.xlu0 %3847
    %3849 = vrot.lane.b32.xlu0 %v3770, 31
    %v3850 = vpop.permute.xlu0 %3849
    %3855 = vrot.lane.b32.xlu0 %v3767, 63
    %v3856 = vpop.permute.xlu0 %3855
    %3857 = vrot.lane.b32.xlu0 %v3768, 63
    %v3858 = vpop.permute.xlu0 %3857
    %3859 = vrot.lane.b32.xlu0 %v3769, 63
    %v3860 = vpop.permute.xlu0 %3859
    %3861 = vrot.lane.b32.xlu0 %v3770, 63
    %v3862 = vpop.permute.xlu0 %3861
    %3867 = vrot.lane.b32.xlu0 %v3767, 95
    %v3868 = vpop.permute.xlu0 %3867
    %3869 = vrot.lane.b32.xlu0 %v3768, 95
    %v3870 = vpop.permute.xlu0 %3869
    %3871 = vrot.lane.b32.xlu0 %v3769, 95
    %v3872 = vpop.permute.xlu0 %3871
    %3873 = vrot.lane.b32.xlu0 %v3770, 95
    %v3874 = vpop.permute.xlu0 %3873
    %v3879 = vsel %vm126, %v3832, %v3844
    %v3880 = vsel %vm126, %v3834, %v3846
    %v3881 = vsel %vm126, %v3836, %v3848
    %v3882 = vsel %vm126, %v3838, %v3850
    %v3883 = vsel %vm131, %v3879, %v3856
    %v3884 = vsel %vm131, %v3880, %v3858
    %v3885 = vsel %vm131, %v3881, %v3860
    %v3886 = vsel %vm131, %v3882, %v3862
    %v3887 = vsel %vm136, %v3883, %v3868
    %v3888 = vsel %vm136, %v3884, %v3870
    %v3889 = vsel %vm136, %v3885, %v3872
    %v3890 = vsel %vm136, %v3886, %v3874
    %v3891 = vmul.f32 %v3887, %v428
    %v3892 = vmul.f32 %v3888, %v428
    %v3893 = vmul.f32 %v3889, %v428
    %v3894 = vmul.f32 %v3890, %v428
    %v3895 = vadd.f32 %v3827, %v3891
    %v3896 = vadd.f32 %v3828, %v3892
    %v3897 = vadd.f32 %v3829, %v3893
    %v3898 = vadd.f32 %v3830, %v3894
    %3899 = vrot.lane.b32.xlu0 %v3767, 126
    %v3900 = vpop.permute.xlu0 %3899
    %3901 = vrot.lane.b32.xlu0 %v3768, 126
    %v3902 = vpop.permute.xlu0 %3901
    %3903 = vrot.lane.b32.xlu0 %v3769, 126
    %v3904 = vpop.permute.xlu0 %3903
    %3905 = vrot.lane.b32.xlu0 %v3770, 126
    %v3906 = vpop.permute.xlu0 %3905
    %3911 = vrot.lane.b32.xlu0 %v3767, 30
    %v3912 = vpop.permute.xlu0 %3911
    %3913 = vrot.lane.b32.xlu0 %v3768, 30
    %v3914 = vpop.permute.xlu0 %3913
    %3915 = vrot.lane.b32.xlu0 %v3769, 30
    %v3916 = vpop.permute.xlu0 %3915
    %3917 = vrot.lane.b32.xlu0 %v3770, 30
    %v3918 = vpop.permute.xlu0 %3917
    %3923 = vrot.lane.b32.xlu0 %v3767, 62
    %v3924 = vpop.permute.xlu0 %3923
    %3925 = vrot.lane.b32.xlu0 %v3768, 62
    %v3926 = vpop.permute.xlu0 %3925
    %3927 = vrot.lane.b32.xlu0 %v3769, 62
    %v3928 = vpop.permute.xlu0 %3927
    %3929 = vrot.lane.b32.xlu0 %v3770, 62
    %v3930 = vpop.permute.xlu0 %3929
    %3935 = vrot.lane.b32.xlu0 %v3767, 94
    %v3936 = vpop.permute.xlu0 %3935
    %3937 = vrot.lane.b32.xlu0 %v3768, 94
    %v3938 = vpop.permute.xlu0 %3937
    %3939 = vrot.lane.b32.xlu0 %v3769, 94
    %v3940 = vpop.permute.xlu0 %3939
    %3941 = vrot.lane.b32.xlu0 %v3770, 94
    %v3942 = vpop.permute.xlu0 %3941
    %v3947 = vsel %vm126, %v3900, %v3912
    %v3948 = vsel %vm126, %v3902, %v3914
    %v3949 = vsel %vm126, %v3904, %v3916
    %v3950 = vsel %vm126, %v3906, %v3918
    %v3951 = vsel %vm131, %v3947, %v3924
    %v3952 = vsel %vm131, %v3948, %v3926
    %v3953 = vsel %vm131, %v3949, %v3928
    %v3954 = vsel %vm131, %v3950, %v3930
    %v3955 = vsel %vm136, %v3951, %v3936
    %v3956 = vsel %vm136, %v3952, %v3938
    %v3957 = vsel %vm136, %v3953, %v3940
    %v3958 = vsel %vm136, %v3954, %v3942
    %v3959 = vmul.f32 %v3955, %v500
    %v3960 = vmul.f32 %v3956, %v500
    %v3961 = vmul.f32 %v3957, %v500
    %v3962 = vmul.f32 %v3958, %v500
    %v3963 = vadd.f32 %v3895, %v3959
    %v3964 = vadd.f32 %v3896, %v3960
    %v3965 = vadd.f32 %v3897, %v3961
    %v3966 = vadd.f32 %v3898, %v3962
    %v3967 = vld [vmem:[#allocation2 + $0x2] sm:$0xff]
    %v3968 = vld [vmem:[#allocation2 + $0xa] sm:$0xff]
    %v3969 = vld [vmem:[#allocation2 + $0x12] sm:$0xff]
    %v3970 = vld [vmem:[#allocation2 + $0x1a] sm:$0xff]
    %3975 = vrot.lane.b32.xlu0 %v3967, 32
    %v3976 = vpop.permute.xlu0 %3975
    %3977 = vrot.lane.b32.xlu0 %v3968, 32
    %v3978 = vpop.permute.xlu0 %3977
    %3979 = vrot.lane.b32.xlu0 %v3969, 32
    %v3980 = vpop.permute.xlu0 %3979
    %3981 = vrot.lane.b32.xlu0 %v3970, 32
    %v3982 = vpop.permute.xlu0 %3981
    %3987 = vrot.lane.b32.xlu0 %v3967, 64
    %v3988 = vpop.permute.xlu0 %3987
    %3989 = vrot.lane.b32.xlu0 %v3968, 64
    %v3990 = vpop.permute.xlu0 %3989
    %3991 = vrot.lane.b32.xlu0 %v3969, 64
    %v3992 = vpop.permute.xlu0 %3991
    %3993 = vrot.lane.b32.xlu0 %v3970, 64
    %v3994 = vpop.permute.xlu0 %3993
    %3999 = vrot.lane.b32.xlu0 %v3967, 96
    %v4000 = vpop.permute.xlu0 %3999
    %4001 = vrot.lane.b32.xlu0 %v3968, 96
    %v4002 = vpop.permute.xlu0 %4001
    %4003 = vrot.lane.b32.xlu0 %v3969, 96
    %v4004 = vpop.permute.xlu0 %4003
    %4005 = vrot.lane.b32.xlu0 %v3970, 96
    %v4006 = vpop.permute.xlu0 %4005
    %v4011 = vsel %vm126, %v3967, %v3976
    %v4012 = vsel %vm126, %v3968, %v3978
    %v4013 = vsel %vm126, %v3969, %v3980
    %v4014 = vsel %vm126, %v3970, %v3982
    %v4015 = vsel %vm131, %v4011, %v3988
    %v4016 = vsel %vm131, %v4012, %v3990
    %v4017 = vsel %vm131, %v4013, %v3992
    %v4018 = vsel %vm131, %v4014, %v3994
    %v4019 = vsel %vm136, %v4015, %v4000
    %v4020 = vsel %vm136, %v4016, %v4002
    %v4021 = vsel %vm136, %v4017, %v4004
    %v4022 = vsel %vm136, %v4018, %v4006
    %v4023 = vmul.f32 %v4019, %v568
    %v4024 = vmul.f32 %v4020, %v568
    %v4025 = vmul.f32 %v4021, %v568
    %v4026 = vmul.f32 %v4022, %v568
    %v4027 = vadd.f32 %v3963, %v4023
    %v4028 = vadd.f32 %v3964, %v4024
    %v4029 = vadd.f32 %v3965, %v4025
    %v4030 = vadd.f32 %v3966, %v4026
    %4031 = vrot.lane.b32.xlu0 %v3967, 127
    %v4032 = vpop.permute.xlu0 %4031
    %4033 = vrot.lane.b32.xlu0 %v3968, 127
    %v4034 = vpop.permute.xlu0 %4033
    %4035 = vrot.lane.b32.xlu0 %v3969, 127
    %v4036 = vpop.permute.xlu0 %4035
    %4037 = vrot.lane.b32.xlu0 %v3970, 127
    %v4038 = vpop.permute.xlu0 %4037
    %4043 = vrot.lane.b32.xlu0 %v3967, 31
    %v4044 = vpop.permute.xlu0 %4043
    %4045 = vrot.lane.b32.xlu0 %v3968, 31
    %v4046 = vpop.permute.xlu0 %4045
    %4047 = vrot.lane.b32.xlu0 %v3969, 31
    %v4048 = vpop.permute.xlu0 %4047
    %4049 = vrot.lane.b32.xlu0 %v3970, 31
    %v4050 = vpop.permute.xlu0 %4049
    %4055 = vrot.lane.b32.xlu0 %v3967, 63
    %v4056 = vpop.permute.xlu0 %4055
    %4057 = vrot.lane.b32.xlu0 %v3968, 63
    %v4058 = vpop.permute.xlu0 %4057
    %4059 = vrot.lane.b32.xlu0 %v3969, 63
    %v4060 = vpop.permute.xlu0 %4059
    %4061 = vrot.lane.b32.xlu0 %v3970, 63
    %v4062 = vpop.permute.xlu0 %4061
    %4067 = vrot.lane.b32.xlu0 %v3967, 95
    %v4068 = vpop.permute.xlu0 %4067
    %4069 = vrot.lane.b32.xlu0 %v3968, 95
    %v4070 = vpop.permute.xlu0 %4069
    %4071 = vrot.lane.b32.xlu0 %v3969, 95
    %v4072 = vpop.permute.xlu0 %4071
    %4073 = vrot.lane.b32.xlu0 %v3970, 95
    %v4074 = vpop.permute.xlu0 %4073
    %v4079 = vsel %vm126, %v4032, %v4044
    %v4080 = vsel %vm126, %v4034, %v4046
    %v4081 = vsel %vm126, %v4036, %v4048
    %v4082 = vsel %vm126, %v4038, %v4050
    %v4083 = vsel %vm131, %v4079, %v4056
    %v4084 = vsel %vm131, %v4080, %v4058
    %v4085 = vsel %vm131, %v4081, %v4060
    %v4086 = vsel %vm131, %v4082, %v4062
    %v4087 = vsel %vm136, %v4083, %v4068
    %v4088 = vsel %vm136, %v4084, %v4070
    %v4089 = vsel %vm136, %v4085, %v4072
    %v4090 = vsel %vm136, %v4086, %v4074
    %v4091 = vmul.f32 %v4087, %v640
    %v4092 = vmul.f32 %v4088, %v640
    %v4093 = vmul.f32 %v4089, %v640
    %v4094 = vmul.f32 %v4090, %v640
    %v4095 = vadd.f32 %v4027, %v4091
    %v4096 = vadd.f32 %v4028, %v4092
    %v4097 = vadd.f32 %v4029, %v4093
    %v4098 = vadd.f32 %v4030, %v4094
    %4099 = vrot.lane.b32.xlu0 %v3967, 126
    %v4100 = vpop.permute.xlu0 %4099
    %4101 = vrot.lane.b32.xlu0 %v3968, 126
    %v4102 = vpop.permute.xlu0 %4101
    %4103 = vrot.lane.b32.xlu0 %v3969, 126
    %v4104 = vpop.permute.xlu0 %4103
    %4105 = vrot.lane.b32.xlu0 %v3970, 126
    %v4106 = vpop.permute.xlu0 %4105
    %4111 = vrot.lane.b32.xlu0 %v3967, 30
    %v4112 = vpop.permute.xlu0 %4111
    %4113 = vrot.lane.b32.xlu0 %v3968, 30
    %v4114 = vpop.permute.xlu0 %4113
    %4115 = vrot.lane.b32.xlu0 %v3969, 30
    %v4116 = vpop.permute.xlu0 %4115
    %4117 = vrot.lane.b32.xlu0 %v3970, 30
    %v4118 = vpop.permute.xlu0 %4117
    %4123 = vrot.lane.b32.xlu0 %v3967, 62
    %v4124 = vpop.permute.xlu0 %4123
    %4125 = vrot.lane.b32.xlu0 %v3968, 62
    %v4126 = vpop.permute.xlu0 %4125
    %4127 = vrot.lane.b32.xlu0 %v3969, 62
    %v4128 = vpop.permute.xlu0 %4127
    %4129 = vrot.lane.b32.xlu0 %v3970, 62
    %v4130 = vpop.permute.xlu0 %4129
    %4135 = vrot.lane.b32.xlu0 %v3967, 94
    %v4136 = vpop.permute.xlu0 %4135
    %4137 = vrot.lane.b32.xlu0 %v3968, 94
    %v4138 = vpop.permute.xlu0 %4137
    %4139 = vrot.lane.b32.xlu0 %v3969, 94
    %v4140 = vpop.permute.xlu0 %4139
    %4141 = vrot.lane.b32.xlu0 %v3970, 94
    %v4142 = vpop.permute.xlu0 %4141
    %v4147 = vsel %vm126, %v4100, %v4112
    %v4148 = vsel %vm126, %v4102, %v4114
    %v4149 = vsel %vm126, %v4104, %v4116
    %v4150 = vsel %vm126, %v4106, %v4118
    %v4151 = vsel %vm131, %v4147, %v4124
    %v4152 = vsel %vm131, %v4148, %v4126
    %v4153 = vsel %vm131, %v4149, %v4128
    %v4154 = vsel %vm131, %v4150, %v4130
    %v4155 = vsel %vm136, %v4151, %v4136
    %v4156 = vsel %vm136, %v4152, %v4138
    %v4157 = vsel %vm136, %v4153, %v4140
    %v4158 = vsel %vm136, %v4154, %v4142
    %v4159 = vmul.f32 %v4155, %v712
    %v4160 = vmul.f32 %v4156, %v712
    %v4161 = vmul.f32 %v4157, %v712
    %v4162 = vmul.f32 %v4158, %v712
    %v4163 = vadd.f32 %v4095, %v4159
    %v4164 = vadd.f32 %v4096, %v4160
    %v4165 = vadd.f32 %v4097, %v4161
    %v4166 = vadd.f32 %v4098, %v4162
    %v4167 = vadd.f32 %v4163, %v725
    %v4168 = vadd.f32 %v4164, %v725
    %v4169 = vadd.f32 %v4165, %v725
    %v4170 = vadd.f32 %v4166, %v725
    %v4171 = vmax.f32 %v4167, 0.0
    %v4172 = vmax.f32 %v4168, 0.0
    %v4173 = vmax.f32 %v4169, 0.0
    %v4174 = vmax.f32 %v4170, 0.0
    %4175 = vst [vmem:[#allocation4] sm:$0xff] %v4171
    %4176 = vst [vmem:[#allocation4 + $0x8] sm:$0xff] %v4172
    %4177 = vst [vmem:[#allocation4 + $0x10] sm:$0xff] %v4173
    %4178 = vst [vmem:[#allocation4 + $0x18] sm:$0xff] %v4174
    %v4179 = vld [vmem:[#allocation4] ss:$2 sm:$0xff]
    %v4180 = vld [vmem:[%s740] ss:$2 sm:$0xff]
    %v4181 = vld [vmem:[%s742] ss:$2 sm:$0xff]
    %v4182 = vld [vmem:[%s744] ss:$2 sm:$0xff]
    %v4183 = vmax.f32 %v4179, %v4181
    %v4184 = vmax.f32 %v4180, %v4182
    %4185 = vxpose.xlu0.b32.start [1/16] %v4183, 128
    %4186 = vxpose.xlu0.b32.cont [2/16] %v4184, 128
    %4187 = vxpose.xlu0.b32.cont [3/16] 0.0, 128
    %4188 = vxpose.xlu0.b32.cont [4/16] 0.0, 128
    %4189 = vxpose.xlu0.b32.cont [5/16] 0.0, 128
    %4190 = vxpose.xlu0.b32.cont [6/16] 0.0, 128
    %4191 = vxpose.xlu0.b32.cont [7/16] 0.0, 128
    %4192 = vxpose.xlu0.b32.cont [8/16] 0.0, 128
    %4193 = vxpose.xlu0.b32.cont [9/16] 0.0, 128
    %4194 = vxpose.xlu0.b32.cont [10/16] 0.0, 128
    %4195 = vxpose.xlu0.b32.cont [11/16] 0.0, 128
    %4196 = vxpose.xlu0.b32.cont [12/16] 0.0, 128
    %4197 = vxpose.xlu0.b32.cont [13/16] 0.0, 128
    %4198 = vxpose.xlu0.b32.cont [14/16] 0.0, 128
    %4199 = vxpose.xlu0.b32.cont [15/16] 0.0, 128
    %4200 = vxpose.xlu0.b32.end [16/16] 0.0, 128
    %v4201 = vpop.trf.xlu0
    %v4202 = vpop.trf.xlu0
    %v4203 = vpop.trf.xlu0
    %v4204 = vpop.trf.xlu0
    %v4205 = vpop.trf.xlu0
    %v4206 = vpop.trf.xlu0
    %v4207 = vpop.trf.xlu0
    %v4208 = vpop.trf.xlu0
    %v4209 = vpop.trf.xlu0
    %v4210 = vpop.trf.xlu0
    %v4211 = vpop.trf.xlu0
    %v4212 = vpop.trf.xlu0
    %v4213 = vpop.trf.xlu0
    %v4214 = vpop.trf.xlu0
    %v4215 = vpop.trf.xlu0
    %v4216 = vpop.trf.xlu0
    %4217 = vst.msk [vmem:[#allocation5] sm:$0xff] %vm780, %v4201
    %4218 = vst.msk [vmem:[#allocation5 + $0x8] sm:$0xff] %vm780, %v4202
    %4219 = vst.msk [vmem:[#allocation5 + $0x10] sm:$0xff] %vm780, %v4203
    %4220 = vst.msk [vmem:[#allocation5 + $0x18] sm:$0xff] %vm780, %v4204
    %4221 = vst.msk [vmem:[#allocation5 + $0x20] sm:$0xff] %vm780, %v4205
    %4222 = vst.msk [vmem:[#allocation5 + $0x28] sm:$0xff] %vm780, %v4206
    %4223 = vst.msk [vmem:[#allocation5 + $0x30] sm:$0xff] %vm780, %v4207
    %4224 = vst.msk [vmem:[#allocation5 + $0x38] sm:$0xff] %vm780, %v4208
    %4225 = vst.msk [vmem:[#allocation5 + $0x40] sm:$0xff] %vm780, %v4209
    %4226 = vst.msk [vmem:[#allocation5 + $0x48] sm:$0xff] %vm780, %v4210
    %4227 = vst.msk [vmem:[#allocation5 + $0x50] sm:$0xff] %vm780, %v4211
    %4228 = vst.msk [vmem:[#allocation5 + $0x58] sm:$0xff] %vm780, %v4212
    %4229 = vst.msk [vmem:[#allocation5 + $0x60] sm:$0xff] %vm780, %v4213
    %4230 = vst.msk [vmem:[#allocation5 + $0x68] sm:$0xff] %vm780, %v4214
    %4231 = vst.msk [vmem:[#allocation5 + $0x70] sm:$0xff] %vm780, %v4215
    %4232 = vst.msk [vmem:[#allocation5 + $0x78] sm:$0xff] %vm780, %v4216
    %v4233 = vld [vmem:[#allocation5] ss:$2 sm:$0xff]
    %v4234 = vld [vmem:[%s798] ss:$2 sm:$0xff]
    %v4235 = vld [vmem:[%s800] ss:$2 sm:$0xff]
    %v4236 = vld [vmem:[%s802] ss:$2 sm:$0xff]
    %v4237 = vld [vmem:[%s804] ss:$2 sm:$0xff]
    %v4238 = vld [vmem:[%s806] ss:$2 sm:$0xff]
    %v4239 = vld [vmem:[%s808] ss:$2 sm:$0xff]
    %v4240 = vld [vmem:[%s810] ss:$2 sm:$0xff]
    %v4241 = vld [vmem:[%s812] ss:$2 sm:$0xff]
    %v4242 = vld [vmem:[%s814] ss:$2 sm:$0xff]
    %v4243 = vld [vmem:[%s816] ss:$2 sm:$0xff]
    %v4244 = vld [vmem:[%s818] ss:$2 sm:$0xff]
    %v4245 = vld [vmem:[%s820] ss:$2 sm:$0xff]
    %v4246 = vld [vmem:[%s822] ss:$2 sm:$0xff]
    %v4247 = vld [vmem:[%s824] ss:$2 sm:$0xff]
    %v4248 = vld [vmem:[%s826] ss:$2 sm:$0xff]
    %v4249 = vmax.f32 %v4233, %v4241
    %v4250 = vmax.f32 %v4234, %v4242
    %v4251 = vmax.f32 %v4235, %v4243
    %v4252 = vmax.f32 %v4236, %v4244
    %v4253 = vmax.f32 %v4237, %v4245
    %v4254 = vmax.f32 %v4238, %v4246
    %v4255 = vmax.f32 %v4239, %v4247
    %v4256 = vmax.f32 %v4240, %v4248
    %4257 = vxpose.xlu0.b32.start [1/16] %v4249, 128
    %4258 = vxpose.xlu0.b32.cont [2/16] %v4250, 128
    %4259 = vxpose.xlu0.b32.cont [3/16] %v4251, 128
    %4260 = vxpose.xlu0.b32.cont [4/16] %v4252, 128
    %4261 = vxpose.xlu0.b32.cont [5/16] %v4253, 128
    %4262 = vxpose.xlu0.b32.cont [6/16] %v4254, 128
    %4263 = vxpose.xlu0.b32.cont [7/16] %v4255, 128
    %4264 = vxpose.xlu0.b32.cont [8/16] %v4256, 128
    %4265 = vxpose.xlu0.b32.cont [9/16] 0.0, 128
    %4266 = vxpose.xlu0.b32.cont [10/16] 0.0, 128
    %4267 = vxpose.xlu0.b32.cont [11/16] 0.0, 128
    %4268 = vxpose.xlu0.b32.cont [12/16] 0.0, 128
    %4269 = vxpose.xlu0.b32.cont [13/16] 0.0, 128
    %4270 = vxpose.xlu0.b32.cont [14/16] 0.0, 128
    %4271 = vxpose.xlu0.b32.cont [15/16] 0.0, 128
    %4272 = vxpose.xlu0.b32.end [16/16] 0.0, 128
    %v4273 = vpop.trf.xlu0
    %v4274 = vpop.trf.xlu0
    %v4275 = vpop.trf.xlu0
    %v4276 = vpop.trf.xlu0
    %v4277 = vpop.trf.xlu0
    %v4278 = vpop.trf.xlu0
    %v4279 = vpop.trf.xlu0
    %v4280 = vpop.trf.xlu0
    %v4281 = vpop.trf.xlu0
    %v4282 = vpop.trf.xlu0
    %v4283 = vpop.trf.xlu0
    %v4284 = vpop.trf.xlu0
    %v4285 = vpop.trf.xlu0
    %v4286 = vpop.trf.xlu0
    %v4287 = vpop.trf.xlu0
    %v4288 = vpop.trf.xlu0
    %4291 = vrot.lane.b32.xlu0 %v4273, 1
    %v4292 = vpop.permute.xlu0 %4291
    %4293 = vrot.lane.b32.xlu0 %v4274, 1
    %v4294 = vpop.permute.xlu0 %4293
    %4297 = vst.msk [vmem:[#allocation3 + $0x1] sm:$0xff] %vm876, %v4292
    %4298 = vst.msk [vmem:[#allocation3 + $0x9] sm:$0xff] %vm876, %v4294
    %4299 = vrot.lane.b32.xlu0 %v4273, 113
    %v4300 = vpop.permute.xlu0 %4299
    %4301 = vrot.lane.b32.xlu0 %v4274, 113
    %v4302 = vpop.permute.xlu0 %4301
    %4305 = vst.msk [vmem:[%s885 + $0x1] sm:$0xff] %vm876, %v4300
    %4306 = vst.msk [vmem:[%s885 + $0x9] sm:$0xff] %vm876, %v4302
    %4307 = vrot.lane.b32.xlu0 %v4273, 97
    %v4308 = vpop.permute.xlu0 %4307
    %4309 = vrot.lane.b32.xlu0 %v4274, 97
    %v4310 = vpop.permute.xlu0 %4309
    %4313 = vst.msk [vmem:[%s894 + $0x1] sm:$0xff] %vm876, %v4308
    %4314 = vst.msk [vmem:[%s894 + $0x9] sm:$0xff] %vm876, %v4310
    %4315 = vrot.lane.b32.xlu0 %v4273, 81
    %v4316 = vpop.permute.xlu0 %4315
    %4317 = vrot.lane.b32.xlu0 %v4274, 81
    %v4318 = vpop.permute.xlu0 %4317
    %4321 = vst.msk [vmem:[%s903 + $0x1] sm:$0xff] %vm876, %v4316
    %4322 = vst.msk [vmem:[%s903 + $0x9] sm:$0xff] %vm876, %v4318
    %v4323 = vld [vmem:[#allocation3] sm:$0xff]
    %v4324 = vld [vmem:[#allocation3 + $0x8] sm:$0xff]
    %4327 = vrot.lane.b32.xlu0 %v4323, 16
    %v4328 = vpop.permute.xlu0 %4327
    %4329 = vrot.lane.b32.xlu0 %v4324, 16
    %v4330 = vpop.permute.xlu0 %4329
    %4333 = vrot.lane.b32.xlu0 %v4323, 32
    %v4334 = vpop.permute.xlu0 %4333
    %4335 = vrot.lane.b32.xlu0 %v4324, 32
    %v4336 = vpop.permute.xlu0 %4335
    %4339 = vrot.lane.b32.xlu0 %v4323, 48
    %v4340 = vpop.permute.xlu0 %4339
    %4341 = vrot.lane.b32.xlu0 %v4324, 48
    %v4342 = vpop.permute.xlu0 %4341
    %4345 = vrot.lane.b32.xlu0 %v4323, 64
    %v4346 = vpop.permute.xlu0 %4345
    %4347 = vrot.lane.b32.xlu0 %v4324, 64
    %v4348 = vpop.permute.xlu0 %4347
    %4351 = vrot.lane.b32.xlu0 %v4323, 80
    %v4352 = vpop.permute.xlu0 %4351
    %4353 = vrot.lane.b32.xlu0 %v4324, 80
    %v4354 = vpop.permute.xlu0 %4353
    %4357 = vrot.lane.b32.xlu0 %v4323, 96
    %v4358 = vpop.permute.xlu0 %4357
    %4359 = vrot.lane.b32.xlu0 %v4324, 96
    %v4360 = vpop.permute.xlu0 %4359
    %4363 = vrot.lane.b32.xlu0 %v4323, 112
    %v4364 = vpop.permute.xlu0 %4363
    %4365 = vrot.lane.b32.xlu0 %v4324, 112
    %v4366 = vpop.permute.xlu0 %4365
    %v4369 = vsel %vm780, %v4323, %v4328
    %v4370 = vsel %vm780, %v4324, %v4330
    %v4371 = vsel %vm126, %v4369, %v4334
    %v4372 = vsel %vm126, %v4370, %v4336
    %v4373 = vsel %vm956, %v4371, %v4340
    %v4374 = vsel %vm956, %v4372, %v4342
    %v4375 = vsel %vm131, %v4373, %v4346
    %v4376 = vsel %vm131, %v4374, %v4348
    %v4377 = vsel %vm961, %v4375, %v4352
    %v4378 = vsel %vm961, %v4376, %v4354
    %v4379 = vsel %vm136, %v4377, %v4358
    %v4380 = vsel %vm136, %v4378, %v4360
    %v4381 = vsel %vm966, %v4379, %v4364
    %v4382 = vsel %vm966, %v4380, %v4366
    %v4383 = vmul.f32 %v4381, %v972
    %v4384 = vmul.f32 %v4382, %v972
    %v4385 = vadd.f32 %v4383, 0.0
    %v4386 = vadd.f32 %v4384, 0.0
    %4387 = vrot.lane.b32.xlu0 %v4323, 127
    %v4388 = vpop.permute.xlu0 %4387
    %4389 = vrot.lane.b32.xlu0 %v4324, 127
    %v4390 = vpop.permute.xlu0 %4389
    %4393 = vrot.lane.b32.xlu0 %v4323, 15
    %v4394 = vpop.permute.xlu0 %4393
    %4395 = vrot.lane.b32.xlu0 %v4324, 15
    %v4396 = vpop.permute.xlu0 %4395
    %4399 = vrot.lane.b32.xlu0 %v4323, 31
    %v4400 = vpop.permute.xlu0 %4399
    %4401 = vrot.lane.b32.xlu0 %v4324, 31
    %v4402 = vpop.permute.xlu0 %4401
    %4405 = vrot.lane.b32.xlu0 %v4323, 47
    %v4406 = vpop.permute.xlu0 %4405
    %4407 = vrot.lane.b32.xlu0 %v4324, 47
    %v4408 = vpop.permute.xlu0 %4407
    %4411 = vrot.lane.b32.xlu0 %v4323, 63
    %v4412 = vpop.permute.xlu0 %4411
    %4413 = vrot.lane.b32.xlu0 %v4324, 63
    %v4414 = vpop.permute.xlu0 %4413
    %4417 = vrot.lane.b32.xlu0 %v4323, 79
    %v4418 = vpop.permute.xlu0 %4417
    %4419 = vrot.lane.b32.xlu0 %v4324, 79
    %v4420 = vpop.permute.xlu0 %4419
    %4423 = vrot.lane.b32.xlu0 %v4323, 95
    %v4424 = vpop.permute.xlu0 %4423
    %4425 = vrot.lane.b32.xlu0 %v4324, 95
    %v4426 = vpop.permute.xlu0 %4425
    %4429 = vrot.lane.b32.xlu0 %v4323, 111
    %v4430 = vpop.permute.xlu0 %4429
    %4431 = vrot.lane.b32.xlu0 %v4324, 111
    %v4432 = vpop.permute.xlu0 %4431
    %v4435 = vsel %vm780, %v4388, %v4394
    %v4436 = vsel %vm780, %v4390, %v4396
    %v4437 = vsel %vm126, %v4435, %v4400
    %v4438 = vsel %vm126, %v4436, %v4402
    %v4439 = vsel %vm956, %v4437, %v4406
    %v4440 = vsel %vm956, %v4438, %v4408
    %v4441 = vsel %vm131, %v4439, %v4412
    %v4442 = vsel %vm131, %v4440, %v4414
    %v4443 = vsel %vm961, %v4441, %v4418
    %v4444 = vsel %vm961, %v4442, %v4420
    %v4445 = vsel %vm136, %v4443, %v4424
    %v4446 = vsel %vm136, %v4444, %v4426
    %v4447 = vsel %vm966, %v4445, %v4430
    %v4448 = vsel %vm966, %v4446, %v4432
    %v4449 = vmul.f32 %v4447, %v1042
    %v4450 = vmul.f32 %v4448, %v1042
    %v4451 = vadd.f32 %v4385, %v4449
    %v4452 = vadd.f32 %v4386, %v4450
    %4453 = vrot.lane.b32.xlu0 %v4323, 126
    %v4454 = vpop.permute.xlu0 %4453
    %4455 = vrot.lane.b32.xlu0 %v4324, 126
    %v4456 = vpop.permute.xlu0 %4455
    %4459 = vrot.lane.b32.xlu0 %v4323, 14
    %v4460 = vpop.permute.xlu0 %4459
    %4461 = vrot.lane.b32.xlu0 %v4324, 14
    %v4462 = vpop.permute.xlu0 %4461
    %4465 = vrot.lane.b32.xlu0 %v4323, 30
    %v4466 = vpop.permute.xlu0 %4465
    %4467 = vrot.lane.b32.xlu0 %v4324, 30
    %v4468 = vpop.permute.xlu0 %4467
    %4471 = vrot.lane.b32.xlu0 %v4323, 46
    %v4472 = vpop.permute.xlu0 %4471
    %4473 = vrot.lane.b32.xlu0 %v4324, 46
    %v4474 = vpop.permute.xlu0 %4473
    %4477 = vrot.lane.b32.xlu0 %v4323, 62
    %v4478 = vpop.permute.xlu0 %4477
    %4479 = vrot.lane.b32.xlu0 %v4324, 62
    %v4480 = vpop.permute.xlu0 %4479
    %4483 = vrot.lane.b32.xlu0 %v4323, 78
    %v4484 = vpop.permute.xlu0 %4483
    %4485 = vrot.lane.b32.xlu0 %v4324, 78
    %v4486 = vpop.permute.xlu0 %4485
    %4489 = vrot.lane.b32.xlu0 %v4323, 94
    %v4490 = vpop.permute.xlu0 %4489
    %4491 = vrot.lane.b32.xlu0 %v4324, 94
    %v4492 = vpop.permute.xlu0 %4491
    %4495 = vrot.lane.b32.xlu0 %v4323, 110
    %v4496 = vpop.permute.xlu0 %4495
    %4497 = vrot.lane.b32.xlu0 %v4324, 110
    %v4498 = vpop.permute.xlu0 %4497
    %v4501 = vsel %vm780, %v4454, %v4460
    %v4502 = vsel %vm780, %v4456, %v4462
    %v4503 = vsel %vm126, %v4501, %v4466
    %v4504 = vsel %vm126, %v4502, %v4468
    %v4505 = vsel %vm956, %v4503, %v4472
    %v4506 = vsel %vm956, %v4504, %v4474
    %v4507 = vsel %vm131, %v4505, %v4478
    %v4508 = vsel %vm131, %v4506, %v4480
    %v4509 = vsel %vm961, %v4507, %v4484
    %v4510 = vsel %vm961, %v4508, %v4486
    %v4511 = vsel %vm136, %v4509, %v4490
    %v4512 = vsel %vm136, %v4510, %v4492
    %v4513 = vsel %vm966, %v4511, %v4496
    %v4514 = vsel %vm966, %v4512, %v4498
    %v4515 = vmul.f32 %v4513, %v1112
    %v4516 = vmul.f32 %v4514, %v1112
    %v4517 = vadd.f32 %v4451, %v4515
    %v4518 = vadd.f32 %v4452, %v4516
    %v4519 = vld [vmem:[#allocation3 + $0x1] sm:$0xff]
    %v4520 = vld [vmem:[#allocation3 + $0x9] sm:$0xff]
    %4523 = vrot.lane.b32.xlu0 %v4519, 16
    %v4524 = vpop.permute.xlu0 %4523
    %4525 = vrot.lane.b32.xlu0 %v4520, 16
    %v4526 = vpop.permute.xlu0 %4525
    %4529 = vrot.lane.b32.xlu0 %v4519, 32
    %v4530 = vpop.permute.xlu0 %4529
    %4531 = vrot.lane.b32.xlu0 %v4520, 32
    %v4532 = vpop.permute.xlu0 %4531
    %4535 = vrot.lane.b32.xlu0 %v4519, 48
    %v4536 = vpop.permute.xlu0 %4535
    %4537 = vrot.lane.b32.xlu0 %v4520, 48
    %v4538 = vpop.permute.xlu0 %4537
    %4541 = vrot.lane.b32.xlu0 %v4519, 64
    %v4542 = vpop.permute.xlu0 %4541
    %4543 = vrot.lane.b32.xlu0 %v4520, 64
    %v4544 = vpop.permute.xlu0 %4543
    %4547 = vrot.lane.b32.xlu0 %v4519, 80
    %v4548 = vpop.permute.xlu0 %4547
    %4549 = vrot.lane.b32.xlu0 %v4520, 80
    %v4550 = vpop.permute.xlu0 %4549
    %4553 = vrot.lane.b32.xlu0 %v4519, 96
    %v4554 = vpop.permute.xlu0 %4553
    %4555 = vrot.lane.b32.xlu0 %v4520, 96
    %v4556 = vpop.permute.xlu0 %4555
    %4559 = vrot.lane.b32.xlu0 %v4519, 112
    %v4560 = vpop.permute.xlu0 %4559
    %4561 = vrot.lane.b32.xlu0 %v4520, 112
    %v4562 = vpop.permute.xlu0 %4561
    %v4565 = vsel %vm780, %v4519, %v4524
    %v4566 = vsel %vm780, %v4520, %v4526
    %v4567 = vsel %vm126, %v4565, %v4530
    %v4568 = vsel %vm126, %v4566, %v4532
    %v4569 = vsel %vm956, %v4567, %v4536
    %v4570 = vsel %vm956, %v4568, %v4538
    %v4571 = vsel %vm131, %v4569, %v4542
    %v4572 = vsel %vm131, %v4570, %v4544
    %v4573 = vsel %vm961, %v4571, %v4548
    %v4574 = vsel %vm961, %v4572, %v4550
    %v4575 = vsel %vm136, %v4573, %v4554
    %v4576 = vsel %vm136, %v4574, %v4556
    %v4577 = vsel %vm966, %v4575, %v4560
    %v4578 = vsel %vm966, %v4576, %v4562
    %v4579 = vmul.f32 %v4577, %v1180
    %v4580 = vmul.f32 %v4578, %v1180
    %v4581 = vadd.f32 %v4517, %v4579
    %v4582 = vadd.f32 %v4518, %v4580
    %4583 = vrot.lane.b32.xlu0 %v4519, 127
    %v4584 = vpop.permute.xlu0 %4583
    %4585 = vrot.lane.b32.xlu0 %v4520, 127
    %v4586 = vpop.permute.xlu0 %4585
    %4589 = vrot.lane.b32.xlu0 %v4519, 15
    %v4590 = vpop.permute.xlu0 %4589
    %4591 = vrot.lane.b32.xlu0 %v4520, 15
    %v4592 = vpop.permute.xlu0 %4591
    %4595 = vrot.lane.b32.xlu0 %v4519, 31
    %v4596 = vpop.permute.xlu0 %4595
    %4597 = vrot.lane.b32.xlu0 %v4520, 31
    %v4598 = vpop.permute.xlu0 %4597
    %4601 = vrot.lane.b32.xlu0 %v4519, 47
    %v4602 = vpop.permute.xlu0 %4601
    %4603 = vrot.lane.b32.xlu0 %v4520, 47
    %v4604 = vpop.permute.xlu0 %4603
    %4607 = vrot.lane.b32.xlu0 %v4519, 63
    %v4608 = vpop.permute.xlu0 %4607
    %4609 = vrot.lane.b32.xlu0 %v4520, 63
    %v4610 = vpop.permute.xlu0 %4609
    %4613 = vrot.lane.b32.xlu0 %v4519, 79
    %v4614 = vpop.permute.xlu0 %4613
    %4615 = vrot.lane.b32.xlu0 %v4520, 79
    %v4616 = vpop.permute.xlu0 %4615
    %4619 = vrot.lane.b32.xlu0 %v4519, 95
    %v4620 = vpop.permute.xlu0 %4619
    %4621 = vrot.lane.b32.xlu0 %v4520, 95
    %v4622 = vpop.permute.xlu0 %4621
    %4625 = vrot.lane.b32.xlu0 %v4519, 111
    %v4626 = vpop.permute.xlu0 %4625
    %4627 = vrot.lane.b32.xlu0 %v4520, 111
    %v4628 = vpop.permute.xlu0 %4627
    %v4631 = vsel %vm780, %v4584, %v4590
    %v4632 = vsel %vm780, %v4586, %v4592
    %v4633 = vsel %vm126, %v4631, %v4596
    %v4634 = vsel %vm126, %v4632, %v4598
    %v4635 = vsel %vm956, %v4633, %v4602
    %v4636 = vsel %vm956, %v4634, %v4604
    %v4637 = vsel %vm131, %v4635, %v4608
    %v4638 = vsel %vm131, %v4636, %v4610
    %v4639 = vsel %vm961, %v4637, %v4614
    %v4640 = vsel %vm961, %v4638, %v4616
    %v4641 = vsel %vm136, %v4639, %v4620
    %v4642 = vsel %vm136, %v4640, %v4622
    %v4643 = vsel %vm966, %v4641, %v4626
    %v4644 = vsel %vm966, %v4642, %v4628
    %v4645 = vmul.f32 %v4643, %v1250
    %v4646 = vmul.f32 %v4644, %v1250
    %v4647 = vadd.f32 %v4581, %v4645
    %v4648 = vadd.f32 %v4582, %v4646
    %4649 = vrot.lane.b32.xlu0 %v4519, 126
    %v4650 = vpop.permute.xlu0 %4649
    %4651 = vrot.lane.b32.xlu0 %v4520, 126
    %v4652 = vpop.permute.xlu0 %4651
    %4655 = vrot.lane.b32.xlu0 %v4519, 14
    %v4656 = vpop.permute.xlu0 %4655
    %4657 = vrot.lane.b32.xlu0 %v4520, 14
    %v4658 = vpop.permute.xlu0 %4657
    %4661 = vrot.lane.b32.xlu0 %v4519, 30
    %v4662 = vpop.permute.xlu0 %4661
    %4663 = vrot.lane.b32.xlu0 %v4520, 30
    %v4664 = vpop.permute.xlu0 %4663
    %4667 = vrot.lane.b32.xlu0 %v4519, 46
    %v4668 = vpop.permute.xlu0 %4667
    %4669 = vrot.lane.b32.xlu0 %v4520, 46
    %v4670 = vpop.permute.xlu0 %4669
    %4673 = vrot.lane.b32.xlu0 %v4519, 62
    %v4674 = vpop.permute.xlu0 %4673
    %4675 = vrot.lane.b32.xlu0 %v4520, 62
    %v4676 = vpop.permute.xlu0 %4675
    %4679 = vrot.lane.b32.xlu0 %v4519, 78
    %v4680 = vpop.permute.xlu0 %4679
    %4681 = vrot.lane.b32.xlu0 %v4520, 78
    %v4682 = vpop.permute.xlu0 %4681
    %4685 = vrot.lane.b32.xlu0 %v4519, 94
    %v4686 = vpop.permute.xlu0 %4685
    %4687 = vrot.lane.b32.xlu0 %v4520, 94
    %v4688 = vpop.permute.xlu0 %4687
    %4691 = vrot.lane.b32.xlu0 %v4519, 110
    %v4692 = vpop.permute.xlu0 %4691
    %4693 = vrot.lane.b32.xlu0 %v4520, 110
    %v4694 = vpop.permute.xlu0 %4693
    %v4697 = vsel %vm780, %v4650, %v4656
    %v4698 = vsel %vm780, %v4652, %v4658
    %v4699 = vsel %vm126, %v4697, %v4662
    %v4700 = vsel %vm126, %v4698, %v4664
    %v4701 = vsel %vm956, %v4699, %v4668
    %v4702 = vsel %vm956, %v4700, %v4670
    %v4703 = vsel %vm131, %v4701, %v4674
    %v4704 = vsel %vm131, %v4702, %v4676
    %v4705 = vsel %vm961, %v4703, %v4680
    %v4706 = vsel %vm961, %v4704, %v4682
    %v4707 = vsel %vm136, %v4705, %v4686
    %v4708 = vsel %vm136, %v4706, %v4688
    %v4709 = vsel %vm966, %v4707, %v4692
    %v4710 = vsel %vm966, %v4708, %v4694
    %v4711 = vmul.f32 %v4709, %v1320
    %v4712 = vmul.f32 %v4710, %v1320
    %v4713 = vadd.f32 %v4647, %v4711
    %v4714 = vadd.f32 %v4648, %v4712
    %v4715 = vld [vmem:[#allocation3 + $0x2] sm:$0xff]
    %v4716 = vld [vmem:[#allocation3 + $0xa] sm:$0xff]
    %4719 = vrot.lane.b32.xlu0 %v4715, 16
    %v4720 = vpop.permute.xlu0 %4719
    %4721 = vrot.lane.b32.xlu0 %v4716, 16
    %v4722 = vpop.permute.xlu0 %4721
    %4725 = vrot.lane.b32.xlu0 %v4715, 32
    %v4726 = vpop.permute.xlu0 %4725
    %4727 = vrot.lane.b32.xlu0 %v4716, 32
    %v4728 = vpop.permute.xlu0 %4727
    %4731 = vrot.lane.b32.xlu0 %v4715, 48
    %v4732 = vpop.permute.xlu0 %4731
    %4733 = vrot.lane.b32.xlu0 %v4716, 48
    %v4734 = vpop.permute.xlu0 %4733
    %4737 = vrot.lane.b32.xlu0 %v4715, 64
    %v4738 = vpop.permute.xlu0 %4737
    %4739 = vrot.lane.b32.xlu0 %v4716, 64
    %v4740 = vpop.permute.xlu0 %4739
    %4743 = vrot.lane.b32.xlu0 %v4715, 80
    %v4744 = vpop.permute.xlu0 %4743
    %4745 = vrot.lane.b32.xlu0 %v4716, 80
    %v4746 = vpop.permute.xlu0 %4745
    %4749 = vrot.lane.b32.xlu0 %v4715, 96
    %v4750 = vpop.permute.xlu0 %4749
    %4751 = vrot.lane.b32.xlu0 %v4716, 96
    %v4752 = vpop.permute.xlu0 %4751
    %4755 = vrot.lane.b32.xlu0 %v4715, 112
    %v4756 = vpop.permute.xlu0 %4755
    %4757 = vrot.lane.b32.xlu0 %v4716, 112
    %v4758 = vpop.permute.xlu0 %4757
    %v4761 = vsel %vm780, %v4715, %v4720
    %v4762 = vsel %vm780, %v4716, %v4722
    %v4763 = vsel %vm126, %v4761, %v4726
    %v4764 = vsel %vm126, %v4762, %v4728
    %v4765 = vsel %vm956, %v4763, %v4732
    %v4766 = vsel %vm956, %v4764, %v4734
    %v4767 = vsel %vm131, %v4765, %v4738
    %v4768 = vsel %vm131, %v4766, %v4740
    %v4769 = vsel %vm961, %v4767, %v4744
    %v4770 = vsel %vm961, %v4768, %v4746
    %v4771 = vsel %vm136, %v4769, %v4750
    %v4772 = vsel %vm136, %v4770, %v4752
    %v4773 = vsel %vm966, %v4771, %v4756
    %v4774 = vsel %vm966, %v4772, %v4758
    %v4775 = vmul.f32 %v4773, %v1388
    %v4776 = vmul.f32 %v4774, %v1388
    %v4777 = vadd.f32 %v4713, %v4775
    %v4778 = vadd.f32 %v4714, %v4776
    %4779 = vrot.lane.b32.xlu0 %v4715, 127
    %v4780 = vpop.permute.xlu0 %4779
    %4781 = vrot.lane.b32.xlu0 %v4716, 127
    %v4782 = vpop.permute.xlu0 %4781
    %4785 = vrot.lane.b32.xlu0 %v4715, 15
    %v4786 = vpop.permute.xlu0 %4785
    %4787 = vrot.lane.b32.xlu0 %v4716, 15
    %v4788 = vpop.permute.xlu0 %4787
    %4791 = vrot.lane.b32.xlu0 %v4715, 31
    %v4792 = vpop.permute.xlu0 %4791
    %4793 = vrot.lane.b32.xlu0 %v4716, 31
    %v4794 = vpop.permute.xlu0 %4793
    %4797 = vrot.lane.b32.xlu0 %v4715, 47
    %v4798 = vpop.permute.xlu0 %4797
    %4799 = vrot.lane.b32.xlu0 %v4716, 47
    %v4800 = vpop.permute.xlu0 %4799
    %4803 = vrot.lane.b32.xlu0 %v4715, 63
    %v4804 = vpop.permute.xlu0 %4803
    %4805 = vrot.lane.b32.xlu0 %v4716, 63
    %v4806 = vpop.permute.xlu0 %4805
    %4809 = vrot.lane.b32.xlu0 %v4715, 79
    %v4810 = vpop.permute.xlu0 %4809
    %4811 = vrot.lane.b32.xlu0 %v4716, 79
    %v4812 = vpop.permute.xlu0 %4811
    %4815 = vrot.lane.b32.xlu0 %v4715, 95
    %v4816 = vpop.permute.xlu0 %4815
    %4817 = vrot.lane.b32.xlu0 %v4716, 95
    %v4818 = vpop.permute.xlu0 %4817
    %4821 = vrot.lane.b32.xlu0 %v4715, 111
    %v4822 = vpop.permute.xlu0 %4821
    %4823 = vrot.lane.b32.xlu0 %v4716, 111
    %v4824 = vpop.permute.xlu0 %4823
    %v4827 = vsel %vm780, %v4780, %v4786
    %v4828 = vsel %vm780, %v4782, %v4788
    %v4829 = vsel %vm126, %v4827, %v4792
    %v4830 = vsel %vm126, %v4828, %v4794
    %v4831 = vsel %vm956, %v4829, %v4798
    %v4832 = vsel %vm956, %v4830, %v4800
    %v4833 = vsel %vm131, %v4831, %v4804
    %v4834 = vsel %vm131, %v4832, %v4806
    %v4835 = vsel %vm961, %v4833, %v4810
    %v4836 = vsel %vm961, %v4834, %v4812
    %v4837 = vsel %vm136, %v4835, %v4816
    %v4838 = vsel %vm136, %v4836, %v4818
    %v4839 = vsel %vm966, %v4837, %v4822
    %v4840 = vsel %vm966, %v4838, %v4824
    %v4841 = vmul.f32 %v4839, %v1458
    %v4842 = vmul.f32 %v4840, %v1458
    %v4843 = vadd.f32 %v4777, %v4841
    %v4844 = vadd.f32 %v4778, %v4842
    %4845 = vrot.lane.b32.xlu0 %v4715, 126
    %v4846 = vpop.permute.xlu0 %4845
    %4847 = vrot.lane.b32.xlu0 %v4716, 126
    %v4848 = vpop.permute.xlu0 %4847
    %4851 = vrot.lane.b32.xlu0 %v4715, 14
    %v4852 = vpop.permute.xlu0 %4851
    %4853 = vrot.lane.b32.xlu0 %v4716, 14
    %v4854 = vpop.permute.xlu0 %4853
    %4857 = vrot.lane.b32.xlu0 %v4715, 30
    %v4858 = vpop.permute.xlu0 %4857
    %4859 = vrot.lane.b32.xlu0 %v4716, 30
    %v4860 = vpop.permute.xlu0 %4859
    %4863 = vrot.lane.b32.xlu0 %v4715, 46
    %v4864 = vpop.permute.xlu0 %4863
    %4865 = vrot.lane.b32.xlu0 %v4716, 46
    %v4866 = vpop.permute.xlu0 %4865
    %4869 = vrot.lane.b32.xlu0 %v4715, 62
    %v4870 = vpop.permute.xlu0 %4869
    %4871 = vrot.lane.b32.xlu0 %v4716, 62
    %v4872 = vpop.permute.xlu0 %4871
    %4875 = vrot.lane.b32.xlu0 %v4715, 78
    %v4876 = vpop.permute.xlu0 %4875
    %4877 = vrot.lane.b32.xlu0 %v4716, 78
    %v4878 = vpop.permute.xlu0 %4877
    %4881 = vrot.lane.b32.xlu0 %v4715, 94
    %v4882 = vpop.permute.xlu0 %4881
    %4883 = vrot.lane.b32.xlu0 %v4716, 94
    %v4884 = vpop.permute.xlu0 %4883
    %4887 = vrot.lane.b32.xlu0 %v4715, 110
    %v4888 = vpop.permute.xlu0 %4887
    %4889 = vrot.lane.b32.xlu0 %v4716, 110
    %v4890 = vpop.permute.xlu0 %4889
    %v4893 = vsel %vm780, %v4846, %v4852
    %v4894 = vsel %vm780, %v4848, %v4854
    %v4895 = vsel %vm126, %v4893, %v4858
    %v4896 = vsel %vm126, %v4894, %v4860
    %v4897 = vsel %vm956, %v4895, %v4864
    %v4898 = vsel %vm956, %v4896, %v4866
    %v4899 = vsel %vm131, %v4897, %v4870
    %v4900 = vsel %vm131, %v4898, %v4872
    %v4901 = vsel %vm961, %v4899, %v4876
    %v4902 = vsel %vm961, %v4900, %v4878
    %v4903 = vsel %vm136, %v4901, %v4882
    %v4904 = vsel %vm136, %v4902, %v4884
    %v4905 = vsel %vm966, %v4903, %v4888
    %v4906 = vsel %vm966, %v4904, %v4890
    %v4907 = vmul.f32 %v4905, %v1528
    %v4908 = vmul.f32 %v4906, %v1528
    %v4909 = vadd.f32 %v4843, %v4907
    %v4910 = vadd.f32 %v4844, %v4908
    %v4911 = vld [vmem:[%s885] sm:$0xff]
    %v4912 = vld [vmem:[%s885 + $0x8] sm:$0xff]
    %4915 = vrot.lane.b32.xlu0 %v4911, 16
    %v4916 = vpop.permute.xlu0 %4915
    %4917 = vrot.lane.b32.xlu0 %v4912, 16
    %v4918 = vpop.permute.xlu0 %4917
    %4921 = vrot.lane.b32.xlu0 %v4911, 32
    %v4922 = vpop.permute.xlu0 %4921
    %4923 = vrot.lane.b32.xlu0 %v4912, 32
    %v4924 = vpop.permute.xlu0 %4923
    %4927 = vrot.lane.b32.xlu0 %v4911, 48
    %v4928 = vpop.permute.xlu0 %4927
    %4929 = vrot.lane.b32.xlu0 %v4912, 48
    %v4930 = vpop.permute.xlu0 %4929
    %4933 = vrot.lane.b32.xlu0 %v4911, 64
    %v4934 = vpop.permute.xlu0 %4933
    %4935 = vrot.lane.b32.xlu0 %v4912, 64
    %v4936 = vpop.permute.xlu0 %4935
    %4939 = vrot.lane.b32.xlu0 %v4911, 80
    %v4940 = vpop.permute.xlu0 %4939
    %4941 = vrot.lane.b32.xlu0 %v4912, 80
    %v4942 = vpop.permute.xlu0 %4941
    %4945 = vrot.lane.b32.xlu0 %v4911, 96
    %v4946 = vpop.permute.xlu0 %4945
    %4947 = vrot.lane.b32.xlu0 %v4912, 96
    %v4948 = vpop.permute.xlu0 %4947
    %4951 = vrot.lane.b32.xlu0 %v4911, 112
    %v4952 = vpop.permute.xlu0 %4951
    %4953 = vrot.lane.b32.xlu0 %v4912, 112
    %v4954 = vpop.permute.xlu0 %4953
    %v4957 = vsel %vm780, %v4911, %v4916
    %v4958 = vsel %vm780, %v4912, %v4918
    %v4959 = vsel %vm126, %v4957, %v4922
    %v4960 = vsel %vm126, %v4958, %v4924
    %v4961 = vsel %vm956, %v4959, %v4928
    %v4962 = vsel %vm956, %v4960, %v4930
    %v4963 = vsel %vm131, %v4961, %v4934
    %v4964 = vsel %vm131, %v4962, %v4936
    %v4965 = vsel %vm961, %v4963, %v4940
    %v4966 = vsel %vm961, %v4964, %v4942
    %v4967 = vsel %vm136, %v4965, %v4946
    %v4968 = vsel %vm136, %v4966, %v4948
    %v4969 = vsel %vm966, %v4967, %v4952
    %v4970 = vsel %vm966, %v4968, %v4954
    %v4971 = vmul.f32 %v4969, %v1596
    %v4972 = vmul.f32 %v4970, %v1596
    %v4973 = vadd.f32 %v4909, %v4971
    %v4974 = vadd.f32 %v4910, %v4972
    %4975 = vrot.lane.b32.xlu0 %v4911, 127
    %v4976 = vpop.permute.xlu0 %4975
    %4977 = vrot.lane.b32.xlu0 %v4912, 127
    %v4978 = vpop.permute.xlu0 %4977
    %4981 = vrot.lane.b32.xlu0 %v4911, 15
    %v4982 = vpop.permute.xlu0 %4981
    %4983 = vrot.lane.b32.xlu0 %v4912, 15
    %v4984 = vpop.permute.xlu0 %4983
    %4987 = vrot.lane.b32.xlu0 %v4911, 31
    %v4988 = vpop.permute.xlu0 %4987
    %4989 = vrot.lane.b32.xlu0 %v4912, 31
    %v4990 = vpop.permute.xlu0 %4989
    %4993 = vrot.lane.b32.xlu0 %v4911, 47
    %v4994 = vpop.permute.xlu0 %4993
    %4995 = vrot.lane.b32.xlu0 %v4912, 47
    %v4996 = vpop.permute.xlu0 %4995
    %4999 = vrot.lane.b32.xlu0 %v4911, 63
    %v5000 = vpop.permute.xlu0 %4999
    %5001 = vrot.lane.b32.xlu0 %v4912, 63
    %v5002 = vpop.permute.xlu0 %5001
    %5005 = vrot.lane.b32.xlu0 %v4911, 79
    %v5006 = vpop.permute.xlu0 %5005
    %5007 = vrot.lane.b32.xlu0 %v4912, 79
    %v5008 = vpop.permute.xlu0 %5007
    %5011 = vrot.lane.b32.xlu0 %v4911, 95
    %v5012 = vpop.permute.xlu0 %5011
    %5013 = vrot.lane.b32.xlu0 %v4912, 95
    %v5014 = vpop.permute.xlu0 %5013
    %5017 = vrot.lane.b32.xlu0 %v4911, 111
    %v5018 = vpop.permute.xlu0 %5017
    %5019 = vrot.lane.b32.xlu0 %v4912, 111
    %v5020 = vpop.permute.xlu0 %5019
    %v5023 = vsel %vm780, %v4976, %v4982
    %v5024 = vsel %vm780, %v4978, %v4984
    %v5025 = vsel %vm126, %v5023, %v4988
    %v5026 = vsel %vm126, %v5024, %v4990
    %v5027 = vsel %vm956, %v5025, %v4994
    %v5028 = vsel %vm956, %v5026, %v4996
    %v5029 = vsel %vm131, %v5027, %v5000
    %v5030 = vsel %vm131, %v5028, %v5002
    %v5031 = vsel %vm961, %v5029, %v5006
    %v5032 = vsel %vm961, %v5030, %v5008
    %v5033 = vsel %vm136, %v5031, %v5012
    %v5034 = vsel %vm136, %v5032, %v5014
    %v5035 = vsel %vm966, %v5033, %v5018
    %v5036 = vsel %vm966, %v5034, %v5020
    %v5037 = vmul.f32 %v5035, %v1666
    %v5038 = vmul.f32 %v5036, %v1666
    %v5039 = vadd.f32 %v4973, %v5037
    %v5040 = vadd.f32 %v4974, %v5038
    %5041 = vrot.lane.b32.xlu0 %v4911, 126
    %v5042 = vpop.permute.xlu0 %5041
    %5043 = vrot.lane.b32.xlu0 %v4912, 126
    %v5044 = vpop.permute.xlu0 %5043
    %5047 = vrot.lane.b32.xlu0 %v4911, 14
    %v5048 = vpop.permute.xlu0 %5047
    %5049 = vrot.lane.b32.xlu0 %v4912, 14
    %v5050 = vpop.permute.xlu0 %5049
    %5053 = vrot.lane.b32.xlu0 %v4911, 30
    %v5054 = vpop.permute.xlu0 %5053
    %5055 = vrot.lane.b32.xlu0 %v4912, 30
    %v5056 = vpop.permute.xlu0 %5055
    %5059 = vrot.lane.b32.xlu0 %v4911, 46
    %v5060 = vpop.permute.xlu0 %5059
    %5061 = vrot.lane.b32.xlu0 %v4912, 46
    %v5062 = vpop.permute.xlu0 %5061
    %5065 = vrot.lane.b32.xlu0 %v4911, 62
    %v5066 = vpop.permute.xlu0 %5065
    %5067 = vrot.lane.b32.xlu0 %v4912, 62
    %v5068 = vpop.permute.xlu0 %5067
    %5071 = vrot.lane.b32.xlu0 %v4911, 78
    %v5072 = vpop.permute.xlu0 %5071
    %5073 = vrot.lane.b32.xlu0 %v4912, 78
    %v5074 = vpop.permute.xlu0 %5073
    %5077 = vrot.lane.b32.xlu0 %v4911, 94
    %v5078 = vpop.permute.xlu0 %5077
    %5079 = vrot.lane.b32.xlu0 %v4912, 94
    %v5080 = vpop.permute.xlu0 %5079
    %5083 = vrot.lane.b32.xlu0 %v4911, 110
    %v5084 = vpop.permute.xlu0 %5083
    %5085 = vrot.lane.b32.xlu0 %v4912, 110
    %v5086 = vpop.permute.xlu0 %5085
    %v5089 = vsel %vm780, %v5042, %v5048
    %v5090 = vsel %vm780, %v5044, %v5050
    %v5091 = vsel %vm126, %v5089, %v5054
    %v5092 = vsel %vm126, %v5090, %v5056
    %v5093 = vsel %vm956, %v5091, %v5060
    %v5094 = vsel %vm956, %v5092, %v5062
    %v5095 = vsel %vm131, %v5093, %v5066
    %v5096 = vsel %vm131, %v5094, %v5068
    %v5097 = vsel %vm961, %v5095, %v5072
    %v5098 = vsel %vm961, %v5096, %v5074
    %v5099 = vsel %vm136, %v5097, %v5078
    %v5100 = vsel %vm136, %v5098, %v5080
    %v5101 = vsel %vm966, %v5099, %v5084
    %v5102 = vsel %vm966, %v5100, %v5086
    %v5103 = vmul.f32 %v5101, %v1736
    %v5104 = vmul.f32 %v5102, %v1736
    %v5105 = vadd.f32 %v5039, %v5103
    %v5106 = vadd.f32 %v5040, %v5104
    %v5107 = vld [vmem:[%s885 + $0x1] sm:$0xff]
    %v5108 = vld [vmem:[%s885 + $0x9] sm:$0xff]
    %5111 = vrot.lane.b32.xlu0 %v5107, 16
    %v5112 = vpop.permute.xlu0 %5111
    %5113 = vrot.lane.b32.xlu0 %v5108, 16
    %v5114 = vpop.permute.xlu0 %5113
    %5117 = vrot.lane.b32.xlu0 %v5107, 32
    %v5118 = vpop.permute.xlu0 %5117
    %5119 = vrot.lane.b32.xlu0 %v5108, 32
    %v5120 = vpop.permute.xlu0 %5119
    %5123 = vrot.lane.b32.xlu0 %v5107, 48
    %v5124 = vpop.permute.xlu0 %5123
    %5125 = vrot.lane.b32.xlu0 %v5108, 48
    %v5126 = vpop.permute.xlu0 %5125
    %5129 = vrot.lane.b32.xlu0 %v5107, 64
    %v5130 = vpop.permute.xlu0 %5129
    %5131 = vrot.lane.b32.xlu0 %v5108, 64
    %v5132 = vpop.permute.xlu0 %5131
    %5135 = vrot.lane.b32.xlu0 %v5107, 80
    %v5136 = vpop.permute.xlu0 %5135
    %5137 = vrot.lane.b32.xlu0 %v5108, 80
    %v5138 = vpop.permute.xlu0 %5137
    %5141 = vrot.lane.b32.xlu0 %v5107, 96
    %v5142 = vpop.permute.xlu0 %5141
    %5143 = vrot.lane.b32.xlu0 %v5108, 96
    %v5144 = vpop.permute.xlu0 %5143
    %5147 = vrot.lane.b32.xlu0 %v5107, 112
    %v5148 = vpop.permute.xlu0 %5147
    %5149 = vrot.lane.b32.xlu0 %v5108, 112
    %v5150 = vpop.permute.xlu0 %5149
    %v5153 = vsel %vm780, %v5107, %v5112
    %v5154 = vsel %vm780, %v5108, %v5114
    %v5155 = vsel %vm126, %v5153, %v5118
    %v5156 = vsel %vm126, %v5154, %v5120
    %v5157 = vsel %vm956, %v5155, %v5124
    %v5158 = vsel %vm956, %v5156, %v5126
    %v5159 = vsel %vm131, %v5157, %v5130
    %v5160 = vsel %vm131, %v5158, %v5132
    %v5161 = vsel %vm961, %v5159, %v5136
    %v5162 = vsel %vm961, %v5160, %v5138
    %v5163 = vsel %vm136, %v5161, %v5142
    %v5164 = vsel %vm136, %v5162, %v5144
    %v5165 = vsel %vm966, %v5163, %v5148
    %v5166 = vsel %vm966, %v5164, %v5150
    %v5167 = vmul.f32 %v5165, %v1804
    %v5168 = vmul.f32 %v5166, %v1804
    %v5169 = vadd.f32 %v5105, %v5167
    %v5170 = vadd.f32 %v5106, %v5168
    %5171 = vrot.lane.b32.xlu0 %v5107, 127
    %v5172 = vpop.permute.xlu0 %5171
    %5173 = vrot.lane.b32.xlu0 %v5108, 127
    %v5174 = vpop.permute.xlu0 %5173
    %5177 = vrot.lane.b32.xlu0 %v5107, 15
    %v5178 = vpop.permute.xlu0 %5177
    %5179 = vrot.lane.b32.xlu0 %v5108, 15
    %v5180 = vpop.permute.xlu0 %5179
    %5183 = vrot.lane.b32.xlu0 %v5107, 31
    %v5184 = vpop.permute.xlu0 %5183
    %5185 = vrot.lane.b32.xlu0 %v5108, 31
    %v5186 = vpop.permute.xlu0 %5185
    %5189 = vrot.lane.b32.xlu0 %v5107, 47
    %v5190 = vpop.permute.xlu0 %5189
    %5191 = vrot.lane.b32.xlu0 %v5108, 47
    %v5192 = vpop.permute.xlu0 %5191
    %5195 = vrot.lane.b32.xlu0 %v5107, 63
    %v5196 = vpop.permute.xlu0 %5195
    %5197 = vrot.lane.b32.xlu0 %v5108, 63
    %v5198 = vpop.permute.xlu0 %5197
    %5201 = vrot.lane.b32.xlu0 %v5107, 79
    %v5202 = vpop.permute.xlu0 %5201
    %5203 = vrot.lane.b32.xlu0 %v5108, 79
    %v5204 = vpop.permute.xlu0 %5203
    %5207 = vrot.lane.b32.xlu0 %v5107, 95
    %v5208 = vpop.permute.xlu0 %5207
    %5209 = vrot.lane.b32.xlu0 %v5108, 95
    %v5210 = vpop.permute.xlu0 %5209
    %5213 = vrot.lane.b32.xlu0 %v5107, 111
    %v5214 = vpop.permute.xlu0 %5213
    %5215 = vrot.lane.b32.xlu0 %v5108, 111
    %v5216 = vpop.permute.xlu0 %5215
    %v5219 = vsel %vm780, %v5172, %v5178
    %v5220 = vsel %vm780, %v5174, %v5180
    %v5221 = vsel %vm126, %v5219, %v5184
    %v5222 = vsel %vm126, %v5220, %v5186
    %v5223 = vsel %vm956, %v5221, %v5190
    %v5224 = vsel %vm956, %v5222, %v5192
    %v5225 = vsel %vm131, %v5223, %v5196
    %v5226 = vsel %vm131, %v5224, %v5198
    %v5227 = vsel %vm961, %v5225, %v5202
    %v5228 = vsel %vm961, %v5226, %v5204
    %v5229 = vsel %vm136, %v5227, %v5208
    %v5230 = vsel %vm136, %v5228, %v5210
    %v5231 = vsel %vm966, %v5229, %v5214
    %v5232 = vsel %vm966, %v5230, %v5216
    %v5233 = vmul.f32 %v5231, %v1874
    %v5234 = vmul.f32 %v5232, %v1874
    %v5235 = vadd.f32 %v5169, %v5233
    %v5236 = vadd.f32 %v5170, %v5234
    %5237 = vrot.lane.b32.xlu0 %v5107, 126
    %v5238 = vpop.permute.xlu0 %5237
    %5239 = vrot.lane.b32.xlu0 %v5108, 126
    %v5240 = vpop.permute.xlu0 %5239
    %5243 = vrot.lane.b32.xlu0 %v5107, 14
    %v5244 = vpop.permute.xlu0 %5243
    %5245 = vrot.lane.b32.xlu0 %v5108, 14
    %v5246 = vpop.permute.xlu0 %5245
    %5249 = vrot.lane.b32.xlu0 %v5107, 30
    %v5250 = vpop.permute.xlu0 %5249
    %5251 = vrot.lane.b32.xlu0 %v5108, 30
    %v5252 = vpop.permute.xlu0 %5251
    %5255 = vrot.lane.b32.xlu0 %v5107, 46
    %v5256 = vpop.permute.xlu0 %5255
    %5257 = vrot.lane.b32.xlu0 %v5108, 46
    %v5258 = vpop.permute.xlu0 %5257
    %5261 = vrot.lane.b32.xlu0 %v5107, 62
    %v5262 = vpop.permute.xlu0 %5261
    %5263 = vrot.lane.b32.xlu0 %v5108, 62
    %v5264 = vpop.permute.xlu0 %5263
    %5267 = vrot.lane.b32.xlu0 %v5107, 78
    %v5268 = vpop.permute.xlu0 %5267
    %5269 = vrot.lane.b32.xlu0 %v5108, 78
    %v5270 = vpop.permute.xlu0 %5269
    %5273 = vrot.lane.b32.xlu0 %v5107, 94
    %v5274 = vpop.permute.xlu0 %5273
    %5275 = vrot.lane.b32.xlu0 %v5108, 94
    %v5276 = vpop.permute.xlu0 %5275
    %5279 = vrot.lane.b32.xlu0 %v5107, 110
    %v5280 = vpop.permute.xlu0 %5279
    %5281 = vrot.lane.b32.xlu0 %v5108, 110
    %v5282 = vpop.permute.xlu0 %5281
    %v5285 = vsel %vm780, %v5238, %v5244
    %v5286 = vsel %vm780, %v5240, %v5246
    %v5287 = vsel %vm126, %v5285, %v5250
    %v5288 = vsel %vm126, %v5286, %v5252
    %v5289 = vsel %vm956, %v5287, %v5256
    %v5290 = vsel %vm956, %v5288, %v5258
    %v5291 = vsel %vm131, %v5289, %v5262
    %v5292 = vsel %vm131, %v5290, %v5264
    %v5293 = vsel %vm961, %v5291, %v5268
    %v5294 = vsel %vm961, %v5292, %v5270
    %v5295 = vsel %vm136, %v5293, %v5274
    %v5296 = vsel %vm136, %v5294, %v5276
    %v5297 = vsel %vm966, %v5295, %v5280
    %v5298 = vsel %vm966, %v5296, %v5282
    %v5299 = vmul.f32 %v5297, %v1944
    %v5300 = vmul.f32 %v5298, %v1944
    %v5301 = vadd.f32 %v5235, %v5299
    %v5302 = vadd.f32 %v5236, %v5300
    %v5303 = vld [vmem:[%s885 + $0x2] sm:$0xff]
    %v5304 = vld [vmem:[%s885 + $0xa] sm:$0xff]
    %5307 = vrot.lane.b32.xlu0 %v5303, 16
    %v5308 = vpop.permute.xlu0 %5307
    %5309 = vrot.lane.b32.xlu0 %v5304, 16
    %v5310 = vpop.permute.xlu0 %5309
    %5313 = vrot.lane.b32.xlu0 %v5303, 32
    %v5314 = vpop.permute.xlu0 %5313
    %5315 = vrot.lane.b32.xlu0 %v5304, 32
    %v5316 = vpop.permute.xlu0 %5315
    %5319 = vrot.lane.b32.xlu0 %v5303, 48
    %v5320 = vpop.permute.xlu0 %5319
    %5321 = vrot.lane.b32.xlu0 %v5304, 48
    %v5322 = vpop.permute.xlu0 %5321
    %5325 = vrot.lane.b32.xlu0 %v5303, 64
    %v5326 = vpop.permute.xlu0 %5325
    %5327 = vrot.lane.b32.xlu0 %v5304, 64
    %v5328 = vpop.permute.xlu0 %5327
    %5331 = vrot.lane.b32.xlu0 %v5303, 80
    %v5332 = vpop.permute.xlu0 %5331
    %5333 = vrot.lane.b32.xlu0 %v5304, 80
    %v5334 = vpop.permute.xlu0 %5333
    %5337 = vrot.lane.b32.xlu0 %v5303, 96
    %v5338 = vpop.permute.xlu0 %5337
    %5339 = vrot.lane.b32.xlu0 %v5304, 96
    %v5340 = vpop.permute.xlu0 %5339
    %5343 = vrot.lane.b32.xlu0 %v5303, 112
    %v5344 = vpop.permute.xlu0 %5343
    %5345 = vrot.lane.b32.xlu0 %v5304, 112
    %v5346 = vpop.permute.xlu0 %5345
    %v5349 = vsel %vm780, %v5303, %v5308
    %v5350 = vsel %vm780, %v5304, %v5310
    %v5351 = vsel %vm126, %v5349, %v5314
    %v5352 = vsel %vm126, %v5350, %v5316
    %v5353 = vsel %vm956, %v5351, %v5320
    %v5354 = vsel %vm956, %v5352, %v5322
    %v5355 = vsel %vm131, %v5353, %v5326
    %v5356 = vsel %vm131, %v5354, %v5328
    %v5357 = vsel %vm961, %v5355, %v5332
    %v5358 = vsel %vm961, %v5356, %v5334
    %v5359 = vsel %vm136, %v5357, %v5338
    %v5360 = vsel %vm136, %v5358, %v5340
    %v5361 = vsel %vm966, %v5359, %v5344
    %v5362 = vsel %vm966, %v5360, %v5346
    %v5363 = vmul.f32 %v5361, %v2012
    %v5364 = vmul.f32 %v5362, %v2012
    %v5365 = vadd.f32 %v5301, %v5363
    %v5366 = vadd.f32 %v5302, %v5364
    %5367 = vrot.lane.b32.xlu0 %v5303, 127
    %v5368 = vpop.permute.xlu0 %5367
    %5369 = vrot.lane.b32.xlu0 %v5304, 127
    %v5370 = vpop.permute.xlu0 %5369
    %5373 = vrot.lane.b32.xlu0 %v5303, 15
    %v5374 = vpop.permute.xlu0 %5373
    %5375 = vrot.lane.b32.xlu0 %v5304, 15
    %v5376 = vpop.permute.xlu0 %5375
    %5379 = vrot.lane.b32.xlu0 %v5303, 31
    %v5380 = vpop.permute.xlu0 %5379
    %5381 = vrot.lane.b32.xlu0 %v5304, 31
    %v5382 = vpop.permute.xlu0 %5381
    %5385 = vrot.lane.b32.xlu0 %v5303, 47
    %v5386 = vpop.permute.xlu0 %5385
    %5387 = vrot.lane.b32.xlu0 %v5304, 47
    %v5388 = vpop.permute.xlu0 %5387
    %5391 = vrot.lane.b32.xlu0 %v5303, 63
    %v5392 = vpop.permute.xlu0 %5391
    %5393 = vrot.lane.b32.xlu0 %v5304, 63
    %v5394 = vpop.permute.xlu0 %5393
    %5397 = vrot.lane.b32.xlu0 %v5303, 79
    %v5398 = vpop.permute.xlu0 %5397
    %5399 = vrot.lane.b32.xlu0 %v5304, 79
    %v5400 = vpop.permute.xlu0 %5399
    %5403 = vrot.lane.b32.xlu0 %v5303, 95
    %v5404 = vpop.permute.xlu0 %5403
    %5405 = vrot.lane.b32.xlu0 %v5304, 95
    %v5406 = vpop.permute.xlu0 %5405
    %5409 = vrot.lane.b32.xlu0 %v5303, 111
    %v5410 = vpop.permute.xlu0 %5409
    %5411 = vrot.lane.b32.xlu0 %v5304, 111
    %v5412 = vpop.permute.xlu0 %5411
    %v5415 = vsel %vm780, %v5368, %v5374
    %v5416 = vsel %vm780, %v5370, %v5376
    %v5417 = vsel %vm126, %v5415, %v5380
    %v5418 = vsel %vm126, %v5416, %v5382
    %v5419 = vsel %vm956, %v5417, %v5386
    %v5420 = vsel %vm956, %v5418, %v5388
    %v5421 = vsel %vm131, %v5419, %v5392
    %v5422 = vsel %vm131, %v5420, %v5394
    %v5423 = vsel %vm961, %v5421, %v5398
    %v5424 = vsel %vm961, %v5422, %v5400
    %v5425 = vsel %vm136, %v5423, %v5404
    %v5426 = vsel %vm136, %v5424, %v5406
    %v5427 = vsel %vm966, %v5425, %v5410
    %v5428 = vsel %vm966, %v5426, %v5412
    %v5429 = vmul.f32 %v5427, %v2082
    %v5430 = vmul.f32 %v5428, %v2082
    %v5431 = vadd.f32 %v5365, %v5429
    %v5432 = vadd.f32 %v5366, %v5430
    %5433 = vrot.lane.b32.xlu0 %v5303, 126
    %v5434 = vpop.permute.xlu0 %5433
    %5435 = vrot.lane.b32.xlu0 %v5304, 126
    %v5436 = vpop.permute.xlu0 %5435
    %5439 = vrot.lane.b32.xlu0 %v5303, 14
    %v5440 = vpop.permute.xlu0 %5439
    %5441 = vrot.lane.b32.xlu0 %v5304, 14
    %v5442 = vpop.permute.xlu0 %5441
    %5445 = vrot.lane.b32.xlu0 %v5303, 30
    %v5446 = vpop.permute.xlu0 %5445
    %5447 = vrot.lane.b32.xlu0 %v5304, 30
    %v5448 = vpop.permute.xlu0 %5447
    %5451 = vrot.lane.b32.xlu0 %v5303, 46
    %v5452 = vpop.permute.xlu0 %5451
    %5453 = vrot.lane.b32.xlu0 %v5304, 46
    %v5454 = vpop.permute.xlu0 %5453
    %5457 = vrot.lane.b32.xlu0 %v5303, 62
    %v5458 = vpop.permute.xlu0 %5457
    %5459 = vrot.lane.b32.xlu0 %v5304, 62
    %v5460 = vpop.permute.xlu0 %5459
    %5463 = vrot.lane.b32.xlu0 %v5303, 78
    %v5464 = vpop.permute.xlu0 %5463
    %5465 = vrot.lane.b32.xlu0 %v5304, 78
    %v5466 = vpop.permute.xlu0 %5465
    %5469 = vrot.lane.b32.xlu0 %v5303, 94
    %v5470 = vpop.permute.xlu0 %5469
    %5471 = vrot.lane.b32.xlu0 %v5304, 94
    %v5472 = vpop.permute.xlu0 %5471
    %5475 = vrot.lane.b32.xlu0 %v5303, 110
    %v5476 = vpop.permute.xlu0 %5475
    %5477 = vrot.lane.b32.xlu0 %v5304, 110
    %v5478 = vpop.permute.xlu0 %5477
    %v5481 = vsel %vm780, %v5434, %v5440
    %v5482 = vsel %vm780, %v5436, %v5442
    %v5483 = vsel %vm126, %v5481, %v5446
    %v5484 = vsel %vm126, %v5482, %v5448
    %v5485 = vsel %vm956, %v5483, %v5452
    %v5486 = vsel %vm956, %v5484, %v5454
    %v5487 = vsel %vm131, %v5485, %v5458
    %v5488 = vsel %vm131, %v5486, %v5460
    %v5489 = vsel %vm961, %v5487, %v5464
    %v5490 = vsel %vm961, %v5488, %v5466
    %v5491 = vsel %vm136, %v5489, %v5470
    %v5492 = vsel %vm136, %v5490, %v5472
    %v5493 = vsel %vm966, %v5491, %v5476
    %v5494 = vsel %vm966, %v5492, %v5478
    %v5495 = vmul.f32 %v5493, %v2152
    %v5496 = vmul.f32 %v5494, %v2152
    %v5497 = vadd.f32 %v5431, %v5495
    %v5498 = vadd.f32 %v5432, %v5496
    %v5499 = vld [vmem:[%s894] sm:$0xff]
    %v5500 = vld [vmem:[%s894 + $0x8] sm:$0xff]
    %5503 = vrot.lane.b32.xlu0 %v5499, 16
    %v5504 = vpop.permute.xlu0 %5503
    %5505 = vrot.lane.b32.xlu0 %v5500, 16
    %v5506 = vpop.permute.xlu0 %5505
    %5509 = vrot.lane.b32.xlu0 %v5499, 32
    %v5510 = vpop.permute.xlu0 %5509
    %5511 = vrot.lane.b32.xlu0 %v5500, 32
    %v5512 = vpop.permute.xlu0 %5511
    %5515 = vrot.lane.b32.xlu0 %v5499, 48
    %v5516 = vpop.permute.xlu0 %5515
    %5517 = vrot.lane.b32.xlu0 %v5500, 48
    %v5518 = vpop.permute.xlu0 %5517
    %5521 = vrot.lane.b32.xlu0 %v5499, 64
    %v5522 = vpop.permute.xlu0 %5521
    %5523 = vrot.lane.b32.xlu0 %v5500, 64
    %v5524 = vpop.permute.xlu0 %5523
    %5527 = vrot.lane.b32.xlu0 %v5499, 80
    %v5528 = vpop.permute.xlu0 %5527
    %5529 = vrot.lane.b32.xlu0 %v5500, 80
    %v5530 = vpop.permute.xlu0 %5529
    %5533 = vrot.lane.b32.xlu0 %v5499, 96
    %v5534 = vpop.permute.xlu0 %5533
    %5535 = vrot.lane.b32.xlu0 %v5500, 96
    %v5536 = vpop.permute.xlu0 %5535
    %5539 = vrot.lane.b32.xlu0 %v5499, 112
    %v5540 = vpop.permute.xlu0 %5539
    %5541 = vrot.lane.b32.xlu0 %v5500, 112
    %v5542 = vpop.permute.xlu0 %5541
    %v5545 = vsel %vm780, %v5499, %v5504
    %v5546 = vsel %vm780, %v5500, %v5506
    %v5547 = vsel %vm126, %v5545, %v5510
    %v5548 = vsel %vm126, %v5546, %v5512
    %v5549 = vsel %vm956, %v5547, %v5516
    %v5550 = vsel %vm956, %v5548, %v5518
    %v5551 = vsel %vm131, %v5549, %v5522
    %v5552 = vsel %vm131, %v5550, %v5524
    %v5553 = vsel %vm961, %v5551, %v5528
    %v5554 = vsel %vm961, %v5552, %v5530
    %v5555 = vsel %vm136, %v5553, %v5534
    %v5556 = vsel %vm136, %v5554, %v5536
    %v5557 = vsel %vm966, %v5555, %v5540
    %v5558 = vsel %vm966, %v5556, %v5542
    %v5559 = vmul.f32 %v5557, %v2220
    %v5560 = vmul.f32 %v5558, %v2220
    %v5561 = vadd.f32 %v5497, %v5559
    %v5562 = vadd.f32 %v5498, %v5560
    %5563 = vrot.lane.b32.xlu0 %v5499, 127
    %v5564 = vpop.permute.xlu0 %5563
    %5565 = vrot.lane.b32.xlu0 %v5500, 127
    %v5566 = vpop.permute.xlu0 %5565
    %5569 = vrot.lane.b32.xlu0 %v5499, 15
    %v5570 = vpop.permute.xlu0 %5569
    %5571 = vrot.lane.b32.xlu0 %v5500, 15
    %v5572 = vpop.permute.xlu0 %5571
    %5575 = vrot.lane.b32.xlu0 %v5499, 31
    %v5576 = vpop.permute.xlu0 %5575
    %5577 = vrot.lane.b32.xlu0 %v5500, 31
    %v5578 = vpop.permute.xlu0 %5577
    %5581 = vrot.lane.b32.xlu0 %v5499, 47
    %v5582 = vpop.permute.xlu0 %5581
    %5583 = vrot.lane.b32.xlu0 %v5500, 47
    %v5584 = vpop.permute.xlu0 %5583
    %5587 = vrot.lane.b32.xlu0 %v5499, 63
    %v5588 = vpop.permute.xlu0 %5587
    %5589 = vrot.lane.b32.xlu0 %v5500, 63
    %v5590 = vpop.permute.xlu0 %5589
    %5593 = vrot.lane.b32.xlu0 %v5499, 79
    %v5594 = vpop.permute.xlu0 %5593
    %5595 = vrot.lane.b32.xlu0 %v5500, 79
    %v5596 = vpop.permute.xlu0 %5595
    %5599 = vrot.lane.b32.xlu0 %v5499, 95
    %v5600 = vpop.permute.xlu0 %5599
    %5601 = vrot.lane.b32.xlu0 %v5500, 95
    %v5602 = vpop.permute.xlu0 %5601
    %5605 = vrot.lane.b32.xlu0 %v5499, 111
    %v5606 = vpop.permute.xlu0 %5605
    %5607 = vrot.lane.b32.xlu0 %v5500, 111
    %v5608 = vpop.permute.xlu0 %5607
    %v5611 = vsel %vm780, %v5564, %v5570
    %v5612 = vsel %vm780, %v5566, %v5572
    %v5613 = vsel %vm126, %v5611, %v5576
    %v5614 = vsel %vm126, %v5612, %v5578
    %v5615 = vsel %vm956, %v5613, %v5582
    %v5616 = vsel %vm956, %v5614, %v5584
    %v5617 = vsel %vm131, %v5615, %v5588
    %v5618 = vsel %vm131, %v5616, %v5590
    %v5619 = vsel %vm961, %v5617, %v5594
    %v5620 = vsel %vm961, %v5618, %v5596
    %v5621 = vsel %vm136, %v5619, %v5600
    %v5622 = vsel %vm136, %v5620, %v5602
    %v5623 = vsel %vm966, %v5621, %v5606
    %v5624 = vsel %vm966, %v5622, %v5608
    %v5625 = vmul.f32 %v5623, %v2290
    %v5626 = vmul.f32 %v5624, %v2290
    %v5627 = vadd.f32 %v5561, %v5625
    %v5628 = vadd.f32 %v5562, %v5626
    %5629 = vrot.lane.b32.xlu0 %v5499, 126
    %v5630 = vpop.permute.xlu0 %5629
    %5631 = vrot.lane.b32.xlu0 %v5500, 126
    %v5632 = vpop.permute.xlu0 %5631
    %5635 = vrot.lane.b32.xlu0 %v5499, 14
    %v5636 = vpop.permute.xlu0 %5635
    %5637 = vrot.lane.b32.xlu0 %v5500, 14
    %v5638 = vpop.permute.xlu0 %5637
    %5641 = vrot.lane.b32.xlu0 %v5499, 30
    %v5642 = vpop.permute.xlu0 %5641
    %5643 = vrot.lane.b32.xlu0 %v5500, 30
    %v5644 = vpop.permute.xlu0 %5643
    %5647 = vrot.lane.b32.xlu0 %v5499, 46
    %v5648 = vpop.permute.xlu0 %5647
    %5649 = vrot.lane.b32.xlu0 %v5500, 46
    %v5650 = vpop.permute.xlu0 %5649
    %5653 = vrot.lane.b32.xlu0 %v5499, 62
    %v5654 = vpop.permute.xlu0 %5653
    %5655 = vrot.lane.b32.xlu0 %v5500, 62
    %v5656 = vpop.permute.xlu0 %5655
    %5659 = vrot.lane.b32.xlu0 %v5499, 78
    %v5660 = vpop.permute.xlu0 %5659
    %5661 = vrot.lane.b32.xlu0 %v5500, 78
    %v5662 = vpop.permute.xlu0 %5661
    %5665 = vrot.lane.b32.xlu0 %v5499, 94
    %v5666 = vpop.permute.xlu0 %5665
    %5667 = vrot.lane.b32.xlu0 %v5500, 94
    %v5668 = vpop.permute.xlu0 %5667
    %5671 = vrot.lane.b32.xlu0 %v5499, 110
    %v5672 = vpop.permute.xlu0 %5671
    %5673 = vrot.lane.b32.xlu0 %v5500, 110
    %v5674 = vpop.permute.xlu0 %5673
    %v5677 = vsel %vm780, %v5630, %v5636
    %v5678 = vsel %vm780, %v5632, %v5638
    %v5679 = vsel %vm126, %v5677, %v5642
    %v5680 = vsel %vm126, %v5678, %v5644
    %v5681 = vsel %vm956, %v5679, %v5648
    %v5682 = vsel %vm956, %v5680, %v5650
    %v5683 = vsel %vm131, %v5681, %v5654
    %v5684 = vsel %vm131, %v5682, %v5656
    %v5685 = vsel %vm961, %v5683, %v5660
    %v5686 = vsel %vm961, %v5684, %v5662
    %v5687 = vsel %vm136, %v5685, %v5666
    %v5688 = vsel %vm136, %v5686, %v5668
    %v5689 = vsel %vm966, %v5687, %v5672
    %v5690 = vsel %vm966, %v5688, %v5674
    %v5691 = vmul.f32 %v5689, %v2360
    %v5692 = vmul.f32 %v5690, %v2360
    %v5693 = vadd.f32 %v5627, %v5691
    %v5694 = vadd.f32 %v5628, %v5692
    %v5695 = vld [vmem:[%s894 + $0x1] sm:$0xff]
    %v5696 = vld [vmem:[%s894 + $0x9] sm:$0xff]
    %5699 = vrot.lane.b32.xlu0 %v5695, 16
    %v5700 = vpop.permute.xlu0 %5699
    %5701 = vrot.lane.b32.xlu0 %v5696, 16
    %v5702 = vpop.permute.xlu0 %5701
    %5705 = vrot.lane.b32.xlu0 %v5695, 32
    %v5706 = vpop.permute.xlu0 %5705
    %5707 = vrot.lane.b32.xlu0 %v5696, 32
    %v5708 = vpop.permute.xlu0 %5707
    %5711 = vrot.lane.b32.xlu0 %v5695, 48
    %v5712 = vpop.permute.xlu0 %5711
    %5713 = vrot.lane.b32.xlu0 %v5696, 48
    %v5714 = vpop.permute.xlu0 %5713
    %5717 = vrot.lane.b32.xlu0 %v5695, 64
    %v5718 = vpop.permute.xlu0 %5717
    %5719 = vrot.lane.b32.xlu0 %v5696, 64
    %v5720 = vpop.permute.xlu0 %5719
    %5723 = vrot.lane.b32.xlu0 %v5695, 80
    %v5724 = vpop.permute.xlu0 %5723
    %5725 = vrot.lane.b32.xlu0 %v5696, 80
    %v5726 = vpop.permute.xlu0 %5725
    %5729 = vrot.lane.b32.xlu0 %v5695, 96
    %v5730 = vpop.permute.xlu0 %5729
    %5731 = vrot.lane.b32.xlu0 %v5696, 96
    %v5732 = vpop.permute.xlu0 %5731
    %5735 = vrot.lane.b32.xlu0 %v5695, 112
    %v5736 = vpop.permute.xlu0 %5735
    %5737 = vrot.lane.b32.xlu0 %v5696, 112
    %v5738 = vpop.permute.xlu0 %5737
    %v5741 = vsel %vm780, %v5695, %v5700
    %v5742 = vsel %vm780, %v5696, %v5702
    %v5743 = vsel %vm126, %v5741, %v5706
    %v5744 = vsel %vm126, %v5742, %v5708
    %v5745 = vsel %vm956, %v5743, %v5712
    %v5746 = vsel %vm956, %v5744, %v5714
    %v5747 = vsel %vm131, %v5745, %v5718
    %v5748 = vsel %vm131, %v5746, %v5720
    %v5749 = vsel %vm961, %v5747, %v5724
    %v5750 = vsel %vm961, %v5748, %v5726
    %v5751 = vsel %vm136, %v5749, %v5730
    %v5752 = vsel %vm136, %v5750, %v5732
    %v5753 = vsel %vm966, %v5751, %v5736
    %v5754 = vsel %vm966, %v5752, %v5738
    %v5755 = vmul.f32 %v5753, %v2428
    %v5756 = vmul.f32 %v5754, %v2428
    %v5757 = vadd.f32 %v5693, %v5755
    %v5758 = vadd.f32 %v5694, %v5756
    %5759 = vrot.lane.b32.xlu0 %v5695, 127
    %v5760 = vpop.permute.xlu0 %5759
    %5761 = vrot.lane.b32.xlu0 %v5696, 127
    %v5762 = vpop.permute.xlu0 %5761
    %5765 = vrot.lane.b32.xlu0 %v5695, 15
    %v5766 = vpop.permute.xlu0 %5765
    %5767 = vrot.lane.b32.xlu0 %v5696, 15
    %v5768 = vpop.permute.xlu0 %5767
    %5771 = vrot.lane.b32.xlu0 %v5695, 31
    %v5772 = vpop.permute.xlu0 %5771
    %5773 = vrot.lane.b32.xlu0 %v5696, 31
    %v5774 = vpop.permute.xlu0 %5773
    %5777 = vrot.lane.b32.xlu0 %v5695, 47
    %v5778 = vpop.permute.xlu0 %5777
    %5779 = vrot.lane.b32.xlu0 %v5696, 47
    %v5780 = vpop.permute.xlu0 %5779
    %5783 = vrot.lane.b32.xlu0 %v5695, 63
    %v5784 = vpop.permute.xlu0 %5783
    %5785 = vrot.lane.b32.xlu0 %v5696, 63
    %v5786 = vpop.permute.xlu0 %5785
    %5789 = vrot.lane.b32.xlu0 %v5695, 79
    %v5790 = vpop.permute.xlu0 %5789
    %5791 = vrot.lane.b32.xlu0 %v5696, 79
    %v5792 = vpop.permute.xlu0 %5791
    %5795 = vrot.lane.b32.xlu0 %v5695, 95
    %v5796 = vpop.permute.xlu0 %5795
    %5797 = vrot.lane.b32.xlu0 %v5696, 95
    %v5798 = vpop.permute.xlu0 %5797
    %5801 = vrot.lane.b32.xlu0 %v5695, 111
    %v5802 = vpop.permute.xlu0 %5801
    %5803 = vrot.lane.b32.xlu0 %v5696, 111
    %v5804 = vpop.permute.xlu0 %5803
    %v5807 = vsel %vm780, %v5760, %v5766
    %v5808 = vsel %vm780, %v5762, %v5768
    %v5809 = vsel %vm126, %v5807, %v5772
    %v5810 = vsel %vm126, %v5808, %v5774
    %v5811 = vsel %vm956, %v5809, %v5778
    %v5812 = vsel %vm956, %v5810, %v5780
    %v5813 = vsel %vm131, %v5811, %v5784
    %v5814 = vsel %vm131, %v5812, %v5786
    %v5815 = vsel %vm961, %v5813, %v5790
    %v5816 = vsel %vm961, %v5814, %v5792
    %v5817 = vsel %vm136, %v5815, %v5796
    %v5818 = vsel %vm136, %v5816, %v5798
    %v5819 = vsel %vm966, %v5817, %v5802
    %v5820 = vsel %vm966, %v5818, %v5804
    %v5821 = vmul.f32 %v5819, %v2498
    %v5822 = vmul.f32 %v5820, %v2498
    %v5823 = vadd.f32 %v5757, %v5821
    %v5824 = vadd.f32 %v5758, %v5822
    %5825 = vrot.lane.b32.xlu0 %v5695, 126
    %v5826 = vpop.permute.xlu0 %5825
    %5827 = vrot.lane.b32.xlu0 %v5696, 126
    %v5828 = vpop.permute.xlu0 %5827
    %5831 = vrot.lane.b32.xlu0 %v5695, 14
    %v5832 = vpop.permute.xlu0 %5831
    %5833 = vrot.lane.b32.xlu0 %v5696, 14
    %v5834 = vpop.permute.xlu0 %5833
    %5837 = vrot.lane.b32.xlu0 %v5695, 30
    %v5838 = vpop.permute.xlu0 %5837
    %5839 = vrot.lane.b32.xlu0 %v5696, 30
    %v5840 = vpop.permute.xlu0 %5839
    %5843 = vrot.lane.b32.xlu0 %v5695, 46
    %v5844 = vpop.permute.xlu0 %5843
    %5845 = vrot.lane.b32.xlu0 %v5696, 46
    %v5846 = vpop.permute.xlu0 %5845
    %5849 = vrot.lane.b32.xlu0 %v5695, 62
    %v5850 = vpop.permute.xlu0 %5849
    %5851 = vrot.lane.b32.xlu0 %v5696, 62
    %v5852 = vpop.permute.xlu0 %5851
    %5855 = vrot.lane.b32.xlu0 %v5695, 78
    %v5856 = vpop.permute.xlu0 %5855
    %5857 = vrot.lane.b32.xlu0 %v5696, 78
    %v5858 = vpop.permute.xlu0 %5857
    %5861 = vrot.lane.b32.xlu0 %v5695, 94
    %v5862 = vpop.permute.xlu0 %5861
    %5863 = vrot.lane.b32.xlu0 %v5696, 94
    %v5864 = vpop.permute.xlu0 %5863
    %5867 = vrot.lane.b32.xlu0 %v5695, 110
    %v5868 = vpop.permute.xlu0 %5867
    %5869 = vrot.lane.b32.xlu0 %v5696, 110
    %v5870 = vpop.permute.xlu0 %5869
    %v5873 = vsel %vm780, %v5826, %v5832
    %v5874 = vsel %vm780, %v5828, %v5834
    %v5875 = vsel %vm126, %v5873, %v5838
    %v5876 = vsel %vm126, %v5874, %v5840
    %v5877 = vsel %vm956, %v5875, %v5844
    %v5878 = vsel %vm956, %v5876, %v5846
    %v5879 = vsel %vm131, %v5877, %v5850
    %v5880 = vsel %vm131, %v5878, %v5852
    %v5881 = vsel %vm961, %v5879, %v5856
    %v5882 = vsel %vm961, %v5880, %v5858
    %v5883 = vsel %vm136, %v5881, %v5862
    %v5884 = vsel %vm136, %v5882, %v5864
    %v5885 = vsel %vm966, %v5883, %v5868
    %v5886 = vsel %vm966, %v5884, %v5870
    %v5887 = vmul.f32 %v5885, %v2568
    %v5888 = vmul.f32 %v5886, %v2568
    %v5889 = vadd.f32 %v5823, %v5887
    %v5890 = vadd.f32 %v5824, %v5888
    %v5891 = vld [vmem:[%s894 + $0x2] sm:$0xff]
    %v5892 = vld [vmem:[%s894 + $0xa] sm:$0xff]
    %5895 = vrot.lane.b32.xlu0 %v5891, 16
    %v5896 = vpop.permute.xlu0 %5895
    %5897 = vrot.lane.b32.xlu0 %v5892, 16
    %v5898 = vpop.permute.xlu0 %5897
    %5901 = vrot.lane.b32.xlu0 %v5891, 32
    %v5902 = vpop.permute.xlu0 %5901
    %5903 = vrot.lane.b32.xlu0 %v5892, 32
    %v5904 = vpop.permute.xlu0 %5903
    %5907 = vrot.lane.b32.xlu0 %v5891, 48
    %v5908 = vpop.permute.xlu0 %5907
    %5909 = vrot.lane.b32.xlu0 %v5892, 48
    %v5910 = vpop.permute.xlu0 %5909
    %5913 = vrot.lane.b32.xlu0 %v5891, 64
    %v5914 = vpop.permute.xlu0 %5913
    %5915 = vrot.lane.b32.xlu0 %v5892, 64
    %v5916 = vpop.permute.xlu0 %5915
    %5919 = vrot.lane.b32.xlu0 %v5891, 80
    %v5920 = vpop.permute.xlu0 %5919
    %5921 = vrot.lane.b32.xlu0 %v5892, 80
    %v5922 = vpop.permute.xlu0 %5921
    %5925 = vrot.lane.b32.xlu0 %v5891, 96
    %v5926 = vpop.permute.xlu0 %5925
    %5927 = vrot.lane.b32.xlu0 %v5892, 96
    %v5928 = vpop.permute.xlu0 %5927
    %5931 = vrot.lane.b32.xlu0 %v5891, 112
    %v5932 = vpop.permute.xlu0 %5931
    %5933 = vrot.lane.b32.xlu0 %v5892, 112
    %v5934 = vpop.permute.xlu0 %5933
    %v5937 = vsel %vm780, %v5891, %v5896
    %v5938 = vsel %vm780, %v5892, %v5898
    %v5939 = vsel %vm126, %v5937, %v5902
    %v5940 = vsel %vm126, %v5938, %v5904
    %v5941 = vsel %vm956, %v5939, %v5908
    %v5942 = vsel %vm956, %v5940, %v5910
    %v5943 = vsel %vm131, %v5941, %v5914
    %v5944 = vsel %vm131, %v5942, %v5916
    %v5945 = vsel %vm961, %v5943, %v5920
    %v5946 = vsel %vm961, %v5944, %v5922
    %v5947 = vsel %vm136, %v5945, %v5926
    %v5948 = vsel %vm136, %v5946, %v5928
    %v5949 = vsel %vm966, %v5947, %v5932
    %v5950 = vsel %vm966, %v5948, %v5934
    %v5951 = vmul.f32 %v5949, %v2636
    %v5952 = vmul.f32 %v5950, %v2636
    %v5953 = vadd.f32 %v5889, %v5951
    %v5954 = vadd.f32 %v5890, %v5952
    %5955 = vrot.lane.b32.xlu0 %v5891, 127
    %v5956 = vpop.permute.xlu0 %5955
    %5957 = vrot.lane.b32.xlu0 %v5892, 127
    %v5958 = vpop.permute.xlu0 %5957
    %5961 = vrot.lane.b32.xlu0 %v5891, 15
    %v5962 = vpop.permute.xlu0 %5961
    %5963 = vrot.lane.b32.xlu0 %v5892, 15
    %v5964 = vpop.permute.xlu0 %5963
    %5967 = vrot.lane.b32.xlu0 %v5891, 31
    %v5968 = vpop.permute.xlu0 %5967
    %5969 = vrot.lane.b32.xlu0 %v5892, 31
    %v5970 = vpop.permute.xlu0 %5969
    %5973 = vrot.lane.b32.xlu0 %v5891, 47
    %v5974 = vpop.permute.xlu0 %5973
    %5975 = vrot.lane.b32.xlu0 %v5892, 47
    %v5976 = vpop.permute.xlu0 %5975
    %5979 = vrot.lane.b32.xlu0 %v5891, 63
    %v5980 = vpop.permute.xlu0 %5979
    %5981 = vrot.lane.b32.xlu0 %v5892, 63
    %v5982 = vpop.permute.xlu0 %5981
    %5985 = vrot.lane.b32.xlu0 %v5891, 79
    %v5986 = vpop.permute.xlu0 %5985
    %5987 = vrot.lane.b32.xlu0 %v5892, 79
    %v5988 = vpop.permute.xlu0 %5987
    %5991 = vrot.lane.b32.xlu0 %v5891, 95
    %v5992 = vpop.permute.xlu0 %5991
    %5993 = vrot.lane.b32.xlu0 %v5892, 95
    %v5994 = vpop.permute.xlu0 %5993
    %5997 = vrot.lane.b32.xlu0 %v5891, 111
    %v5998 = vpop.permute.xlu0 %5997
    %5999 = vrot.lane.b32.xlu0 %v5892, 111
    %v6000 = vpop.permute.xlu0 %5999
    %v6003 = vsel %vm780, %v5956, %v5962
    %v6004 = vsel %vm780, %v5958, %v5964
    %v6005 = vsel %vm126, %v6003, %v5968
    %v6006 = vsel %vm126, %v6004, %v5970
    %v6007 = vsel %vm956, %v6005, %v5974
    %v6008 = vsel %vm956, %v6006, %v5976
    %v6009 = vsel %vm131, %v6007, %v5980
    %v6010 = vsel %vm131, %v6008, %v5982
    %v6011 = vsel %vm961, %v6009, %v5986
    %v6012 = vsel %vm961, %v6010, %v5988
    %v6013 = vsel %vm136, %v6011, %v5992
    %v6014 = vsel %vm136, %v6012, %v5994
    %v6015 = vsel %vm966, %v6013, %v5998
    %v6016 = vsel %vm966, %v6014, %v6000
    %v6017 = vmul.f32 %v6015, %v2706
    %v6018 = vmul.f32 %v6016, %v2706
    %v6019 = vadd.f32 %v5953, %v6017
    %v6020 = vadd.f32 %v5954, %v6018
    %6021 = vrot.lane.b32.xlu0 %v5891, 126
    %v6022 = vpop.permute.xlu0 %6021
    %6023 = vrot.lane.b32.xlu0 %v5892, 126
    %v6024 = vpop.permute.xlu0 %6023
    %6027 = vrot.lane.b32.xlu0 %v5891, 14
    %v6028 = vpop.permute.xlu0 %6027
    %6029 = vrot.lane.b32.xlu0 %v5892, 14
    %v6030 = vpop.permute.xlu0 %6029
    %6033 = vrot.lane.b32.xlu0 %v5891, 30
    %v6034 = vpop.permute.xlu0 %6033
    %6035 = vrot.lane.b32.xlu0 %v5892, 30
    %v6036 = vpop.permute.xlu0 %6035
    %6039 = vrot.lane.b32.xlu0 %v5891, 46
    %v6040 = vpop.permute.xlu0 %6039
    %6041 = vrot.lane.b32.xlu0 %v5892, 46
    %v6042 = vpop.permute.xlu0 %6041
    %6045 = vrot.lane.b32.xlu0 %v5891, 62
    %v6046 = vpop.permute.xlu0 %6045
    %6047 = vrot.lane.b32.xlu0 %v5892, 62
    %v6048 = vpop.permute.xlu0 %6047
    %6051 = vrot.lane.b32.xlu0 %v5891, 78
    %v6052 = vpop.permute.xlu0 %6051
    %6053 = vrot.lane.b32.xlu0 %v5892, 78
    %v6054 = vpop.permute.xlu0 %6053
    %6057 = vrot.lane.b32.xlu0 %v5891, 94
    %v6058 = vpop.permute.xlu0 %6057
    %6059 = vrot.lane.b32.xlu0 %v5892, 94
    %v6060 = vpop.permute.xlu0 %6059
    %6063 = vrot.lane.b32.xlu0 %v5891, 110
    %v6064 = vpop.permute.xlu0 %6063
    %6065 = vrot.lane.b32.xlu0 %v5892, 110
    %v6066 = vpop.permute.xlu0 %6065
    %v6069 = vsel %vm780, %v6022, %v6028
    %v6070 = vsel %vm780, %v6024, %v6030
    %v6071 = vsel %vm126, %v6069, %v6034
    %v6072 = vsel %vm126, %v6070, %v6036
    %v6073 = vsel %vm956, %v6071, %v6040
    %v6074 = vsel %vm956, %v6072, %v6042
    %v6075 = vsel %vm131, %v6073, %v6046
    %v6076 = vsel %vm131, %v6074, %v6048
    %v6077 = vsel %vm961, %v6075, %v6052
    %v6078 = vsel %vm961, %v6076, %v6054
    %v6079 = vsel %vm136, %v6077, %v6058
    %v6080 = vsel %vm136, %v6078, %v6060
    %v6081 = vsel %vm966, %v6079, %v6064
    %v6082 = vsel %vm966, %v6080, %v6066
    %v6083 = vmul.f32 %v6081, %v2776
    %v6084 = vmul.f32 %v6082, %v2776
    %v6085 = vadd.f32 %v6019, %v6083
    %v6086 = vadd.f32 %v6020, %v6084
    %v6087 = vld [vmem:[%s903] sm:$0xff]
    %v6088 = vld [vmem:[%s903 + $0x8] sm:$0xff]
    %6091 = vrot.lane.b32.xlu0 %v6087, 16
    %v6092 = vpop.permute.xlu0 %6091
    %6093 = vrot.lane.b32.xlu0 %v6088, 16
    %v6094 = vpop.permute.xlu0 %6093
    %6097 = vrot.lane.b32.xlu0 %v6087, 32
    %v6098 = vpop.permute.xlu0 %6097
    %6099 = vrot.lane.b32.xlu0 %v6088, 32
    %v6100 = vpop.permute.xlu0 %6099
    %6103 = vrot.lane.b32.xlu0 %v6087, 48
    %v6104 = vpop.permute.xlu0 %6103
    %6105 = vrot.lane.b32.xlu0 %v6088, 48
    %v6106 = vpop.permute.xlu0 %6105
    %6109 = vrot.lane.b32.xlu0 %v6087, 64
    %v6110 = vpop.permute.xlu0 %6109
    %6111 = vrot.lane.b32.xlu0 %v6088, 64
    %v6112 = vpop.permute.xlu0 %6111
    %6115 = vrot.lane.b32.xlu0 %v6087, 80
    %v6116 = vpop.permute.xlu0 %6115
    %6117 = vrot.lane.b32.xlu0 %v6088, 80
    %v6118 = vpop.permute.xlu0 %6117
    %6121 = vrot.lane.b32.xlu0 %v6087, 96
    %v6122 = vpop.permute.xlu0 %6121
    %6123 = vrot.lane.b32.xlu0 %v6088, 96
    %v6124 = vpop.permute.xlu0 %6123
    %6127 = vrot.lane.b32.xlu0 %v6087, 112
    %v6128 = vpop.permute.xlu0 %6127
    %6129 = vrot.lane.b32.xlu0 %v6088, 112
    %v6130 = vpop.permute.xlu0 %6129
    %v6133 = vsel %vm780, %v6087, %v6092
    %v6134 = vsel %vm780, %v6088, %v6094
    %v6135 = vsel %vm126, %v6133, %v6098
    %v6136 = vsel %vm126, %v6134, %v6100
    %v6137 = vsel %vm956, %v6135, %v6104
    %v6138 = vsel %vm956, %v6136, %v6106
    %v6139 = vsel %vm131, %v6137, %v6110
    %v6140 = vsel %vm131, %v6138, %v6112
    %v6141 = vsel %vm961, %v6139, %v6116
    %v6142 = vsel %vm961, %v6140, %v6118
    %v6143 = vsel %vm136, %v6141, %v6122
    %v6144 = vsel %vm136, %v6142, %v6124
    %v6145 = vsel %vm966, %v6143, %v6128
    %v6146 = vsel %vm966, %v6144, %v6130
    %v6147 = vmul.f32 %v6145, %v2844
    %v6148 = vmul.f32 %v6146, %v2844
    %v6149 = vadd.f32 %v6085, %v6147
    %v6150 = vadd.f32 %v6086, %v6148
    %6151 = vrot.lane.b32.xlu0 %v6087, 127
    %v6152 = vpop.permute.xlu0 %6151
    %6153 = vrot.lane.b32.xlu0 %v6088, 127
    %v6154 = vpop.permute.xlu0 %6153
    %6157 = vrot.lane.b32.xlu0 %v6087, 15
    %v6158 = vpop.permute.xlu0 %6157
    %6159 = vrot.lane.b32.xlu0 %v6088, 15
    %v6160 = vpop.permute.xlu0 %6159
    %6163 = vrot.lane.b32.xlu0 %v6087, 31
    %v6164 = vpop.permute.xlu0 %6163
    %6165 = vrot.lane.b32.xlu0 %v6088, 31
    %v6166 = vpop.permute.xlu0 %6165
    %6169 = vrot.lane.b32.xlu0 %v6087, 47
    %v6170 = vpop.permute.xlu0 %6169
    %6171 = vrot.lane.b32.xlu0 %v6088, 47
    %v6172 = vpop.permute.xlu0 %6171
    %6175 = vrot.lane.b32.xlu0 %v6087, 63
    %v6176 = vpop.permute.xlu0 %6175
    %6177 = vrot.lane.b32.xlu0 %v6088, 63
    %v6178 = vpop.permute.xlu0 %6177
    %6181 = vrot.lane.b32.xlu0 %v6087, 79
    %v6182 = vpop.permute.xlu0 %6181
    %6183 = vrot.lane.b32.xlu0 %v6088, 79
    %v6184 = vpop.permute.xlu0 %6183
    %6187 = vrot.lane.b32.xlu0 %v6087, 95
    %v6188 = vpop.permute.xlu0 %6187
    %6189 = vrot.lane.b32.xlu0 %v6088, 95
    %v6190 = vpop.permute.xlu0 %6189
    %6193 = vrot.lane.b32.xlu0 %v6087, 111
    %v6194 = vpop.permute.xlu0 %6193
    %6195 = vrot.lane.b32.xlu0 %v6088, 111
    %v6196 = vpop.permute.xlu0 %6195
    %v6199 = vsel %vm780, %v6152, %v6158
    %v6200 = vsel %vm780, %v6154, %v6160
    %v6201 = vsel %vm126, %v6199, %v6164
    %v6202 = vsel %vm126, %v6200, %v6166
    %v6203 = vsel %vm956, %v6201, %v6170
    %v6204 = vsel %vm956, %v6202, %v6172
    %v6205 = vsel %vm131, %v6203, %v6176
    %v6206 = vsel %vm131, %v6204, %v6178
    %v6207 = vsel %vm961, %v6205, %v6182
    %v6208 = vsel %vm961, %v6206, %v6184
    %v6209 = vsel %vm136, %v6207, %v6188
    %v6210 = vsel %vm136, %v6208, %v6190
    %v6211 = vsel %vm966, %v6209, %v6194
    %v6212 = vsel %vm966, %v6210, %v6196
    %v6213 = vmul.f32 %v6211, %v2914
    %v6214 = vmul.f32 %v6212, %v2914
    %v6215 = vadd.f32 %v6149, %v6213
    %v6216 = vadd.f32 %v6150, %v6214
    %6217 = vrot.lane.b32.xlu0 %v6087, 126
    %v6218 = vpop.permute.xlu0 %6217
    %6219 = vrot.lane.b32.xlu0 %v6088, 126
    %v6220 = vpop.permute.xlu0 %6219
    %6223 = vrot.lane.b32.xlu0 %v6087, 14
    %v6224 = vpop.permute.xlu0 %6223
    %6225 = vrot.lane.b32.xlu0 %v6088, 14
    %v6226 = vpop.permute.xlu0 %6225
    %6229 = vrot.lane.b32.xlu0 %v6087, 30
    %v6230 = vpop.permute.xlu0 %6229
    %6231 = vrot.lane.b32.xlu0 %v6088, 30
    %v6232 = vpop.permute.xlu0 %6231
    %6235 = vrot.lane.b32.xlu0 %v6087, 46
    %v6236 = vpop.permute.xlu0 %6235
    %6237 = vrot.lane.b32.xlu0 %v6088, 46
    %v6238 = vpop.permute.xlu0 %6237
    %6241 = vrot.lane.b32.xlu0 %v6087, 62
    %v6242 = vpop.permute.xlu0 %6241
    %6243 = vrot.lane.b32.xlu0 %v6088, 62
    %v6244 = vpop.permute.xlu0 %6243
    %6247 = vrot.lane.b32.xlu0 %v6087, 78
    %v6248 = vpop.permute.xlu0 %6247
    %6249 = vrot.lane.b32.xlu0 %v6088, 78
    %v6250 = vpop.permute.xlu0 %6249
    %6253 = vrot.lane.b32.xlu0 %v6087, 94
    %v6254 = vpop.permute.xlu0 %6253
    %6255 = vrot.lane.b32.xlu0 %v6088, 94
    %v6256 = vpop.permute.xlu0 %6255
    %6259 = vrot.lane.b32.xlu0 %v6087, 110
    %v6260 = vpop.permute.xlu0 %6259
    %6261 = vrot.lane.b32.xlu0 %v6088, 110
    %v6262 = vpop.permute.xlu0 %6261
    %v6265 = vsel %vm780, %v6218, %v6224
    %v6266 = vsel %vm780, %v6220, %v6226
    %v6267 = vsel %vm126, %v6265, %v6230
    %v6268 = vsel %vm126, %v6266, %v6232
    %v6269 = vsel %vm956, %v6267, %v6236
    %v6270 = vsel %vm956, %v6268, %v6238
    %v6271 = vsel %vm131, %v6269, %v6242
    %v6272 = vsel %vm131, %v6270, %v6244
    %v6273 = vsel %vm961, %v6271, %v6248
    %v6274 = vsel %vm961, %v6272, %v6250
    %v6275 = vsel %vm136, %v6273, %v6254
    %v6276 = vsel %vm136, %v6274, %v6256
    %v6277 = vsel %vm966, %v6275, %v6260
    %v6278 = vsel %vm966, %v6276, %v6262
    %v6279 = vmul.f32 %v6277, %v2984
    %v6280 = vmul.f32 %v6278, %v2984
    %v6281 = vadd.f32 %v6215, %v6279
    %v6282 = vadd.f32 %v6216, %v6280
    %v6283 = vld [vmem:[%s903 + $0x1] sm:$0xff]
    %v6284 = vld [vmem:[%s903 + $0x9] sm:$0xff]
    %6287 = vrot.lane.b32.xlu0 %v6283, 16
    %v6288 = vpop.permute.xlu0 %6287
    %6289 = vrot.lane.b32.xlu0 %v6284, 16
    %v6290 = vpop.permute.xlu0 %6289
    %6293 = vrot.lane.b32.xlu0 %v6283, 32
    %v6294 = vpop.permute.xlu0 %6293
    %6295 = vrot.lane.b32.xlu0 %v6284, 32
    %v6296 = vpop.permute.xlu0 %6295
    %6299 = vrot.lane.b32.xlu0 %v6283, 48
    %v6300 = vpop.permute.xlu0 %6299
    %6301 = vrot.lane.b32.xlu0 %v6284, 48
    %v6302 = vpop.permute.xlu0 %6301
    %6305 = vrot.lane.b32.xlu0 %v6283, 64
    %v6306 = vpop.permute.xlu0 %6305
    %6307 = vrot.lane.b32.xlu0 %v6284, 64
    %v6308 = vpop.permute.xlu0 %6307
    %6311 = vrot.lane.b32.xlu0 %v6283, 80
    %v6312 = vpop.permute.xlu0 %6311
    %6313 = vrot.lane.b32.xlu0 %v6284, 80
    %v6314 = vpop.permute.xlu0 %6313
    %6317 = vrot.lane.b32.xlu0 %v6283, 96
    %v6318 = vpop.permute.xlu0 %6317
    %6319 = vrot.lane.b32.xlu0 %v6284, 96
    %v6320 = vpop.permute.xlu0 %6319
    %6323 = vrot.lane.b32.xlu0 %v6283, 112
    %v6324 = vpop.permute.xlu0 %6323
    %6325 = vrot.lane.b32.xlu0 %v6284, 112
    %v6326 = vpop.permute.xlu0 %6325
    %v6329 = vsel %vm780, %v6283, %v6288
    %v6330 = vsel %vm780, %v6284, %v6290
    %v6331 = vsel %vm126, %v6329, %v6294
    %v6332 = vsel %vm126, %v6330, %v6296
    %v6333 = vsel %vm956, %v6331, %v6300
    %v6334 = vsel %vm956, %v6332, %v6302
    %v6335 = vsel %vm131, %v6333, %v6306
    %v6336 = vsel %vm131, %v6334, %v6308
    %v6337 = vsel %vm961, %v6335, %v6312
    %v6338 = vsel %vm961, %v6336, %v6314
    %v6339 = vsel %vm136, %v6337, %v6318
    %v6340 = vsel %vm136, %v6338, %v6320
    %v6341 = vsel %vm966, %v6339, %v6324
    %v6342 = vsel %vm966, %v6340, %v6326
    %v6343 = vmul.f32 %v6341, %v3052
    %v6344 = vmul.f32 %v6342, %v3052
    %v6345 = vadd.f32 %v6281, %v6343
    %v6346 = vadd.f32 %v6282, %v6344
    %6347 = vrot.lane.b32.xlu0 %v6283, 127
    %v6348 = vpop.permute.xlu0 %6347
    %6349 = vrot.lane.b32.xlu0 %v6284, 127
    %v6350 = vpop.permute.xlu0 %6349
    %6353 = vrot.lane.b32.xlu0 %v6283, 15
    %v6354 = vpop.permute.xlu0 %6353
    %6355 = vrot.lane.b32.xlu0 %v6284, 15
    %v6356 = vpop.permute.xlu0 %6355
    %6359 = vrot.lane.b32.xlu0 %v6283, 31
    %v6360 = vpop.permute.xlu0 %6359
    %6361 = vrot.lane.b32.xlu0 %v6284, 31
    %v6362 = vpop.permute.xlu0 %6361
    %6365 = vrot.lane.b32.xlu0 %v6283, 47
    %v6366 = vpop.permute.xlu0 %6365
    %6367 = vrot.lane.b32.xlu0 %v6284, 47
    %v6368 = vpop.permute.xlu0 %6367
    %6371 = vrot.lane.b32.xlu0 %v6283, 63
    %v6372 = vpop.permute.xlu0 %6371
    %6373 = vrot.lane.b32.xlu0 %v6284, 63
    %v6374 = vpop.permute.xlu0 %6373
    %6377 = vrot.lane.b32.xlu0 %v6283, 79
    %v6378 = vpop.permute.xlu0 %6377
    %6379 = vrot.lane.b32.xlu0 %v6284, 79
    %v6380 = vpop.permute.xlu0 %6379
    %6383 = vrot.lane.b32.xlu0 %v6283, 95
    %v6384 = vpop.permute.xlu0 %6383
    %6385 = vrot.lane.b32.xlu0 %v6284, 95
    %v6386 = vpop.permute.xlu0 %6385
    %6389 = vrot.lane.b32.xlu0 %v6283, 111
    %v6390 = vpop.permute.xlu0 %6389
    %6391 = vrot.lane.b32.xlu0 %v6284, 111
    %v6392 = vpop.permute.xlu0 %6391
    %v6395 = vsel %vm780, %v6348, %v6354
    %v6396 = vsel %vm780, %v6350, %v6356
    %v6397 = vsel %vm126, %v6395, %v6360
    %v6398 = vsel %vm126, %v6396, %v6362
    %v6399 = vsel %vm956, %v6397, %v6366
    %v6400 = vsel %vm956, %v6398, %v6368
    %v6401 = vsel %vm131, %v6399, %v6372
    %v6402 = vsel %vm131, %v6400, %v6374
    %v6403 = vsel %vm961, %v6401, %v6378
    %v6404 = vsel %vm961, %v6402, %v6380
    %v6405 = vsel %vm136, %v6403, %v6384
    %v6406 = vsel %vm136, %v6404, %v6386
    %v6407 = vsel %vm966, %v6405, %v6390
    %v6408 = vsel %vm966, %v6406, %v6392
    %v6409 = vmul.f32 %v6407, %v3122
    %v6410 = vmul.f32 %v6408, %v3122
    %v6411 = vadd.f32 %v6345, %v6409
    %v6412 = vadd.f32 %v6346, %v6410
    %6413 = vrot.lane.b32.xlu0 %v6283, 126
    %v6414 = vpop.permute.xlu0 %6413
    %6415 = vrot.lane.b32.xlu0 %v6284, 126
    %v6416 = vpop.permute.xlu0 %6415
    %6419 = vrot.lane.b32.xlu0 %v6283, 14
    %v6420 = vpop.permute.xlu0 %6419
    %6421 = vrot.lane.b32.xlu0 %v6284, 14
    %v6422 = vpop.permute.xlu0 %6421
    %6425 = vrot.lane.b32.xlu0 %v6283, 30
    %v6426 = vpop.permute.xlu0 %6425
    %6427 = vrot.lane.b32.xlu0 %v6284, 30
    %v6428 = vpop.permute.xlu0 %6427
    %6431 = vrot.lane.b32.xlu0 %v6283, 46
    %v6432 = vpop.permute.xlu0 %6431
    %6433 = vrot.lane.b32.xlu0 %v6284, 46
    %v6434 = vpop.permute.xlu0 %6433
    %6437 = vrot.lane.b32.xlu0 %v6283, 62
    %v6438 = vpop.permute.xlu0 %6437
    %6439 = vrot.lane.b32.xlu0 %v6284, 62
    %v6440 = vpop.permute.xlu0 %6439
    %6443 = vrot.lane.b32.xlu0 %v6283, 78
    %v6444 = vpop.permute.xlu0 %6443
    %6445 = vrot.lane.b32.xlu0 %v6284, 78
    %v6446 = vpop.permute.xlu0 %6445
    %6449 = vrot.lane.b32.xlu0 %v6283, 94
    %v6450 = vpop.permute.xlu0 %6449
    %6451 = vrot.lane.b32.xlu0 %v6284, 94
    %v6452 = vpop.permute.xlu0 %6451
    %6455 = vrot.lane.b32.xlu0 %v6283, 110
    %v6456 = vpop.permute.xlu0 %6455
    %6457 = vrot.lane.b32.xlu0 %v6284, 110
    %v6458 = vpop.permute.xlu0 %6457
    %v6461 = vsel %vm780, %v6414, %v6420
    %v6462 = vsel %vm780, %v6416, %v6422
    %v6463 = vsel %vm126, %v6461, %v6426
    %v6464 = vsel %vm126, %v6462, %v6428
    %v6465 = vsel %vm956, %v6463, %v6432
    %v6466 = vsel %vm956, %v6464, %v6434
    %v6467 = vsel %vm131, %v6465, %v6438
    %v6468 = vsel %vm131, %v6466, %v6440
    %v6469 = vsel %vm961, %v6467, %v6444
    %v6470 = vsel %vm961, %v6468, %v6446
    %v6471 = vsel %vm136, %v6469, %v6450
    %v6472 = vsel %vm136, %v6470, %v6452
    %v6473 = vsel %vm966, %v6471, %v6456
    %v6474 = vsel %vm966, %v6472, %v6458
    %v6475 = vmul.f32 %v6473, %v3192
    %v6476 = vmul.f32 %v6474, %v3192
    %v6477 = vadd.f32 %v6411, %v6475
    %v6478 = vadd.f32 %v6412, %v6476
    %v6479 = vld [vmem:[%s903 + $0x2] sm:$0xff]
    %v6480 = vld [vmem:[%s903 + $0xa] sm:$0xff]
    %6483 = vrot.lane.b32.xlu0 %v6479, 16
    %v6484 = vpop.permute.xlu0 %6483
    %6485 = vrot.lane.b32.xlu0 %v6480, 16
    %v6486 = vpop.permute.xlu0 %6485
    %6489 = vrot.lane.b32.xlu0 %v6479, 32
    %v6490 = vpop.permute.xlu0 %6489
    %6491 = vrot.lane.b32.xlu0 %v6480, 32
    %v6492 = vpop.permute.xlu0 %6491
    %6495 = vrot.lane.b32.xlu0 %v6479, 48
    %v6496 = vpop.permute.xlu0 %6495
    %6497 = vrot.lane.b32.xlu0 %v6480, 48
    %v6498 = vpop.permute.xlu0 %6497
    %6501 = vrot.lane.b32.xlu0 %v6479, 64
    %v6502 = vpop.permute.xlu0 %6501
    %6503 = vrot.lane.b32.xlu0 %v6480, 64
    %v6504 = vpop.permute.xlu0 %6503
    %6507 = vrot.lane.b32.xlu0 %v6479, 80
    %v6508 = vpop.permute.xlu0 %6507
    %6509 = vrot.lane.b32.xlu0 %v6480, 80
    %v6510 = vpop.permute.xlu0 %6509
    %6513 = vrot.lane.b32.xlu0 %v6479, 96
    %v6514 = vpop.permute.xlu0 %6513
    %6515 = vrot.lane.b32.xlu0 %v6480, 96
    %v6516 = vpop.permute.xlu0 %6515
    %6519 = vrot.lane.b32.xlu0 %v6479, 112
    %v6520 = vpop.permute.xlu0 %6519
    %6521 = vrot.lane.b32.xlu0 %v6480, 112
    %v6522 = vpop.permute.xlu0 %6521
    %v6525 = vsel %vm780, %v6479, %v6484
    %v6526 = vsel %vm780, %v6480, %v6486
    %v6527 = vsel %vm126, %v6525, %v6490
    %v6528 = vsel %vm126, %v6526, %v6492
    %v6529 = vsel %vm956, %v6527, %v6496
    %v6530 = vsel %vm956, %v6528, %v6498
    %v6531 = vsel %vm131, %v6529, %v6502
    %v6532 = vsel %vm131, %v6530, %v6504
    %v6533 = vsel %vm961, %v6531, %v6508
    %v6534 = vsel %vm961, %v6532, %v6510
    %v6535 = vsel %vm136, %v6533, %v6514
    %v6536 = vsel %vm136, %v6534, %v6516
    %v6537 = vsel %vm966, %v6535, %v6520
    %v6538 = vsel %vm966, %v6536, %v6522
    %v6539 = vmul.f32 %v6537, %v3260
    %v6540 = vmul.f32 %v6538, %v3260
    %v6541 = vadd.f32 %v6477, %v6539
    %v6542 = vadd.f32 %v6478, %v6540
    %6543 = vrot.lane.b32.xlu0 %v6479, 127
    %v6544 = vpop.permute.xlu0 %6543
    %6545 = vrot.lane.b32.xlu0 %v6480, 127
    %v6546 = vpop.permute.xlu0 %6545
    %6549 = vrot.lane.b32.xlu0 %v6479, 15
    %v6550 = vpop.permute.xlu0 %6549
    %6551 = vrot.lane.b32.xlu0 %v6480, 15
    %v6552 = vpop.permute.xlu0 %6551
    %6555 = vrot.lane.b32.xlu0 %v6479, 31
    %v6556 = vpop.permute.xlu0 %6555
    %6557 = vrot.lane.b32.xlu0 %v6480, 31
    %v6558 = vpop.permute.xlu0 %6557
    %6561 = vrot.lane.b32.xlu0 %v6479, 47
    %v6562 = vpop.permute.xlu0 %6561
    %6563 = vrot.lane.b32.xlu0 %v6480, 47
    %v6564 = vpop.permute.xlu0 %6563
    %6567 = vrot.lane.b32.xlu0 %v6479, 63
    %v6568 = vpop.permute.xlu0 %6567
    %6569 = vrot.lane.b32.xlu0 %v6480, 63
    %v6570 = vpop.permute.xlu0 %6569
    %6573 = vrot.lane.b32.xlu0 %v6479, 79
    %v6574 = vpop.permute.xlu0 %6573
    %6575 = vrot.lane.b32.xlu0 %v6480, 79
    %v6576 = vpop.permute.xlu0 %6575
    %6579 = vrot.lane.b32.xlu0 %v6479, 95
    %v6580 = vpop.permute.xlu0 %6579
    %6581 = vrot.lane.b32.xlu0 %v6480, 95
    %v6582 = vpop.permute.xlu0 %6581
    %6585 = vrot.lane.b32.xlu0 %v6479, 111
    %v6586 = vpop.permute.xlu0 %6585
    %6587 = vrot.lane.b32.xlu0 %v6480, 111
    %v6588 = vpop.permute.xlu0 %6587
    %v6591 = vsel %vm780, %v6544, %v6550
    %v6592 = vsel %vm780, %v6546, %v6552
    %v6593 = vsel %vm126, %v6591, %v6556
    %v6594 = vsel %vm126, %v6592, %v6558
    %v6595 = vsel %vm956, %v6593, %v6562
    %v6596 = vsel %vm956, %v6594, %v6564
    %v6597 = vsel %vm131, %v6595, %v6568
    %v6598 = vsel %vm131, %v6596, %v6570
    %v6599 = vsel %vm961, %v6597, %v6574
    %v6600 = vsel %vm961, %v6598, %v6576
    %v6601 = vsel %vm136, %v6599, %v6580
    %v6602 = vsel %vm136, %v6600, %v6582
    %v6603 = vsel %vm966, %v6601, %v6586
    %v6604 = vsel %vm966, %v6602, %v6588
    %v6605 = vmul.f32 %v6603, %v3330
    %v6606 = vmul.f32 %v6604, %v3330
    %v6607 = vadd.f32 %v6541, %v6605
    %v6608 = vadd.f32 %v6542, %v6606
    %6609 = vrot.lane.b32.xlu0 %v6479, 126
    %v6610 = vpop.permute.xlu0 %6609
    %6611 = vrot.lane.b32.xlu0 %v6480, 126
    %v6612 = vpop.permute.xlu0 %6611
    %6615 = vrot.lane.b32.xlu0 %v6479, 14
    %v6616 = vpop.permute.xlu0 %6615
    %6617 = vrot.lane.b32.xlu0 %v6480, 14
    %v6618 = vpop.permute.xlu0 %6617
    %6621 = vrot.lane.b32.xlu0 %v6479, 30
    %v6622 = vpop.permute.xlu0 %6621
    %6623 = vrot.lane.b32.xlu0 %v6480, 30
    %v6624 = vpop.permute.xlu0 %6623
    %6627 = vrot.lane.b32.xlu0 %v6479, 46
    %v6628 = vpop.permute.xlu0 %6627
    %6629 = vrot.lane.b32.xlu0 %v6480, 46
    %v6630 = vpop.permute.xlu0 %6629
    %6633 = vrot.lane.b32.xlu0 %v6479, 62
    %v6634 = vpop.permute.xlu0 %6633
    %6635 = vrot.lane.b32.xlu0 %v6480, 62
    %v6636 = vpop.permute.xlu0 %6635
    %6639 = vrot.lane.b32.xlu0 %v6479, 78
    %v6640 = vpop.permute.xlu0 %6639
    %6641 = vrot.lane.b32.xlu0 %v6480, 78
    %v6642 = vpop.permute.xlu0 %6641
    %6645 = vrot.lane.b32.xlu0 %v6479, 94
    %v6646 = vpop.permute.xlu0 %6645
    %6647 = vrot.lane.b32.xlu0 %v6480, 94
    %v6648 = vpop.permute.xlu0 %6647
    %6651 = vrot.lane.b32.xlu0 %v6479, 110
    %v6652 = vpop.permute.xlu0 %6651
    %6653 = vrot.lane.b32.xlu0 %v6480, 110
    %v6654 = vpop.permute.xlu0 %6653
    %v6657 = vsel %vm780, %v6610, %v6616
    %v6658 = vsel %vm780, %v6612, %v6618
    %v6659 = vsel %vm126, %v6657, %v6622
    %v6660 = vsel %vm126, %v6658, %v6624
    %v6661 = vsel %vm956, %v6659, %v6628
    %v6662 = vsel %vm956, %v6660, %v6630
    %v6663 = vsel %vm131, %v6661, %v6634
    %v6664 = vsel %vm131, %v6662, %v6636
    %v6665 = vsel %vm961, %v6663, %v6640
    %v6666 = vsel %vm961, %v6664, %v6642
    %v6667 = vsel %vm136, %v6665, %v6646
    %v6668 = vsel %vm136, %v6666, %v6648
    %v6669 = vsel %vm966, %v6667, %v6652
    %v6670 = vsel %vm966, %v6668, %v6654
    %v6671 = vmul.f32 %v6669, %v3400
    %v6672 = vmul.f32 %v6670, %v3400
    %v6673 = vadd.f32 %v6607, %v6671
    %v6674 = vadd.f32 %v6608, %v6672
    %v6675 = vadd.f32 %v6673, %v3409
    %v6676 = vadd.f32 %v6674, %v3409
    %v6677 = vmax.f32 %v6675, 0.0
    %v6678 = vmax.f32 %v6676, 0.0
    %6679 = vst [vmem:[#allocation6] sm:$0xff] %v6677
    %6680 = vst [vmem:[#allocation6 + $0x8] sm:$0xff] %v6678
    %v6681 = vld [vmem:[#allocation6] ss:$2 sm:$0xff]
    %v6682 = vld [vmem:[%s3418] ss:$2 sm:$0xff]
    %v6683 = vmax.f32 %v6681, %v6682
    %6684 = vxpose.xlu0.b32.start [1/16] %v6683, 128
    %6685 = vxpose.xlu0.b32.cont [2/16] 0.0, 128
    %6686 = vxpose.xlu0.b32.cont [3/16] 0.0, 128
    %6687 = vxpose.xlu0.b32.cont [4/16] 0.0, 128
    %6688 = vxpose.xlu0.b32.cont [5/16] 0.0, 128
    %6689 = vxpose.xlu0.b32.cont [6/16] 0.0, 128
    %6690 = vxpose.xlu0.b32.cont [7/16] 0.0, 128
    %6691 = vxpose.xlu0.b32.cont [8/16] 0.0, 128
    %6692 = vxpose.xlu0.b32.cont [9/16] 0.0, 128
    %6693 = vxpose.xlu0.b32.cont [10/16] 0.0, 128
    %6694 = vxpose.xlu0.b32.cont [11/16] 0.0, 128
    %6695 = vxpose.xlu0.b32.cont [12/16] 0.0, 128
    %6696 = vxpose.xlu0.b32.cont [13/16] 0.0, 128
    %6697 = vxpose.xlu0.b32.cont [14/16] 0.0, 128
    %6698 = vxpose.xlu0.b32.cont [15/16] 0.0, 128
    %6699 = vxpose.xlu0.b32.end [16/16] 0.0, 128
    %v6700 = vpop.trf.xlu0
    %v6701 = vpop.trf.xlu0
    %v6702 = vpop.trf.xlu0
    %v6703 = vpop.trf.xlu0
    %v6704 = vpop.trf.xlu0
    %v6705 = vpop.trf.xlu0
    %v6706 = vpop.trf.xlu0
    %v6707 = vpop.trf.xlu0
    %v6708 = vpop.trf.xlu0
    %v6709 = vpop.trf.xlu0
    %v6710 = vpop.trf.xlu0
    %v6711 = vpop.trf.xlu0
    %v6712 = vpop.trf.xlu0
    %v6713 = vpop.trf.xlu0
    %v6714 = vpop.trf.xlu0
    %v6715 = vpop.trf.xlu0
    %6716 = vst.msk [vmem:[#allocation7] sm:$0xff] %vm3453, %v6700
    %6717 = vst.msk [vmem:[#allocation7 + $0x8] sm:$0xff] %vm3453, %v6701
    %6718 = vst.msk [vmem:[#allocation7 + $0x10] sm:$0xff] %vm3453, %v6702
    %6719 = vst.msk [vmem:[#allocation7 + $0x18] sm:$0xff] %vm3453, %v6703
    %6720 = vst.msk [vmem:[#allocation7 + $0x20] sm:$0xff] %vm3453, %v6704
    %6721 = vst.msk [vmem:[#allocation7 + $0x28] sm:$0xff] %vm3453, %v6705
    %6722 = vst.msk [vmem:[#allocation7 + $0x30] sm:$0xff] %vm3453, %v6706
    %6723 = vst.msk [vmem:[#allocation7 + $0x38] sm:$0xff] %vm3453, %v6707
    %6724 = vst.msk [vmem:[#allocation7 + $0x40] sm:$0xff] %vm3453, %v6708
    %6725 = vst.msk [vmem:[#allocation7 + $0x48] sm:$0xff] %vm3453, %v6709
    %6726 = vst.msk [vmem:[#allocation7 + $0x50] sm:$0xff] %vm3453, %v6710
    %6727 = vst.msk [vmem:[#allocation7 + $0x58] sm:$0xff] %vm3453, %v6711
    %6728 = vst.msk [vmem:[#allocation7 + $0x60] sm:$0xff] %vm3453, %v6712
    %6729 = vst.msk [vmem:[#allocation7 + $0x68] sm:$0xff] %vm3453, %v6713
    %6730 = vst.msk [vmem:[#allocation7 + $0x70] sm:$0xff] %vm3453, %v6714
    %6731 = vst.msk [vmem:[#allocation7 + $0x78] sm:$0xff] %vm3453, %v6715
    %v6732 = vld [vmem:[#allocation7] ss:$2 sm:$0xff]
    %v6733 = vld [vmem:[%s3471] ss:$2 sm:$0xff]
    %v6734 = vld [vmem:[%s3473] ss:$2 sm:$0xff]
    %v6735 = vld [vmem:[%s3475] ss:$2 sm:$0xff]
    %v6736 = vld [vmem:[%s3477] ss:$2 sm:$0xff]
    %v6737 = vld [vmem:[%s3479] ss:$2 sm:$0xff]
    %v6738 = vld [vmem:[%s3481] ss:$2 sm:$0xff]
    %v6739 = vld [vmem:[%s3483] ss:$2 sm:$0xff]
    %v6740 = vld [vmem:[%s3485] ss:$2 sm:$0xff]
    %v6741 = vld [vmem:[%s3487] ss:$2 sm:$0xff]
    %v6742 = vld [vmem:[%s3489] ss:$2 sm:$0xff]
    %v6743 = vld [vmem:[%s3491] ss:$2 sm:$0xff]
    %v6744 = vld [vmem:[%s3493] ss:$2 sm:$0xff]
    %v6745 = vld [vmem:[%s3495] ss:$2 sm:$0xff]
    %v6746 = vld [vmem:[%s3497] ss:$2 sm:$0xff]
    %v6747 = vld [vmem:[%s3499] ss:$2 sm:$0xff]
    %v6748 = vmax.f32 %v6732, %v6740
    %v6749 = vmax.f32 %v6733, %v6741
    %v6750 = vmax.f32 %v6734, %v6742
    %v6751 = vmax.f32 %v6735, %v6743
    %v6752 = vmax.f32 %v6736, %v6744
    %v6753 = vmax.f32 %v6737, %v6745
    %v6754 = vmax.f32 %v6738, %v6746
    %v6755 = vmax.f32 %v6739, %v6747
    %6756 = vxpose.xlu0.b32.start [1/16] %v6748, 128
    %6757 = vxpose.xlu0.b32.cont [2/16] %v6749, 128
    %6758 = vxpose.xlu0.b32.cont [3/16] %v6750, 128
    %6759 = vxpose.xlu0.b32.cont [4/16] %v6751, 128
    %6760 = vxpose.xlu0.b32.cont [5/16] %v6752, 128
    %6761 = vxpose.xlu0.b32.cont [6/16] %v6753, 128
    %6762 = vxpose.xlu0.b32.cont [7/16] %v6754, 128
    %6763 = vxpose.xlu0.b32.cont [8/16] %v6755, 128
    %6764 = vxpose.xlu0.b32.cont [9/16] 0.0, 128
    %6765 = vxpose.xlu0.b32.cont [10/16] 0.0, 128
    %6766 = vxpose.xlu0.b32.cont [11/16] 0.0, 128
    %6767 = vxpose.xlu0.b32.cont [12/16] 0.0, 128
    %6768 = vxpose.xlu0.b32.cont [13/16] 0.0, 128
    %6769 = vxpose.xlu0.b32.cont [14/16] 0.0, 128
    %6770 = vxpose.xlu0.b32.cont [15/16] 0.0, 128
    %6771 = vxpose.xlu0.b32.end [16/16] 0.0, 128
    %v6772 = vpop.trf.xlu0
    %v6773 = vpop.trf.xlu0
    %v6774 = vpop.trf.xlu0
    %v6775 = vpop.trf.xlu0
    %v6776 = vpop.trf.xlu0
    %v6777 = vpop.trf.xlu0
    %v6778 = vpop.trf.xlu0
    %v6779 = vpop.trf.xlu0
    %v6780 = vpop.trf.xlu0
    %v6781 = vpop.trf.xlu0
    %v6782 = vpop.trf.xlu0
    %v6783 = vpop.trf.xlu0
    %v6784 = vpop.trf.xlu0
    %v6785 = vpop.trf.xlu0
    %v6786 = vpop.trf.xlu0
    %v6787 = vpop.trf.xlu0
    %s6788 = scalar_lea.vmem [#allocation8], 8
    %6789 = vst.msk [vmem:[%s6788] sm:$0xff] %vm131, %v6772
    %v6790 = vld [vmem:[#allocation8] sm:$0x1]
    %v6791 = vld [vmem:[#allocation8 + $0x8] sm:$0x1]
    %v6792 = vld [vmem:[%s5] sm:$0xff]
    %v6793 = vld [vmem:[%s5 + $0x8] sm:$0xff]
    %v6794 = vld [vmem:[%s5 + $0x10] sm:$0xff]
    %v6795 = vld [vmem:[%s5 + $0x18] sm:$0xff]
    %v6796 = vld [vmem:[%s5 + $0x20] sm:$0xff]
    %v6797 = vld [vmem:[%s5 + $0x28] sm:$0xff]
    %v6798 = vld [vmem:[%s5 + $0x30] sm:$0xff]
    %v6799 = vld [vmem:[%s5 + $0x38] sm:$0xff]
    %v6800 = vld [vmem:[#allocation8 + $0x1] sm:$0x1]
    %v6801 = vld [vmem:[#allocation8 + $0x9] sm:$0x1]
    %s6802 = scalar_lea.vmem %s5, 64
    %v6803 = vld [vmem:[%s6802] sm:$0xff]
    %v6804 = vld [vmem:[%s6802 + $0x8] sm:$0xff]
    %v6805 = vld [vmem:[%s6802 + $0x10] sm:$0xff]
    %v6806 = vld [vmem:[%s6802 + $0x18] sm:$0xff]
    %v6807 = vld [vmem:[%s6802 + $0x20] sm:$0xff]
    %v6808 = vld [vmem:[%s6802 + $0x28] sm:$0xff]
    %v6809 = vld [vmem:[%s6802 + $0x30] sm:$0xff]
    %v6810 = vld [vmem:[%s6802 + $0x38] sm:$0xff]
    %v6813 = vrot.slane %v6801, 7
    %vm6814 = vcmask 1041409
    %v6815 = vsel %vm6814, %v6813, %v6800
    %v6816 = vsel %vm131, %v6815, 0
    %6818 = vmatprep.subr.mxu0 0.0
    %6819 = vmatpush1.msra.mxu0 %v6803
    %6820 = vmatprep.subr.mxu0 0.0
    %6821 = vmatpush1.msra.mxu0 %v6804
    %6822 = vmatprep.subr.mxu0 0.0
    %6823 = vmatpush1.msra.mxu0 %v6805
    %6824 = vmatprep.subr.mxu0 0.0
    %6825 = vmatpush1.msra.mxu0 %v6806
    %6826 = vmatprep.subr.mxu0 0.0
    %6827 = vmatpush1.msra.mxu0 %v6807
    %6828 = vmatprep.subr.mxu0 0.0
    %6829 = vmatpush1.msra.mxu0 %v6808
    %6830 = vmatprep.subr.mxu0 0.0
    %6831 = vmatpush1.msra.mxu0 %v6809
    %6832 = vmatprep.subr.mxu0 0.0
    %6833 = vmatpush1.msra.mxu0 %v6810
    %6834 = vmatprep.subr.mxu0 0.0
    %6835 = vmatpush1.msra.mxu0 0.0
    %6836 = vmatprep.subr.mxu0 0.0
    %6837 = vmatpush1.msra.mxu0 0.0
    %6838 = vmatprep.subr.mxu0 0.0
    %6839 = vmatpush1.msra.mxu0 0.0
    %6840 = vmatprep.subr.mxu0 0.0
    %6841 = vmatpush1.msra.mxu0 0.0
    %6842 = vmatprep.subr.mxu0 0.0
    %6843 = vmatpush1.msra.mxu0 0.0
    %6844 = vmatprep.subr.mxu0 0.0
    %6845 = vmatpush1.msra.mxu0 0.0
    %6846 = vmatprep.subr.mxu0 0.0
    %6847 = vmatpush1.msra.mxu0 0.0
    %6848 = vmatprep.subr.mxu0 0.0
    %6849 = vmatpush1.msra.mxu0 0.0
    %6850 = vmatprep.subr.mxu0 0.0
    %6851 = vmatpush1.msra.mxu0 0.0
    %6852 = vmatprep.subr.mxu0 0.0
    %6853 = vmatpush1.msra.mxu0 0.0
    %6854 = vmatprep.subr.mxu0 0.0
    %6855 = vmatpush1.msra.mxu0 0.0
    %6856 = vmatprep.subr.mxu0 0.0
    %6857 = vmatpush1.msra.mxu0 0.0
    %6858 = vmatprep.subr.mxu0 0.0
    %6859 = vmatpush1.msra.mxu0 0.0
    %6860 = vmatprep.subr.mxu0 0.0
    %6861 = vmatpush1.msra.mxu0 0.0
    %6862 = vmatprep.subr.mxu0 0.0
    %6863 = vmatpush1.msra.mxu0 0.0
    %6864 = vmatprep.subr.mxu0 0.0
    %6865 = vmatpush1.msra.mxu0 0.0
    %6866 = vmatprep.subr.mxu0 0.0
    %6867 = vmatpush1.msra.mxu0 0.0
    %6868 = vmatprep.subr.mxu0 0.0
    %6869 = vmatpush1.msra.mxu0 0.0
    %6870 = vmatprep.subr.mxu0 0.0
    %6871 = vmatpush1.msra.mxu0 0.0
    %6872 = vmatprep.subr.mxu0 0.0
    %6873 = vmatpush1.msra.mxu0 0.0
    %6874 = vmatprep.subr.mxu0 0.0
    %6875 = vmatpush1.msra.mxu0 0.0
    %6876 = vmatprep.subr.mxu0 0.0
    %6877 = vmatpush1.msra.mxu0 0.0
    %6878 = vmatprep.subr.mxu0 0.0
    %6879 = vmatpush1.msra.mxu0 0.0
    %6880 = vmatprep.subr.mxu0 0.0
    %6881 = vmatpush1.msra.mxu0 0.0
    %6882 = vmatprep.mubr.f32.mxu0 0.0
    %6883 = vmatmul.mubr.f32.gmra.mrb[0].mxu0 %v6816
    %v6884 = vpop.f32.mrb[0].mxu0
    %v6885 = vadd.f32 0.0, %v6884
    %v6886 = vpop.f32.mrb[0].mxu0
    %6887 = vdwg.mxu0
    %v6890 = vrot.slane %v6791, 7
    %v6891 = vsel %vm6814, %v6890, %v6790
    %v6892 = vsel %vm131, %v6891, 0
    %6894 = vmatprep.subr.mxu0 0.0
    %6895 = vmatpush1.msra.mxu0 %v6792
    %6896 = vmatprep.subr.mxu0 0.0
    %6897 = vmatpush1.msra.mxu0 %v6793
    %6898 = vmatprep.subr.mxu0 0.0
    %6899 = vmatpush1.msra.mxu0 %v6794
    %6900 = vmatprep.subr.mxu0 0.0
    %6901 = vmatpush1.msra.mxu0 %v6795
    %6902 = vmatprep.subr.mxu0 0.0
    %6903 = vmatpush1.msra.mxu0 %v6796
    %6904 = vmatprep.subr.mxu0 0.0
    %6905 = vmatpush1.msra.mxu0 %v6797
    %6906 = vmatprep.subr.mxu0 0.0
    %6907 = vmatpush1.msra.mxu0 %v6798
    %6908 = vmatprep.subr.mxu0 0.0
    %6909 = vmatpush1.msra.mxu0 %v6799
    %6910 = vmatprep.subr.mxu0 0.0
    %6911 = vmatpush1.msra.mxu0 0.0
    %6912 = vmatprep.subr.mxu0 0.0
    %6913 = vmatpush1.msra.mxu0 0.0
    %6914 = vmatprep.subr.mxu0 0.0
    %6915 = vmatpush1.msra.mxu0 0.0
    %6916 = vmatprep.subr.mxu0 0.0
    %6917 = vmatpush1.msra.mxu0 0.0
    %6918 = vmatprep.subr.mxu0 0.0
    %6919 = vmatpush1.msra.mxu0 0.0
    %6920 = vmatprep.subr.mxu0 0.0
    %6921 = vmatpush1.msra.mxu0 0.0
    %6922 = vmatprep.subr.mxu0 0.0
    %6923 = vmatpush1.msra.mxu0 0.0
    %6924 = vmatprep.subr.mxu0 0.0
    %6925 = vmatpush1.msra.mxu0 0.0
    %6926 = vmatprep.subr.mxu0 0.0
    %6927 = vmatpush1.msra.mxu0 0.0
    %6928 = vmatprep.subr.mxu0 0.0
    %6929 = vmatpush1.msra.mxu0 0.0
    %6930 = vmatprep.subr.mxu0 0.0
    %6931 = vmatpush1.msra.mxu0 0.0
    %6932 = vmatprep.subr.mxu0 0.0
    %6933 = vmatpush1.msra.mxu0 0.0
    %6934 = vmatprep.subr.mxu0 0.0
    %6935 = vmatpush1.msra.mxu0 0.0
    %6936 = vmatprep.subr.mxu0 0.0
    %6937 = vmatpush1.msra.mxu0 0.0
    %6938 = vmatprep.subr.mxu0 0.0
    %6939 = vmatpush1.msra.mxu0 0.0
    %6940 = vmatprep.subr.mxu0 0.0
    %6941 = vmatpush1.msra.mxu0 0.0
    %6942 = vmatprep.subr.mxu0 0.0
    %6943 = vmatpush1.msra.mxu0 0.0
    %6944 = vmatprep.subr.mxu0 0.0
    %6945 = vmatpush1.msra.mxu0 0.0
    %6946 = vmatprep.subr.mxu0 0.0
    %6947 = vmatpush1.msra.mxu0 0.0
    %6948 = vmatprep.subr.mxu0 0.0
    %6949 = vmatpush1.msra.mxu0 0.0
    %6950 = vmatprep.subr.mxu0 0.0
    %6951 = vmatpush1.msra.mxu0 0.0
    %6952 = vmatprep.subr.mxu0 0.0
    %6953 = vmatpush1.msra.mxu0 0.0
    %6954 = vmatprep.subr.mxu0 0.0
    %6955 = vmatpush1.msra.mxu0 0.0
    %6956 = vmatprep.subr.mxu0 0.0
    %6957 = vmatpush1.msra.mxu0 0.0
    %6958 = vmatprep.mubr.f32.mxu0 0.0
    %6959 = vmatmul.mubr.f32.gmra.mrb[0].mxu0 %v6892
    %v6960 = vpop.f32.mrb[0].mxu0
    %v6961 = vadd.f32 %v6885, %v6960
    %v6962 = vpop.f32.mrb[0].mxu0
    %6963 = vdwg.mxu0
    %v6964 = vld [vmem:[#allocation8 + $0x2] sm:$0x1]
    %v6965 = vld [vmem:[#allocation8 + $0xa] sm:$0x1]
    %s6966 = scalar_lea.vmem %s5, 128
    %v6967 = vld [vmem:[%s6966] sm:$0xff]
    %v6968 = vld [vmem:[%s6966 + $0x8] sm:$0xff]
    %v6969 = vld [vmem:[%s6966 + $0x10] sm:$0xff]
    %v6970 = vld [vmem:[%s6966 + $0x18] sm:$0xff]
    %v6971 = vld [vmem:[%s6966 + $0x20] sm:$0xff]
    %v6972 = vld [vmem:[%s6966 + $0x28] sm:$0xff]
    %v6973 = vld [vmem:[%s6966 + $0x30] sm:$0xff]
    %v6974 = vld [vmem:[%s6966 + $0x38] sm:$0xff]
    %v6977 = vrot.slane %v6965, 7
    %v6978 = vsel %vm6814, %v6977, %v6964
    %v6979 = vsel %vm131, %v6978, 0
    %6981 = vmatprep.subr.mxu0 0.0
    %6982 = vmatpush1.msra.mxu0 %v6967
    %6983 = vmatprep.subr.mxu0 0.0
    %6984 = vmatpush1.msra.mxu0 %v6968
    %6985 = vmatprep.subr.mxu0 0.0
    %6986 = vmatpush1.msra.mxu0 %v6969
    %6987 = vmatprep.subr.mxu0 0.0
    %6988 = vmatpush1.msra.mxu0 %v6970
    %6989 = vmatprep.subr.mxu0 0.0
    %6990 = vmatpush1.msra.mxu0 %v6971
    %6991 = vmatprep.subr.mxu0 0.0
    %6992 = vmatpush1.msra.mxu0 %v6972
    %6993 = vmatprep.subr.mxu0 0.0
    %6994 = vmatpush1.msra.mxu0 %v6973
    %6995 = vmatprep.subr.mxu0 0.0
    %6996 = vmatpush1.msra.mxu0 %v6974
    %6997 = vmatprep.subr.mxu0 0.0
    %6998 = vmatpush1.msra.mxu0 0.0
    %6999 = vmatprep.subr.mxu0 0.0
    %7000 = vmatpush1.msra.mxu0 0.0
    %7001 = vmatprep.subr.mxu0 0.0
    %7002 = vmatpush1.msra.mxu0 0.0
    %7003 = vmatprep.subr.mxu0 0.0
    %7004 = vmatpush1.msra.mxu0 0.0
    %7005 = vmatprep.subr.mxu0 0.0
    %7006 = vmatpush1.msra.mxu0 0.0
    %7007 = vmatprep.subr.mxu0 0.0
    %7008 = vmatpush1.msra.mxu0 0.0
    %7009 = vmatprep.subr.mxu0 0.0
    %7010 = vmatpush1.msra.mxu0 0.0
    %7011 = vmatprep.subr.mxu0 0.0
    %7012 = vmatpush1.msra.mxu0 0.0
    %7013 = vmatprep.subr.mxu0 0.0
    %7014 = vmatpush1.msra.mxu0 0.0
    %7015 = vmatprep.subr.mxu0 0.0
    %7016 = vmatpush1.msra.mxu0 0.0
    %7017 = vmatprep.subr.mxu0 0.0
    %7018 = vmatpush1.msra.mxu0 0.0
    %7019 = vmatprep.subr.mxu0 0.0
    %7020 = vmatpush1.msra.mxu0 0.0
    %7021 = vmatprep.subr.mxu0 0.0
    %7022 = vmatpush1.msra.mxu0 0.0
    %7023 = vmatprep.subr.mxu0 0.0
    %7024 = vmatpush1.msra.mxu0 0.0
    %7025 = vmatprep.subr.mxu0 0.0
    %7026 = vmatpush1.msra.mxu0 0.0
    %7027 = vmatprep.subr.mxu0 0.0
    %7028 = vmatpush1.msra.mxu0 0.0
    %7029 = vmatprep.subr.mxu0 0.0
    %7030 = vmatpush1.msra.mxu0 0.0
    %7031 = vmatprep.subr.mxu0 0.0
    %7032 = vmatpush1.msra.mxu0 0.0
    %7033 = vmatprep.subr.mxu0 0.0
    %7034 = vmatpush1.msra.mxu0 0.0
    %7035 = vmatprep.subr.mxu0 0.0
    %7036 = vmatpush1.msra.mxu0 0.0
    %7037 = vmatprep.subr.mxu0 0.0
    %7038 = vmatpush1.msra.mxu0 0.0
    %7039 = vmatprep.subr.mxu0 0.0
    %7040 = vmatpush1.msra.mxu0 0.0
    %7041 = vmatprep.subr.mxu0 0.0
    %7042 = vmatpush1.msra.mxu0 0.0
    %7043 = vmatprep.subr.mxu0 0.0
    %7044 = vmatpush1.msra.mxu0 0.0
    %7045 = vmatprep.mubr.f32.mxu0 0.0
    %7046 = vmatmul.mubr.f32.gmra.mrb[0].mxu0 %v6979
    %v7047 = vpop.f32.mrb[0].mxu0
    %v7048 = vadd.f32 0.0, %v7047
    %v7049 = vpop.f32.mrb[0].mxu0
    %7050 = vdwg.mxu0
    %v7051 = vadd.f32 %v6961, %v7048
    %v7052 = vld [vmem:[#allocation8 + $0x3] sm:$0x1]
    %v7053 = vld [vmem:[#allocation8 + $0xb] sm:$0x1]
    %s7054 = scalar_lea.vmem %s5, 192
    %v7055 = vld [vmem:[%s7054] sm:$0xff]
    %v7056 = vld [vmem:[%s7054 + $0x8] sm:$0xff]
    %v7057 = vld [vmem:[%s7054 + $0x10] sm:$0xff]
    %v7058 = vld [vmem:[%s7054 + $0x18] sm:$0xff]
    %v7059 = vld [vmem:[%s7054 + $0x20] sm:$0xff]
    %v7060 = vld [vmem:[%s7054 + $0x28] sm:$0xff]
    %v7061 = vld [vmem:[%s7054 + $0x30] sm:$0xff]
    %v7062 = vld [vmem:[%s7054 + $0x38] sm:$0xff]
    %v7065 = vrot.slane %v7053, 7
    %v7066 = vsel %vm6814, %v7065, %v7052
    %v7067 = vsel %vm131, %v7066, 0
    %7069 = vmatprep.subr.mxu0 0.0
    %7070 = vmatpush1.msra.mxu0 %v7055
    %7071 = vmatprep.subr.mxu0 0.0
    %7072 = vmatpush1.msra.mxu0 %v7056
    %7073 = vmatprep.subr.mxu0 0.0
    %7074 = vmatpush1.msra.mxu0 %v7057
    %7075 = vmatprep.subr.mxu0 0.0
    %7076 = vmatpush1.msra.mxu0 %v7058
    %7077 = vmatprep.subr.mxu0 0.0
    %7078 = vmatpush1.msra.mxu0 %v7059
    %7079 = vmatprep.subr.mxu0 0.0
    %7080 = vmatpush1.msra.mxu0 %v7060
    %7081 = vmatprep.subr.mxu0 0.0
    %7082 = vmatpush1.msra.mxu0 %v7061
    %7083 = vmatprep.subr.mxu0 0.0
    %7084 = vmatpush1.msra.mxu0 %v7062
    %7085 = vmatprep.subr.mxu0 0.0
    %7086 = vmatpush1.msra.mxu0 0.0
    %7087 = vmatprep.subr.mxu0 0.0
    %7088 = vmatpush1.msra.mxu0 0.0
    %7089 = vmatprep.subr.mxu0 0.0
    %7090 = vmatpush1.msra.mxu0 0.0
    %7091 = vmatprep.subr.mxu0 0.0
    %7092 = vmatpush1.msra.mxu0 0.0
    %7093 = vmatprep.subr.mxu0 0.0
    %7094 = vmatpush1.msra.mxu0 0.0
    %7095 = vmatprep.subr.mxu0 0.0
    %7096 = vmatpush1.msra.mxu0 0.0
    %7097 = vmatprep.subr.mxu0 0.0
    %7098 = vmatpush1.msra.mxu0 0.0
    %7099 = vmatprep.subr.mxu0 0.0
    %7100 = vmatpush1.msra.mxu0 0.0
    %7101 = vmatprep.subr.mxu0 0.0
    %7102 = vmatpush1.msra.mxu0 0.0
    %7103 = vmatprep.subr.mxu0 0.0
    %7104 = vmatpush1.msra.mxu0 0.0
    %7105 = vmatprep.subr.mxu0 0.0
    %7106 = vmatpush1.msra.mxu0 0.0
    %7107 = vmatprep.subr.mxu0 0.0
    %7108 = vmatpush1.msra.mxu0 0.0
    %7109 = vmatprep.subr.mxu0 0.0
    %7110 = vmatpush1.msra.mxu0 0.0
    %7111 = vmatprep.subr.mxu0 0.0
    %7112 = vmatpush1.msra.mxu0 0.0
    %7113 = vmatprep.subr.mxu0 0.0
    %7114 = vmatpush1.msra.mxu0 0.0
    %7115 = vmatprep.subr.mxu0 0.0
    %7116 = vmatpush1.msra.mxu0 0.0
    %7117 = vmatprep.subr.mxu0 0.0
    %7118 = vmatpush1.msra.mxu0 0.0
    %7119 = vmatprep.subr.mxu0 0.0
    %7120 = vmatpush1.msra.mxu0 0.0
    %7121 = vmatprep.subr.mxu0 0.0
    %7122 = vmatpush1.msra.mxu0 0.0
    %7123 = vmatprep.subr.mxu0 0.0
    %7124 = vmatpush1.msra.mxu0 0.0
    %7125 = vmatprep.subr.mxu0 0.0
    %7126 = vmatpush1.msra.mxu0 0.0
    %7127 = vmatprep.subr.mxu0 0.0
    %7128 = vmatpush1.msra.mxu0 0.0
    %7129 = vmatprep.subr.mxu0 0.0
    %7130 = vmatpush1.msra.mxu0 0.0
    %7131 = vmatprep.subr.mxu0 0.0
    %7132 = vmatpush1.msra.mxu0 0.0
    %7133 = vmatprep.mubr.f32.mxu0 0.0
    %7134 = vmatmul.mubr.f32.gmra.mrb[0].mxu0 %v7067
    %v7135 = vpop.f32.mrb[0].mxu0
    %v7136 = vadd.f32 0.0, %v7135
    %v7137 = vpop.f32.mrb[0].mxu0
    %7138 = vdwg.mxu0
    %v7139 = vadd.f32 %v7051, %v7136
    %v7140 = vld [vmem:[#allocation8 + $0x4] sm:$0x1]
    %v7141 = vld [vmem:[#allocation8 + $0xc] sm:$0x1]
    %s7142 = scalar_lea.vmem %s5, 256
    %v7143 = vld [vmem:[%s7142] sm:$0xff]
    %v7144 = vld [vmem:[%s7142 + $0x8] sm:$0xff]
    %v7145 = vld [vmem:[%s7142 + $0x10] sm:$0xff]
    %v7146 = vld [vmem:[%s7142 + $0x18] sm:$0xff]
    %v7147 = vld [vmem:[%s7142 + $0x20] sm:$0xff]
    %v7148 = vld [vmem:[%s7142 + $0x28] sm:$0xff]
    %v7149 = vld [vmem:[%s7142 + $0x30] sm:$0xff]
    %v7150 = vld [vmem:[%s7142 + $0x38] sm:$0xff]
    %v7153 = vrot.slane %v7141, 7
    %v7154 = vsel %vm6814, %v7153, %v7140
    %v7155 = vsel %vm131, %v7154, 0
    %7157 = vmatprep.subr.mxu0 0.0
    %7158 = vmatpush1.msra.mxu0 %v7143
    %7159 = vmatprep.subr.mxu0 0.0
    %7160 = vmatpush1.msra.mxu0 %v7144
    %7161 = vmatprep.subr.mxu0 0.0
    %7162 = vmatpush1.msra.mxu0 %v7145
    %7163 = vmatprep.subr.mxu0 0.0
    %7164 = vmatpush1.msra.mxu0 %v7146
    %7165 = vmatprep.subr.mxu0 0.0
    %7166 = vmatpush1.msra.mxu0 %v7147
    %7167 = vmatprep.subr.mxu0 0.0
    %7168 = vmatpush1.msra.mxu0 %v7148
    %7169 = vmatprep.subr.mxu0 0.0
    %7170 = vmatpush1.msra.mxu0 %v7149
    %7171 = vmatprep.subr.mxu0 0.0
    %7172 = vmatpush1.msra.mxu0 %v7150
    %7173 = vmatprep.subr.mxu0 0.0
    %7174 = vmatpush1.msra.mxu0 0.0
    %7175 = vmatprep.subr.mxu0 0.0
    %7176 = vmatpush1.msra.mxu0 0.0
    %7177 = vmatprep.subr.mxu0 0.0
    %7178 = vmatpush1.msra.mxu0 0.0
    %7179 = vmatprep.subr.mxu0 0.0
    %7180 = vmatpush1.msra.mxu0 0.0
    %7181 = vmatprep.subr.mxu0 0.0
    %7182 = vmatpush1.msra.mxu0 0.0
    %7183 = vmatprep.subr.mxu0 0.0
    %7184 = vmatpush1.msra.mxu0 0.0
    %7185 = vmatprep.subr.mxu0 0.0
    %7186 = vmatpush1.msra.mxu0 0.0
    %7187 = vmatprep.subr.mxu0 0.0
    %7188 = vmatpush1.msra.mxu0 0.0
    %7189 = vmatprep.subr.mxu0 0.0
    %7190 = vmatpush1.msra.mxu0 0.0
    %7191 = vmatprep.subr.mxu0 0.0
    %7192 = vmatpush1.msra.mxu0 0.0
    %7193 = vmatprep.subr.mxu0 0.0
    %7194 = vmatpush1.msra.mxu0 0.0
    %7195 = vmatprep.subr.mxu0 0.0
    %7196 = vmatpush1.msra.mxu0 0.0
    %7197 = vmatprep.subr.mxu0 0.0
    %7198 = vmatpush1.msra.mxu0 0.0
    %7199 = vmatprep.subr.mxu0 0.0
    %7200 = vmatpush1.msra.mxu0 0.0
    %7201 = vmatprep.subr.mxu0 0.0
    %7202 = vmatpush1.msra.mxu0 0.0
    %7203 = vmatprep.subr.mxu0 0.0
    %7204 = vmatpush1.msra.mxu0 0.0
    %7205 = vmatprep.subr.mxu0 0.0
    %7206 = vmatpush1.msra.mxu0 0.0
    %7207 = vmatprep.subr.mxu0 0.0
    %7208 = vmatpush1.msra.mxu0 0.0
    %7209 = vmatprep.subr.mxu0 0.0
    %7210 = vmatpush1.msra.mxu0 0.0
    %7211 = vmatprep.subr.mxu0 0.0
    %7212 = vmatpush1.msra.mxu0 0.0
    %7213 = vmatprep.subr.mxu0 0.0
    %7214 = vmatpush1.msra.mxu0 0.0
    %7215 = vmatprep.subr.mxu0 0.0
    %7216 = vmatpush1.msra.mxu0 0.0
    %7217 = vmatprep.subr.mxu0 0.0
    %7218 = vmatpush1.msra.mxu0 0.0
    %7219 = vmatprep.subr.mxu0 0.0
    %7220 = vmatpush1.msra.mxu0 0.0
    %7221 = vmatprep.mubr.f32.mxu0 0.0
    %7222 = vmatmul.mubr.f32.gmra.mrb[0].mxu0 %v7155
    %v7223 = vpop.f32.mrb[0].mxu0
    %v7224 = vadd.f32 0.0, %v7223
    %v7225 = vpop.f32.mrb[0].mxu0
    %7226 = vdwg.mxu0
    %v7227 = vadd.f32 %v7139, %v7224
    %v7228 = vld [vmem:[#allocation8 + $0x5] sm:$0x1]
    %v7229 = vld [vmem:[#allocation8 + $0xd] sm:$0x1]
    %s7230 = scalar_lea.vmem %s5, 320
    %v7231 = vld [vmem:[%s7230] sm:$0xff]
    %v7232 = vld [vmem:[%s7230 + $0x8] sm:$0xff]
    %v7233 = vld [vmem:[%s7230 + $0x10] sm:$0xff]
    %v7234 = vld [vmem:[%s7230 + $0x18] sm:$0xff]
    %v7235 = vld [vmem:[%s7230 + $0x20] sm:$0xff]
    %v7236 = vld [vmem:[%s7230 + $0x28] sm:$0xff]
    %v7237 = vld [vmem:[%s7230 + $0x30] sm:$0xff]
    %v7238 = vld [vmem:[%s7230 + $0x38] sm:$0xff]
    %v7241 = vrot.slane %v7229, 7
    %v7242 = vsel %vm6814, %v7241, %v7228
    %v7243 = vsel %vm131, %v7242, 0
    %7245 = vmatprep.subr.mxu0 0.0
    %7246 = vmatpush1.msra.mxu0 %v7231
    %7247 = vmatprep.subr.mxu0 0.0
    %7248 = vmatpush1.msra.mxu0 %v7232
    %7249 = vmatprep.subr.mxu0 0.0
    %7250 = vmatpush1.msra.mxu0 %v7233
    %7251 = vmatprep.subr.mxu0 0.0
    %7252 = vmatpush1.msra.mxu0 %v7234
    %7253 = vmatprep.subr.mxu0 0.0
    %7254 = vmatpush1.msra.mxu0 %v7235
    %7255 = vmatprep.subr.mxu0 0.0
    %7256 = vmatpush1.msra.mxu0 %v7236
    %7257 = vmatprep.subr.mxu0 0.0
    %7258 = vmatpush1.msra.mxu0 %v7237
    %7259 = vmatprep.subr.mxu0 0.0
    %7260 = vmatpush1.msra.mxu0 %v7238
    %7261 = vmatprep.subr.mxu0 0.0
    %7262 = vmatpush1.msra.mxu0 0.0
    %7263 = vmatprep.subr.mxu0 0.0
    %7264 = vmatpush1.msra.mxu0 0.0
    %7265 = vmatprep.subr.mxu0 0.0
    %7266 = vmatpush1.msra.mxu0 0.0
    %7267 = vmatprep.subr.mxu0 0.0
    %7268 = vmatpush1.msra.mxu0 0.0
    %7269 = vmatprep.subr.mxu0 0.0
    %7270 = vmatpush1.msra.mxu0 0.0
    %7271 = vmatprep.subr.mxu0 0.0
    %7272 = vmatpush1.msra.mxu0 0.0
    %7273 = vmatprep.subr.mxu0 0.0
    %7274 = vmatpush1.msra.mxu0 0.0
    %7275 = vmatprep.subr.mxu0 0.0
    %7276 = vmatpush1.msra.mxu0 0.0
    %7277 = vmatprep.subr.mxu0 0.0
    %7278 = vmatpush1.msra.mxu0 0.0
    %7279 = vmatprep.subr.mxu0 0.0
    %7280 = vmatpush1.msra.mxu0 0.0
    %7281 = vmatprep.subr.mxu0 0.0
    %7282 = vmatpush1.msra.mxu0 0.0
    %7283 = vmatprep.subr.mxu0 0.0
    %7284 = vmatpush1.msra.mxu0 0.0
    %7285 = vmatprep.subr.mxu0 0.0
    %7286 = vmatpush1.msra.mxu0 0.0
    %7287 = vmatprep.subr.mxu0 0.0
    %7288 = vmatpush1.msra.mxu0 0.0
    %7289 = vmatprep.subr.mxu0 0.0
    %7290 = vmatpush1.msra.mxu0 0.0
    %7291 = vmatprep.subr.mxu0 0.0
    %7292 = vmatpush1.msra.mxu0 0.0
    %7293 = vmatprep.subr.mxu0 0.0
    %7294 = vmatpush1.msra.mxu0 0.0
    %7295 = vmatprep.subr.mxu0 0.0
    %7296 = vmatpush1.msra.mxu0 0.0
    %7297 = vmatprep.subr.mxu0 0.0
    %7298 = vmatpush1.msra.mxu0 0.0
    %7299 = vmatprep.subr.mxu0 0.0
    %7300 = vmatpush1.msra.mxu0 0.0
    %7301 = vmatprep.subr.mxu0 0.0
    %7302 = vmatpush1.msra.mxu0 0.0
    %7303 = vmatprep.subr.mxu0 0.0
    %7304 = vmatpush1.msra.mxu0 0.0
    %7305 = vmatprep.subr.mxu0 0.0
    %7306 = vmatpush1.msra.mxu0 0.0
    %7307 = vmatprep.subr.mxu0 0.0
    %7308 = vmatpush1.msra.mxu0 0.0
    %7309 = vmatprep.mubr.f32.mxu0 0.0
    %7310 = vmatmul.mubr.f32.gmra.mrb[0].mxu0 %v7243
    %v7311 = vpop.f32.mrb[0].mxu0
    %v7312 = vadd.f32 0.0, %v7311
    %v7313 = vpop.f32.mrb[0].mxu0
    %7314 = vdwg.mxu0
    %v7315 = vadd.f32 %v7227, %v7312
    %v7316 = vld [vmem:[#allocation8 + $0x6] sm:$0x1]
    %v7317 = vld [vmem:[#allocation8 + $0xe] sm:$0x1]
    %s7318 = scalar_lea.vmem %s5, 384
    %v7319 = vld [vmem:[%s7318] sm:$0xff]
    %v7320 = vld [vmem:[%s7318 + $0x8] sm:$0xff]
    %v7321 = vld [vmem:[%s7318 + $0x10] sm:$0xff]
    %v7322 = vld [vmem:[%s7318 + $0x18] sm:$0xff]
    %v7323 = vld [vmem:[%s7318 + $0x20] sm:$0xff]
    %v7324 = vld [vmem:[%s7318 + $0x28] sm:$0xff]
    %v7325 = vld [vmem:[%s7318 + $0x30] sm:$0xff]
    %v7326 = vld [vmem:[%s7318 + $0x38] sm:$0xff]
    %v7329 = vrot.slane %v7317, 7
    %v7330 = vsel %vm6814, %v7329, %v7316
    %v7331 = vsel %vm131, %v7330, 0
    %7333 = vmatprep.subr.mxu0 0.0
    %7334 = vmatpush1.msra.mxu0 %v7319
    %7335 = vmatprep.subr.mxu0 0.0
    %7336 = vmatpush1.msra.mxu0 %v7320
    %7337 = vmatprep.subr.mxu0 0.0
    %7338 = vmatpush1.msra.mxu0 %v7321
    %7339 = vmatprep.subr.mxu0 0.0
    %7340 = vmatpush1.msra.mxu0 %v7322
    %7341 = vmatprep.subr.mxu0 0.0
    %7342 = vmatpush1.msra.mxu0 %v7323
    %7343 = vmatprep.subr.mxu0 0.0
    %7344 = vmatpush1.msra.mxu0 %v7324
    %7345 = vmatprep.subr.mxu0 0.0
    %7346 = vmatpush1.msra.mxu0 %v7325
    %7347 = vmatprep.subr.mxu0 0.0
    %7348 = vmatpush1.msra.mxu0 %v7326
    %7349 = vmatprep.subr.mxu0 0.0
    %7350 = vmatpush1.msra.mxu0 0.0
    %7351 = vmatprep.subr.mxu0 0.0
    %7352 = vmatpush1.msra.mxu0 0.0
    %7353 = vmatprep.subr.mxu0 0.0
    %7354 = vmatpush1.msra.mxu0 0.0
    %7355 = vmatprep.subr.mxu0 0.0
    %7356 = vmatpush1.msra.mxu0 0.0
    %7357 = vmatprep.subr.mxu0 0.0
    %7358 = vmatpush1.msra.mxu0 0.0
    %7359 = vmatprep.subr.mxu0 0.0
    %7360 = vmatpush1.msra.mxu0 0.0
    %7361 = vmatprep.subr.mxu0 0.0
    %7362 = vmatpush1.msra.mxu0 0.0
    %7363 = vmatprep.subr.mxu0 0.0
    %7364 = vmatpush1.msra.mxu0 0.0
    %7365 = vmatprep.subr.mxu0 0.0
    %7366 = vmatpush1.msra.mxu0 0.0
    %7367 = vmatprep.subr.mxu0 0.0
    %7368 = vmatpush1.msra.mxu0 0.0
    %7369 = vmatprep.subr.mxu0 0.0
    %7370 = vmatpush1.msra.mxu0 0.0
    %7371 = vmatprep.subr.mxu0 0.0
    %7372 = vmatpush1.msra.mxu0 0.0
    %7373 = vmatprep.subr.mxu0 0.0
    %7374 = vmatpush1.msra.mxu0 0.0
    %7375 = vmatprep.subr.mxu0 0.0
    %7376 = vmatpush1.msra.mxu0 0.0
    %7377 = vmatprep.subr.mxu0 0.0
    %7378 = vmatpush1.msra.mxu0 0.0
    %7379 = vmatprep.subr.mxu0 0.0
    %7380 = vmatpush1.msra.mxu0 0.0
    %7381 = vmatprep.subr.mxu0 0.0
    %7382 = vmatpush1.msra.mxu0 0.0
    %7383 = vmatprep.subr.mxu0 0.0
    %7384 = vmatpush1.msra.mxu0 0.0
    %7385 = vmatprep.subr.mxu0 0.0
    %7386 = vmatpush1.msra.mxu0 0.0
    %7387 = vmatprep.subr.mxu0 0.0
    %7388 = vmatpush1.msra.mxu0 0.0
    %7389 = vmatprep.subr.mxu0 0.0
    %7390 = vmatpush1.msra.mxu0 0.0
    %7391 = vmatprep.subr.mxu0 0.0
    %7392 = vmatpush1.msra.mxu0 0.0
    %7393 = vmatprep.subr.mxu0 0.0
    %7394 = vmatpush1.msra.mxu0 0.0
    %7395 = vmatprep.subr.mxu0 0.0
    %7396 = vmatpush1.msra.mxu0 0.0
    %7397 = vmatprep.mubr.f32.mxu0 0.0
    %7398 = vmatmul.mubr.f32.gmra.mrb[0].mxu0 %v7331
    %v7399 = vpop.f32.mrb[0].mxu0
    %v7400 = vadd.f32 0.0, %v7399
    %v7401 = vpop.f32.mrb[0].mxu0
    %7402 = vdwg.mxu0
    %v7403 = vadd.f32 %v7315, %v7400
    %v7404 = vld [vmem:[#allocation8 + $0x7] sm:$0x1]
    %v7405 = vld [vmem:[#allocation8 + $0xf] sm:$0x1]
    %s7406 = scalar_lea.vmem %s5, 448
    %v7407 = vld [vmem:[%s7406] sm:$0xff]
    %v7408 = vld [vmem:[%s7406 + $0x8] sm:$0xff]
    %v7409 = vld [vmem:[%s7406 + $0x10] sm:$0xff]
    %v7410 = vld [vmem:[%s7406 + $0x18] sm:$0xff]
    %v7411 = vld [vmem:[%s7406 + $0x20] sm:$0xff]
    %v7412 = vld [vmem:[%s7406 + $0x28] sm:$0xff]
    %v7413 = vld [vmem:[%s7406 + $0x30] sm:$0xff]
    %v7414 = vld [vmem:[%s7406 + $0x38] sm:$0xff]
    %v7417 = vrot.slane %v7405, 7
    %v7418 = vsel %vm6814, %v7417, %v7404
    %v7419 = vsel %vm131, %v7418, 0
    %7421 = vmatprep.subr.mxu0 0.0
    %7422 = vmatpush1.msra.mxu0 %v7407
    %7423 = vmatprep.subr.mxu0 0.0
    %7424 = vmatpush1.msra.mxu0 %v7408
    %7425 = vmatprep.subr.mxu0 0.0
    %7426 = vmatpush1.msra.mxu0 %v7409
    %7427 = vmatprep.subr.mxu0 0.0
    %7428 = vmatpush1.msra.mxu0 %v7410
    %7429 = vmatprep.subr.mxu0 0.0
    %7430 = vmatpush1.msra.mxu0 %v7411
    %7431 = vmatprep.subr.mxu0 0.0
    %7432 = vmatpush1.msra.mxu0 %v7412
    %7433 = vmatprep.subr.mxu0 0.0
    %7434 = vmatpush1.msra.mxu0 %v7413
    %7435 = vmatprep.subr.mxu0 0.0
    %7436 = vmatpush1.msra.mxu0 %v7414
    %7437 = vmatprep.subr.mxu0 0.0
    %7438 = vmatpush1.msra.mxu0 0.0
    %7439 = vmatprep.subr.mxu0 0.0
    %7440 = vmatpush1.msra.mxu0 0.0
    %7441 = vmatprep.subr.mxu0 0.0
    %7442 = vmatpush1.msra.mxu0 0.0
    %7443 = vmatprep.subr.mxu0 0.0
    %7444 = vmatpush1.msra.mxu0 0.0
    %7445 = vmatprep.subr.mxu0 0.0
    %7446 = vmatpush1.msra.mxu0 0.0
    %7447 = vmatprep.subr.mxu0 0.0
    %7448 = vmatpush1.msra.mxu0 0.0
    %7449 = vmatprep.subr.mxu0 0.0
    %7450 = vmatpush1.msra.mxu0 0.0
    %7451 = vmatprep.subr.mxu0 0.0
    %7452 = vmatpush1.msra.mxu0 0.0
    %7453 = vmatprep.subr.mxu0 0.0
    %7454 = vmatpush1.msra.mxu0 0.0
    %7455 = vmatprep.subr.mxu0 0.0
    %7456 = vmatpush1.msra.mxu0 0.0
    %7457 = vmatprep.subr.mxu0 0.0
    %7458 = vmatpush1.msra.mxu0 0.0
    %7459 = vmatprep.subr.mxu0 0.0
    %7460 = vmatpush1.msra.mxu0 0.0
    %7461 = vmatprep.subr.mxu0 0.0
    %7462 = vmatpush1.msra.mxu0 0.0
    %7463 = vmatprep.subr.mxu0 0.0
    %7464 = vmatpush1.msra.mxu0 0.0
    %7465 = vmatprep.subr.mxu0 0.0
    %7466 = vmatpush1.msra.mxu0 0.0
    %7467 = vmatprep.subr.mxu0 0.0
    %7468 = vmatpush1.msra.mxu0 0.0
    %7469 = vmatprep.subr.mxu0 0.0
    %7470 = vmatpush1.msra.mxu0 0.0
    %7471 = vmatprep.subr.mxu0 0.0
    %7472 = vmatpush1.msra.mxu0 0.0
    %7473 = vmatprep.subr.mxu0 0.0
    %7474 = vmatpush1.msra.mxu0 0.0
    %7475 = vmatprep.subr.mxu0 0.0
    %7476 = vmatpush1.msra.mxu0 0.0
    %7477 = vmatprep.subr.mxu0 0.0
    %7478 = vmatpush1.msra.mxu0 0.0
    %7479 = vmatprep.subr.mxu0 0.0
    %7480 = vmatpush1.msra.mxu0 0.0
    %7481 = vmatprep.subr.mxu0 0.0
    %7482 = vmatpush1.msra.mxu0 0.0
    %7483 = vmatprep.subr.mxu0 0.0
    %7484 = vmatpush1.msra.mxu0 0.0
    %7485 = vmatprep.mubr.f32.mxu0 0.0
    %7486 = vmatmul.mubr.f32.gmra.mrb[0].mxu0 %v7419
    %v7487 = vpop.f32.mrb[0].mxu0
    %v7488 = vadd.f32 0.0, %v7487
    %v7489 = vpop.f32.mrb[0].mxu0
    %7490 = vdwg.mxu0
    %v7491 = vadd.f32 %v7403, %v7488
    %v7492 = vld [vmem:[%s6] sm:$0x1]
    %v7494 = vlaneseq
    %v7495 = vshrl.u32 %v7494, 7
    %v7496 = vsub.s32 0, %v7495
    %v7497 = vrot.slane %v7492, %v7496
    %v7499 = vadd.f32 %v7491, %v7497
    %vm7500 = vcmask 230400
    %7501 = vst.msk [vmem:[#allocation9] sm:$0x3] %vm7500, %v7499
    // Predicated region
    $region30: #{cnn_forward.1} parent=1 // pred_check
      _
    $region31: #{cnn_forward.1} parent=1 // pred_check_branch
      %7503 = sbr.rel (0) target = $region33
    $region32: #{cnn_forward.1} parent=1 // pred_region
      %s7505 = ssub.s32 32, 32
      %7506 = vsyncadd [#allocation10], %s7505
      %s7508 = sshll.u32 [#allocation9], 4
      %s7509 = int_to_ptr.vmem [resolvable:$true] %s7508
      %7511 = dma.vmem_to_hbm [thread:$0]  %s7509, 32, %s7, [#allocation10]
    $region33: #{cnn_forward.1} parent=1 // pred_fallthru
      _
    // Predicated region
    $region34: #{cnn_forward.1} parent=1 // pred_check
      _
    $region35: #{cnn_forward.1} parent=1 // pred_check_branch
      %7513 = sbr.rel (0) target = $region37
    $region36: #{cnn_forward.1} parent=1 // pred_region
      %7514 = dma.done [#allocation10], 32
    $region37: #{cnn_forward.1} parent=1 // pred_fallthru
      _
    %7515 = vsyncpa [#allocation10], 1

</llo_original>
